<compile_context>
chip_gen: v7x
topology: tpu7x:2x2x1
jax: 0.10.0
libtpu: 0.0.40
codegen_flags: <defaults>
</compile_context>

<pallas_src>
import math
import functools

import jax
import jax.numpy as jnp
from jax.experimental import pallas as pl
from jax.experimental.pallas import tpu as pltpu

# ----------------------- small config (consistent with the module) ----------
DICT_SIZE = 64
HIDDEN_DIM = 32
HEADS = 4
D_MODEL = HIDDEN_DIM * HEADS          # 128
IN_DIM = D_MODEL                      # embedding dim == d_model (see note above)
INNER_DIM = 64
FFN_DIM = INNER_DIM * HEADS           # 256
LAYERS = 2
MAX_LEN = 64
SEQ_LEN = 9                           # S: forward uses S-1 tokens + 1 label row
BATCH = 2
LN_EPS = 1e-5
SCALE = 1.0 / math.sqrt(HIDDEN_DIM)

_VMEM = pl.BlockSpec(memory_space=pltpu.MemorySpace.VMEM)
_SMEM = pl.BlockSpec(memory_space=pltpu.MemorySpace.SMEM)


# ----------------------------- in-kernel math helpers ------------------------
def _gelu(x):
    # tanh-approx GELU: the tanh goes to the EUP slot (free alongside MXU/VPU
    # work) instead of a long VALU erf-polynomial chain between the FFN dots.
    c = math.sqrt(2.0 / math.pi)
    return 0.5 * x * (1.0 + jnp.tanh(c * (x + 0.044715 * x * x * x)))


def _layernorm(x, g, b):
    mu = jnp.mean(x, axis=-1, keepdims=True)
    xc = x - mu
    var = jnp.mean(xc * xc, axis=-1, keepdims=True)
    return xc * jax.lax.rsqrt(var + LN_EPS) * g + b


# ------------------------------- fused kernel --------------------------------
def _nodegpt_kernel(x_ref,
                    sa_wqkv_ref, sa_bqkv_ref, sa_wo_ref, sa_bo_ref,
                    ca_wq_ref, ca_bq_ref, ca_wkv_ref, ca_bkv_ref, ca_wo_ref, ca_bo_ref,
                    n1g_ref, n1b_ref, n2g_ref, n2b_ref, n3g_ref, n3b_ref,
                    w1_ref, b1_ref, w2_ref, b2_ref,
                    out_w_ref, out_b_ref,
                    labels_ref,
                    loss_ref,
                    *, batch, seq_rows):
    """Whole NodeGPT forward (post-tokenization) + cross-entropy in one kernel.

    x_ref:      (batch*seq_rows, D_MODEL) tokenized input, batch-major rows.
    labels_ref: (batch,) int32 in SMEM.
    loss_ref:   (1, 1) f32 output.
    """
    rows = batch * seq_rows

    # -------- hoisted constants (built once, reused everywhere) --------
    lane = jax.lax.broadcasted_iota(jnp.int32, (1, D_MODEL), 1)
    head_masks = [
        jnp.where((lane >= h * HIDDEN_DIM) & (lane < (h + 1) * HIDDEN_DIM),
                  1.0, 0.0).astype(jnp.float32)
        for h in range(HEADS)
    ]
    ridx = jax.lax.broadcasted_iota(jnp.int32, (rows, 1), 0)
    cidx = jax.lax.broadcasted_iota(jnp.int32, (1, rows), 1)
    same_batch = jnp.zeros((rows, rows), jnp.float32)
    for b in range(batch):
        rin = (ridx >= b * seq_rows) & (ridx < (b + 1) * seq_rows)
        cin = (cidx >= b * seq_rows) & (cidx < (b + 1) * seq_rows)
        same_batch = same_batch + jnp.where(rin & cin, 1.0, 0.0)
    batch_mask = jnp.where(same_batch > 0.5, 0.0, -1e30)   # block-diagonal

    def _proj(x, w_ref, b_ref, l):
        # bf16 weights, bf16 activations at the MXU inputs, f32 accumulation.
        w = w_ref[l] if l is not None else w_ref[...]
        b = b_ref[l] if l is not None else b_ref[...]
        return (jnp.dot(x.astype(jnp.bfloat16), w,
                        preferred_element_type=jnp.float32) + b)

    def _mha(q, k, v):
        # All batches attend at once on the fused (rows, 128) slab; cross-batch
        # score blocks are removed by the additive block-diagonal mask.  The
        # per-head lane masks make each dot exact per-head attention while
        # keeping every operand 128 lanes wide; summing the head outputs into
        # disjoint lane blocks IS the head concatenation.
        # TODO(synk): the optional head-stacked single-dot variant is skipped
        # because with seq_rows=10 the stacking boundaries are not
        # (8,128)-tile aligned (would force relayout copies).
        o = jnp.zeros((rows, D_MODEL), jnp.float32)
        for h in range(HEADS):
            s = jax.lax.dot_general(q, k * head_masks[h],
                                    (((1,), (1,)), ((), ())),
                                    preferred_element_type=jnp.float32)
            s = s * SCALE + batch_mask
            m = jnp.max(s, axis=-1, keepdims=True)
            p = jnp.exp(s - m)
            p = p * pl.reciprocal(jnp.sum(p, axis=-1, keepdims=True), approx=True)
            o = o + jnp.dot(p, v * head_masks[h],
                            preferred_element_type=jnp.float32)
        return o

    mem = x_ref[...]                    # tokenized sequence = cross-attn memory
    x = mem
    for l in range(LAYERS):
        # ---- self-attention (fused QKV projection, N=384) ----
        qkv = _proj(x, sa_wqkv_ref, sa_bqkv_ref, l)
        sa = _mha(qkv[:, 0:D_MODEL],
                  qkv[:, D_MODEL:2 * D_MODEL],
                  qkv[:, 2 * D_MODEL:3 * D_MODEL])
        sa = _proj(sa, sa_wo_ref, sa_bo_ref, l)
        x = _layernorm(x + sa, n1g_ref[l], n1b_ref[l])

        # ---- cross-attention ----
        # TODO(synk): reference calls nn.TransformerDecoder(z) without the
        # required `memory` arg (would raise in PyTorch); we use the tokenized
        # sequence itself as cross-attention memory.
        q = _proj(x, ca_wq_ref, ca_bq_ref, l)
        kv = _proj(mem, ca_wkv_ref, ca_bkv_ref, l)              # fused KV, N=256
        ca = _mha(q, kv[:, 0:D_MODEL], kv[:, D_MODEL:2 * D_MODEL])
        ca = _proj(ca, ca_wo_ref, ca_bo_ref, l)
        x = _layernorm(x + ca, n2g_ref[l], n2b_ref[l])

        # ---- feed-forward (tanh-approx GELU) ----
        h = _gelu(_proj(x, w1_ref, b1_ref, l))
        ff = _proj(h, w2_ref, b2_ref, l)
        x = _layernorm(x + ff, n3g_ref[l], n3b_ref[l])

    # ---- batched output head + row-masked cross-entropy (fused) ----
    logits = _proj(x, out_w_ref, out_b_ref, None)               # (rows, 64)
    m = jnp.max(logits, axis=-1, keepdims=True)
    lse = m + jnp.log(jnp.sum(jnp.exp(logits - m), axis=-1, keepdims=True))
    ids = jax.lax.broadcasted_iota(jnp.int32, (rows, DICT_SIZE), 1)
    label_col = jnp.zeros((rows, 1), jnp.int32)
    row_sel = jnp.zeros((rows, 1), jnp.float32)
    for b in range(batch):
        is_last = ridx == (b * seq_rows + seq_rows - 1)         # (rows, 1) bool
        label_col = jnp.where(is_last, labels_ref[b], label_col)
        row_sel = row_sel + jnp.where(is_last, 1.0, 0.0)
    picked = jnp.sum(jnp.where(ids == label_col, logits, 0.0),
                     axis=-1, keepdims=True)                    # (rows, 1)
    total = jnp.sum((lse - picked) * row_sel, axis=0, keepdims=True)   # (1, 1)
    loss_ref[...] = total * (1.0 / batch)


# --------------------------- forward (thin JAX glue) --------------------------
def _cost_estimate(args, batch, seq_rows):
    rows = batch * seq_rows
    wcols = 3 * D_MODEL + D_MODEL + D_MODEL + 2 * D_MODEL + D_MODEL + FFN_DIM
    mm = 2 * rows * D_MODEL * wcols + 2 * rows * FFN_DIM * D_MODEL
    attn = 2 * HEADS * 2 * (2 * rows * rows * D_MODEL)   # 2 attn blocks / layer
    flops = LAYERS * (mm + attn) + 2 * rows * D_MODEL * DICT_SIZE
    transcendentals = (LAYERS * (2 * HEADS * rows * rows + rows * FFN_DIM)
                       + rows * DICT_SIZE)
    bytes_accessed = sum(int(a.size) * a.dtype.itemsize for a in args) + 4
    return pl.CostEstimate(flops=int(flops),
                           transcendentals=int(transcendentals),
                           bytes_accessed=int(bytes_accessed))


def node_gpt_forward(params, sequences):
    """sequences: (S, B) int32 node ids. Returns scalar cross-entropy loss."""
    seq = sequences[:-1]                     # (S-1, B)
    y = sequences[-1].astype(jnp.int32)      # (B,)
    s, b = seq.shape
    t = s + 2                                # start + tokens + end

    # _tokenize_seq: embedding gather + positional encoding; dropout = identity.
    z = params["embed"][seq] + params["pe"][:s]                    # (S-1, B, D)
    st = jnp.broadcast_to(params["start"][None, None, :], (1, b, D_MODEL))
    en = jnp.broadcast_to(params["end"][None, None, :], (1, b, D_MODEL))
    z = jnp.concatenate([st, z, en], axis=0)                       # (T, B, D)
    x0 = z.transpose(1, 0, 2).reshape(b * t, D_MODEL)              # batch-major rows

    args = (x0,
            params["sa_wqkv"], params["sa_bqkv"], params["sa_wo"], params["sa_bo"],
            params["ca_wq"], params["ca_bq"], params["ca_wkv"], params["ca_bkv"],
            params["ca_wo"], params["ca_bo"],
            params["n1_g"], params["n1_b"], params["n2_g"], params["n2_b"],
            params["n3_g"], params["n3_b"],
            params["w1"], params["b1"], params["w2"], params["b2"],
            params["out_w"], params["out_b"])

    kernel = functools.partial(_nodegpt_kernel, batch=b, seq_rows=t)
    # TODO(synk): on v7x a grid=(BATCH,) parallel split could light up the
    # second TensorCore; kept gridless here since it only adds per-step
    # overhead on single-TC v5e/v6e.
    loss = pl.pallas_call(
        kernel,
        out_shape=jax.ShapeDtypeStruct((1, 1), jnp.float32),
        in_specs=[_VMEM] * len(args) + [_SMEM],
        out_specs=_VMEM,
        compiler_params=pltpu.CompilerParams(vmem_limit_bytes=16 * 1024 * 1024),
        cost_estimate=_cost_estimate(args, b, t),
    )(*args, y)
    return loss[0, 0]


# ------------------------------ parameter init --------------------------------
def init_params(key):
    def nrm(k, shape, scale=0.02, dtype=jnp.float32):
        return (scale * jax.random.normal(k, shape, dtype=jnp.float32)).astype(dtype)

    keys = iter(jax.random.split(key, 32))
    p = {}
    p["embed"] = nrm(next(keys), (DICT_SIZE, IN_DIM), 1.0)

    # PositionalEncoding buffer: sin on even, cos on odd dims.
    position = jnp.arange(MAX_LEN, dtype=jnp.float32)[:, None]
    div_term = jnp.exp(jnp.arange(0, IN_DIM, 2, dtype=jnp.float32)
                       * (-math.log(10000.0) / IN_DIM))
    pe = jnp.stack([jnp.sin(position * div_term),
                    jnp.cos(position * div_term)], axis=-1).reshape(MAX_LEN, IN_DIM)
    p["pe"] = pe[:, None, :]

    xav = math.sqrt(2.0 / (2.0 * D_MODEL))          # xavier_normal_-style std
    p["start"] = nrm(next(keys), (D_MODEL,), xav)
    p["end"] = nrm(next(keys), (D_MODEL,), xav)
    # NOTE: self.proj is defined in __init__ but never used by forward(); omitted.

    L = LAYERS
    bf = jnp.bfloat16   # matmul weights stored bf16 (halved weight DMA on v5e/v6e)
    # Self-attention: QKV fused into one (D, 3D) weight per layer (stacked on L).
    p["sa_wqkv"] = nrm(next(keys), (L, D_MODEL, 3 * D_MODEL), dtype=bf)
    p["sa_bqkv"] = jnp.zeros((L, 1, 3 * D_MODEL), jnp.float32)
    p["sa_wo"] = nrm(next(keys), (L, D_MODEL, D_MODEL), dtype=bf)
    p["sa_bo"] = jnp.zeros((L, 1, D_MODEL), jnp.float32)
    # Cross-attention: Q separate, KV fused (memory-side projection).
    p["ca_wq"] = nrm(next(keys), (L, D_MODEL, D_MODEL), dtype=bf)
    p["ca_bq"] = jnp.zeros((L, 1, D_MODEL), jnp.float32)
    p["ca_wkv"] = nrm(next(keys), (L, D_MODEL, 2 * D_MODEL), dtype=bf)
    p["ca_bkv"] = jnp.zeros((L, 1, 2 * D_MODEL), jnp.float32)
    p["ca_wo"] = nrm(next(keys), (L, D_MODEL, D_MODEL), dtype=bf)
    p["ca_bo"] = jnp.zeros((L, 1, D_MODEL), jnp.float32)
    # Feed-forward.
    p["w1"] = nrm(next(keys), (L, D_MODEL, FFN_DIM), dtype=bf)
    p["b1"] = jnp.zeros((L, 1, FFN_DIM), jnp.float32)
    p["w2"] = nrm(next(keys), (L, FFN_DIM, D_MODEL), dtype=bf)
    p["b2"] = jnp.zeros((L, 1, D_MODEL), jnp.float32)
    # LayerNorms (f32).
    for n in ("n1", "n2", "n3"):
        p[n + "_g"] = jnp.ones((L, 1, D_MODEL), jnp.float32)
        p[n + "_b"] = jnp.zeros((L, 1, D_MODEL), jnp.float32)
    # Output head.
    p["out_w"] = nrm(next(keys), (D_MODEL, DICT_SIZE), dtype=bf)
    p["out_b"] = jnp.zeros((1, DICT_SIZE), jnp.float32)
    return p


# ----------------------------------- main --------------------------------------
if __name__ == "__main__":
    key = jax.random.PRNGKey(0)
    pkey, skey = jax.random.split(key)
    params = init_params(pkey)
    sequences = jax.random.randint(skey, (SEQ_LEN, BATCH), 0, DICT_SIZE,
                                   dtype=jnp.int32)      # (S, B) node ids
    loss = jax.jit(node_gpt_forward)(params, sequences)
    jax.block_until_ready(loss)
    print("KERNEL_OK")
</pallas_src>

<mosaic_0001>
module attributes {stable_mosaic.version = 11 : i64} {
  func.func @_nodegpt_kernel(%arg0: memref<20x128xf32, #tpu.memory_space<vmem>>, %arg1: memref<2x128x384xbf16, #tpu.memory_space<vmem>>, %arg2: memref<2x1x384xf32, #tpu.memory_space<vmem>>, %arg3: memref<2x128x128xbf16, #tpu.memory_space<vmem>>, %arg4: memref<2x1x128xf32, #tpu.memory_space<vmem>>, %arg5: memref<2x128x128xbf16, #tpu.memory_space<vmem>>, %arg6: memref<2x1x128xf32, #tpu.memory_space<vmem>>, %arg7: memref<2x128x256xbf16, #tpu.memory_space<vmem>>, %arg8: memref<2x1x256xf32, #tpu.memory_space<vmem>>, %arg9: memref<2x128x128xbf16, #tpu.memory_space<vmem>>, %arg10: memref<2x1x128xf32, #tpu.memory_space<vmem>>, %arg11: memref<2x1x128xf32, #tpu.memory_space<vmem>>, %arg12: memref<2x1x128xf32, #tpu.memory_space<vmem>>, %arg13: memref<2x1x128xf32, #tpu.memory_space<vmem>>, %arg14: memref<2x1x128xf32, #tpu.memory_space<vmem>>, %arg15: memref<2x1x128xf32, #tpu.memory_space<vmem>>, %arg16: memref<2x1x128xf32, #tpu.memory_space<vmem>>, %arg17: memref<2x128x256xbf16, #tpu.memory_space<vmem>>, %arg18: memref<2x1x256xf32, #tpu.memory_space<vmem>>, %arg19: memref<2x256x128xbf16, #tpu.memory_space<vmem>>, %arg20: memref<2x1x128xf32, #tpu.memory_space<vmem>>, %arg21: memref<128x64xbf16, #tpu.memory_space<vmem>>, %arg22: memref<1x64xf32, #tpu.memory_space<vmem>>, %arg23: memref<2xi32, #tpu.memory_space<smem>>, %arg24: memref<1x1xf32, #tpu.memory_space<vmem>>) attributes {dimension_semantics = [], scalar_prefetch = 0 : i64, scratch_operands = 0 : i64, tpu.core_type = #tpu.core_type<tc>} {
    %0 = tpu.iota {dimensions = array<i32: 1>} : vector<1x128xi32>
    %c0_i32 = arith.constant 0 : i32
    %1 = vector.broadcast %c0_i32 : i32 to vector<1x128xi32>
    %2 = arith.cmpi sge, %0, %1 : vector<1x128xi32>
    %c32_i32 = arith.constant 32 : i32
    %3 = vector.broadcast %c32_i32 : i32 to vector<1x128xi32>
    %4 = arith.cmpi slt, %0, %3 : vector<1x128xi32>
    %5 = arith.andi %2, %4 : vector<1x128xi1>
    %cst = arith.constant 1.000000e+00 : f32
    %cst_0 = arith.constant 0.000000e+00 : f32
    %6 = vector.broadcast %cst : f32 to vector<1x128xf32>
    %7 = vector.broadcast %cst_0 : f32 to vector<1x128xf32>
    %8 = arith.select %5, %6, %7 : vector<1x128xi1>, vector<1x128xf32>
    %c32_i32_1 = arith.constant 32 : i32
    %9 = vector.broadcast %c32_i32_1 : i32 to vector<1x128xi32>
    %10 = arith.cmpi sge, %0, %9 : vector<1x128xi32>
    %c64_i32 = arith.constant 64 : i32
    %11 = vector.broadcast %c64_i32 : i32 to vector<1x128xi32>
    %12 = arith.cmpi slt, %0, %11 : vector<1x128xi32>
    %13 = arith.andi %10, %12 : vector<1x128xi1>
    %cst_2 = arith.constant 1.000000e+00 : f32
    %cst_3 = arith.constant 0.000000e+00 : f32
    %14 = vector.broadcast %cst_2 : f32 to vector<1x128xf32>
    %15 = vector.broadcast %cst_3 : f32 to vector<1x128xf32>
    %16 = arith.select %13, %14, %15 : vector<1x128xi1>, vector<1x128xf32>
    %c64_i32_4 = arith.constant 64 : i32
    %17 = vector.broadcast %c64_i32_4 : i32 to vector<1x128xi32>
    %18 = arith.cmpi sge, %0, %17 : vector<1x128xi32>
    %c96_i32 = arith.constant 96 : i32
    %19 = vector.broadcast %c96_i32 : i32 to vector<1x128xi32>
    %20 = arith.cmpi slt, %0, %19 : vector<1x128xi32>
    %21 = arith.andi %18, %20 : vector<1x128xi1>
    %cst_5 = arith.constant 1.000000e+00 : f32
    %cst_6 = arith.constant 0.000000e+00 : f32
    %22 = vector.broadcast %cst_5 : f32 to vector<1x128xf32>
    %23 = vector.broadcast %cst_6 : f32 to vector<1x128xf32>
    %24 = arith.select %21, %22, %23 : vector<1x128xi1>, vector<1x128xf32>
    %c96_i32_7 = arith.constant 96 : i32
    %25 = vector.broadcast %c96_i32_7 : i32 to vector<1x128xi32>
    %26 = arith.cmpi sge, %0, %25 : vector<1x128xi32>
    %c128_i32 = arith.constant 128 : i32
    %27 = vector.broadcast %c128_i32 : i32 to vector<1x128xi32>
    %28 = arith.cmpi slt, %0, %27 : vector<1x128xi32>
    %29 = arith.andi %26, %28 : vector<1x128xi1>
    %cst_8 = arith.constant 1.000000e+00 : f32
    %cst_9 = arith.constant 0.000000e+00 : f32
    %30 = vector.broadcast %cst_8 : f32 to vector<1x128xf32>
    %31 = vector.broadcast %cst_9 : f32 to vector<1x128xf32>
    %32 = arith.select %29, %30, %31 : vector<1x128xi1>, vector<1x128xf32>
    %33 = tpu.iota {dimensions = array<i32: 0>} : vector<20x1xi32>
    %34 = tpu.iota {dimensions = array<i32: 1>} : vector<1x20xi32>
    %cst_10 = arith.constant 0.000000e+00 : f32
    %35 = vector.broadcast %cst_10 : f32 to vector<20x20xf32>
    %c0_i32_11 = arith.constant 0 : i32
    %36 = vector.broadcast %c0_i32_11 : i32 to vector<20x1xi32>
    %37 = arith.cmpi sge, %33, %36 : vector<20x1xi32>
    %c10_i32 = arith.constant 10 : i32
    %38 = vector.broadcast %c10_i32 : i32 to vector<20x1xi32>
    %39 = arith.cmpi slt, %33, %38 : vector<20x1xi32>
    %40 = arith.andi %37, %39 : vector<20x1xi1>
    %c0_i32_12 = arith.constant 0 : i32
    %41 = vector.broadcast %c0_i32_12 : i32 to vector<1x20xi32>
    %42 = arith.cmpi sge, %34, %41 : vector<1x20xi32>
    %c10_i32_13 = arith.constant 10 : i32
    %43 = vector.broadcast %c10_i32_13 : i32 to vector<1x20xi32>
    %44 = arith.cmpi slt, %34, %43 : vector<1x20xi32>
    %45 = arith.andi %42, %44 : vector<1x20xi1>
    %46 = vector.broadcast %40 : vector<20x1xi1> to vector<20x20xi1>
    %47 = vector.broadcast %45 : vector<1x20xi1> to vector<20x20xi1>
    %48 = arith.andi %46, %47 : vector<20x20xi1>
    %cst_14 = arith.constant 1.000000e+00 : f32
    %cst_15 = arith.constant 0.000000e+00 : f32
    %49 = vector.broadcast %cst_14 : f32 to vector<20x20xf32>
    %50 = vector.broadcast %cst_15 : f32 to vector<20x20xf32>
    %51 = arith.select %48, %49, %50 : vector<20x20xi1>, vector<20x20xf32>
    %52 = arith.addf %35, %51 : vector<20x20xf32>
    %c10_i32_16 = arith.constant 10 : i32
    %53 = vector.broadcast %c10_i32_16 : i32 to vector<20x1xi32>
    %54 = arith.cmpi sge, %33, %53 : vector<20x1xi32>
    %c20_i32 = arith.constant 20 : i32
    %55 = vector.broadcast %c20_i32 : i32 to vector<20x1xi32>
    %56 = arith.cmpi slt, %33, %55 : vector<20x1xi32>
    %57 = arith.andi %54, %56 : vector<20x1xi1>
    %c10_i32_17 = arith.constant 10 : i32
    %58 = vector.broadcast %c10_i32_17 : i32 to vector<1x20xi32>
    %59 = arith.cmpi sge, %34, %58 : vector<1x20xi32>
    %c20_i32_18 = arith.constant 20 : i32
    %60 = vector.broadcast %c20_i32_18 : i32 to vector<1x20xi32>
    %61 = arith.cmpi slt, %34, %60 : vector<1x20xi32>
    %62 = arith.andi %59, %61 : vector<1x20xi1>
    %63 = vector.broadcast %57 : vector<20x1xi1> to vector<20x20xi1>
    %64 = vector.broadcast %62 : vector<1x20xi1> to vector<20x20xi1>
    %65 = arith.andi %63, %64 : vector<20x20xi1>
    %cst_19 = arith.constant 1.000000e+00 : f32
    %cst_20 = arith.constant 0.000000e+00 : f32
    %66 = vector.broadcast %cst_19 : f32 to vector<20x20xf32>
    %67 = vector.broadcast %cst_20 : f32 to vector<20x20xf32>
    %68 = arith.select %65, %66, %67 : vector<20x20xi1>, vector<20x20xf32>
    %69 = arith.addf %52, %68 : vector<20x20xf32>
    %cst_21 = arith.constant 5.000000e-01 : f32
    %70 = vector.broadcast %cst_21 : f32 to vector<20x20xf32>
    %71 = arith.cmpf ogt, %69, %70 : vector<20x20xf32>
    %cst_22 = arith.constant 0.000000e+00 : f32
    %cst_23 = arith.constant -1.000000e+30 : f32
    %72 = vector.broadcast %cst_22 : f32 to vector<20x20xf32>
    %73 = vector.broadcast %cst_23 : f32 to vector<20x20xf32>
    %74 = arith.select %71, %72, %73 : vector<20x20xi1>, vector<20x20xf32>
    %c0 = arith.constant 0 : index
    %c0_24 = arith.constant 0 : index
    %75 = vector.load %arg0[%c0, %c0_24] : memref<20x128xf32, #tpu.memory_space<vmem>>, vector<20x128xf32>
    %c0_25 = arith.constant 0 : index
    %c0_26 = arith.constant 0 : index
    %c0_27 = arith.constant 0 : index
    %76 = vector.load %arg1[%c0_25, %c0_26, %c0_27] : memref<2x128x384xbf16, #tpu.memory_space<vmem>>, vector<1x128x384xbf16>
    %77 = vector.shape_cast %76 : vector<1x128x384xbf16> to vector<128x384xbf16>
    %c0_28 = arith.constant 0 : index
    %c0_29 = arith.constant 0 : index
    %c0_30 = arith.constant 0 : index
    %78 = vector.load %arg2[%c0_28, %c0_29, %c0_30] : memref<2x1x384xf32, #tpu.memory_space<vmem>>, vector<1x1x384xf32>
    %79 = vector.shape_cast %78 : vector<1x1x384xf32> to vector<1x384xf32>
    %80 = arith.truncf %75 : vector<20x128xf32> to vector<20x128xbf16>
    %cst_31 = arith.constant dense<0.000000e+00> : vector<20x384xf32>
    %81 = tpu.matmul %80, %77, %cst_31 {dimension_numbers = #tpu.dot_dimension_numbers<[1], [0], [0], [1], [0, 0, 1, 1], [], []>} : vector<20x128xbf16>, vector<128x384xbf16>, vector<20x384xf32> -> vector<20x384xf32>
    %82 = vector.broadcast %79 : vector<1x384xf32> to vector<20x384xf32>
    %83 = arith.addf %81, %82 : vector<20x384xf32>
    %84 = vector.extract_strided_slice %83 {offsets = [0, 0], sizes = [20, 128], strides = [1, 1]} : vector<20x384xf32> to vector<20x128xf32>
    %85 = vector.extract_strided_slice %83 {offsets = [0, 128], sizes = [20, 128], strides = [1, 1]} : vector<20x384xf32> to vector<20x128xf32>
    %86 = vector.extract_strided_slice %83 {offsets = [0, 256], sizes = [20, 128], strides = [1, 1]} : vector<20x384xf32> to vector<20x128xf32>
    %cst_32 = arith.constant 0.000000e+00 : f32
    %87 = vector.broadcast %cst_32 : f32 to vector<20x128xf32>
    %88 = vector.broadcast %8 : vector<1x128xf32> to vector<20x128xf32>
    %89 = arith.mulf %85, %88 : vector<20x128xf32>
    %cst_33 = arith.constant dense<0.000000e+00> : vector<20x20xf32>
    %90 = tpu.matmul %84, %89, %cst_33 {dimension_numbers = #tpu.dot_dimension_numbers<[1], [1], [0], [0], [0, 0, 1, 0], [], []>} : vector<20x128xf32>, vector<20x128xf32>, vector<20x20xf32> -> vector<20x20xf32>
    %cst_34 = arith.constant 0.176776692 : f32
    %91 = vector.broadcast %cst_34 : f32 to vector<20x20xf32>
    %92 = arith.mulf %90, %91 : vector<20x20xf32>
    %93 = arith.addf %92, %74 : vector<20x20xf32>
    %cst_35 = arith.constant dense<0xFF800000> : vector<20xf32>
    %94 = vector.multi_reduction <maximumf>, %93, %cst_35 [1] : vector<20x20xf32> to vector<20xf32>
    %95 = vector.shape_cast %94 : vector<20xf32> to vector<20x1xf32>
    %96 = vector.broadcast %95 : vector<20x1xf32> to vector<20x20xf32>
    %97 = arith.subf %93, %96 : vector<20x20xf32>
    %98 = math.exp %97 : vector<20x20xf32>
    %cst_36 = arith.constant dense<0.000000e+00> : vector<20xf32>
    %99 = vector.multi_reduction <add>, %98, %cst_36 [1] : vector<20x20xf32> to vector<20xf32>
    %100 = vector.shape_cast %99 : vector<20xf32> to vector<20x1xf32>
    %101 = tpu.reciprocal %100 {approx = true} : vector<20x1xf32> -> vector<20x1xf32>
    %102 = vector.broadcast %101 : vector<20x1xf32> to vector<20x20xf32>
    %103 = arith.mulf %98, %102 : vector<20x20xf32>
    %104 = vector.broadcast %8 : vector<1x128xf32> to vector<20x128xf32>
    %105 = arith.mulf %86, %104 : vector<20x128xf32>
    %cst_37 = arith.constant dense<0.000000e+00> : vector<20x128xf32>
    %106 = tpu.matmul %103, %105, %cst_37 {dimension_numbers = #tpu.dot_dimension_numbers<[1], [0], [0], [1], [0, 0, 1, 1], [], []>} : vector<20x20xf32>, vector<20x128xf32>, vector<20x128xf32> -> vector<20x128xf32>
    %107 = arith.addf %87, %106 : vector<20x128xf32>
    %108 = vector.broadcast %16 : vector<1x128xf32> to vector<20x128xf32>
    %109 = arith.mulf %85, %108 : vector<20x128xf32>
    %cst_38 = arith.constant dense<0.000000e+00> : vector<20x20xf32>
    %110 = tpu.matmul %84, %109, %cst_38 {dimension_numbers = #tpu.dot_dimension_numbers<[1], [1], [0], [0], [0, 0, 1, 0], [], []>} : vector<20x128xf32>, vector<20x128xf32>, vector<20x20xf32> -> vector<20x20xf32>
    %cst_39 = arith.constant 0.176776692 : f32
    %111 = vector.broadcast %cst_39 : f32 to vector<20x20xf32>
    %112 = arith.mulf %110, %111 : vector<20x20xf32>
    %113 = arith.addf %112, %74 : vector<20x20xf32>
    %cst_40 = arith.constant dense<0xFF800000> : vector<20xf32>
    %114 = vector.multi_reduction <maximumf>, %113, %cst_40 [1] : vector<20x20xf32> to vector<20xf32>
    %115 = vector.shape_cast %114 : vector<20xf32> to vector<20x1xf32>
    %116 = vector.broadcast %115 : vector<20x1xf32> to vector<20x20xf32>
    %117 = arith.subf %113, %116 : vector<20x20xf32>
    %118 = math.exp %117 : vector<20x20xf32>
    %cst_41 = arith.constant dense<0.000000e+00> : vector<20xf32>
    %119 = vector.multi_reduction <add>, %118, %cst_41 [1] : vector<20x20xf32> to vector<20xf32>
    %120 = vector.shape_cast %119 : vector<20xf32> to vector<20x1xf32>
    %121 = tpu.reciprocal %120 {approx = true} : vector<20x1xf32> -> vector<20x1xf32>
    %122 = vector.broadcast %121 : vector<20x1xf32> to vector<20x20xf32>
    %123 = arith.mulf %118, %122 : vector<20x20xf32>
    %124 = vector.broadcast %16 : vector<1x128xf32> to vector<20x128xf32>
    %125 = arith.mulf %86, %124 : vector<20x128xf32>
    %cst_42 = arith.constant dense<0.000000e+00> : vector<20x128xf32>
    %126 = tpu.matmul %123, %125, %cst_42 {dimension_numbers = #tpu.dot_dimension_numbers<[1], [0], [0], [1], [0, 0, 1, 1], [], []>} : vector<20x20xf32>, vector<20x128xf32>, vector<20x128xf32> -> vector<20x128xf32>
    %127 = arith.addf %107, %126 : vector<20x128xf32>
    %128 = vector.broadcast %24 : vector<1x128xf32> to vector<20x128xf32>
    %129 = arith.mulf %85, %128 : vector<20x128xf32>
    %cst_43 = arith.constant dense<0.000000e+00> : vector<20x20xf32>
    %130 = tpu.matmul %84, %129, %cst_43 {dimension_numbers = #tpu.dot_dimension_numbers<[1], [1], [0], [0], [0, 0, 1, 0], [], []>} : vector<20x128xf32>, vector<20x128xf32>, vector<20x20xf32> -> vector<20x20xf32>
    %cst_44 = arith.constant 0.176776692 : f32
    %131 = vector.broadcast %cst_44 : f32 to vector<20x20xf32>
    %132 = arith.mulf %130, %131 : vector<20x20xf32>
    %133 = arith.addf %132, %74 : vector<20x20xf32>
    %cst_45 = arith.constant dense<0xFF800000> : vector<20xf32>
    %134 = vector.multi_reduction <maximumf>, %133, %cst_45 [1] : vector<20x20xf32> to vector<20xf32>
    %135 = vector.shape_cast %134 : vector<20xf32> to vector<20x1xf32>
    %136 = vector.broadcast %135 : vector<20x1xf32> to vector<20x20xf32>
    %137 = arith.subf %133, %136 : vector<20x20xf32>
    %138 = math.exp %137 : vector<20x20xf32>
    %cst_46 = arith.constant dense<0.000000e+00> : vector<20xf32>
    %139 = vector.multi_reduction <add>, %138, %cst_46 [1] : vector<20x20xf32> to vector<20xf32>
    %140 = vector.shape_cast %139 : vector<20xf32> to vector<20x1xf32>
    %141 = tpu.reciprocal %140 {approx = true} : vector<20x1xf32> -> vector<20x1xf32>
    %142 = vector.broadcast %141 : vector<20x1xf32> to vector<20x20xf32>
    %143 = arith.mulf %138, %142 : vector<20x20xf32>
    %144 = vector.broadcast %24 : vector<1x128xf32> to vector<20x128xf32>
    %145 = arith.mulf %86, %144 : vector<20x128xf32>
    %cst_47 = arith.constant dense<0.000000e+00> : vector<20x128xf32>
    %146 = tpu.matmul %143, %145, %cst_47 {dimension_numbers = #tpu.dot_dimension_numbers<[1], [0], [0], [1], [0, 0, 1, 1], [], []>} : vector<20x20xf32>, vector<20x128xf32>, vector<20x128xf32> -> vector<20x128xf32>
    %147 = arith.addf %127, %146 : vector<20x128xf32>
    %148 = vector.broadcast %32 : vector<1x128xf32> to vector<20x128xf32>
    %149 = arith.mulf %85, %148 : vector<20x128xf32>
    %cst_48 = arith.constant dense<0.000000e+00> : vector<20x20xf32>
    %150 = tpu.matmul %84, %149, %cst_48 {dimension_numbers = #tpu.dot_dimension_numbers<[1], [1], [0], [0], [0, 0, 1, 0], [], []>} : vector<20x128xf32>, vector<20x128xf32>, vector<20x20xf32> -> vector<20x20xf32>
    %cst_49 = arith.constant 0.176776692 : f32
    %151 = vector.broadcast %cst_49 : f32 to vector<20x20xf32>
    %152 = arith.mulf %150, %151 : vector<20x20xf32>
    %153 = arith.addf %152, %74 : vector<20x20xf32>
    %cst_50 = arith.constant dense<0xFF800000> : vector<20xf32>
    %154 = vector.multi_reduction <maximumf>, %153, %cst_50 [1] : vector<20x20xf32> to vector<20xf32>
    %155 = vector.shape_cast %154 : vector<20xf32> to vector<20x1xf32>
    %156 = vector.broadcast %155 : vector<20x1xf32> to vector<20x20xf32>
    %157 = arith.subf %153, %156 : vector<20x20xf32>
    %158 = math.exp %157 : vector<20x20xf32>
    %cst_51 = arith.constant dense<0.000000e+00> : vector<20xf32>
    %159 = vector.multi_reduction <add>, %158, %cst_51 [1] : vector<20x20xf32> to vector<20xf32>
    %160 = vector.shape_cast %159 : vector<20xf32> to vector<20x1xf32>
    %161 = tpu.reciprocal %160 {approx = true} : vector<20x1xf32> -> vector<20x1xf32>
    %162 = vector.broadcast %161 : vector<20x1xf32> to vector<20x20xf32>
    %163 = arith.mulf %158, %162 : vector<20x20xf32>
    %164 = vector.broadcast %32 : vector<1x128xf32> to vector<20x128xf32>
    %165 = arith.mulf %86, %164 : vector<20x128xf32>
    %cst_52 = arith.constant dense<0.000000e+00> : vector<20x128xf32>
    %166 = tpu.matmul %163, %165, %cst_52 {dimension_numbers = #tpu.dot_dimension_numbers<[1], [0], [0], [1], [0, 0, 1, 1], [], []>} : vector<20x20xf32>, vector<20x128xf32>, vector<20x128xf32> -> vector<20x128xf32>
    %167 = arith.addf %147, %166 : vector<20x128xf32>
    %c0_53 = arith.constant 0 : index
    %c0_54 = arith.constant 0 : index
    %c0_55 = arith.constant 0 : index
    %168 = vector.load %arg3[%c0_53, %c0_54, %c0_55] : memref<2x128x128xbf16, #tpu.memory_space<vmem>>, vector<1x128x128xbf16>
    %169 = vector.shape_cast %168 : vector<1x128x128xbf16> to vector<128x128xbf16>
    %c0_56 = arith.constant 0 : index
    %c0_57 = arith.constant 0 : index
    %c0_58 = arith.constant 0 : index
    %170 = vector.load %arg4[%c0_56, %c0_57, %c0_58] : memref<2x1x128xf32, #tpu.memory_space<vmem>>, vector<1x1x128xf32>
    %171 = vector.shape_cast %170 : vector<1x1x128xf32> to vector<1x128xf32>
    %172 = arith.truncf %167 : vector<20x128xf32> to vector<20x128xbf16>
    %cst_59 = arith.constant dense<0.000000e+00> : vector<20x128xf32>
    %173 = tpu.matmul %172, %169, %cst_59 {dimension_numbers = #tpu.dot_dimension_numbers<[1], [0], [0], [1], [0, 0, 1, 1], [], []>} : vector<20x128xbf16>, vector<128x128xbf16>, vector<20x128xf32> -> vector<20x128xf32>
    %174 = vector.broadcast %171 : vector<1x128xf32> to vector<20x128xf32>
    %175 = arith.addf %173, %174 : vector<20x128xf32>
    %176 = arith.addf %75, %175 : vector<20x128xf32>
    %c0_60 = arith.constant 0 : index
    %c0_61 = arith.constant 0 : index
    %c0_62 = arith.constant 0 : index
    %177 = vector.load %arg11[%c0_60, %c0_61, %c0_62] : memref<2x1x128xf32, #tpu.memory_space<vmem>>, vector<1x1x128xf32>
    %178 = vector.shape_cast %177 : vector<1x1x128xf32> to vector<1x128xf32>
    %c0_63 = arith.constant 0 : index
    %c0_64 = arith.constant 0 : index
    %c0_65 = arith.constant 0 : index
    %179 = vector.load %arg12[%c0_63, %c0_64, %c0_65] : memref<2x1x128xf32, #tpu.memory_space<vmem>>, vector<1x1x128xf32>
    %180 = vector.shape_cast %179 : vector<1x1x128xf32> to vector<1x128xf32>
    %cst_66 = arith.constant dense<0.000000e+00> : vector<20xf32>
    %181 = vector.multi_reduction <add>, %176, %cst_66 [1] : vector<20x128xf32> to vector<20xf32>
    %182 = vector.shape_cast %181 : vector<20xf32> to vector<20x1xf32>
    %cst_67 = arith.constant 1.280000e+02 : f32
    %183 = vector.broadcast %cst_67 : f32 to vector<20x1xf32>
    %184 = arith.divf %182, %183 : vector<20x1xf32>
    %185 = vector.broadcast %184 : vector<20x1xf32> to vector<20x128xf32>
    %186 = arith.subf %176, %185 : vector<20x128xf32>
    %187 = arith.mulf %186, %186 : vector<20x128xf32>
    %cst_68 = arith.constant dense<0.000000e+00> : vector<20xf32>
    %188 = vector.multi_reduction <add>, %187, %cst_68 [1] : vector<20x128xf32> to vector<20xf32>
    %189 = vector.shape_cast %188 : vector<20xf32> to vector<20x1xf32>
    %cst_69 = arith.constant 1.280000e+02 : f32
    %190 = vector.broadcast %cst_69 : f32 to vector<20x1xf32>
    %191 = arith.divf %189, %190 : vector<20x1xf32>
    %cst_70 = arith.constant 9.99999974E-6 : f32
    %192 = vector.broadcast %cst_70 : f32 to vector<20x1xf32>
    %193 = arith.addf %191, %192 : vector<20x1xf32>
    %194 = math.rsqrt %193 : vector<20x1xf32>
    %195 = vector.broadcast %194 : vector<20x1xf32> to vector<20x128xf32>
    %196 = arith.mulf %186, %195 : vector<20x128xf32>
    %197 = vector.broadcast %178 : vector<1x128xf32> to vector<20x128xf32>
    %198 = arith.mulf %196, %197 : vector<20x128xf32>
    %199 = vector.broadcast %180 : vector<1x128xf32> to vector<20x128xf32>
    %200 = arith.addf %198, %199 : vector<20x128xf32>
    %c0_71 = arith.constant 0 : index
    %c0_72 = arith.constant 0 : index
    %c0_73 = arith.constant 0 : index
    %201 = vector.load %arg5[%c0_71, %c0_72, %c0_73] : memref<2x128x128xbf16, #tpu.memory_space<vmem>>, vector<1x128x128xbf16>
    %202 = vector.shape_cast %201 : vector<1x128x128xbf16> to vector<128x128xbf16>
    %c0_74 = arith.constant 0 : index
    %c0_75 = arith.constant 0 : index
    %c0_76 = arith.constant 0 : index
    %203 = vector.load %arg6[%c0_74, %c0_75, %c0_76] : memref<2x1x128xf32, #tpu.memory_space<vmem>>, vector<1x1x128xf32>
    %204 = vector.shape_cast %203 : vector<1x1x128xf32> to vector<1x128xf32>
    %205 = arith.truncf %200 : vector<20x128xf32> to vector<20x128xbf16>
    %cst_77 = arith.constant dense<0.000000e+00> : vector<20x128xf32>
    %206 = tpu.matmul %205, %202, %cst_77 {dimension_numbers = #tpu.dot_dimension_numbers<[1], [0], [0], [1], [0, 0, 1, 1], [], []>} : vector<20x128xbf16>, vector<128x128xbf16>, vector<20x128xf32> -> vector<20x128xf32>
    %207 = vector.broadcast %204 : vector<1x128xf32> to vector<20x128xf32>
    %208 = arith.addf %206, %207 : vector<20x128xf32>
    %c0_78 = arith.constant 0 : index
    %c0_79 = arith.constant 0 : index
    %c0_80 = arith.constant 0 : index
    %209 = vector.load %arg7[%c0_78, %c0_79, %c0_80] : memref<2x128x256xbf16, #tpu.memory_space<vmem>>, vector<1x128x256xbf16>
    %210 = vector.shape_cast %209 : vector<1x128x256xbf16> to vector<128x256xbf16>
    %c0_81 = arith.constant 0 : index
    %c0_82 = arith.constant 0 : index
    %c0_83 = arith.constant 0 : index
    %211 = vector.load %arg8[%c0_81, %c0_82, %c0_83] : memref<2x1x256xf32, #tpu.memory_space<vmem>>, vector<1x1x256xf32>
    %212 = vector.shape_cast %211 : vector<1x1x256xf32> to vector<1x256xf32>
    %213 = arith.truncf %75 : vector<20x128xf32> to vector<20x128xbf16>
    %cst_84 = arith.constant dense<0.000000e+00> : vector<20x256xf32>
    %214 = tpu.matmul %213, %210, %cst_84 {dimension_numbers = #tpu.dot_dimension_numbers<[1], [0], [0], [1], [0, 0, 1, 1], [], []>} : vector<20x128xbf16>, vector<128x256xbf16>, vector<20x256xf32> -> vector<20x256xf32>
    %215 = vector.broadcast %212 : vector<1x256xf32> to vector<20x256xf32>
    %216 = arith.addf %214, %215 : vector<20x256xf32>
    %217 = vector.extract_strided_slice %216 {offsets = [0, 0], sizes = [20, 128], strides = [1, 1]} : vector<20x256xf32> to vector<20x128xf32>
    %218 = vector.extract_strided_slice %216 {offsets = [0, 128], sizes = [20, 128], strides = [1, 1]} : vector<20x256xf32> to vector<20x128xf32>
    %cst_85 = arith.constant 0.000000e+00 : f32
    %219 = vector.broadcast %cst_85 : f32 to vector<20x128xf32>
    %220 = vector.broadcast %8 : vector<1x128xf32> to vector<20x128xf32>
    %221 = arith.mulf %217, %220 : vector<20x128xf32>
    %cst_86 = arith.constant dense<0.000000e+00> : vector<20x20xf32>
    %222 = tpu.matmul %208, %221, %cst_86 {dimension_numbers = #tpu.dot_dimension_numbers<[1], [1], [0], [0], [0, 0, 1, 0], [], []>} : vector<20x128xf32>, vector<20x128xf32>, vector<20x20xf32> -> vector<20x20xf32>
    %cst_87 = arith.constant 0.176776692 : f32
    %223 = vector.broadcast %cst_87 : f32 to vector<20x20xf32>
    %224 = arith.mulf %222, %223 : vector<20x20xf32>
    %225 = arith.addf %224, %74 : vector<20x20xf32>
    %cst_88 = arith.constant dense<0xFF800000> : vector<20xf32>
    %226 = vector.multi_reduction <maximumf>, %225, %cst_88 [1] : vector<20x20xf32> to vector<20xf32>
    %227 = vector.shape_cast %226 : vector<20xf32> to vector<20x1xf32>
    %228 = vector.broadcast %227 : vector<20x1xf32> to vector<20x20xf32>
    %229 = arith.subf %225, %228 : vector<20x20xf32>
    %230 = math.exp %229 : vector<20x20xf32>
    %cst_89 = arith.constant dense<0.000000e+00> : vector<20xf32>
    %231 = vector.multi_reduction <add>, %230, %cst_89 [1] : vector<20x20xf32> to vector<20xf32>
    %232 = vector.shape_cast %231 : vector<20xf32> to vector<20x1xf32>
    %233 = tpu.reciprocal %232 {approx = true} : vector<20x1xf32> -> vector<20x1xf32>
    %234 = vector.broadcast %233 : vector<20x1xf32> to vector<20x20xf32>
    %235 = arith.mulf %230, %234 : vector<20x20xf32>
    %236 = vector.broadcast %8 : vector<1x128xf32> to vector<20x128xf32>
    %237 = arith.mulf %218, %236 : vector<20x128xf32>
    %cst_90 = arith.constant dense<0.000000e+00> : vector<20x128xf32>
    %238 = tpu.matmul %235, %237, %cst_90 {dimension_numbers = #tpu.dot_dimension_numbers<[1], [0], [0], [1], [0, 0, 1, 1], [], []>} : vector<20x20xf32>, vector<20x128xf32>, vector<20x128xf32> -> vector<20x128xf32>
    %239 = arith.addf %219, %238 : vector<20x128xf32>
    %240 = vector.broadcast %16 : vector<1x128xf32> to vector<20x128xf32>
    %241 = arith.mulf %217, %240 : vector<20x128xf32>
    %cst_91 = arith.constant dense<0.000000e+00> : vector<20x20xf32>
    %242 = tpu.matmul %208, %241, %cst_91 {dimension_numbers = #tpu.dot_dimension_numbers<[1], [1], [0], [0], [0, 0, 1, 0], [], []>} : vector<20x128xf32>, vector<20x128xf32>, vector<20x20xf32> -> vector<20x20xf32>
    %cst_92 = arith.constant 0.176776692 : f32
    %243 = vector.broadcast %cst_92 : f32 to vector<20x20xf32>
    %244 = arith.mulf %242, %243 : vector<20x20xf32>
    %245 = arith.addf %244, %74 : vector<20x20xf32>
    %cst_93 = arith.constant dense<0xFF800000> : vector<20xf32>
    %246 = vector.multi_reduction <maximumf>, %245, %cst_93 [1] : vector<20x20xf32> to vector<20xf32>
    %247 = vector.shape_cast %246 : vector<20xf32> to vector<20x1xf32>
    %248 = vector.broadcast %247 : vector<20x1xf32> to vector<20x20xf32>
    %249 = arith.subf %245, %248 : vector<20x20xf32>
    %250 = math.exp %249 : vector<20x20xf32>
    %cst_94 = arith.constant dense<0.000000e+00> : vector<20xf32>
    %251 = vector.multi_reduction <add>, %250, %cst_94 [1] : vector<20x20xf32> to vector<20xf32>
    %252 = vector.shape_cast %251 : vector<20xf32> to vector<20x1xf32>
    %253 = tpu.reciprocal %252 {approx = true} : vector<20x1xf32> -> vector<20x1xf32>
    %254 = vector.broadcast %253 : vector<20x1xf32> to vector<20x20xf32>
    %255 = arith.mulf %250, %254 : vector<20x20xf32>
    %256 = vector.broadcast %16 : vector<1x128xf32> to vector<20x128xf32>
    %257 = arith.mulf %218, %256 : vector<20x128xf32>
    %cst_95 = arith.constant dense<0.000000e+00> : vector<20x128xf32>
    %258 = tpu.matmul %255, %257, %cst_95 {dimension_numbers = #tpu.dot_dimension_numbers<[1], [0], [0], [1], [0, 0, 1, 1], [], []>} : vector<20x20xf32>, vector<20x128xf32>, vector<20x128xf32> -> vector<20x128xf32>
    %259 = arith.addf %239, %258 : vector<20x128xf32>
    %260 = vector.broadcast %24 : vector<1x128xf32> to vector<20x128xf32>
    %261 = arith.mulf %217, %260 : vector<20x128xf32>
    %cst_96 = arith.constant dense<0.000000e+00> : vector<20x20xf32>
    %262 = tpu.matmul %208, %261, %cst_96 {dimension_numbers = #tpu.dot_dimension_numbers<[1], [1], [0], [0], [0, 0, 1, 0], [], []>} : vector<20x128xf32>, vector<20x128xf32>, vector<20x20xf32> -> vector<20x20xf32>
    %cst_97 = arith.constant 0.176776692 : f32
    %263 = vector.broadcast %cst_97 : f32 to vector<20x20xf32>
    %264 = arith.mulf %262, %263 : vector<20x20xf32>
    %265 = arith.addf %264, %74 : vector<20x20xf32>
    %cst_98 = arith.constant dense<0xFF800000> : vector<20xf32>
    %266 = vector.multi_reduction <maximumf>, %265, %cst_98 [1] : vector<20x20xf32> to vector<20xf32>
    %267 = vector.shape_cast %266 : vector<20xf32> to vector<20x1xf32>
    %268 = vector.broadcast %267 : vector<20x1xf32> to vector<20x20xf32>
    %269 = arith.subf %265, %268 : vector<20x20xf32>
    %270 = math.exp %269 : vector<20x20xf32>
    %cst_99 = arith.constant dense<0.000000e+00> : vector<20xf32>
    %271 = vector.multi_reduction <add>, %270, %cst_99 [1] : vector<20x20xf32> to vector<20xf32>
    %272 = vector.shape_cast %271 : vector<20xf32> to vector<20x1xf32>
    %273 = tpu.reciprocal %272 {approx = true} : vector<20x1xf32> -> vector<20x1xf32>
    %274 = vector.broadcast %273 : vector<20x1xf32> to vector<20x20xf32>
    %275 = arith.mulf %270, %274 : vector<20x20xf32>
    %276 = vector.broadcast %24 : vector<1x128xf32> to vector<20x128xf32>
    %277 = arith.mulf %218, %276 : vector<20x128xf32>
    %cst_100 = arith.constant dense<0.000000e+00> : vector<20x128xf32>
    %278 = tpu.matmul %275, %277, %cst_100 {dimension_numbers = #tpu.dot_dimension_numbers<[1], [0], [0], [1], [0, 0, 1, 1], [], []>} : vector<20x20xf32>, vector<20x128xf32>, vector<20x128xf32> -> vector<20x128xf32>
    %279 = arith.addf %259, %278 : vector<20x128xf32>
    %280 = vector.broadcast %32 : vector<1x128xf32> to vector<20x128xf32>
    %281 = arith.mulf %217, %280 : vector<20x128xf32>
    %cst_101 = arith.constant dense<0.000000e+00> : vector<20x20xf32>
    %282 = tpu.matmul %208, %281, %cst_101 {dimension_numbers = #tpu.dot_dimension_numbers<[1], [1], [0], [0], [0, 0, 1, 0], [], []>} : vector<20x128xf32>, vector<20x128xf32>, vector<20x20xf32> -> vector<20x20xf32>
    %cst_102 = arith.constant 0.176776692 : f32
    %283 = vector.broadcast %cst_102 : f32 to vector<20x20xf32>
    %284 = arith.mulf %282, %283 : vector<20x20xf32>
    %285 = arith.addf %284, %74 : vector<20x20xf32>
    %cst_103 = arith.constant dense<0xFF800000> : vector<20xf32>
    %286 = vector.multi_reduction <maximumf>, %285, %cst_103 [1] : vector<20x20xf32> to vector<20xf32>
    %287 = vector.shape_cast %286 : vector<20xf32> to vector<20x1xf32>
    %288 = vector.broadcast %287 : vector<20x1xf32> to vector<20x20xf32>
    %289 = arith.subf %285, %288 : vector<20x20xf32>
    %290 = math.exp %289 : vector<20x20xf32>
    %cst_104 = arith.constant dense<0.000000e+00> : vector<20xf32>
    %291 = vector.multi_reduction <add>, %290, %cst_104 [1] : vector<20x20xf32> to vector<20xf32>
    %292 = vector.shape_cast %291 : vector<20xf32> to vector<20x1xf32>
    %293 = tpu.reciprocal %292 {approx = true} : vector<20x1xf32> -> vector<20x1xf32>
    %294 = vector.broadcast %293 : vector<20x1xf32> to vector<20x20xf32>
    %295 = arith.mulf %290, %294 : vector<20x20xf32>
    %296 = vector.broadcast %32 : vector<1x128xf32> to vector<20x128xf32>
    %297 = arith.mulf %218, %296 : vector<20x128xf32>
    %cst_105 = arith.constant dense<0.000000e+00> : vector<20x128xf32>
    %298 = tpu.matmul %295, %297, %cst_105 {dimension_numbers = #tpu.dot_dimension_numbers<[1], [0], [0], [1], [0, 0, 1, 1], [], []>} : vector<20x20xf32>, vector<20x128xf32>, vector<20x128xf32> -> vector<20x128xf32>
    %299 = arith.addf %279, %298 : vector<20x128xf32>
    %c0_106 = arith.constant 0 : index
    %c0_107 = arith.constant 0 : index
    %c0_108 = arith.constant 0 : index
    %300 = vector.load %arg9[%c0_106, %c0_107, %c0_108] : memref<2x128x128xbf16, #tpu.memory_space<vmem>>, vector<1x128x128xbf16>
    %301 = vector.shape_cast %300 : vector<1x128x128xbf16> to vector<128x128xbf16>
    %c0_109 = arith.constant 0 : index
    %c0_110 = arith.constant 0 : index
    %c0_111 = arith.constant 0 : index
    %302 = vector.load %arg10[%c0_109, %c0_110, %c0_111] : memref<2x1x128xf32, #tpu.memory_space<vmem>>, vector<1x1x128xf32>
    %303 = vector.shape_cast %302 : vector<1x1x128xf32> to vector<1x128xf32>
    %304 = arith.truncf %299 : vector<20x128xf32> to vector<20x128xbf16>
    %cst_112 = arith.constant dense<0.000000e+00> : vector<20x128xf32>
    %305 = tpu.matmul %304, %301, %cst_112 {dimension_numbers = #tpu.dot_dimension_numbers<[1], [0], [0], [1], [0, 0, 1, 1], [], []>} : vector<20x128xbf16>, vector<128x128xbf16>, vector<20x128xf32> -> vector<20x128xf32>
    %306 = vector.broadcast %303 : vector<1x128xf32> to vector<20x128xf32>
    %307 = arith.addf %305, %306 : vector<20x128xf32>
    %308 = arith.addf %200, %307 : vector<20x128xf32>
    %c0_113 = arith.constant 0 : index
    %c0_114 = arith.constant 0 : index
    %c0_115 = arith.constant 0 : index
    %309 = vector.load %arg13[%c0_113, %c0_114, %c0_115] : memref<2x1x128xf32, #tpu.memory_space<vmem>>, vector<1x1x128xf32>
    %310 = vector.shape_cast %309 : vector<1x1x128xf32> to vector<1x128xf32>
    %c0_116 = arith.constant 0 : index
    %c0_117 = arith.constant 0 : index
    %c0_118 = arith.constant 0 : index
    %311 = vector.load %arg14[%c0_116, %c0_117, %c0_118] : memref<2x1x128xf32, #tpu.memory_space<vmem>>, vector<1x1x128xf32>
    %312 = vector.shape_cast %311 : vector<1x1x128xf32> to vector<1x128xf32>
    %cst_119 = arith.constant dense<0.000000e+00> : vector<20xf32>
    %313 = vector.multi_reduction <add>, %308, %cst_119 [1] : vector<20x128xf32> to vector<20xf32>
    %314 = vector.shape_cast %313 : vector<20xf32> to vector<20x1xf32>
    %cst_120 = arith.constant 1.280000e+02 : f32
    %315 = vector.broadcast %cst_120 : f32 to vector<20x1xf32>
    %316 = arith.divf %314, %315 : vector<20x1xf32>
    %317 = vector.broadcast %316 : vector<20x1xf32> to vector<20x128xf32>
    %318 = arith.subf %308, %317 : vector<20x128xf32>
    %319 = arith.mulf %318, %318 : vector<20x128xf32>
    %cst_121 = arith.constant dense<0.000000e+00> : vector<20xf32>
    %320 = vector.multi_reduction <add>, %319, %cst_121 [1] : vector<20x128xf32> to vector<20xf32>
    %321 = vector.shape_cast %320 : vector<20xf32> to vector<20x1xf32>
    %cst_122 = arith.constant 1.280000e+02 : f32
    %322 = vector.broadcast %cst_122 : f32 to vector<20x1xf32>
    %323 = arith.divf %321, %322 : vector<20x1xf32>
    %cst_123 = arith.constant 9.99999974E-6 : f32
    %324 = vector.broadcast %cst_123 : f32 to vector<20x1xf32>
    %325 = arith.addf %323, %324 : vector<20x1xf32>
    %326 = math.rsqrt %325 : vector<20x1xf32>
    %327 = vector.broadcast %326 : vector<20x1xf32> to vector<20x128xf32>
    %328 = arith.mulf %318, %327 : vector<20x128xf32>
    %329 = vector.broadcast %310 : vector<1x128xf32> to vector<20x128xf32>
    %330 = arith.mulf %328, %329 : vector<20x128xf32>
    %331 = vector.broadcast %312 : vector<1x128xf32> to vector<20x128xf32>
    %332 = arith.addf %330, %331 : vector<20x128xf32>
    %c0_124 = arith.constant 0 : index
    %c0_125 = arith.constant 0 : index
    %c0_126 = arith.constant 0 : index
    %333 = vector.load %arg17[%c0_124, %c0_125, %c0_126] : memref<2x128x256xbf16, #tpu.memory_space<vmem>>, vector<1x128x256xbf16>
    %334 = vector.shape_cast %333 : vector<1x128x256xbf16> to vector<128x256xbf16>
    %c0_127 = arith.constant 0 : index
    %c0_128 = arith.constant 0 : index
    %c0_129 = arith.constant 0 : index
    %335 = vector.load %arg18[%c0_127, %c0_128, %c0_129] : memref<2x1x256xf32, #tpu.memory_space<vmem>>, vector<1x1x256xf32>
    %336 = vector.shape_cast %335 : vector<1x1x256xf32> to vector<1x256xf32>
    %337 = arith.truncf %332 : vector<20x128xf32> to vector<20x128xbf16>
    %cst_130 = arith.constant dense<0.000000e+00> : vector<20x256xf32>
    %338 = tpu.matmul %337, %334, %cst_130 {dimension_numbers = #tpu.dot_dimension_numbers<[1], [0], [0], [1], [0, 0, 1, 1], [], []>} : vector<20x128xbf16>, vector<128x256xbf16>, vector<20x256xf32> -> vector<20x256xf32>
    %339 = vector.broadcast %336 : vector<1x256xf32> to vector<20x256xf32>
    %340 = arith.addf %338, %339 : vector<20x256xf32>
    %cst_131 = arith.constant 5.000000e-01 : f32
    %341 = vector.broadcast %cst_131 : f32 to vector<20x256xf32>
    %342 = arith.mulf %341, %340 : vector<20x256xf32>
    %cst_132 = arith.constant 4.471500e-02 : f32
    %343 = vector.broadcast %cst_132 : f32 to vector<20x256xf32>
    %344 = arith.mulf %343, %340 : vector<20x256xf32>
    %345 = arith.mulf %344, %340 : vector<20x256xf32>
    %346 = arith.mulf %345, %340 : vector<20x256xf32>
    %347 = arith.addf %340, %346 : vector<20x256xf32>
    %cst_133 = arith.constant 0.797884583 : f32
    %348 = vector.broadcast %cst_133 : f32 to vector<20x256xf32>
    %349 = arith.mulf %348, %347 : vector<20x256xf32>
    %350 = math.tanh %349 : vector<20x256xf32>
    %cst_134 = arith.constant 1.000000e+00 : f32
    %351 = vector.broadcast %cst_134 : f32 to vector<20x256xf32>
    %352 = arith.addf %351, %350 : vector<20x256xf32>
    %353 = arith.mulf %342, %352 : vector<20x256xf32>
    %c0_135 = arith.constant 0 : index
    %c0_136 = arith.constant 0 : index
    %c0_137 = arith.constant 0 : index
    %354 = vector.load %arg19[%c0_135, %c0_136, %c0_137] : memref<2x256x128xbf16, #tpu.memory_space<vmem>>, vector<1x256x128xbf16>
    %355 = vector.shape_cast %354 : vector<1x256x128xbf16> to vector<256x128xbf16>
    %c0_138 = arith.constant 0 : index
    %c0_139 = arith.constant 0 : index
    %c0_140 = arith.constant 0 : index
    %356 = vector.load %arg20[%c0_138, %c0_139, %c0_140] : memref<2x1x128xf32, #tpu.memory_space<vmem>>, vector<1x1x128xf32>
    %357 = vector.shape_cast %356 : vector<1x1x128xf32> to vector<1x128xf32>
    %358 = arith.truncf %353 : vector<20x256xf32> to vector<20x256xbf16>
    %cst_141 = arith.constant dense<0.000000e+00> : vector<20x128xf32>
    %359 = tpu.matmul %358, %355, %cst_141 {dimension_numbers = #tpu.dot_dimension_numbers<[1], [0], [0], [1], [0, 0, 1, 1], [], []>} : vector<20x256xbf16>, vector<256x128xbf16>, vector<20x128xf32> -> vector<20x128xf32>
    %360 = vector.broadcast %357 : vector<1x128xf32> to vector<20x128xf32>
    %361 = arith.addf %359, %360 : vector<20x128xf32>
    %362 = arith.addf %332, %361 : vector<20x128xf32>
    %c0_142 = arith.constant 0 : index
    %c0_143 = arith.constant 0 : index
    %c0_144 = arith.constant 0 : index
    %363 = vector.load %arg15[%c0_142, %c0_143, %c0_144] : memref<2x1x128xf32, #tpu.memory_space<vmem>>, vector<1x1x128xf32>
    %364 = vector.shape_cast %363 : vector<1x1x128xf32> to vector<1x128xf32>
    %c0_145 = arith.constant 0 : index
    %c0_146 = arith.constant 0 : index
    %c0_147 = arith.constant 0 : index
    %365 = vector.load %arg16[%c0_145, %c0_146, %c0_147] : memref<2x1x128xf32, #tpu.memory_space<vmem>>, vector<1x1x128xf32>
    %366 = vector.shape_cast %365 : vector<1x1x128xf32> to vector<1x128xf32>
    %cst_148 = arith.constant dense<0.000000e+00> : vector<20xf32>
    %367 = vector.multi_reduction <add>, %362, %cst_148 [1] : vector<20x128xf32> to vector<20xf32>
    %368 = vector.shape_cast %367 : vector<20xf32> to vector<20x1xf32>
    %cst_149 = arith.constant 1.280000e+02 : f32
    %369 = vector.broadcast %cst_149 : f32 to vector<20x1xf32>
    %370 = arith.divf %368, %369 : vector<20x1xf32>
    %371 = vector.broadcast %370 : vector<20x1xf32> to vector<20x128xf32>
    %372 = arith.subf %362, %371 : vector<20x128xf32>
    %373 = arith.mulf %372, %372 : vector<20x128xf32>
    %cst_150 = arith.constant dense<0.000000e+00> : vector<20xf32>
    %374 = vector.multi_reduction <add>, %373, %cst_150 [1] : vector<20x128xf32> to vector<20xf32>
    %375 = vector.shape_cast %374 : vector<20xf32> to vector<20x1xf32>
    %cst_151 = arith.constant 1.280000e+02 : f32
    %376 = vector.broadcast %cst_151 : f32 to vector<20x1xf32>
    %377 = arith.divf %375, %376 : vector<20x1xf32>
    %cst_152 = arith.constant 9.99999974E-6 : f32
    %378 = vector.broadcast %cst_152 : f32 to vector<20x1xf32>
    %379 = arith.addf %377, %378 : vector<20x1xf32>
    %380 = math.rsqrt %379 : vector<20x1xf32>
    %381 = vector.broadcast %380 : vector<20x1xf32> to vector<20x128xf32>
    %382 = arith.mulf %372, %381 : vector<20x128xf32>
    %383 = vector.broadcast %364 : vector<1x128xf32> to vector<20x128xf32>
    %384 = arith.mulf %382, %383 : vector<20x128xf32>
    %385 = vector.broadcast %366 : vector<1x128xf32> to vector<20x128xf32>
    %386 = arith.addf %384, %385 : vector<20x128xf32>
    %c1 = arith.constant 1 : index
    %c0_153 = arith.constant 0 : index
    %c0_154 = arith.constant 0 : index
    %387 = vector.load %arg1[%c1, %c0_153, %c0_154] : memref<2x128x384xbf16, #tpu.memory_space<vmem>>, vector<1x128x384xbf16>
    %388 = vector.shape_cast %387 : vector<1x128x384xbf16> to vector<128x384xbf16>
    %c1_155 = arith.constant 1 : index
    %c0_156 = arith.constant 0 : index
    %c0_157 = arith.constant 0 : index
    %389 = vector.load %arg2[%c1_155, %c0_156, %c0_157] : memref<2x1x384xf32, #tpu.memory_space<vmem>>, vector<1x1x384xf32>
    %390 = vector.shape_cast %389 : vector<1x1x384xf32> to vector<1x384xf32>
    %391 = arith.truncf %386 : vector<20x128xf32> to vector<20x128xbf16>
    %cst_158 = arith.constant dense<0.000000e+00> : vector<20x384xf32>
    %392 = tpu.matmul %391, %388, %cst_158 {dimension_numbers = #tpu.dot_dimension_numbers<[1], [0], [0], [1], [0, 0, 1, 1], [], []>} : vector<20x128xbf16>, vector<128x384xbf16>, vector<20x384xf32> -> vector<20x384xf32>
    %393 = vector.broadcast %390 : vector<1x384xf32> to vector<20x384xf32>
    %394 = arith.addf %392, %393 : vector<20x384xf32>
    %395 = vector.extract_strided_slice %394 {offsets = [0, 0], sizes = [20, 128], strides = [1, 1]} : vector<20x384xf32> to vector<20x128xf32>
    %396 = vector.extract_strided_slice %394 {offsets = [0, 128], sizes = [20, 128], strides = [1, 1]} : vector<20x384xf32> to vector<20x128xf32>
    %397 = vector.extract_strided_slice %394 {offsets = [0, 256], sizes = [20, 128], strides = [1, 1]} : vector<20x384xf32> to vector<20x128xf32>
    %cst_159 = arith.constant 0.000000e+00 : f32
    %398 = vector.broadcast %cst_159 : f32 to vector<20x128xf32>
    %399 = vector.broadcast %8 : vector<1x128xf32> to vector<20x128xf32>
    %400 = arith.mulf %396, %399 : vector<20x128xf32>
    %cst_160 = arith.constant dense<0.000000e+00> : vector<20x20xf32>
    %401 = tpu.matmul %395, %400, %cst_160 {dimension_numbers = #tpu.dot_dimension_numbers<[1], [1], [0], [0], [0, 0, 1, 0], [], []>} : vector<20x128xf32>, vector<20x128xf32>, vector<20x20xf32> -> vector<20x20xf32>
    %cst_161 = arith.constant 0.176776692 : f32
    %402 = vector.broadcast %cst_161 : f32 to vector<20x20xf32>
    %403 = arith.mulf %401, %402 : vector<20x20xf32>
    %404 = arith.addf %403, %74 : vector<20x20xf32>
    %cst_162 = arith.constant dense<0xFF800000> : vector<20xf32>
    %405 = vector.multi_reduction <maximumf>, %404, %cst_162 [1] : vector<20x20xf32> to vector<20xf32>
    %406 = vector.shape_cast %405 : vector<20xf32> to vector<20x1xf32>
    %407 = vector.broadcast %406 : vector<20x1xf32> to vector<20x20xf32>
    %408 = arith.subf %404, %407 : vector<20x20xf32>
    %409 = math.exp %408 : vector<20x20xf32>
    %cst_163 = arith.constant dense<0.000000e+00> : vector<20xf32>
    %410 = vector.multi_reduction <add>, %409, %cst_163 [1] : vector<20x20xf32> to vector<20xf32>
    %411 = vector.shape_cast %410 : vector<20xf32> to vector<20x1xf32>
    %412 = tpu.reciprocal %411 {approx = true} : vector<20x1xf32> -> vector<20x1xf32>
    %413 = vector.broadcast %412 : vector<20x1xf32> to vector<20x20xf32>
    %414 = arith.mulf %409, %413 : vector<20x20xf32>
    %415 = vector.broadcast %8 : vector<1x128xf32> to vector<20x128xf32>
    %416 = arith.mulf %397, %415 : vector<20x128xf32>
    %cst_164 = arith.constant dense<0.000000e+00> : vector<20x128xf32>
    %417 = tpu.matmul %414, %416, %cst_164 {dimension_numbers = #tpu.dot_dimension_numbers<[1], [0], [0], [1], [0, 0, 1, 1], [], []>} : vector<20x20xf32>, vector<20x128xf32>, vector<20x128xf32> -> vector<20x128xf32>
    %418 = arith.addf %398, %417 : vector<20x128xf32>
    %419 = vector.broadcast %16 : vector<1x128xf32> to vector<20x128xf32>
    %420 = arith.mulf %396, %419 : vector<20x128xf32>
    %cst_165 = arith.constant dense<0.000000e+00> : vector<20x20xf32>
    %421 = tpu.matmul %395, %420, %cst_165 {dimension_numbers = #tpu.dot_dimension_numbers<[1], [1], [0], [0], [0, 0, 1, 0], [], []>} : vector<20x128xf32>, vector<20x128xf32>, vector<20x20xf32> -> vector<20x20xf32>
    %cst_166 = arith.constant 0.176776692 : f32
    %422 = vector.broadcast %cst_166 : f32 to vector<20x20xf32>
    %423 = arith.mulf %421, %422 : vector<20x20xf32>
    %424 = arith.addf %423, %74 : vector<20x20xf32>
    %cst_167 = arith.constant dense<0xFF800000> : vector<20xf32>
    %425 = vector.multi_reduction <maximumf>, %424, %cst_167 [1] : vector<20x20xf32> to vector<20xf32>
    %426 = vector.shape_cast %425 : vector<20xf32> to vector<20x1xf32>
    %427 = vector.broadcast %426 : vector<20x1xf32> to vector<20x20xf32>
    %428 = arith.subf %424, %427 : vector<20x20xf32>
    %429 = math.exp %428 : vector<20x20xf32>
    %cst_168 = arith.constant dense<0.000000e+00> : vector<20xf32>
    %430 = vector.multi_reduction <add>, %429, %cst_168 [1] : vector<20x20xf32> to vector<20xf32>
    %431 = vector.shape_cast %430 : vector<20xf32> to vector<20x1xf32>
    %432 = tpu.reciprocal %431 {approx = true} : vector<20x1xf32> -> vector<20x1xf32>
    %433 = vector.broadcast %432 : vector<20x1xf32> to vector<20x20xf32>
    %434 = arith.mulf %429, %433 : vector<20x20xf32>
    %435 = vector.broadcast %16 : vector<1x128xf32> to vector<20x128xf32>
    %436 = arith.mulf %397, %435 : vector<20x128xf32>
    %cst_169 = arith.constant dense<0.000000e+00> : vector<20x128xf32>
    %437 = tpu.matmul %434, %436, %cst_169 {dimension_numbers = #tpu.dot_dimension_numbers<[1], [0], [0], [1], [0, 0, 1, 1], [], []>} : vector<20x20xf32>, vector<20x128xf32>, vector<20x128xf32> -> vector<20x128xf32>
    %438 = arith.addf %418, %437 : vector<20x128xf32>
    %439 = vector.broadcast %24 : vector<1x128xf32> to vector<20x128xf32>
    %440 = arith.mulf %396, %439 : vector<20x128xf32>
    %cst_170 = arith.constant dense<0.000000e+00> : vector<20x20xf32>
    %441 = tpu.matmul %395, %440, %cst_170 {dimension_numbers = #tpu.dot_dimension_numbers<[1], [1], [0], [0], [0, 0, 1, 0], [], []>} : vector<20x128xf32>, vector<20x128xf32>, vector<20x20xf32> -> vector<20x20xf32>
    %cst_171 = arith.constant 0.176776692 : f32
    %442 = vector.broadcast %cst_171 : f32 to vector<20x20xf32>
    %443 = arith.mulf %441, %442 : vector<20x20xf32>
    %444 = arith.addf %443, %74 : vector<20x20xf32>
    %cst_172 = arith.constant dense<0xFF800000> : vector<20xf32>
    %445 = vector.multi_reduction <maximumf>, %444, %cst_172 [1] : vector<20x20xf32> to vector<20xf32>
    %446 = vector.shape_cast %445 : vector<20xf32> to vector<20x1xf32>
    %447 = vector.broadcast %446 : vector<20x1xf32> to vector<20x20xf32>
    %448 = arith.subf %444, %447 : vector<20x20xf32>
    %449 = math.exp %448 : vector<20x20xf32>
    %cst_173 = arith.constant dense<0.000000e+00> : vector<20xf32>
    %450 = vector.multi_reduction <add>, %449, %cst_173 [1] : vector<20x20xf32> to vector<20xf32>
    %451 = vector.shape_cast %450 : vector<20xf32> to vector<20x1xf32>
    %452 = tpu.reciprocal %451 {approx = true} : vector<20x1xf32> -> vector<20x1xf32>
    %453 = vector.broadcast %452 : vector<20x1xf32> to vector<20x20xf32>
    %454 = arith.mulf %449, %453 : vector<20x20xf32>
    %455 = vector.broadcast %24 : vector<1x128xf32> to vector<20x128xf32>
    %456 = arith.mulf %397, %455 : vector<20x128xf32>
    %cst_174 = arith.constant dense<0.000000e+00> : vector<20x128xf32>
    %457 = tpu.matmul %454, %456, %cst_174 {dimension_numbers = #tpu.dot_dimension_numbers<[1], [0], [0], [1], [0, 0, 1, 1], [], []>} : vector<20x20xf32>, vector<20x128xf32>, vector<20x128xf32> -> vector<20x128xf32>
    %458 = arith.addf %438, %457 : vector<20x128xf32>
    %459 = vector.broadcast %32 : vector<1x128xf32> to vector<20x128xf32>
    %460 = arith.mulf %396, %459 : vector<20x128xf32>
    %cst_175 = arith.constant dense<0.000000e+00> : vector<20x20xf32>
    %461 = tpu.matmul %395, %460, %cst_175 {dimension_numbers = #tpu.dot_dimension_numbers<[1], [1], [0], [0], [0, 0, 1, 0], [], []>} : vector<20x128xf32>, vector<20x128xf32>, vector<20x20xf32> -> vector<20x20xf32>
    %cst_176 = arith.constant 0.176776692 : f32
    %462 = vector.broadcast %cst_176 : f32 to vector<20x20xf32>
    %463 = arith.mulf %461, %462 : vector<20x20xf32>
    %464 = arith.addf %463, %74 : vector<20x20xf32>
    %cst_177 = arith.constant dense<0xFF800000> : vector<20xf32>
    %465 = vector.multi_reduction <maximumf>, %464, %cst_177 [1] : vector<20x20xf32> to vector<20xf32>
    %466 = vector.shape_cast %465 : vector<20xf32> to vector<20x1xf32>
    %467 = vector.broadcast %466 : vector<20x1xf32> to vector<20x20xf32>
    %468 = arith.subf %464, %467 : vector<20x20xf32>
    %469 = math.exp %468 : vector<20x20xf32>
    %cst_178 = arith.constant dense<0.000000e+00> : vector<20xf32>
    %470 = vector.multi_reduction <add>, %469, %cst_178 [1] : vector<20x20xf32> to vector<20xf32>
    %471 = vector.shape_cast %470 : vector<20xf32> to vector<20x1xf32>
    %472 = tpu.reciprocal %471 {approx = true} : vector<20x1xf32> -> vector<20x1xf32>
    %473 = vector.broadcast %472 : vector<20x1xf32> to vector<20x20xf32>
    %474 = arith.mulf %469, %473 : vector<20x20xf32>
    %475 = vector.broadcast %32 : vector<1x128xf32> to vector<20x128xf32>
    %476 = arith.mulf %397, %475 : vector<20x128xf32>
    %cst_179 = arith.constant dense<0.000000e+00> : vector<20x128xf32>
    %477 = tpu.matmul %474, %476, %cst_179 {dimension_numbers = #tpu.dot_dimension_numbers<[1], [0], [0], [1], [0, 0, 1, 1], [], []>} : vector<20x20xf32>, vector<20x128xf32>, vector<20x128xf32> -> vector<20x128xf32>
    %478 = arith.addf %458, %477 : vector<20x128xf32>
    %c1_180 = arith.constant 1 : index
    %c0_181 = arith.constant 0 : index
    %c0_182 = arith.constant 0 : index
    %479 = vector.load %arg3[%c1_180, %c0_181, %c0_182] : memref<2x128x128xbf16, #tpu.memory_space<vmem>>, vector<1x128x128xbf16>
    %480 = vector.shape_cast %479 : vector<1x128x128xbf16> to vector<128x128xbf16>
    %c1_183 = arith.constant 1 : index
    %c0_184 = arith.constant 0 : index
    %c0_185 = arith.constant 0 : index
    %481 = vector.load %arg4[%c1_183, %c0_184, %c0_185] : memref<2x1x128xf32, #tpu.memory_space<vmem>>, vector<1x1x128xf32>
    %482 = vector.shape_cast %481 : vector<1x1x128xf32> to vector<1x128xf32>
    %483 = arith.truncf %478 : vector<20x128xf32> to vector<20x128xbf16>
    %cst_186 = arith.constant dense<0.000000e+00> : vector<20x128xf32>
    %484 = tpu.matmul %483, %480, %cst_186 {dimension_numbers = #tpu.dot_dimension_numbers<[1], [0], [0], [1], [0, 0, 1, 1], [], []>} : vector<20x128xbf16>, vector<128x128xbf16>, vector<20x128xf32> -> vector<20x128xf32>
    %485 = vector.broadcast %482 : vector<1x128xf32> to vector<20x128xf32>
    %486 = arith.addf %484, %485 : vector<20x128xf32>
    %487 = arith.addf %386, %486 : vector<20x128xf32>
    %c1_187 = arith.constant 1 : index
    %c0_188 = arith.constant 0 : index
    %c0_189 = arith.constant 0 : index
    %488 = vector.load %arg11[%c1_187, %c0_188, %c0_189] : memref<2x1x128xf32, #tpu.memory_space<vmem>>, vector<1x1x128xf32>
    %489 = vector.shape_cast %488 : vector<1x1x128xf32> to vector<1x128xf32>
    %c1_190 = arith.constant 1 : index
    %c0_191 = arith.constant 0 : index
    %c0_192 = arith.constant 0 : index
    %490 = vector.load %arg12[%c1_190, %c0_191, %c0_192] : memref<2x1x128xf32, #tpu.memory_space<vmem>>, vector<1x1x128xf32>
    %491 = vector.shape_cast %490 : vector<1x1x128xf32> to vector<1x128xf32>
    %cst_193 = arith.constant dense<0.000000e+00> : vector<20xf32>
    %492 = vector.multi_reduction <add>, %487, %cst_193 [1] : vector<20x128xf32> to vector<20xf32>
    %493 = vector.shape_cast %492 : vector<20xf32> to vector<20x1xf32>
    %cst_194 = arith.constant 1.280000e+02 : f32
    %494 = vector.broadcast %cst_194 : f32 to vector<20x1xf32>
    %495 = arith.divf %493, %494 : vector<20x1xf32>
    %496 = vector.broadcast %495 : vector<20x1xf32> to vector<20x128xf32>
    %497 = arith.subf %487, %496 : vector<20x128xf32>
    %498 = arith.mulf %497, %497 : vector<20x128xf32>
    %cst_195 = arith.constant dense<0.000000e+00> : vector<20xf32>
    %499 = vector.multi_reduction <add>, %498, %cst_195 [1] : vector<20x128xf32> to vector<20xf32>
    %500 = vector.shape_cast %499 : vector<20xf32> to vector<20x1xf32>
    %cst_196 = arith.constant 1.280000e+02 : f32
    %501 = vector.broadcast %cst_196 : f32 to vector<20x1xf32>
    %502 = arith.divf %500, %501 : vector<20x1xf32>
    %cst_197 = arith.constant 9.99999974E-6 : f32
    %503 = vector.broadcast %cst_197 : f32 to vector<20x1xf32>
    %504 = arith.addf %502, %503 : vector<20x1xf32>
    %505 = math.rsqrt %504 : vector<20x1xf32>
    %506 = vector.broadcast %505 : vector<20x1xf32> to vector<20x128xf32>
    %507 = arith.mulf %497, %506 : vector<20x128xf32>
    %508 = vector.broadcast %489 : vector<1x128xf32> to vector<20x128xf32>
    %509 = arith.mulf %507, %508 : vector<20x128xf32>
    %510 = vector.broadcast %491 : vector<1x128xf32> to vector<20x128xf32>
    %511 = arith.addf %509, %510 : vector<20x128xf32>
    %c1_198 = arith.constant 1 : index
    %c0_199 = arith.constant 0 : index
    %c0_200 = arith.constant 0 : index
    %512 = vector.load %arg5[%c1_198, %c0_199, %c0_200] : memref<2x128x128xbf16, #tpu.memory_space<vmem>>, vector<1x128x128xbf16>
    %513 = vector.shape_cast %512 : vector<1x128x128xbf16> to vector<128x128xbf16>
    %c1_201 = arith.constant 1 : index
    %c0_202 = arith.constant 0 : index
    %c0_203 = arith.constant 0 : index
    %514 = vector.load %arg6[%c1_201, %c0_202, %c0_203] : memref<2x1x128xf32, #tpu.memory_space<vmem>>, vector<1x1x128xf32>
    %515 = vector.shape_cast %514 : vector<1x1x128xf32> to vector<1x128xf32>
    %516 = arith.truncf %511 : vector<20x128xf32> to vector<20x128xbf16>
    %cst_204 = arith.constant dense<0.000000e+00> : vector<20x128xf32>
    %517 = tpu.matmul %516, %513, %cst_204 {dimension_numbers = #tpu.dot_dimension_numbers<[1], [0], [0], [1], [0, 0, 1, 1], [], []>} : vector<20x128xbf16>, vector<128x128xbf16>, vector<20x128xf32> -> vector<20x128xf32>
    %518 = vector.broadcast %515 : vector<1x128xf32> to vector<20x128xf32>
    %519 = arith.addf %517, %518 : vector<20x128xf32>
    %c1_205 = arith.constant 1 : index
    %c0_206 = arith.constant 0 : index
    %c0_207 = arith.constant 0 : index
    %520 = vector.load %arg7[%c1_205, %c0_206, %c0_207] : memref<2x128x256xbf16, #tpu.memory_space<vmem>>, vector<1x128x256xbf16>
    %521 = vector.shape_cast %520 : vector<1x128x256xbf16> to vector<128x256xbf16>
    %c1_208 = arith.constant 1 : index
    %c0_209 = arith.constant 0 : index
    %c0_210 = arith.constant 0 : index
    %522 = vector.load %arg8[%c1_208, %c0_209, %c0_210] : memref<2x1x256xf32, #tpu.memory_space<vmem>>, vector<1x1x256xf32>
    %523 = vector.shape_cast %522 : vector<1x1x256xf32> to vector<1x256xf32>
    %524 = arith.truncf %75 : vector<20x128xf32> to vector<20x128xbf16>
    %cst_211 = arith.constant dense<0.000000e+00> : vector<20x256xf32>
    %525 = tpu.matmul %524, %521, %cst_211 {dimension_numbers = #tpu.dot_dimension_numbers<[1], [0], [0], [1], [0, 0, 1, 1], [], []>} : vector<20x128xbf16>, vector<128x256xbf16>, vector<20x256xf32> -> vector<20x256xf32>
    %526 = vector.broadcast %523 : vector<1x256xf32> to vector<20x256xf32>
    %527 = arith.addf %525, %526 : vector<20x256xf32>
    %528 = vector.extract_strided_slice %527 {offsets = [0, 0], sizes = [20, 128], strides = [1, 1]} : vector<20x256xf32> to vector<20x128xf32>
    %529 = vector.extract_strided_slice %527 {offsets = [0, 128], sizes = [20, 128], strides = [1, 1]} : vector<20x256xf32> to vector<20x128xf32>
    %cst_212 = arith.constant 0.000000e+00 : f32
    %530 = vector.broadcast %cst_212 : f32 to vector<20x128xf32>
    %531 = vector.broadcast %8 : vector<1x128xf32> to vector<20x128xf32>
    %532 = arith.mulf %528, %531 : vector<20x128xf32>
    %cst_213 = arith.constant dense<0.000000e+00> : vector<20x20xf32>
    %533 = tpu.matmul %519, %532, %cst_213 {dimension_numbers = #tpu.dot_dimension_numbers<[1], [1], [0], [0], [0, 0, 1, 0], [], []>} : vector<20x128xf32>, vector<20x128xf32>, vector<20x20xf32> -> vector<20x20xf32>
    %cst_214 = arith.constant 0.176776692 : f32
    %534 = vector.broadcast %cst_214 : f32 to vector<20x20xf32>
    %535 = arith.mulf %533, %534 : vector<20x20xf32>
    %536 = arith.addf %535, %74 : vector<20x20xf32>
    %cst_215 = arith.constant dense<0xFF800000> : vector<20xf32>
    %537 = vector.multi_reduction <maximumf>, %536, %cst_215 [1] : vector<20x20xf32> to vector<20xf32>
    %538 = vector.shape_cast %537 : vector<20xf32> to vector<20x1xf32>
    %539 = vector.broadcast %538 : vector<20x1xf32> to vector<20x20xf32>
    %540 = arith.subf %536, %539 : vector<20x20xf32>
    %541 = math.exp %540 : vector<20x20xf32>
    %cst_216 = arith.constant dense<0.000000e+00> : vector<20xf32>
    %542 = vector.multi_reduction <add>, %541, %cst_216 [1] : vector<20x20xf32> to vector<20xf32>
    %543 = vector.shape_cast %542 : vector<20xf32> to vector<20x1xf32>
    %544 = tpu.reciprocal %543 {approx = true} : vector<20x1xf32> -> vector<20x1xf32>
    %545 = vector.broadcast %544 : vector<20x1xf32> to vector<20x20xf32>
    %546 = arith.mulf %541, %545 : vector<20x20xf32>
    %547 = vector.broadcast %8 : vector<1x128xf32> to vector<20x128xf32>
    %548 = arith.mulf %529, %547 : vector<20x128xf32>
    %cst_217 = arith.constant dense<0.000000e+00> : vector<20x128xf32>
    %549 = tpu.matmul %546, %548, %cst_217 {dimension_numbers = #tpu.dot_dimension_numbers<[1], [0], [0], [1], [0, 0, 1, 1], [], []>} : vector<20x20xf32>, vector<20x128xf32>, vector<20x128xf32> -> vector<20x128xf32>
    %550 = arith.addf %530, %549 : vector<20x128xf32>
    %551 = vector.broadcast %16 : vector<1x128xf32> to vector<20x128xf32>
    %552 = arith.mulf %528, %551 : vector<20x128xf32>
    %cst_218 = arith.constant dense<0.000000e+00> : vector<20x20xf32>
    %553 = tpu.matmul %519, %552, %cst_218 {dimension_numbers = #tpu.dot_dimension_numbers<[1], [1], [0], [0], [0, 0, 1, 0], [], []>} : vector<20x128xf32>, vector<20x128xf32>, vector<20x20xf32> -> vector<20x20xf32>
    %cst_219 = arith.constant 0.176776692 : f32
    %554 = vector.broadcast %cst_219 : f32 to vector<20x20xf32>
    %555 = arith.mulf %553, %554 : vector<20x20xf32>
    %556 = arith.addf %555, %74 : vector<20x20xf32>
    %cst_220 = arith.constant dense<0xFF800000> : vector<20xf32>
    %557 = vector.multi_reduction <maximumf>, %556, %cst_220 [1] : vector<20x20xf32> to vector<20xf32>
    %558 = vector.shape_cast %557 : vector<20xf32> to vector<20x1xf32>
    %559 = vector.broadcast %558 : vector<20x1xf32> to vector<20x20xf32>
    %560 = arith.subf %556, %559 : vector<20x20xf32>
    %561 = math.exp %560 : vector<20x20xf32>
    %cst_221 = arith.constant dense<0.000000e+00> : vector<20xf32>
    %562 = vector.multi_reduction <add>, %561, %cst_221 [1] : vector<20x20xf32> to vector<20xf32>
    %563 = vector.shape_cast %562 : vector<20xf32> to vector<20x1xf32>
    %564 = tpu.reciprocal %563 {approx = true} : vector<20x1xf32> -> vector<20x1xf32>
    %565 = vector.broadcast %564 : vector<20x1xf32> to vector<20x20xf32>
    %566 = arith.mulf %561, %565 : vector<20x20xf32>
    %567 = vector.broadcast %16 : vector<1x128xf32> to vector<20x128xf32>
    %568 = arith.mulf %529, %567 : vector<20x128xf32>
    %cst_222 = arith.constant dense<0.000000e+00> : vector<20x128xf32>
    %569 = tpu.matmul %566, %568, %cst_222 {dimension_numbers = #tpu.dot_dimension_numbers<[1], [0], [0], [1], [0, 0, 1, 1], [], []>} : vector<20x20xf32>, vector<20x128xf32>, vector<20x128xf32> -> vector<20x128xf32>
    %570 = arith.addf %550, %569 : vector<20x128xf32>
    %571 = vector.broadcast %24 : vector<1x128xf32> to vector<20x128xf32>
    %572 = arith.mulf %528, %571 : vector<20x128xf32>
    %cst_223 = arith.constant dense<0.000000e+00> : vector<20x20xf32>
    %573 = tpu.matmul %519, %572, %cst_223 {dimension_numbers = #tpu.dot_dimension_numbers<[1], [1], [0], [0], [0, 0, 1, 0], [], []>} : vector<20x128xf32>, vector<20x128xf32>, vector<20x20xf32> -> vector<20x20xf32>
    %cst_224 = arith.constant 0.176776692 : f32
    %574 = vector.broadcast %cst_224 : f32 to vector<20x20xf32>
    %575 = arith.mulf %573, %574 : vector<20x20xf32>
    %576 = arith.addf %575, %74 : vector<20x20xf32>
    %cst_225 = arith.constant dense<0xFF800000> : vector<20xf32>
    %577 = vector.multi_reduction <maximumf>, %576, %cst_225 [1] : vector<20x20xf32> to vector<20xf32>
    %578 = vector.shape_cast %577 : vector<20xf32> to vector<20x1xf32>
    %579 = vector.broadcast %578 : vector<20x1xf32> to vector<20x20xf32>
    %580 = arith.subf %576, %579 : vector<20x20xf32>
    %581 = math.exp %580 : vector<20x20xf32>
    %cst_226 = arith.constant dense<0.000000e+00> : vector<20xf32>
    %582 = vector.multi_reduction <add>, %581, %cst_226 [1] : vector<20x20xf32> to vector<20xf32>
    %583 = vector.shape_cast %582 : vector<20xf32> to vector<20x1xf32>
    %584 = tpu.reciprocal %583 {approx = true} : vector<20x1xf32> -> vector<20x1xf32>
    %585 = vector.broadcast %584 : vector<20x1xf32> to vector<20x20xf32>
    %586 = arith.mulf %581, %585 : vector<20x20xf32>
    %587 = vector.broadcast %24 : vector<1x128xf32> to vector<20x128xf32>
    %588 = arith.mulf %529, %587 : vector<20x128xf32>
    %cst_227 = arith.constant dense<0.000000e+00> : vector<20x128xf32>
    %589 = tpu.matmul %586, %588, %cst_227 {dimension_numbers = #tpu.dot_dimension_numbers<[1], [0], [0], [1], [0, 0, 1, 1], [], []>} : vector<20x20xf32>, vector<20x128xf32>, vector<20x128xf32> -> vector<20x128xf32>
    %590 = arith.addf %570, %589 : vector<20x128xf32>
    %591 = vector.broadcast %32 : vector<1x128xf32> to vector<20x128xf32>
    %592 = arith.mulf %528, %591 : vector<20x128xf32>
    %cst_228 = arith.constant dense<0.000000e+00> : vector<20x20xf32>
    %593 = tpu.matmul %519, %592, %cst_228 {dimension_numbers = #tpu.dot_dimension_numbers<[1], [1], [0], [0], [0, 0, 1, 0], [], []>} : vector<20x128xf32>, vector<20x128xf32>, vector<20x20xf32> -> vector<20x20xf32>
    %cst_229 = arith.constant 0.176776692 : f32
    %594 = vector.broadcast %cst_229 : f32 to vector<20x20xf32>
    %595 = arith.mulf %593, %594 : vector<20x20xf32>
    %596 = arith.addf %595, %74 : vector<20x20xf32>
    %cst_230 = arith.constant dense<0xFF800000> : vector<20xf32>
    %597 = vector.multi_reduction <maximumf>, %596, %cst_230 [1] : vector<20x20xf32> to vector<20xf32>
    %598 = vector.shape_cast %597 : vector<20xf32> to vector<20x1xf32>
    %599 = vector.broadcast %598 : vector<20x1xf32> to vector<20x20xf32>
    %600 = arith.subf %596, %599 : vector<20x20xf32>
    %601 = math.exp %600 : vector<20x20xf32>
    %cst_231 = arith.constant dense<0.000000e+00> : vector<20xf32>
    %602 = vector.multi_reduction <add>, %601, %cst_231 [1] : vector<20x20xf32> to vector<20xf32>
    %603 = vector.shape_cast %602 : vector<20xf32> to vector<20x1xf32>
    %604 = tpu.reciprocal %603 {approx = true} : vector<20x1xf32> -> vector<20x1xf32>
    %605 = vector.broadcast %604 : vector<20x1xf32> to vector<20x20xf32>
    %606 = arith.mulf %601, %605 : vector<20x20xf32>
    %607 = vector.broadcast %32 : vector<1x128xf32> to vector<20x128xf32>
    %608 = arith.mulf %529, %607 : vector<20x128xf32>
    %cst_232 = arith.constant dense<0.000000e+00> : vector<20x128xf32>
    %609 = tpu.matmul %606, %608, %cst_232 {dimension_numbers = #tpu.dot_dimension_numbers<[1], [0], [0], [1], [0, 0, 1, 1], [], []>} : vector<20x20xf32>, vector<20x128xf32>, vector<20x128xf32> -> vector<20x128xf32>
    %610 = arith.addf %590, %609 : vector<20x128xf32>
    %c1_233 = arith.constant 1 : index
    %c0_234 = arith.constant 0 : index
    %c0_235 = arith.constant 0 : index
    %611 = vector.load %arg9[%c1_233, %c0_234, %c0_235] : memref<2x128x128xbf16, #tpu.memory_space<vmem>>, vector<1x128x128xbf16>
    %612 = vector.shape_cast %611 : vector<1x128x128xbf16> to vector<128x128xbf16>
    %c1_236 = arith.constant 1 : index
    %c0_237 = arith.constant 0 : index
    %c0_238 = arith.constant 0 : index
    %613 = vector.load %arg10[%c1_236, %c0_237, %c0_238] : memref<2x1x128xf32, #tpu.memory_space<vmem>>, vector<1x1x128xf32>
    %614 = vector.shape_cast %613 : vector<1x1x128xf32> to vector<1x128xf32>
    %615 = arith.truncf %610 : vector<20x128xf32> to vector<20x128xbf16>
    %cst_239 = arith.constant dense<0.000000e+00> : vector<20x128xf32>
    %616 = tpu.matmul %615, %612, %cst_239 {dimension_numbers = #tpu.dot_dimension_numbers<[1], [0], [0], [1], [0, 0, 1, 1], [], []>} : vector<20x128xbf16>, vector<128x128xbf16>, vector<20x128xf32> -> vector<20x128xf32>
    %617 = vector.broadcast %614 : vector<1x128xf32> to vector<20x128xf32>
    %618 = arith.addf %616, %617 : vector<20x128xf32>
    %619 = arith.addf %511, %618 : vector<20x128xf32>
    %c1_240 = arith.constant 1 : index
    %c0_241 = arith.constant 0 : index
    %c0_242 = arith.constant 0 : index
    %620 = vector.load %arg13[%c1_240, %c0_241, %c0_242] : memref<2x1x128xf32, #tpu.memory_space<vmem>>, vector<1x1x128xf32>
    %621 = vector.shape_cast %620 : vector<1x1x128xf32> to vector<1x128xf32>
    %c1_243 = arith.constant 1 : index
    %c0_244 = arith.constant 0 : index
    %c0_245 = arith.constant 0 : index
    %622 = vector.load %arg14[%c1_243, %c0_244, %c0_245] : memref<2x1x128xf32, #tpu.memory_space<vmem>>, vector<1x1x128xf32>
    %623 = vector.shape_cast %622 : vector<1x1x128xf32> to vector<1x128xf32>
    %cst_246 = arith.constant dense<0.000000e+00> : vector<20xf32>
    %624 = vector.multi_reduction <add>, %619, %cst_246 [1] : vector<20x128xf32> to vector<20xf32>
    %625 = vector.shape_cast %624 : vector<20xf32> to vector<20x1xf32>
    %cst_247 = arith.constant 1.280000e+02 : f32
    %626 = vector.broadcast %cst_247 : f32 to vector<20x1xf32>
    %627 = arith.divf %625, %626 : vector<20x1xf32>
    %628 = vector.broadcast %627 : vector<20x1xf32> to vector<20x128xf32>
    %629 = arith.subf %619, %628 : vector<20x128xf32>
    %630 = arith.mulf %629, %629 : vector<20x128xf32>
    %cst_248 = arith.constant dense<0.000000e+00> : vector<20xf32>
    %631 = vector.multi_reduction <add>, %630, %cst_248 [1] : vector<20x128xf32> to vector<20xf32>
    %632 = vector.shape_cast %631 : vector<20xf32> to vector<20x1xf32>
    %cst_249 = arith.constant 1.280000e+02 : f32
    %633 = vector.broadcast %cst_249 : f32 to vector<20x1xf32>
    %634 = arith.divf %632, %633 : vector<20x1xf32>
    %cst_250 = arith.constant 9.99999974E-6 : f32
    %635 = vector.broadcast %cst_250 : f32 to vector<20x1xf32>
    %636 = arith.addf %634, %635 : vector<20x1xf32>
    %637 = math.rsqrt %636 : vector<20x1xf32>
    %638 = vector.broadcast %637 : vector<20x1xf32> to vector<20x128xf32>
    %639 = arith.mulf %629, %638 : vector<20x128xf32>
    %640 = vector.broadcast %621 : vector<1x128xf32> to vector<20x128xf32>
    %641 = arith.mulf %639, %640 : vector<20x128xf32>
    %642 = vector.broadcast %623 : vector<1x128xf32> to vector<20x128xf32>
    %643 = arith.addf %641, %642 : vector<20x128xf32>
    %c1_251 = arith.constant 1 : index
    %c0_252 = arith.constant 0 : index
    %c0_253 = arith.constant 0 : index
    %644 = vector.load %arg17[%c1_251, %c0_252, %c0_253] : memref<2x128x256xbf16, #tpu.memory_space<vmem>>, vector<1x128x256xbf16>
    %645 = vector.shape_cast %644 : vector<1x128x256xbf16> to vector<128x256xbf16>
    %c1_254 = arith.constant 1 : index
    %c0_255 = arith.constant 0 : index
    %c0_256 = arith.constant 0 : index
    %646 = vector.load %arg18[%c1_254, %c0_255, %c0_256] : memref<2x1x256xf32, #tpu.memory_space<vmem>>, vector<1x1x256xf32>
    %647 = vector.shape_cast %646 : vector<1x1x256xf32> to vector<1x256xf32>
    %648 = arith.truncf %643 : vector<20x128xf32> to vector<20x128xbf16>
    %cst_257 = arith.constant dense<0.000000e+00> : vector<20x256xf32>
    %649 = tpu.matmul %648, %645, %cst_257 {dimension_numbers = #tpu.dot_dimension_numbers<[1], [0], [0], [1], [0, 0, 1, 1], [], []>} : vector<20x128xbf16>, vector<128x256xbf16>, vector<20x256xf32> -> vector<20x256xf32>
    %650 = vector.broadcast %647 : vector<1x256xf32> to vector<20x256xf32>
    %651 = arith.addf %649, %650 : vector<20x256xf32>
    %cst_258 = arith.constant 5.000000e-01 : f32
    %652 = vector.broadcast %cst_258 : f32 to vector<20x256xf32>
    %653 = arith.mulf %652, %651 : vector<20x256xf32>
    %cst_259 = arith.constant 4.471500e-02 : f32
    %654 = vector.broadcast %cst_259 : f32 to vector<20x256xf32>
    %655 = arith.mulf %654, %651 : vector<20x256xf32>
    %656 = arith.mulf %655, %651 : vector<20x256xf32>
    %657 = arith.mulf %656, %651 : vector<20x256xf32>
    %658 = arith.addf %651, %657 : vector<20x256xf32>
    %cst_260 = arith.constant 0.797884583 : f32
    %659 = vector.broadcast %cst_260 : f32 to vector<20x256xf32>
    %660 = arith.mulf %659, %658 : vector<20x256xf32>
    %661 = math.tanh %660 : vector<20x256xf32>
    %cst_261 = arith.constant 1.000000e+00 : f32
    %662 = vector.broadcast %cst_261 : f32 to vector<20x256xf32>
    %663 = arith.addf %662, %661 : vector<20x256xf32>
    %664 = arith.mulf %653, %663 : vector<20x256xf32>
    %c1_262 = arith.constant 1 : index
    %c0_263 = arith.constant 0 : index
    %c0_264 = arith.constant 0 : index
    %665 = vector.load %arg19[%c1_262, %c0_263, %c0_264] : memref<2x256x128xbf16, #tpu.memory_space<vmem>>, vector<1x256x128xbf16>
    %666 = vector.shape_cast %665 : vector<1x256x128xbf16> to vector<256x128xbf16>
    %c1_265 = arith.constant 1 : index
    %c0_266 = arith.constant 0 : index
    %c0_267 = arith.constant 0 : index
    %667 = vector.load %arg20[%c1_265, %c0_266, %c0_267] : memref<2x1x128xf32, #tpu.memory_space<vmem>>, vector<1x1x128xf32>
    %668 = vector.shape_cast %667 : vector<1x1x128xf32> to vector<1x128xf32>
    %669 = arith.truncf %664 : vector<20x256xf32> to vector<20x256xbf16>
    %cst_268 = arith.constant dense<0.000000e+00> : vector<20x128xf32>
    %670 = tpu.matmul %669, %666, %cst_268 {dimension_numbers = #tpu.dot_dimension_numbers<[1], [0], [0], [1], [0, 0, 1, 1], [], []>} : vector<20x256xbf16>, vector<256x128xbf16>, vector<20x128xf32> -> vector<20x128xf32>
    %671 = vector.broadcast %668 : vector<1x128xf32> to vector<20x128xf32>
    %672 = arith.addf %670, %671 : vector<20x128xf32>
    %673 = arith.addf %643, %672 : vector<20x128xf32>
    %c1_269 = arith.constant 1 : index
    %c0_270 = arith.constant 0 : index
    %c0_271 = arith.constant 0 : index
    %674 = vector.load %arg15[%c1_269, %c0_270, %c0_271] : memref<2x1x128xf32, #tpu.memory_space<vmem>>, vector<1x1x128xf32>
    %675 = vector.shape_cast %674 : vector<1x1x128xf32> to vector<1x128xf32>
    %c1_272 = arith.constant 1 : index
    %c0_273 = arith.constant 0 : index
    %c0_274 = arith.constant 0 : index
    %676 = vector.load %arg16[%c1_272, %c0_273, %c0_274] : memref<2x1x128xf32, #tpu.memory_space<vmem>>, vector<1x1x128xf32>
    %677 = vector.shape_cast %676 : vector<1x1x128xf32> to vector<1x128xf32>
    %cst_275 = arith.constant dense<0.000000e+00> : vector<20xf32>
    %678 = vector.multi_reduction <add>, %673, %cst_275 [1] : vector<20x128xf32> to vector<20xf32>
    %679 = vector.shape_cast %678 : vector<20xf32> to vector<20x1xf32>
    %cst_276 = arith.constant 1.280000e+02 : f32
    %680 = vector.broadcast %cst_276 : f32 to vector<20x1xf32>
    %681 = arith.divf %679, %680 : vector<20x1xf32>
    %682 = vector.broadcast %681 : vector<20x1xf32> to vector<20x128xf32>
    %683 = arith.subf %673, %682 : vector<20x128xf32>
    %684 = arith.mulf %683, %683 : vector<20x128xf32>
    %cst_277 = arith.constant dense<0.000000e+00> : vector<20xf32>
    %685 = vector.multi_reduction <add>, %684, %cst_277 [1] : vector<20x128xf32> to vector<20xf32>
    %686 = vector.shape_cast %685 : vector<20xf32> to vector<20x1xf32>
    %cst_278 = arith.constant 1.280000e+02 : f32
    %687 = vector.broadcast %cst_278 : f32 to vector<20x1xf32>
    %688 = arith.divf %686, %687 : vector<20x1xf32>
    %cst_279 = arith.constant 9.99999974E-6 : f32
    %689 = vector.broadcast %cst_279 : f32 to vector<20x1xf32>
    %690 = arith.addf %688, %689 : vector<20x1xf32>
    %691 = math.rsqrt %690 : vector<20x1xf32>
    %692 = vector.broadcast %691 : vector<20x1xf32> to vector<20x128xf32>
    %693 = arith.mulf %683, %692 : vector<20x128xf32>
    %694 = vector.broadcast %675 : vector<1x128xf32> to vector<20x128xf32>
    %695 = arith.mulf %693, %694 : vector<20x128xf32>
    %696 = vector.broadcast %677 : vector<1x128xf32> to vector<20x128xf32>
    %697 = arith.addf %695, %696 : vector<20x128xf32>
    %c0_280 = arith.constant 0 : index
    %c0_281 = arith.constant 0 : index
    %698 = vector.load %arg21[%c0_280, %c0_281] : memref<128x64xbf16, #tpu.memory_space<vmem>>, vector<128x64xbf16>
    %c0_282 = arith.constant 0 : index
    %c0_283 = arith.constant 0 : index
    %699 = vector.load %arg22[%c0_282, %c0_283] : memref<1x64xf32, #tpu.memory_space<vmem>>, vector<1x64xf32>
    %700 = arith.truncf %697 : vector<20x128xf32> to vector<20x128xbf16>
    %cst_284 = arith.constant dense<0.000000e+00> : vector<20x64xf32>
    %701 = tpu.matmul %700, %698, %cst_284 {dimension_numbers = #tpu.dot_dimension_numbers<[1], [0], [0], [1], [0, 0, 1, 1], [], []>} : vector<20x128xbf16>, vector<128x64xbf16>, vector<20x64xf32> -> vector<20x64xf32>
    %702 = vector.broadcast %699 : vector<1x64xf32> to vector<20x64xf32>
    %703 = arith.addf %701, %702 : vector<20x64xf32>
    %cst_285 = arith.constant dense<0xFF800000> : vector<20xf32>
    %704 = vector.multi_reduction <maximumf>, %703, %cst_285 [1] : vector<20x64xf32> to vector<20xf32>
    %705 = vector.shape_cast %704 : vector<20xf32> to vector<20x1xf32>
    %706 = vector.broadcast %705 : vector<20x1xf32> to vector<20x64xf32>
    %707 = arith.subf %703, %706 : vector<20x64xf32>
    %708 = math.exp %707 : vector<20x64xf32>
    %cst_286 = arith.constant dense<0.000000e+00> : vector<20xf32>
    %709 = vector.multi_reduction <add>, %708, %cst_286 [1] : vector<20x64xf32> to vector<20xf32>
    %710 = vector.shape_cast %709 : vector<20xf32> to vector<20x1xf32>
    %711 = math.log %710 : vector<20x1xf32>
    %712 = arith.addf %705, %711 : vector<20x1xf32>
    %713 = tpu.iota {dimensions = array<i32: 1>} : vector<20x64xi32>
    %c0_i32_287 = arith.constant 0 : i32
    %714 = vector.broadcast %c0_i32_287 : i32 to vector<20x1xi32>
    %cst_288 = arith.constant 0.000000e+00 : f32
    %715 = vector.broadcast %cst_288 : f32 to vector<20x1xf32>
    %c9_i32 = arith.constant 9 : i32
    %716 = vector.broadcast %c9_i32 : i32 to vector<20x1xi32>
    %717 = arith.cmpi eq, %33, %716 : vector<20x1xi32>
    %c0_289 = arith.constant 0 : index
    %718 = memref.load %arg23[%c0_289] : memref<2xi32, #tpu.memory_space<smem>>
    %719 = vector.broadcast %718 : i32 to vector<20x1xi32>
    %720 = arith.select %717, %719, %714 : vector<20x1xi1>, vector<20x1xi32>
    %cst_290 = arith.constant 1.000000e+00 : f32
    %cst_291 = arith.constant 0.000000e+00 : f32
    %721 = vector.broadcast %cst_290 : f32 to vector<20x1xf32>
    %722 = vector.broadcast %cst_291 : f32 to vector<20x1xf32>
    %723 = arith.select %717, %721, %722 : vector<20x1xi1>, vector<20x1xf32>
    %724 = arith.addf %715, %723 : vector<20x1xf32>
    %c19_i32 = arith.constant 19 : i32
    %725 = vector.broadcast %c19_i32 : i32 to vector<20x1xi32>
    %726 = arith.cmpi eq, %33, %725 : vector<20x1xi32>
    %c1_292 = arith.constant 1 : index
    %727 = memref.load %arg23[%c1_292] : memref<2xi32, #tpu.memory_space<smem>>
    %728 = vector.broadcast %727 : i32 to vector<20x1xi32>
    %729 = arith.select %726, %728, %720 : vector<20x1xi1>, vector<20x1xi32>
    %cst_293 = arith.constant 1.000000e+00 : f32
    %cst_294 = arith.constant 0.000000e+00 : f32
    %730 = vector.broadcast %cst_293 : f32 to vector<20x1xf32>
    %731 = vector.broadcast %cst_294 : f32 to vector<20x1xf32>
    %732 = arith.select %726, %730, %731 : vector<20x1xi1>, vector<20x1xf32>
    %733 = arith.addf %724, %732 : vector<20x1xf32>
    %734 = vector.broadcast %729 : vector<20x1xi32> to vector<20x64xi32>
    %735 = arith.cmpi eq, %713, %734 : vector<20x64xi32>
    %cst_295 = arith.constant 0.000000e+00 : f32
    %736 = vector.broadcast %cst_295 : f32 to vector<20x64xf32>
    %737 = arith.select %735, %703, %736 : vector<20x64xi1>, vector<20x64xf32>
    %cst_296 = arith.constant dense<0.000000e+00> : vector<20xf32>
    %738 = vector.multi_reduction <add>, %737, %cst_296 [1] : vector<20x64xf32> to vector<20xf32>
    %739 = vector.shape_cast %738 : vector<20xf32> to vector<20x1xf32>
    %740 = arith.subf %712, %739 : vector<20x1xf32>
    %741 = arith.mulf %740, %733 : vector<20x1xf32>
    %cst_297 = arith.constant dense<0.000000e+00> : vector<1xf32>
    %742 = vector.multi_reduction <add>, %741, %cst_297 [0] : vector<20x1xf32> to vector<1xf32>
    %743 = vector.shape_cast %742 : vector<1xf32> to vector<1x1xf32>
    %cst_298 = arith.constant 5.000000e-01 : f32
    %744 = vector.broadcast %cst_298 : f32 to vector<1x1xf32>
    %745 = arith.mulf %743, %744 : vector<1x1xf32>
    %c0_299 = arith.constant 0 : index
    %c0_300 = arith.constant 0 : index
    %746 = vector.load %arg24[%c0_299, %c0_300] : memref<1x1xf32, #tpu.memory_space<vmem>>, vector<1x1xf32>
    tpu.vector_store %arg24[%c0_299, %c0_300], %745 {strides = array<i32>} : memref<1x1xf32, #tpu.memory_space<vmem>>, vector<1x1xf32>,
    return
  }
}

</mosaic_0001>

<llo_original>
// kernel: node_gpt_forward.1
$region0: #{node_gpt_forward.1}
  #allocation0 [shape = 'u32[]', space=smem, size = 0x4, offset = 0x4, fixed_abs, tag = 'smem constant byte address 0x4 - core index']
  #allocation1 [shape = 'u32[144,128]{1,0:T(1,128)}', space=vmem, size = 0x12000, scoped, tag = 'internal scratch']
  %s0 = inlined_call_operand.vmem [shape: f32[20,128], index: 0, kind: input, shape index: {}]
  %s1 = inlined_call_operand.vmem [shape: bf16[2,128,384], index: 1, kind: input, shape index: {}]
  %s2 = inlined_call_operand.hbm [shape: f32[2,1,384], index: 2, kind: input, shape index: {}]
  %s3 = inlined_call_operand.vmem [shape: bf16[2,128,128], index: 3, kind: input, shape index: {}]
  %s4 = inlined_call_operand.vmem [shape: f32[2,1,128], index: 4, kind: input, shape index: {}]
  %s5 = inlined_call_operand.hbm [shape: bf16[2,128,128], index: 5, kind: input, shape index: {}]
  %s6 = inlined_call_operand.hbm [shape: f32[2,1,128], index: 6, kind: input, shape index: {}]
  %s7 = inlined_call_operand.hbm [shape: bf16[2,128,256], index: 7, kind: input, shape index: {}]
  %s8 = inlined_call_operand.hbm [shape: f32[2,1,256], index: 8, kind: input, shape index: {}]
  %s9 = inlined_call_operand.hbm [shape: bf16[2,128,128], index: 9, kind: input, shape index: {}]
  %s10 = inlined_call_operand.hbm [shape: f32[2,1,128], index: 10, kind: input, shape index: {}]
  %s11 = inlined_call_operand.hbm [shape: f32[2,1,128], index: 11, kind: input, shape index: {}]
  %s12 = inlined_call_operand.hbm [shape: f32[2,1,128], index: 12, kind: input, shape index: {}]
  %s13 = inlined_call_operand.hbm [shape: f32[2,1,128], index: 13, kind: input, shape index: {}]
  %s14 = inlined_call_operand.hbm [shape: f32[2,1,128], index: 14, kind: input, shape index: {}]
  %s15 = inlined_call_operand.hbm [shape: f32[2,1,128], index: 15, kind: input, shape index: {}]
  %s16 = inlined_call_operand.hbm [shape: f32[2,1,128], index: 16, kind: input, shape index: {}]
  %s17 = inlined_call_operand.hbm [shape: bf16[2,128,256], index: 17, kind: input, shape index: {}]
  %s18 = inlined_call_operand.hbm [shape: f32[2,1,256], index: 18, kind: input, shape index: {}]
  %s19 = inlined_call_operand.hbm [shape: bf16[2,256,128], index: 19, kind: input, shape index: {}]
  %s20 = inlined_call_operand.hbm [shape: f32[2,1,128], index: 20, kind: input, shape index: {}]
  %s21 = inlined_call_operand.vmem [shape: bf16[128,64], index: 21, kind: input, shape index: {}]
  %s22 = inlined_call_operand.hbm [shape: f32[1,64], index: 22, kind: input, shape index: {}]
  %s23 = inlined_call_operand.vmem [shape: s32[2], index: 23, kind: input, shape index: {}]
  %s24 = inlined_call_operand.hbm [shape: f32[1,1], index: 24, kind: output, shape index: {}]
  %s25 = sld [smem:[#allocation0]]
  $region182: #{node_gpt_forward.1} parent=0
    _
  %s27 = ssub.s32 1, %s25
  %s28 = scalar_select 0, %s27, %s25
  $region1: #{node_gpt_forward.1} parent=0
    #allocation2 [shape = 'u8[3072]{0}', space=vmem, size = 0xc00, scoped, tag = 'input window, operand 2, single buffered']
    #allocation3 [shape = 's32[1]{0}', space=sflag, size = 0x4, scoped, tag = 'scoped memory for node_gpt_forward.1']
    #allocation4 [shape = 's32[1]{0}', space=sflag, size = 0x4, scoped, tag = 'scoped memory for node_gpt_forward.1']
    #allocation5 [shape = 's32[1]{0}', space=sflag, size = 0x4, scoped, tag = 'scoped memory for node_gpt_forward.1']
    #allocation6 [shape = 'u8[65536]{0}', space=vmem, size = 0x10000, scoped, tag = 'input window, operand 5, single buffered']
    #allocation7 [shape = 's32[1]{0}', space=sflag, size = 0x4, scoped, tag = 'scoped memory for node_gpt_forward.1']
    #allocation8 [shape = 'u8[1024]{0}', space=vmem, size = 0x400, scoped, tag = 'input window, operand 6, single buffered']
    #allocation9 [shape = 'u8[131072]{0}', space=vmem, size = 0x20000, scoped, tag = 'input window, operand 7, single buffered']
    #allocation10 [shape = 's32[1]{0}', space=sflag, size = 0x4, scoped, tag = 'scoped memory for node_gpt_forward.1']
    #allocation11 [shape = 'u8[2048]{0}', space=vmem, size = 0x800, scoped, tag = 'input window, operand 8, single buffered']
    #allocation12 [shape = 'u8[65536]{0}', space=vmem, size = 0x10000, scoped, tag = 'input window, operand 9, single buffered']
    #allocation13 [shape = 's32[1]{0}', space=sflag, size = 0x4, scoped, tag = 'scoped memory for node_gpt_forward.1']
    #allocation14 [shape = 'u8[1024]{0}', space=vmem, size = 0x400, scoped, tag = 'input window, operand 10, single buffered']
    #allocation15 [shape = 'u8[1024]{0}', space=vmem, size = 0x400, scoped, tag = 'input window, operand 11, single buffered']
    #allocation16 [shape = 's32[1]{0}', space=sflag, size = 0x4, scoped, tag = 'scoped memory for node_gpt_forward.1']
    #allocation17 [shape = 'u8[1024]{0}', space=vmem, size = 0x400, scoped, tag = 'input window, operand 12, single buffered']
    #allocation18 [shape = 'u8[1024]{0}', space=vmem, size = 0x400, scoped, tag = 'input window, operand 13, single buffered']
    #allocation19 [shape = 's32[1]{0}', space=sflag, size = 0x4, scoped, tag = 'scoped memory for node_gpt_forward.1']
    #allocation20 [shape = 'u8[1024]{0}', space=vmem, size = 0x400, scoped, tag = 'input window, operand 14, single buffered']
    #allocation21 [shape = 'u8[1024]{0}', space=vmem, size = 0x400, scoped, tag = 'input window, operand 15, single buffered']
    #allocation22 [shape = 's32[1]{0}', space=sflag, size = 0x4, scoped, tag = 'scoped memory for node_gpt_forward.1']
    #allocation23 [shape = 'u8[1024]{0}', space=vmem, size = 0x400, scoped, tag = 'input window, operand 16, single buffered']
    #allocation24 [shape = 'u8[131072]{0}', space=vmem, size = 0x20000, scoped, tag = 'input window, operand 17, single buffered']
    #allocation25 [shape = 's32[1]{0}', space=sflag, size = 0x4, scoped, tag = 'scoped memory for node_gpt_forward.1']
    #allocation26 [shape = 'u8[2048]{0}', space=vmem, size = 0x800, scoped, tag = 'input window, operand 18, single buffered']
    #allocation27 [shape = 'u8[131072]{0}', space=vmem, size = 0x20000, scoped, tag = 'input window, operand 19, single buffered']
    #allocation28 [shape = 's32[1]{0}', space=sflag, size = 0x4, scoped, tag = 'scoped memory for node_gpt_forward.1']
    #allocation29 [shape = 'u8[1024]{0}', space=vmem, size = 0x400, scoped, tag = 'input window, operand 20, single buffered']
    #allocation30 [shape = 'u8[512]{0}', space=vmem, size = 0x400, scoped, tag = 'input window, operand 22, single buffered']
    #allocation31 [shape = 's32[1]{0}', space=sflag, size = 0x4, scoped, tag = 'scoped memory for node_gpt_forward.1']
    #allocation32 [shape = 'u8[512]{0}', space=smem, size = 0x200, scoped, tag = 'input window, operand 23, single buffered']
    #allocation33 [shape = 'u8[512]{0}', space=vmem, size = 0x400, scoped, tag = 'output window, operand 0, single buffered']
    %29 = vsyncpa [#allocation3], 0
    %30 = vsyncpa [#allocation7], 0
    %31 = vsyncpa [#allocation10], 0
    %32 = vsyncpa [#allocation13], 0
    %33 = vsyncpa [#allocation16], 0
    %34 = vsyncpa [#allocation19], 0
    %35 = vsyncpa [#allocation22], 0
    %36 = vsyncpa [#allocation25], 0
    %37 = vsyncpa [#allocation28], 0
    %38 = vsyncpa [#allocation31], 0
    %39 = vsyncpa [#allocation5], 0
    %40 = vsyncpa [#allocation4], 0
    // Predicated region
    $region2: #{node_gpt_forward.1} parent=1 // pred_check
      _
    $region3: #{node_gpt_forward.1} parent=1 // pred_check_branch
      %42 = sbr.rel (0) target = $region5
    $region4: #{node_gpt_forward.1} parent=1 // pred_region
      _
    $region5: #{node_gpt_forward.1} parent=1 // pred_fallthru
      _
    // Predicated region
    $region6: #{node_gpt_forward.1} parent=1 // pred_check
      _
    $region7: #{node_gpt_forward.1} parent=1 // pred_check_branch
      %44 = sbr.rel (0) target = $region9
    $region8: #{node_gpt_forward.1} parent=1 // pred_region
      _
    $region9: #{node_gpt_forward.1} parent=1 // pred_fallthru
      _
    // Predicated region
    $region10: #{node_gpt_forward.1} parent=1 // pred_check
      _
    $region11: #{node_gpt_forward.1} parent=1 // pred_check_branch
      %46 = sbr.rel (0) target = $region13
    $region12: #{node_gpt_forward.1} parent=1 // pred_region
      %s48 = ssub.s32 96, 96
      %49 = vsyncadd [#allocation3], %s48
      %s50 = sshll.u32 [#allocation2], 4
      %s51 = int_to_ptr.vmem [resolvable:$true] %s50
      %56 = dma.hbm_to_vmem [thread:$0]  %s2, 96, %s51, [#allocation3], 48, 48, 3
    $region13: #{node_gpt_forward.1} parent=1 // pred_fallthru
      _
    // Predicated region
    $region14: #{node_gpt_forward.1} parent=1 // pred_check
      _
    $region15: #{node_gpt_forward.1} parent=1 // pred_check_branch
      %58 = sbr.rel (0) target = $region17
    $region16: #{node_gpt_forward.1} parent=1 // pred_region
      _
    $region17: #{node_gpt_forward.1} parent=1 // pred_fallthru
      _
    // Predicated region
    $region18: #{node_gpt_forward.1} parent=1 // pred_check
      _
    $region19: #{node_gpt_forward.1} parent=1 // pred_check_branch
      %60 = sbr.rel (0) target = $region21
    $region20: #{node_gpt_forward.1} parent=1 // pred_region
      _
    $region21: #{node_gpt_forward.1} parent=1 // pred_fallthru
      _
    // Predicated region
    $region22: #{node_gpt_forward.1} parent=1 // pred_check
      _
    $region23: #{node_gpt_forward.1} parent=1 // pred_check_branch
      %62 = sbr.rel (0) target = $region25
    $region24: #{node_gpt_forward.1} parent=1 // pred_region
      %s64 = ssub.s32 2048, 2048
      %65 = vsyncadd [#allocation7], %s64
      %s66 = sshll.u32 [#allocation6], 4
      %s67 = int_to_ptr.vmem [resolvable:$true] %s66
      %72 = dma.hbm_to_vmem [thread:$0]  %s5, 2048, %s67, [#allocation7], 64, 64, 4
    $region25: #{node_gpt_forward.1} parent=1 // pred_fallthru
      _
    // Predicated region
    $region26: #{node_gpt_forward.1} parent=1 // pred_check
      _
    $region27: #{node_gpt_forward.1} parent=1 // pred_check_branch
      %74 = sbr.rel (0) target = $region29
    $region28: #{node_gpt_forward.1} parent=1 // pred_region
      %s76 = ssub.s32 32, 32
      %77 = vsyncadd [#allocation7], %s76
      %s78 = sshll.u32 [#allocation8], 4
      %s79 = int_to_ptr.vmem [resolvable:$true] %s78
      %84 = dma.hbm_to_vmem [thread:$0]  %s6, 32, %s79, [#allocation7], 16, 16, 1
    $region29: #{node_gpt_forward.1} parent=1 // pred_fallthru
      _
    // Predicated region
    $region30: #{node_gpt_forward.1} parent=1 // pred_check
      _
    $region31: #{node_gpt_forward.1} parent=1 // pred_check_branch
      %86 = sbr.rel (0) target = $region33
    $region32: #{node_gpt_forward.1} parent=1 // pred_region
      %s88 = ssub.s32 4096, 4096
      %89 = vsyncadd [#allocation10], %s88
      %s90 = sshll.u32 [#allocation9], 4
      %s91 = int_to_ptr.vmem [resolvable:$true] %s90
      %96 = dma.hbm_to_vmem [thread:$0]  %s7, 4096, %s91, [#allocation10], 128, 128, 8
    $region33: #{node_gpt_forward.1} parent=1 // pred_fallthru
      _
    // Predicated region
    $region34: #{node_gpt_forward.1} parent=1 // pred_check
      _
    $region35: #{node_gpt_forward.1} parent=1 // pred_check_branch
      %98 = sbr.rel (0) target = $region37
    $region36: #{node_gpt_forward.1} parent=1 // pred_region
      %s100 = ssub.s32 64, 64
      %101 = vsyncadd [#allocation10], %s100
      %s102 = sshll.u32 [#allocation11], 4
      %s103 = int_to_ptr.vmem [resolvable:$true] %s102
      %108 = dma.hbm_to_vmem [thread:$0]  %s8, 64, %s103, [#allocation10], 32, 32, 2
    $region37: #{node_gpt_forward.1} parent=1 // pred_fallthru
      _
    // Predicated region
    $region38: #{node_gpt_forward.1} parent=1 // pred_check
      _
    $region39: #{node_gpt_forward.1} parent=1 // pred_check_branch
      %110 = sbr.rel (0) target = $region41
    $region40: #{node_gpt_forward.1} parent=1 // pred_region
      %s112 = ssub.s32 2048, 2048
      %113 = vsyncadd [#allocation13], %s112
      %s114 = sshll.u32 [#allocation12], 4
      %s115 = int_to_ptr.vmem [resolvable:$true] %s114
      %120 = dma.hbm_to_vmem [thread:$0]  %s9, 2048, %s115, [#allocation13], 64, 64, 4
    $region41: #{node_gpt_forward.1} parent=1 // pred_fallthru
      _
    // Predicated region
    $region42: #{node_gpt_forward.1} parent=1 // pred_check
      _
    $region43: #{node_gpt_forward.1} parent=1 // pred_check_branch
      %122 = sbr.rel (0) target = $region45
    $region44: #{node_gpt_forward.1} parent=1 // pred_region
      %s124 = ssub.s32 32, 32
      %125 = vsyncadd [#allocation13], %s124
      %s126 = sshll.u32 [#allocation14], 4
      %s127 = int_to_ptr.vmem [resolvable:$true] %s126
      %132 = dma.hbm_to_vmem [thread:$0]  %s10, 32, %s127, [#allocation13], 16, 16, 1
    $region45: #{node_gpt_forward.1} parent=1 // pred_fallthru
      _
    // Predicated region
    $region46: #{node_gpt_forward.1} parent=1 // pred_check
      _
    $region47: #{node_gpt_forward.1} parent=1 // pred_check_branch
      %134 = sbr.rel (0) target = $region49
    $region48: #{node_gpt_forward.1} parent=1 // pred_region
      %s136 = ssub.s32 32, 32
      %137 = vsyncadd [#allocation16], %s136
      %s138 = sshll.u32 [#allocation15], 4
      %s139 = int_to_ptr.vmem [resolvable:$true] %s138
      %144 = dma.hbm_to_vmem [thread:$0]  %s11, 32, %s139, [#allocation16], 16, 16, 1
    $region49: #{node_gpt_forward.1} parent=1 // pred_fallthru
      _
    // Predicated region
    $region50: #{node_gpt_forward.1} parent=1 // pred_check
      _
    $region51: #{node_gpt_forward.1} parent=1 // pred_check_branch
      %146 = sbr.rel (0) target = $region53
    $region52: #{node_gpt_forward.1} parent=1 // pred_region
      %s148 = ssub.s32 32, 32
      %149 = vsyncadd [#allocation16], %s148
      %s150 = sshll.u32 [#allocation17], 4
      %s151 = int_to_ptr.vmem [resolvable:$true] %s150
      %156 = dma.hbm_to_vmem [thread:$0]  %s12, 32, %s151, [#allocation16], 16, 16, 1
    $region53: #{node_gpt_forward.1} parent=1 // pred_fallthru
      _
    // Predicated region
    $region54: #{node_gpt_forward.1} parent=1 // pred_check
      _
    $region55: #{node_gpt_forward.1} parent=1 // pred_check_branch
      %158 = sbr.rel (0) target = $region57
    $region56: #{node_gpt_forward.1} parent=1 // pred_region
      %s160 = ssub.s32 32, 32
      %161 = vsyncadd [#allocation19], %s160
      %s162 = sshll.u32 [#allocation18], 4
      %s163 = int_to_ptr.vmem [resolvable:$true] %s162
      %168 = dma.hbm_to_vmem [thread:$0]  %s13, 32, %s163, [#allocation19], 16, 16, 1
    $region57: #{node_gpt_forward.1} parent=1 // pred_fallthru
      _
    // Predicated region
    $region58: #{node_gpt_forward.1} parent=1 // pred_check
      _
    $region59: #{node_gpt_forward.1} parent=1 // pred_check_branch
      %170 = sbr.rel (0) target = $region61
    $region60: #{node_gpt_forward.1} parent=1 // pred_region
      %s172 = ssub.s32 32, 32
      %173 = vsyncadd [#allocation19], %s172
      %s174 = sshll.u32 [#allocation20], 4
      %s175 = int_to_ptr.vmem [resolvable:$true] %s174
      %180 = dma.hbm_to_vmem [thread:$0]  %s14, 32, %s175, [#allocation19], 16, 16, 1
    $region61: #{node_gpt_forward.1} parent=1 // pred_fallthru
      _
    // Predicated region
    $region62: #{node_gpt_forward.1} parent=1 // pred_check
      _
    $region63: #{node_gpt_forward.1} parent=1 // pred_check_branch
      %182 = sbr.rel (0) target = $region65
    $region64: #{node_gpt_forward.1} parent=1 // pred_region
      %s184 = ssub.s32 32, 32
      %185 = vsyncadd [#allocation22], %s184
      %s186 = sshll.u32 [#allocation21], 4
      %s187 = int_to_ptr.vmem [resolvable:$true] %s186
      %192 = dma.hbm_to_vmem [thread:$0]  %s15, 32, %s187, [#allocation22], 16, 16, 1
    $region65: #{node_gpt_forward.1} parent=1 // pred_fallthru
      _
    // Predicated region
    $region66: #{node_gpt_forward.1} parent=1 // pred_check
      _
    $region67: #{node_gpt_forward.1} parent=1 // pred_check_branch
      %194 = sbr.rel (0) target = $region69
    $region68: #{node_gpt_forward.1} parent=1 // pred_region
      %s196 = ssub.s32 32, 32
      %197 = vsyncadd [#allocation22], %s196
      %s198 = sshll.u32 [#allocation23], 4
      %s199 = int_to_ptr.vmem [resolvable:$true] %s198
      %204 = dma.hbm_to_vmem [thread:$0]  %s16, 32, %s199, [#allocation22], 16, 16, 1
    $region69: #{node_gpt_forward.1} parent=1 // pred_fallthru
      _
    // Predicated region
    $region70: #{node_gpt_forward.1} parent=1 // pred_check
      _
    $region71: #{node_gpt_forward.1} parent=1 // pred_check_branch
      %206 = sbr.rel (0) target = $region73
    $region72: #{node_gpt_forward.1} parent=1 // pred_region
      %s208 = ssub.s32 4096, 4096
      %209 = vsyncadd [#allocation25], %s208
      %s210 = sshll.u32 [#allocation24], 4
      %s211 = int_to_ptr.vmem [resolvable:$true] %s210
      %216 = dma.hbm_to_vmem [thread:$0]  %s17, 4096, %s211, [#allocation25], 128, 128, 8
    $region73: #{node_gpt_forward.1} parent=1 // pred_fallthru
      _
    // Predicated region
    $region74: #{node_gpt_forward.1} parent=1 // pred_check
      _
    $region75: #{node_gpt_forward.1} parent=1 // pred_check_branch
      %218 = sbr.rel (0) target = $region77
    $region76: #{node_gpt_forward.1} parent=1 // pred_region
      %s220 = ssub.s32 64, 64
      %221 = vsyncadd [#allocation25], %s220
      %s222 = sshll.u32 [#allocation26], 4
      %s223 = int_to_ptr.vmem [resolvable:$true] %s222
      %228 = dma.hbm_to_vmem [thread:$0]  %s18, 64, %s223, [#allocation25], 32, 32, 2
    $region77: #{node_gpt_forward.1} parent=1 // pred_fallthru
      _
    // Predicated region
    $region78: #{node_gpt_forward.1} parent=1 // pred_check
      _
    $region79: #{node_gpt_forward.1} parent=1 // pred_check_branch
      %230 = sbr.rel (0) target = $region81
    $region80: #{node_gpt_forward.1} parent=1 // pred_region
      %s232 = ssub.s32 4096, 4096
      %233 = vsyncadd [#allocation28], %s232
      %s234 = sshll.u32 [#allocation27], 4
      %s235 = int_to_ptr.vmem [resolvable:$true] %s234
      %240 = dma.hbm_to_vmem [thread:$0]  %s19, 4096, %s235, [#allocation28], 64, 64, 4
    $region81: #{node_gpt_forward.1} parent=1 // pred_fallthru
      _
    // Predicated region
    $region82: #{node_gpt_forward.1} parent=1 // pred_check
      _
    $region83: #{node_gpt_forward.1} parent=1 // pred_check_branch
      %242 = sbr.rel (0) target = $region85
    $region84: #{node_gpt_forward.1} parent=1 // pred_region
      %s244 = ssub.s32 32, 32
      %245 = vsyncadd [#allocation28], %s244
      %s246 = sshll.u32 [#allocation29], 4
      %s247 = int_to_ptr.vmem [resolvable:$true] %s246
      %252 = dma.hbm_to_vmem [thread:$0]  %s20, 32, %s247, [#allocation28], 16, 16, 1
    $region85: #{node_gpt_forward.1} parent=1 // pred_fallthru
      _
    // Predicated region
    $region86: #{node_gpt_forward.1} parent=1 // pred_check
      _
    $region87: #{node_gpt_forward.1} parent=1 // pred_check_branch
      %254 = sbr.rel (0) target = $region89
    $region88: #{node_gpt_forward.1} parent=1 // pred_region
      _
    $region89: #{node_gpt_forward.1} parent=1 // pred_fallthru
      _
    // Predicated region
    $region90: #{node_gpt_forward.1} parent=1 // pred_check
      _
    $region91: #{node_gpt_forward.1} parent=1 // pred_check_branch
      %256 = sbr.rel (0) target = $region93
    $region92: #{node_gpt_forward.1} parent=1 // pred_region
      %s258 = ssub.s32 16, 16
      %259 = vsyncadd [#allocation31], %s258
      %s261 = sshll.u32 [#allocation30], 4
      %s262 = int_to_ptr.vmem [resolvable:$true] %s261
      %264 = dma.hbm_to_vmem [thread:$0]  %s22, 16, %s262, [#allocation31]
    $region93: #{node_gpt_forward.1} parent=1 // pred_fallthru
      _
    // Predicated region
    $region94: #{node_gpt_forward.1} parent=1 // pred_check
      _
    $region95: #{node_gpt_forward.1} parent=1 // pred_check_branch
      %266 = sbr.rel (0) target = $region97
    $region96: #{node_gpt_forward.1} parent=1 // pred_region
      %s268 = ssub.s32 16, 16
      %269 = vsyncadd [#allocation5], %s268
      %s271 = sshll.u32 %s23, 4
      %s272 = int_to_ptr.vmem [resolvable:$true] %s271
      %274 = dma.vmem_to_smem %s272, 16, [#allocation32], [#allocation5]
    $region97: #{node_gpt_forward.1} parent=1 // pred_fallthru
      _
    // Predicated region
    $region98: #{node_gpt_forward.1} parent=1 // pred_check
      _
    $region99: #{node_gpt_forward.1} parent=1 // pred_check_branch
      %276 = sbr.rel (0) target = $region101
    $region100: #{node_gpt_forward.1} parent=1 // pred_region
      %277 = dma.done [#allocation3], 96
    $region101: #{node_gpt_forward.1} parent=1 // pred_fallthru
      _
    // Predicated region
    $region102: #{node_gpt_forward.1} parent=1 // pred_check
      _
    $region103: #{node_gpt_forward.1} parent=1 // pred_check_branch
      %279 = sbr.rel (0) target = $region105
    $region104: #{node_gpt_forward.1} parent=1 // pred_region
      %280 = dma.done [#allocation7], 2048
    $region105: #{node_gpt_forward.1} parent=1 // pred_fallthru
      _
    // Predicated region
    $region106: #{node_gpt_forward.1} parent=1 // pred_check
      _
    $region107: #{node_gpt_forward.1} parent=1 // pred_check_branch
      %282 = sbr.rel (0) target = $region109
    $region108: #{node_gpt_forward.1} parent=1 // pred_region
      %283 = dma.done [#allocation7], 32
    $region109: #{node_gpt_forward.1} parent=1 // pred_fallthru
      _
    // Predicated region
    $region110: #{node_gpt_forward.1} parent=1 // pred_check
      _
    $region111: #{node_gpt_forward.1} parent=1 // pred_check_branch
      %285 = sbr.rel (0) target = $region113
    $region112: #{node_gpt_forward.1} parent=1 // pred_region
      %286 = dma.done [#allocation10], 4096
    $region113: #{node_gpt_forward.1} parent=1 // pred_fallthru
      _
    // Predicated region
    $region114: #{node_gpt_forward.1} parent=1 // pred_check
      _
    $region115: #{node_gpt_forward.1} parent=1 // pred_check_branch
      %288 = sbr.rel (0) target = $region117
    $region116: #{node_gpt_forward.1} parent=1 // pred_region
      %289 = dma.done [#allocation10], 64
    $region117: #{node_gpt_forward.1} parent=1 // pred_fallthru
      _
    // Predicated region
    $region118: #{node_gpt_forward.1} parent=1 // pred_check
      _
    $region119: #{node_gpt_forward.1} parent=1 // pred_check_branch
      %291 = sbr.rel (0) target = $region121
    $region120: #{node_gpt_forward.1} parent=1 // pred_region
      %292 = dma.done [#allocation13], 2048
    $region121: #{node_gpt_forward.1} parent=1 // pred_fallthru
      _
    // Predicated region
    $region122: #{node_gpt_forward.1} parent=1 // pred_check
      _
    $region123: #{node_gpt_forward.1} parent=1 // pred_check_branch
      %294 = sbr.rel (0) target = $region125
    $region124: #{node_gpt_forward.1} parent=1 // pred_region
      %295 = dma.done [#allocation13], 32
    $region125: #{node_gpt_forward.1} parent=1 // pred_fallthru
      _
    // Predicated region
    $region126: #{node_gpt_forward.1} parent=1 // pred_check
      _
    $region127: #{node_gpt_forward.1} parent=1 // pred_check_branch
      %297 = sbr.rel (0) target = $region129
    $region128: #{node_gpt_forward.1} parent=1 // pred_region
      %298 = dma.done [#allocation16], 32
    $region129: #{node_gpt_forward.1} parent=1 // pred_fallthru
      _
    // Predicated region
    $region130: #{node_gpt_forward.1} parent=1 // pred_check
      _
    $region131: #{node_gpt_forward.1} parent=1 // pred_check_branch
      %300 = sbr.rel (0) target = $region133
    $region132: #{node_gpt_forward.1} parent=1 // pred_region
      %301 = dma.done [#allocation16], 32
    $region133: #{node_gpt_forward.1} parent=1 // pred_fallthru
      _
    // Predicated region
    $region134: #{node_gpt_forward.1} parent=1 // pred_check
      _
    $region135: #{node_gpt_forward.1} parent=1 // pred_check_branch
      %303 = sbr.rel (0) target = $region137
    $region136: #{node_gpt_forward.1} parent=1 // pred_region
      %304 = dma.done [#allocation19], 32
    $region137: #{node_gpt_forward.1} parent=1 // pred_fallthru
      _
    // Predicated region
    $region138: #{node_gpt_forward.1} parent=1 // pred_check
      _
    $region139: #{node_gpt_forward.1} parent=1 // pred_check_branch
      %306 = sbr.rel (0) target = $region141
    $region140: #{node_gpt_forward.1} parent=1 // pred_region
      %307 = dma.done [#allocation19], 32
    $region141: #{node_gpt_forward.1} parent=1 // pred_fallthru
      _
    // Predicated region
    $region142: #{node_gpt_forward.1} parent=1 // pred_check
      _
    $region143: #{node_gpt_forward.1} parent=1 // pred_check_branch
      %309 = sbr.rel (0) target = $region145
    $region144: #{node_gpt_forward.1} parent=1 // pred_region
      %310 = dma.done [#allocation22], 32
    $region145: #{node_gpt_forward.1} parent=1 // pred_fallthru
      _
    // Predicated region
    $region146: #{node_gpt_forward.1} parent=1 // pred_check
      _
    $region147: #{node_gpt_forward.1} parent=1 // pred_check_branch
      %312 = sbr.rel (0) target = $region149
    $region148: #{node_gpt_forward.1} parent=1 // pred_region
      %313 = dma.done [#allocation22], 32
    $region149: #{node_gpt_forward.1} parent=1 // pred_fallthru
      _
    // Predicated region
    $region150: #{node_gpt_forward.1} parent=1 // pred_check
      _
    $region151: #{node_gpt_forward.1} parent=1 // pred_check_branch
      %315 = sbr.rel (0) target = $region153
    $region152: #{node_gpt_forward.1} parent=1 // pred_region
      %316 = dma.done [#allocation25], 4096
    $region153: #{node_gpt_forward.1} parent=1 // pred_fallthru
      _
    // Predicated region
    $region154: #{node_gpt_forward.1} parent=1 // pred_check
      _
    $region155: #{node_gpt_forward.1} parent=1 // pred_check_branch
      %318 = sbr.rel (0) target = $region157
    $region156: #{node_gpt_forward.1} parent=1 // pred_region
      %319 = dma.done [#allocation25], 64
    $region157: #{node_gpt_forward.1} parent=1 // pred_fallthru
      _
    // Predicated region
    $region158: #{node_gpt_forward.1} parent=1 // pred_check
      _
    $region159: #{node_gpt_forward.1} parent=1 // pred_check_branch
      %321 = sbr.rel (0) target = $region161
    $region160: #{node_gpt_forward.1} parent=1 // pred_region
      %322 = dma.done [#allocation28], 4096
    $region161: #{node_gpt_forward.1} parent=1 // pred_fallthru
      _
    // Predicated region
    $region162: #{node_gpt_forward.1} parent=1 // pred_check
      _
    $region163: #{node_gpt_forward.1} parent=1 // pred_check_branch
      %324 = sbr.rel (0) target = $region165
    $region164: #{node_gpt_forward.1} parent=1 // pred_region
      %325 = dma.done [#allocation28], 32
    $region165: #{node_gpt_forward.1} parent=1 // pred_fallthru
      _
    // Predicated region
    $region166: #{node_gpt_forward.1} parent=1 // pred_check
      _
    $region167: #{node_gpt_forward.1} parent=1 // pred_check_branch
      %327 = sbr.rel (0) target = $region169
    $region168: #{node_gpt_forward.1} parent=1 // pred_region
      %328 = dma.done [#allocation31], 16
    $region169: #{node_gpt_forward.1} parent=1 // pred_fallthru
      _
    // Predicated region
    $region170: #{node_gpt_forward.1} parent=1 // pred_check
      _
    $region171: #{node_gpt_forward.1} parent=1 // pred_check_branch
      %330 = sbr.rel (0) target = $region173
    $region172: #{node_gpt_forward.1} parent=1 // pred_region
      %331 = dma.done [#allocation5], 16
    $region173: #{node_gpt_forward.1} parent=1 // pred_fallthru
      _
    %332 = sfence
    %v334 = vlaneseq
    %v335 = vand.u32 %v334, 127
    %vm336 = vcmp.ge.s32.totalorder %v335, 0
    %vm337 = vcmp.lt.s32.totalorder %v335, 32
    %vm338 = vmand %vm336, %vm337
    %v339 = vsel %vm338, 1.0, 0.0
    %vm340 = vcmp.ge.s32.totalorder %v335, 32
    %vm341 = vcmp.lt.s32.totalorder %v335, 64
    %vm342 = vmand %vm340, %vm341
    %v343 = vsel %vm342, 1.0, 0.0
    %vm344 = vcmp.ge.s32.totalorder %v335, 64
    %vm345 = vcmp.lt.s32.totalorder %v335, 96
    %vm346 = vmand %vm344, %vm345
    %v347 = vsel %vm346, 1.0, 0.0
    %vm348 = vcmp.ge.s32.totalorder %v335, 96
    %vm349 = vcmp.lt.s32.totalorder %v335, 128
    %vm350 = vmand %vm348, %vm349
    %v351 = vsel %vm350, 1.0, 0.0
    %v352 = vlaneseq
    %v353 = vshrl.u32 %v352, 7
    %v354 = vadd.s32 %v353, 8
    %v355 = vadd.s32 %v353, 16
    %vm356 = vcmp.ge.s32.totalorder %v353, 0
    %vm357 = vcmp.ge.s32.totalorder %v354, 0
    %vm358 = vcmp.ge.s32.totalorder %v355, 0
    %vm359 = vcmp.lt.s32.totalorder %v353, 10
    %vm360 = vcmp.lt.s32.totalorder %v354, 10
    %vm361 = vcmp.lt.s32.totalorder %v355, 10
    %vm362 = vmand %vm356, %vm359
    %vm363 = vmand %vm357, %vm360
    %vm364 = vmand %vm358, %vm361
    %vm365 = vcmp.lt.s32.totalorder %v335, 10
    %vm366 = vmand %vm336, %vm365
    %v367 = vsel %vm362, 1, 0
    %v368 = vsel %vm363, 1, 0
    %v369 = vsel %vm364, 1, 0
    %vm370 = vcmp.eq.s32.totalorder %v367, 1
    %vm371 = vcmp.eq.s32.totalorder %v368, 1
    %vm372 = vcmp.eq.s32.totalorder %v369, 1
    %v373 = vsel %vm366, 1, 0
    %vm374 = vcmp.eq.s32.totalorder %v373, 1
    %vm375 = vmand %vm370, %vm374
    %vm376 = vmand %vm371, %vm374
    %vm377 = vmand %vm372, %vm374
    %v378 = vsel %vm375, 1.0, 0.0
    %v379 = vsel %vm376, 1.0, 0.0
    %v380 = vsel %vm377, 1.0, 0.0
    %v381 = vadd.f32 %v378, 0.0
    %v382 = vadd.f32 %v379, 0.0
    %v383 = vadd.f32 %v380, 0.0
    %vm384 = vcmp.ge.s32.totalorder %v353, 10
    %vm385 = vcmp.ge.s32.totalorder %v354, 10
    %vm386 = vcmp.ge.s32.totalorder %v355, 10
    %vm387 = vcmp.lt.s32.totalorder %v353, 20
    %vm388 = vcmp.lt.s32.totalorder %v354, 20
    %vm389 = vcmp.lt.s32.totalorder %v355, 20
    %vm390 = vmand %vm384, %vm387
    %vm391 = vmand %vm385, %vm388
    %vm392 = vmand %vm386, %vm389
    %vm393 = vcmp.ge.s32.totalorder %v335, 10
    %vm394 = vcmp.lt.s32.totalorder %v335, 20
    %vm395 = vmand %vm393, %vm394
    %v396 = vsel %vm390, 1, 0
    %v397 = vsel %vm391, 1, 0
    %v398 = vsel %vm392, 1, 0
    %vm399 = vcmp.eq.s32.totalorder %v396, 1
    %vm400 = vcmp.eq.s32.totalorder %v397, 1
    %vm401 = vcmp.eq.s32.totalorder %v398, 1
    %v402 = vsel %vm395, 1, 0
    %vm403 = vcmp.eq.s32.totalorder %v402, 1
    %vm404 = vmand %vm399, %vm403
    %vm405 = vmand %vm400, %vm403
    %vm406 = vmand %vm401, %vm403
    %v407 = vsel %vm404, 1.0, 0.0
    %v408 = vsel %vm405, 1.0, 0.0
    %v409 = vsel %vm406, 1.0, 0.0
    %v410 = vadd.f32 %v381, %v407
    %v411 = vadd.f32 %v382, %v408
    %v412 = vadd.f32 %v383, %v409
    %vm413 = vcmp.gt.f32.partialorder %v410, 0.5
    %vm414 = vcmp.gt.f32.partialorder %v411, 0.5
    %vm415 = vcmp.gt.f32.partialorder %v412, 0.5
    %v416 = vsel %vm413, 0.0, -1e+30
    %v417 = vsel %vm414, 0.0, -1e+30
    %v418 = vsel %vm415, 0.0, -1e+30
    %v419 = vld [vmem:[%s0] sm:$0xff]
    %v420 = vld [vmem:[%s0 + $0x8] sm:$0xff]
    %v421 = vld [vmem:[%s0 + $0x10] sm:$0xf]
    %v422 = vld [vmem:[%s1] sm:$0xff]
    %v423 = vld [vmem:[%s1 + $0x8] sm:$0xf]
    %v424 = vld [vmem:[%s1 + $0xc] sm:$0xff]
    %v425 = vld [vmem:[%s1 + $0x14] sm:$0xf]
    %v426 = vld [vmem:[%s1 + $0x18] sm:$0xff]
    %v427 = vld [vmem:[%s1 + $0x20] sm:$0xf]
    %v428 = vld [vmem:[%s1 + $0x24] sm:$0xff]
    %v429 = vld [vmem:[%s1 + $0x2c] sm:$0xf]
    %v430 = vld [vmem:[%s1 + $0x30] sm:$0xff]
    %v431 = vld [vmem:[%s1 + $0x38] sm:$0xf]
    %v432 = vld [vmem:[%s1 + $0x3c] sm:$0xff]
    %v433 = vld [vmem:[%s1 + $0x44] sm:$0xf]
    %v434 = vld [vmem:[%s1 + $0x48] sm:$0xff]
    %v435 = vld [vmem:[%s1 + $0x50] sm:$0xf]
    %v436 = vld [vmem:[%s1 + $0x54] sm:$0xff]
    %v437 = vld [vmem:[%s1 + $0x5c] sm:$0xf]
    %v438 = vld [vmem:[%s1 + $0x60] sm:$0xff]
    %v439 = vld [vmem:[%s1 + $0x68] sm:$0xf]
    %v440 = vld [vmem:[%s1 + $0x6c] sm:$0xff]
    %v441 = vld [vmem:[%s1 + $0x74] sm:$0xf]
    %v442 = vld [vmem:[%s1 + $0x78] sm:$0xff]
    %v443 = vld [vmem:[%s1 + $0x80] sm:$0xf]
    %v444 = vld [vmem:[%s1 + $0x84] sm:$0xff]
    %v445 = vld [vmem:[%s1 + $0x8c] sm:$0xf]
    %v446 = vld [vmem:[%s1 + $0x90] sm:$0xff]
    %v447 = vld [vmem:[%s1 + $0x98] sm:$0xf]
    %v448 = vld [vmem:[%s1 + $0x9c] sm:$0xff]
    %v449 = vld [vmem:[%s1 + $0xa4] sm:$0xf]
    %v450 = vld [vmem:[%s1 + $0xa8] sm:$0xff]
    %v451 = vld [vmem:[%s1 + $0xb0] sm:$0xf]
    %v452 = vld [vmem:[%s1 + $0xb4] sm:$0xff]
    %v453 = vld [vmem:[%s1 + $0xbc] sm:$0xf]
    %v454 = vld [vmem:[#allocation2] sm:$0x7]
    %v455 = vpack.c.bf16 %v420, %v419
    %v456 = vpack.c.bf16 %v421, %v421
    %v458 = vlaneseq
    %v459 = vshrl.u32 %v458, 7
    %v460 = vsub.s32 0, %v459
    %v461 = vrot.slane %v454, %v460
    %v462 = vlaneseq
    %v463 = vshrl.u32 %v462, 7
    %v464 = vsub.s32 1, %v463
    %v465 = vrot.slane %v454, %v464
    %v466 = vlaneseq
    %v467 = vshrl.u32 %v466, 7
    %v468 = vsub.s32 2, %v467
    %v469 = vrot.slane %v454, %v468
    %v505 = vunpack.c.l.b16 %v422
    %v506 = vunpack.c.h.b16 %v422
    %v507 = vunpack.c.l.b16 %v423
    %v508 = vunpack.c.l.b16 %v424
    %v509 = vunpack.c.h.b16 %v424
    %v510 = vunpack.c.l.b16 %v425
    %v511 = vunpack.c.l.b16 %v426
    %v512 = vunpack.c.h.b16 %v426
    %v513 = vunpack.c.l.b16 %v427
    %v514 = vunpack.c.l.b16 %v428
    %v515 = vunpack.c.h.b16 %v428
    %v516 = vunpack.c.l.b16 %v429
    %v517 = vunpack.c.l.b16 %v430
    %v518 = vunpack.c.h.b16 %v430
    %v519 = vunpack.c.l.b16 %v431
    %v520 = vunpack.c.l.b16 %v432
    %v521 = vunpack.c.h.b16 %v432
    %v522 = vunpack.c.l.b16 %v433
    %v523 = vunpack.c.l.b16 %v434
    %v524 = vunpack.c.h.b16 %v434
    %v525 = vunpack.c.l.b16 %v435
    %v526 = vunpack.c.l.b16 %v436
    %v527 = vunpack.c.h.b16 %v436
    %v528 = vunpack.c.l.b16 %v437
    %v529 = vunpack.c.l.b16 %v438
    %v530 = vunpack.c.h.b16 %v438
    %v531 = vunpack.c.l.b16 %v439
    %v532 = vunpack.c.l.b16 %v440
    %v533 = vunpack.c.h.b16 %v440
    %v534 = vunpack.c.l.b16 %v441
    %v535 = vunpack.c.l.b16 %v442
    %v536 = vunpack.c.h.b16 %v442
    %v537 = vunpack.c.l.b16 %v443
    %v538 = vunpack.c.l.b16 %v444
    %v539 = vunpack.c.h.b16 %v444
    %v540 = vunpack.c.l.b16 %v445
    %v541 = vunpack.c.l.b16 %v446
    %v542 = vunpack.c.h.b16 %v446
    %v543 = vunpack.c.l.b16 %v447
    %v544 = vunpack.c.l.b16 %v448
    %v545 = vunpack.c.h.b16 %v448
    %v546 = vunpack.c.l.b16 %v449
    %v547 = vunpack.c.l.b16 %v450
    %v548 = vunpack.c.h.b16 %v450
    %v549 = vunpack.c.l.b16 %v451
    %v550 = vunpack.c.l.b16 %v452
    %v551 = vunpack.c.h.b16 %v452
    %v552 = vunpack.c.l.b16 %v453
    %v553 = vpack.c.b16 %v508, %v505
    %v554 = vpack.c.b16 %v509, %v506
    %v555 = vpack.c.b16 %v510, %v507
    %v556 = vpack.c.b16 %v514, %v511
    %v557 = vpack.c.b16 %v515, %v512
    %v558 = vpack.c.b16 %v516, %v513
    %v559 = vpack.c.b16 %v520, %v517
    %v560 = vpack.c.b16 %v521, %v518
    %v561 = vpack.c.b16 %v522, %v519
    %v562 = vpack.c.b16 %v526, %v523
    %v563 = vpack.c.b16 %v527, %v524
    %v564 = vpack.c.b16 %v528, %v525
    %v565 = vpack.c.b16 %v532, %v529
    %v566 = vpack.c.b16 %v533, %v530
    %v567 = vpack.c.b16 %v534, %v531
    %v568 = vpack.c.b16 %v538, %v535
    %v569 = vpack.c.b16 %v539, %v536
    %v570 = vpack.c.b16 %v540, %v537
    %v571 = vpack.c.b16 %v544, %v541
    %v572 = vpack.c.b16 %v545, %v542
    %v573 = vpack.c.b16 %v546, %v543
    %v574 = vpack.c.b16 %v550, %v547
    %v575 = vpack.c.b16 %v551, %v548
    %v576 = vpack.c.b16 %v552, %v549
    %601 = vmatprep.subr.bf16.mxu0 %v554
    %602 = vmatpush1.bf16.msra.mxu0 %v553
    %603 = vmatprep.subr.bf16.mxu0 %v557
    %604 = vmatpush1.bf16.msra.mxu0 %v556
    %605 = vmatprep.subr.bf16.mxu0 %v560
    %606 = vmatpush1.bf16.msra.mxu0 %v559
    %607 = vmatprep.subr.bf16.mxu0 %v563
    %608 = vmatpush1.bf16.msra.mxu0 %v562
    %609 = vmatprep.subr.bf16.mxu0 %v566
    %610 = vmatpush1.bf16.msra.mxu0 %v565
    %611 = vmatprep.subr.bf16.mxu0 %v569
    %612 = vmatpush1.bf16.msra.mxu0 %v568
    %613 = vmatprep.subr.bf16.mxu0 %v572
    %614 = vmatpush1.bf16.msra.mxu0 %v571
    %615 = vmatprep.subr.bf16.mxu0 %v575
    %616 = vmatpush1.bf16.msra.mxu0 %v574
    %617 = vmatprep.subr.bf16.mxu0 0
    %618 = vmatpush1.bf16.msra.mxu0 0
    %619 = vmatprep.subr.bf16.mxu0 0
    %620 = vmatpush1.bf16.msra.mxu0 0
    %621 = vmatprep.subr.bf16.mxu0 0
    %622 = vmatpush1.bf16.msra.mxu0 0
    %623 = vmatprep.subr.bf16.mxu0 0
    %624 = vmatpush1.bf16.msra.mxu0 0
    %625 = vmatprep.subr.bf16.mxu0 0
    %626 = vmatpush1.bf16.msra.mxu0 0
    %627 = vmatprep.subr.bf16.mxu0 0
    %628 = vmatpush1.bf16.msra.mxu0 0
    %629 = vmatprep.subr.bf16.mxu0 0
    %630 = vmatpush1.bf16.msra.mxu0 0
    %631 = vmatprep.subr.bf16.mxu0 0
    %632 = vmatpush1.bf16.msra.mxu0 0
    %633 = vmatprep.mubr.bf16.mxu0 0
    %634 = vmatmul.mubr.bf16.gmra.mrb[0].mxu0 %v455
    %v635 = vpop.f32.mrb[0].mxu0
    %v636 = vadd.f32 %v461, %v635
    %v637 = vpop.f32.mrb[0].mxu0
    %v638 = vadd.f32 %v465, %v637
    %v639 = vpop.f32.mrb[0].mxu0
    %v640 = vadd.f32 %v461, %v639
    %v641 = vpop.f32.mrb[0].mxu0
    %v642 = vadd.f32 %v465, %v641
    %643 = vmatprep.mubr.bf16.mxu0 0
    %644 = vmatmul.mubr.bf16.gmra.mrb[0].mxu0 %v456
    %v645 = vpop.f32.mrb[0].mxu0
    %v646 = vadd.f32 %v461, %v645
    %v647 = vpop.f32.mrb[0].mxu0
    %v648 = vadd.f32 %v465, %v647
    %v649 = vpop.f32.mrb[0].mxu0
    %v650 = vpop.f32.mrb[0].mxu0
    %651 = vdwg.mxu0
    %652 = vmatprep.subr.bf16.mxu0 0
    %653 = vmatpush1.bf16.msra.mxu0 %v555
    %654 = vmatprep.subr.bf16.mxu0 0
    %655 = vmatpush1.bf16.msra.mxu0 %v558
    %656 = vmatprep.subr.bf16.mxu0 0
    %657 = vmatpush1.bf16.msra.mxu0 %v561
    %658 = vmatprep.subr.bf16.mxu0 0
    %659 = vmatpush1.bf16.msra.mxu0 %v564
    %660 = vmatprep.subr.bf16.mxu0 0
    %661 = vmatpush1.bf16.msra.mxu0 %v567
    %662 = vmatprep.subr.bf16.mxu0 0
    %663 = vmatpush1.bf16.msra.mxu0 %v570
    %664 = vmatprep.subr.bf16.mxu0 0
    %665 = vmatpush1.bf16.msra.mxu0 %v573
    %666 = vmatprep.subr.bf16.mxu0 0
    %667 = vmatpush1.bf16.msra.mxu0 %v576
    %668 = vmatprep.subr.bf16.mxu0 0
    %669 = vmatpush1.bf16.msra.mxu0 0
    %670 = vmatprep.subr.bf16.mxu0 0
    %671 = vmatpush1.bf16.msra.mxu0 0
    %672 = vmatprep.subr.bf16.mxu0 0
    %673 = vmatpush1.bf16.msra.mxu0 0
    %674 = vmatprep.subr.bf16.mxu0 0
    %675 = vmatpush1.bf16.msra.mxu0 0
    %676 = vmatprep.subr.bf16.mxu0 0
    %677 = vmatpush1.bf16.msra.mxu0 0
    %678 = vmatprep.subr.bf16.mxu0 0
    %679 = vmatpush1.bf16.msra.mxu0 0
    %680 = vmatprep.subr.bf16.mxu0 0
    %681 = vmatpush1.bf16.msra.mxu0 0
    %682 = vmatprep.subr.bf16.mxu0 0
    %683 = vmatpush1.bf16.msra.mxu0 0
    %684 = vmatprep.mubr.bf16.mxu0 0
    %685 = vmatmul.mubr.bf16.gmra.mrb[0].mxu0 %v455
    %v686 = vpop.f32.mrb[0].mxu0
    %v687 = vadd.f32 %v469, %v686
    %v688 = vpop.f32.mrb[0].mxu0
    %v689 = vpop.f32.mrb[0].mxu0
    %v690 = vadd.f32 %v469, %v689
    %v691 = vpop.f32.mrb[0].mxu0
    %692 = vmatprep.mubr.bf16.mxu0 0
    %693 = vmatmul.mubr.bf16.gmra.mrb[0].mxu0 %v456
    %v694 = vpop.f32.mrb[0].mxu0
    %v695 = vadd.f32 %v469, %v694
    %v696 = vpop.f32.mrb[0].mxu0
    %v697 = vpop.f32.mrb[0].mxu0
    %v698 = vpop.f32.mrb[0].mxu0
    %699 = vdwg.mxu0
    %v700 = vmul.f32 %v638, %v339
    %v701 = vmul.f32 %v642, %v339
    %v702 = vmul.f32 %v648, %v339
    %703 = vmatprep.subr.mxu0 0.0
    %704 = vmatpush1.xpose.msra.mxu0 %v700
    %705 = vmatprep.subr.mxu0 0.0
    %706 = vmatpush1.xpose.msra.mxu0 %v701
    %707 = vmatprep.subr.mxu0 0.0
    %708 = vmatpush1.xpose.msra.mxu0 %v702
    %709 = vmatprep.subr.mxu0 0.0
    %710 = vmatpush1.xpose.msra.mxu0 0.0
    %711 = vmatprep.subr.mxu0 0.0
    %712 = vmatpush1.xpose.msra.mxu0 0.0
    %713 = vmatprep.subr.mxu0 0.0
    %714 = vmatpush1.xpose.msra.mxu0 0.0
    %715 = vmatprep.subr.mxu0 0.0
    %716 = vmatpush1.xpose.msra.mxu0 0.0
    %717 = vmatprep.subr.mxu0 0.0
    %718 = vmatpush1.xpose.msra.mxu0 0.0
    %719 = vmatprep.subr.mxu0 0.0
    %720 = vmatpush1.xpose.msra.mxu0 0.0
    %721 = vmatprep.subr.mxu0 0.0
    %722 = vmatpush1.xpose.msra.mxu0 0.0
    %723 = vmatprep.subr.mxu0 0.0
    %724 = vmatpush1.xpose.msra.mxu0 0.0
    %725 = vmatprep.subr.mxu0 0.0
    %726 = vmatpush1.xpose.msra.mxu0 0.0
    %727 = vmatprep.subr.mxu0 0.0
    %728 = vmatpush1.xpose.msra.mxu0 0.0
    %729 = vmatprep.subr.mxu0 0.0
    %730 = vmatpush1.xpose.msra.mxu0 0.0
    %731 = vmatprep.subr.mxu0 0.0
    %732 = vmatpush1.xpose.msra.mxu0 0.0
    %733 = vmatprep.subr.mxu0 0.0
    %734 = vmatpush1.xpose.msra.mxu0 0.0
    %735 = vmatprep.subr.mxu0 0.0
    %736 = vmatpush1.xpose.msra.mxu0 0.0
    %737 = vmatprep.subr.mxu0 0.0
    %738 = vmatpush1.xpose.msra.mxu0 0.0
    %739 = vmatprep.subr.mxu0 0.0
    %740 = vmatpush1.xpose.msra.mxu0 0.0
    %741 = vmatprep.subr.mxu0 0.0
    %742 = vmatpush1.xpose.msra.mxu0 0.0
    %743 = vmatprep.subr.mxu0 0.0
    %744 = vmatpush1.xpose.msra.mxu0 0.0
    %745 = vmatprep.subr.mxu0 0.0
    %746 = vmatpush1.xpose.msra.mxu0 0.0
    %747 = vmatprep.subr.mxu0 0.0
    %748 = vmatpush1.xpose.msra.mxu0 0.0
    %749 = vmatprep.subr.mxu0 0.0
    %750 = vmatpush1.xpose.msra.mxu0 0.0
    %751 = vmatprep.subr.mxu0 0.0
    %752 = vmatpush1.xpose.msra.mxu0 0.0
    %753 = vmatprep.subr.mxu0 0.0
    %754 = vmatpush1.xpose.msra.mxu0 0.0
    %755 = vmatprep.subr.mxu0 0.0
    %756 = vmatpush1.xpose.msra.mxu0 0.0
    %757 = vmatprep.subr.mxu0 0.0
    %758 = vmatpush1.xpose.msra.mxu0 0.0
    %759 = vmatprep.subr.mxu0 0.0
    %760 = vmatpush1.xpose.msra.mxu0 0.0
    %761 = vmatprep.subr.mxu0 0.0
    %762 = vmatpush1.xpose.msra.mxu0 0.0
    %763 = vmatprep.subr.mxu0 0.0
    %764 = vmatpush1.xpose.msra.mxu0 0.0
    %765 = vmatprep.subr.mxu0 0.0
    %766 = vmatpush1.xpose.msra.mxu0 0.0
    %767 = vmatprep.mubr.f32.mxu0 0.0
    %768 = vmatmul.mubr.f32.gmra.mrb[0].mxu0 %v636
    %v769 = vpop.f32.mrb[0].mxu0
    %v770 = vadd.f32 0.0, %v769
    %v771 = vpop.f32.mrb[0].mxu0
    %772 = vmatprep.mubr.f32.mxu0 0.0
    %773 = vmatmul.mubr.f32.gmra.mrb[0].mxu0 %v640
    %v774 = vpop.f32.mrb[0].mxu0
    %v775 = vadd.f32 0.0, %v774
    %v776 = vpop.f32.mrb[0].mxu0
    %777 = vmatprep.mubr.f32.mxu0 0.0
    %778 = vmatmul.mubr.f32.gmra.mrb[0].mxu0 %v646
    %v779 = vpop.f32.mrb[0].mxu0
    %v780 = vadd.f32 0.0, %v779
    %v781 = vpop.f32.mrb[0].mxu0
    %782 = vdwg.mxu0
    %v783 = vmul.f32 %v770, 0.17677669
    %v784 = vmul.f32 %v775, 0.17677669
    %v785 = vmul.f32 %v780, 0.17677669
    %v786 = vadd.f32 %v783, %v416
    %v787 = vadd.f32 %v784, %v417
    %v788 = vadd.f32 %v785, %v418
    %vm789 = vcmask 162816
    %v790 = vsel %vm789, %v786, -inf
    %791 = vmax.xlane.f32.xlu0 %v790
    %v792 = vpop.xlane.xlu0 %791
    %v793 = vsel %vm789, %v787, -inf
    %794 = vmax.xlane.f32.xlu0 %v793
    %v795 = vpop.xlane.xlu0 %794
    %vm796 = vcmask 158720
    %v797 = vsel %vm796, %v788, -inf
    %798 = vmax.xlane.f32.xlu0 %v797
    %v799 = vpop.xlane.xlu0 %798
    %v800 = vsub.f32 %v786, %v792
    %v801 = vsub.f32 %v787, %v795
    %v802 = vsub.f32 %v788, %v799
    %v803 = vmul.f32 %v800, 1.442695
    %v804 = vpow.pop %v803
    %v805 = vmul.f32 %v801, 1.442695
    %v806 = vpow.pop %v805
    %v807 = vmul.f32 %v802, 1.442695
    %v808 = vpow.pop %v807
    %v809 = vsel %vm789, %v804, 0.0
    %810 = vadd.xlane.f32.xlu0 %v809
    %v811 = vpop.xlane.xlu0 %810
    %v812 = vsel %vm789, %v806, 0.0
    %813 = vadd.xlane.f32.xlu0 %v812
    %v814 = vpop.xlane.xlu0 %813
    %v815 = vsel %vm796, %v808, 0.0
    %816 = vadd.xlane.f32.xlu0 %v815
    %v817 = vpop.xlane.xlu0 %816
    %v818 = vrcp.pop %v811
    %v819 = vrcp.pop %v814
    %v820 = vrcp.pop %v817
    %v821 = vmul.f32 %v804, %v818
    %v822 = vmul.f32 %v806, %v819
    %v823 = vmul.f32 %v808, %v820
    %v824 = vmul.f32 %v687, %v339
    %v825 = vmul.f32 %v690, %v339
    %v826 = vmul.f32 %v695, %v339
    %v827 = vmul.f32 %v638, %v343
    %v828 = vmul.f32 %v642, %v343
    %v829 = vmul.f32 %v648, %v343
    %830 = vmatprep.subr.mxu0 0.0
    %831 = vmatpush1.xpose.msra.mxu0 %v827
    %832 = vmatprep.subr.mxu0 0.0
    %833 = vmatpush1.xpose.msra.mxu0 %v828
    %834 = vmatprep.subr.mxu0 0.0
    %835 = vmatpush1.xpose.msra.mxu0 %v829
    %836 = vmatprep.subr.mxu0 0.0
    %837 = vmatpush1.xpose.msra.mxu0 0.0
    %838 = vmatprep.subr.mxu0 0.0
    %839 = vmatpush1.xpose.msra.mxu0 0.0
    %840 = vmatprep.subr.mxu0 0.0
    %841 = vmatpush1.xpose.msra.mxu0 0.0
    %842 = vmatprep.subr.mxu0 0.0
    %843 = vmatpush1.xpose.msra.mxu0 0.0
    %844 = vmatprep.subr.mxu0 0.0
    %845 = vmatpush1.xpose.msra.mxu0 0.0
    %846 = vmatprep.subr.mxu0 0.0
    %847 = vmatpush1.xpose.msra.mxu0 0.0
    %848 = vmatprep.subr.mxu0 0.0
    %849 = vmatpush1.xpose.msra.mxu0 0.0
    %850 = vmatprep.subr.mxu0 0.0
    %851 = vmatpush1.xpose.msra.mxu0 0.0
    %852 = vmatprep.subr.mxu0 0.0
    %853 = vmatpush1.xpose.msra.mxu0 0.0
    %854 = vmatprep.subr.mxu0 0.0
    %855 = vmatpush1.xpose.msra.mxu0 0.0
    %856 = vmatprep.subr.mxu0 0.0
    %857 = vmatpush1.xpose.msra.mxu0 0.0
    %858 = vmatprep.subr.mxu0 0.0
    %859 = vmatpush1.xpose.msra.mxu0 0.0
    %860 = vmatprep.subr.mxu0 0.0
    %861 = vmatpush1.xpose.msra.mxu0 0.0
    %862 = vmatprep.subr.mxu0 0.0
    %863 = vmatpush1.xpose.msra.mxu0 0.0
    %864 = vmatprep.subr.mxu0 0.0
    %865 = vmatpush1.xpose.msra.mxu0 0.0
    %866 = vmatprep.subr.mxu0 0.0
    %867 = vmatpush1.xpose.msra.mxu0 0.0
    %868 = vmatprep.subr.mxu0 0.0
    %869 = vmatpush1.xpose.msra.mxu0 0.0
    %870 = vmatprep.subr.mxu0 0.0
    %871 = vmatpush1.xpose.msra.mxu0 0.0
    %872 = vmatprep.subr.mxu0 0.0
    %873 = vmatpush1.xpose.msra.mxu0 0.0
    %874 = vmatprep.subr.mxu0 0.0
    %875 = vmatpush1.xpose.msra.mxu0 0.0
    %876 = vmatprep.subr.mxu0 0.0
    %877 = vmatpush1.xpose.msra.mxu0 0.0
    %878 = vmatprep.subr.mxu0 0.0
    %879 = vmatpush1.xpose.msra.mxu0 0.0
    %880 = vmatprep.subr.mxu0 0.0
    %881 = vmatpush1.xpose.msra.mxu0 0.0
    %882 = vmatprep.subr.mxu0 0.0
    %883 = vmatpush1.xpose.msra.mxu0 0.0
    %884 = vmatprep.subr.mxu0 0.0
    %885 = vmatpush1.xpose.msra.mxu0 0.0
    %886 = vmatprep.subr.mxu0 0.0
    %887 = vmatpush1.xpose.msra.mxu0 0.0
    %888 = vmatprep.subr.mxu0 0.0
    %889 = vmatpush1.xpose.msra.mxu0 0.0
    %890 = vmatprep.subr.mxu0 0.0
    %891 = vmatpush1.xpose.msra.mxu0 0.0
    %892 = vmatprep.subr.mxu0 0.0
    %893 = vmatpush1.xpose.msra.mxu0 0.0
    %894 = vmatprep.mubr.f32.mxu0 0.0
    %895 = vmatmul.mubr.f32.gmra.mrb[0].mxu0 %v636
    %v896 = vpop.f32.mrb[0].mxu0
    %v897 = vadd.f32 0.0, %v896
    %v898 = vpop.f32.mrb[0].mxu0
    %899 = vmatprep.mubr.f32.mxu0 0.0
    %900 = vmatmul.mubr.f32.gmra.mrb[0].mxu0 %v640
    %v901 = vpop.f32.mrb[0].mxu0
    %v902 = vadd.f32 0.0, %v901
    %v903 = vpop.f32.mrb[0].mxu0
    %904 = vmatprep.mubr.f32.mxu0 0.0
    %905 = vmatmul.mubr.f32.gmra.mrb[0].mxu0 %v646
    %v906 = vpop.f32.mrb[0].mxu0
    %v907 = vadd.f32 0.0, %v906
    %v908 = vpop.f32.mrb[0].mxu0
    %909 = vdwg.mxu0
    %v910 = vmul.f32 %v897, 0.17677669
    %v911 = vmul.f32 %v902, 0.17677669
    %v912 = vmul.f32 %v907, 0.17677669
    %v913 = vadd.f32 %v910, %v416
    %v914 = vadd.f32 %v911, %v417
    %v915 = vadd.f32 %v912, %v418
    %v916 = vsel %vm789, %v913, -inf
    %917 = vmax.xlane.f32.xlu0 %v916
    %v918 = vpop.xlane.xlu0 %917
    %v919 = vsel %vm789, %v914, -inf
    %920 = vmax.xlane.f32.xlu0 %v919
    %v921 = vpop.xlane.xlu0 %920
    %v922 = vsel %vm796, %v915, -inf
    %923 = vmax.xlane.f32.xlu0 %v922
    %v924 = vpop.xlane.xlu0 %923
    %v925 = vsub.f32 %v913, %v918
    %v926 = vsub.f32 %v914, %v921
    %v927 = vsub.f32 %v915, %v924
    %v928 = vmul.f32 %v925, 1.442695
    %v929 = vpow.pop %v928
    %v930 = vmul.f32 %v926, 1.442695
    %v931 = vpow.pop %v930
    %v932 = vmul.f32 %v927, 1.442695
    %v933 = vpow.pop %v932
    %v934 = vsel %vm789, %v929, 0.0
    %935 = vadd.xlane.f32.xlu0 %v934
    %v936 = vpop.xlane.xlu0 %935
    %v937 = vsel %vm789, %v931, 0.0
    %938 = vadd.xlane.f32.xlu0 %v937
    %v939 = vpop.xlane.xlu0 %938
    %v940 = vsel %vm796, %v933, 0.0
    %941 = vadd.xlane.f32.xlu0 %v940
    %v942 = vpop.xlane.xlu0 %941
    %v943 = vrcp.pop %v936
    %v944 = vrcp.pop %v939
    %v945 = vrcp.pop %v942
    %v946 = vmul.f32 %v929, %v943
    %v947 = vmul.f32 %v931, %v944
    %v948 = vmul.f32 %v933, %v945
    %v949 = vmul.f32 %v687, %v343
    %v950 = vmul.f32 %v690, %v343
    %v951 = vmul.f32 %v695, %v343
    %v953 = vsel %vm789, %v946, 0
    %v956 = vsel %vm789, %v947, 0
    %v959 = vsel %vm789, %v948, 0
    %vm961 = vcmask 1043456
    %v963 = vsel %vm961, %v951, 0
    %965 = vmatprep.subr.mxu0 0.0
    %966 = vmatpush1.msra.mxu0 %v949
    %967 = vmatprep.subr.mxu0 0.0
    %968 = vmatpush1.msra.mxu0 %v950
    %969 = vmatprep.subr.mxu0 0.0
    %970 = vmatpush1.msra.mxu0 %v963
    %971 = vmatprep.subr.mxu0 0.0
    %972 = vmatpush1.msra.mxu0 0.0
    %973 = vmatprep.subr.mxu0 0.0
    %974 = vmatpush1.msra.mxu0 0.0
    %975 = vmatprep.subr.mxu0 0.0
    %976 = vmatpush1.msra.mxu0 0.0
    %977 = vmatprep.subr.mxu0 0.0
    %978 = vmatpush1.msra.mxu0 0.0
    %979 = vmatprep.subr.mxu0 0.0
    %980 = vmatpush1.msra.mxu0 0.0
    %981 = vmatprep.subr.mxu0 0.0
    %982 = vmatpush1.msra.mxu0 0.0
    %983 = vmatprep.subr.mxu0 0.0
    %984 = vmatpush1.msra.mxu0 0.0
    %985 = vmatprep.subr.mxu0 0.0
    %986 = vmatpush1.msra.mxu0 0.0
    %987 = vmatprep.subr.mxu0 0.0
    %988 = vmatpush1.msra.mxu0 0.0
    %989 = vmatprep.subr.mxu0 0.0
    %990 = vmatpush1.msra.mxu0 0.0
    %991 = vmatprep.subr.mxu0 0.0
    %992 = vmatpush1.msra.mxu0 0.0
    %993 = vmatprep.subr.mxu0 0.0
    %994 = vmatpush1.msra.mxu0 0.0
    %995 = vmatprep.subr.mxu0 0.0
    %996 = vmatpush1.msra.mxu0 0.0
    %997 = vmatprep.subr.mxu0 0.0
    %998 = vmatpush1.msra.mxu0 0.0
    %999 = vmatprep.subr.mxu0 0.0
    %1000 = vmatpush1.msra.mxu0 0.0
    %1001 = vmatprep.subr.mxu0 0.0
    %1002 = vmatpush1.msra.mxu0 0.0
    %1003 = vmatprep.subr.mxu0 0.0
    %1004 = vmatpush1.msra.mxu0 0.0
    %1005 = vmatprep.subr.mxu0 0.0
    %1006 = vmatpush1.msra.mxu0 0.0
    %1007 = vmatprep.subr.mxu0 0.0
    %1008 = vmatpush1.msra.mxu0 0.0
    %1009 = vmatprep.subr.mxu0 0.0
    %1010 = vmatpush1.msra.mxu0 0.0
    %1011 = vmatprep.subr.mxu0 0.0
    %1012 = vmatpush1.msra.mxu0 0.0
    %1013 = vmatprep.subr.mxu0 0.0
    %1014 = vmatpush1.msra.mxu0 0.0
    %1015 = vmatprep.subr.mxu0 0.0
    %1016 = vmatpush1.msra.mxu0 0.0
    %1017 = vmatprep.subr.mxu0 0.0
    %1018 = vmatpush1.msra.mxu0 0.0
    %1019 = vmatprep.subr.mxu0 0.0
    %1020 = vmatpush1.msra.mxu0 0.0
    %1021 = vmatprep.subr.mxu0 0.0
    %1022 = vmatpush1.msra.mxu0 0.0
    %1023 = vmatprep.subr.mxu0 0.0
    %1024 = vmatpush1.msra.mxu0 0.0
    %1025 = vmatprep.subr.mxu0 0.0
    %1026 = vmatpush1.msra.mxu0 0.0
    %1027 = vmatprep.subr.mxu0 0.0
    %1028 = vmatpush1.msra.mxu0 0.0
    %1029 = vmatprep.mubr.f32.mxu0 0.0
    %1030 = vmatmul.mubr.f32.gmra.mrb[0].mxu0 %v953
    %v1031 = vpop.f32.mrb[0].mxu0
    %v1032 = vadd.f32 0.0, %v1031
    %v1033 = vpop.f32.mrb[0].mxu0
    %1034 = vmatprep.mubr.f32.mxu0 0.0
    %1035 = vmatmul.mubr.f32.gmra.mrb[0].mxu0 %v956
    %v1036 = vpop.f32.mrb[0].mxu0
    %v1037 = vadd.f32 0.0, %v1036
    %v1038 = vpop.f32.mrb[0].mxu0
    %1039 = vmatprep.mubr.f32.mxu0 0.0
    %1040 = vmatmul.mubr.f32.gmra.mrb[0].mxu0 %v959
    %v1041 = vpop.f32.mrb[0].mxu0
    %v1042 = vadd.f32 0.0, %v1041
    %v1043 = vpop.f32.mrb[0].mxu0
    %1044 = vdwg.mxu0
    %v1046 = vsel %vm789, %v821, 0
    %v1049 = vsel %vm789, %v822, 0
    %v1052 = vsel %vm789, %v823, 0
    %v1055 = vsel %vm961, %v826, 0
    %1057 = vmatprep.subr.mxu0 0.0
    %1058 = vmatpush1.msra.mxu0 %v824
    %1059 = vmatprep.subr.mxu0 0.0
    %1060 = vmatpush1.msra.mxu0 %v825
    %1061 = vmatprep.subr.mxu0 0.0
    %1062 = vmatpush1.msra.mxu0 %v1055
    %1063 = vmatprep.subr.mxu0 0.0
    %1064 = vmatpush1.msra.mxu0 0.0
    %1065 = vmatprep.subr.mxu0 0.0
    %1066 = vmatpush1.msra.mxu0 0.0
    %1067 = vmatprep.subr.mxu0 0.0
    %1068 = vmatpush1.msra.mxu0 0.0
    %1069 = vmatprep.subr.mxu0 0.0
    %1070 = vmatpush1.msra.mxu0 0.0
    %1071 = vmatprep.subr.mxu0 0.0
    %1072 = vmatpush1.msra.mxu0 0.0
    %1073 = vmatprep.subr.mxu0 0.0
    %1074 = vmatpush1.msra.mxu0 0.0
    %1075 = vmatprep.subr.mxu0 0.0
    %1076 = vmatpush1.msra.mxu0 0.0
    %1077 = vmatprep.subr.mxu0 0.0
    %1078 = vmatpush1.msra.mxu0 0.0
    %1079 = vmatprep.subr.mxu0 0.0
    %1080 = vmatpush1.msra.mxu0 0.0
    %1081 = vmatprep.subr.mxu0 0.0
    %1082 = vmatpush1.msra.mxu0 0.0
    %1083 = vmatprep.subr.mxu0 0.0
    %1084 = vmatpush1.msra.mxu0 0.0
    %1085 = vmatprep.subr.mxu0 0.0
    %1086 = vmatpush1.msra.mxu0 0.0
    %1087 = vmatprep.subr.mxu0 0.0
    %1088 = vmatpush1.msra.mxu0 0.0
    %1089 = vmatprep.subr.mxu0 0.0
    %1090 = vmatpush1.msra.mxu0 0.0
    %1091 = vmatprep.subr.mxu0 0.0
    %1092 = vmatpush1.msra.mxu0 0.0
    %1093 = vmatprep.subr.mxu0 0.0
    %1094 = vmatpush1.msra.mxu0 0.0
    %1095 = vmatprep.subr.mxu0 0.0
    %1096 = vmatpush1.msra.mxu0 0.0
    %1097 = vmatprep.subr.mxu0 0.0
    %1098 = vmatpush1.msra.mxu0 0.0
    %1099 = vmatprep.subr.mxu0 0.0
    %1100 = vmatpush1.msra.mxu0 0.0
    %1101 = vmatprep.subr.mxu0 0.0
    %1102 = vmatpush1.msra.mxu0 0.0
    %1103 = vmatprep.subr.mxu0 0.0
    %1104 = vmatpush1.msra.mxu0 0.0
    %1105 = vmatprep.subr.mxu0 0.0
    %1106 = vmatpush1.msra.mxu0 0.0
    %1107 = vmatprep.subr.mxu0 0.0
    %1108 = vmatpush1.msra.mxu0 0.0
    %1109 = vmatprep.subr.mxu0 0.0
    %1110 = vmatpush1.msra.mxu0 0.0
    %1111 = vmatprep.subr.mxu0 0.0
    %1112 = vmatpush1.msra.mxu0 0.0
    %1113 = vmatprep.subr.mxu0 0.0
    %1114 = vmatpush1.msra.mxu0 0.0
    %1115 = vmatprep.subr.mxu0 0.0
    %1116 = vmatpush1.msra.mxu0 0.0
    %1117 = vmatprep.subr.mxu0 0.0
    %1118 = vmatpush1.msra.mxu0 0.0
    %1119 = vmatprep.subr.mxu0 0.0
    %1120 = vmatpush1.msra.mxu0 0.0
    %1121 = vmatprep.mubr.f32.mxu0 0.0
    %1122 = vmatmul.mubr.f32.gmra.mrb[0].mxu0 %v1046
    %v1123 = vpop.f32.mrb[0].mxu0
    %v1124 = vadd.f32 %v1032, %v1123
    %v1125 = vpop.f32.mrb[0].mxu0
    %1126 = vmatprep.mubr.f32.mxu0 0.0
    %1127 = vmatmul.mubr.f32.gmra.mrb[0].mxu0 %v1049
    %v1128 = vpop.f32.mrb[0].mxu0
    %v1129 = vadd.f32 %v1037, %v1128
    %v1130 = vpop.f32.mrb[0].mxu0
    %1131 = vmatprep.mubr.f32.mxu0 0.0
    %1132 = vmatmul.mubr.f32.gmra.mrb[0].mxu0 %v1052
    %v1133 = vpop.f32.mrb[0].mxu0
    %v1134 = vadd.f32 %v1042, %v1133
    %v1135 = vpop.f32.mrb[0].mxu0
    %1136 = vdwg.mxu0
    %v1137 = vmul.f32 %v638, %v347
    %v1138 = vmul.f32 %v642, %v347
    %v1139 = vmul.f32 %v648, %v347
    %1140 = vmatprep.subr.mxu0 0.0
    %1141 = vmatpush1.xpose.msra.mxu0 %v1137
    %1142 = vmatprep.subr.mxu0 0.0
    %1143 = vmatpush1.xpose.msra.mxu0 %v1138
    %1144 = vmatprep.subr.mxu0 0.0
    %1145 = vmatpush1.xpose.msra.mxu0 %v1139
    %1146 = vmatprep.subr.mxu0 0.0
    %1147 = vmatpush1.xpose.msra.mxu0 0.0
    %1148 = vmatprep.subr.mxu0 0.0
    %1149 = vmatpush1.xpose.msra.mxu0 0.0
    %1150 = vmatprep.subr.mxu0 0.0
    %1151 = vmatpush1.xpose.msra.mxu0 0.0
    %1152 = vmatprep.subr.mxu0 0.0
    %1153 = vmatpush1.xpose.msra.mxu0 0.0
    %1154 = vmatprep.subr.mxu0 0.0
    %1155 = vmatpush1.xpose.msra.mxu0 0.0
    %1156 = vmatprep.subr.mxu0 0.0
    %1157 = vmatpush1.xpose.msra.mxu0 0.0
    %1158 = vmatprep.subr.mxu0 0.0
    %1159 = vmatpush1.xpose.msra.mxu0 0.0
    %1160 = vmatprep.subr.mxu0 0.0
    %1161 = vmatpush1.xpose.msra.mxu0 0.0
    %1162 = vmatprep.subr.mxu0 0.0
    %1163 = vmatpush1.xpose.msra.mxu0 0.0
    %1164 = vmatprep.subr.mxu0 0.0
    %1165 = vmatpush1.xpose.msra.mxu0 0.0
    %1166 = vmatprep.subr.mxu0 0.0
    %1167 = vmatpush1.xpose.msra.mxu0 0.0
    %1168 = vmatprep.subr.mxu0 0.0
    %1169 = vmatpush1.xpose.msra.mxu0 0.0
    %1170 = vmatprep.subr.mxu0 0.0
    %1171 = vmatpush1.xpose.msra.mxu0 0.0
    %1172 = vmatprep.subr.mxu0 0.0
    %1173 = vmatpush1.xpose.msra.mxu0 0.0
    %1174 = vmatprep.subr.mxu0 0.0
    %1175 = vmatpush1.xpose.msra.mxu0 0.0
    %1176 = vmatprep.subr.mxu0 0.0
    %1177 = vmatpush1.xpose.msra.mxu0 0.0
    %1178 = vmatprep.subr.mxu0 0.0
    %1179 = vmatpush1.xpose.msra.mxu0 0.0
    %1180 = vmatprep.subr.mxu0 0.0
    %1181 = vmatpush1.xpose.msra.mxu0 0.0
    %1182 = vmatprep.subr.mxu0 0.0
    %1183 = vmatpush1.xpose.msra.mxu0 0.0
    %1184 = vmatprep.subr.mxu0 0.0
    %1185 = vmatpush1.xpose.msra.mxu0 0.0
    %1186 = vmatprep.subr.mxu0 0.0
    %1187 = vmatpush1.xpose.msra.mxu0 0.0
    %1188 = vmatprep.subr.mxu0 0.0
    %1189 = vmatpush1.xpose.msra.mxu0 0.0
    %1190 = vmatprep.subr.mxu0 0.0
    %1191 = vmatpush1.xpose.msra.mxu0 0.0
    %1192 = vmatprep.subr.mxu0 0.0
    %1193 = vmatpush1.xpose.msra.mxu0 0.0
    %1194 = vmatprep.subr.mxu0 0.0
    %1195 = vmatpush1.xpose.msra.mxu0 0.0
    %1196 = vmatprep.subr.mxu0 0.0
    %1197 = vmatpush1.xpose.msra.mxu0 0.0
    %1198 = vmatprep.subr.mxu0 0.0
    %1199 = vmatpush1.xpose.msra.mxu0 0.0
    %1200 = vmatprep.subr.mxu0 0.0
    %1201 = vmatpush1.xpose.msra.mxu0 0.0
    %1202 = vmatprep.subr.mxu0 0.0
    %1203 = vmatpush1.xpose.msra.mxu0 0.0
    %1204 = vmatprep.mubr.f32.mxu0 0.0
    %1205 = vmatmul.mubr.f32.gmra.mrb[0].mxu0 %v636
    %v1206 = vpop.f32.mrb[0].mxu0
    %v1207 = vadd.f32 0.0, %v1206
    %v1208 = vpop.f32.mrb[0].mxu0
    %1209 = vmatprep.mubr.f32.mxu0 0.0
    %1210 = vmatmul.mubr.f32.gmra.mrb[0].mxu0 %v640
    %v1211 = vpop.f32.mrb[0].mxu0
    %v1212 = vadd.f32 0.0, %v1211
    %v1213 = vpop.f32.mrb[0].mxu0
    %1214 = vmatprep.mubr.f32.mxu0 0.0
    %1215 = vmatmul.mubr.f32.gmra.mrb[0].mxu0 %v646
    %v1216 = vpop.f32.mrb[0].mxu0
    %v1217 = vadd.f32 0.0, %v1216
    %v1218 = vpop.f32.mrb[0].mxu0
    %1219 = vdwg.mxu0
    %v1220 = vmul.f32 %v1207, 0.17677669
    %v1221 = vmul.f32 %v1212, 0.17677669
    %v1222 = vmul.f32 %v1217, 0.17677669
    %v1223 = vadd.f32 %v1220, %v416
    %v1224 = vadd.f32 %v1221, %v417
    %v1225 = vadd.f32 %v1222, %v418
    %v1226 = vsel %vm789, %v1223, -inf
    %1227 = vmax.xlane.f32.xlu0 %v1226
    %v1228 = vpop.xlane.xlu0 %1227
    %v1229 = vsel %vm789, %v1224, -inf
    %1230 = vmax.xlane.f32.xlu0 %v1229
    %v1231 = vpop.xlane.xlu0 %1230
    %v1232 = vsel %vm796, %v1225, -inf
    %1233 = vmax.xlane.f32.xlu0 %v1232
    %v1234 = vpop.xlane.xlu0 %1233
    %v1235 = vsub.f32 %v1223, %v1228
    %v1236 = vsub.f32 %v1224, %v1231
    %v1237 = vsub.f32 %v1225, %v1234
    %v1238 = vmul.f32 %v1235, 1.442695
    %v1239 = vpow.pop %v1238
    %v1240 = vmul.f32 %v1236, 1.442695
    %v1241 = vpow.pop %v1240
    %v1242 = vmul.f32 %v1237, 1.442695
    %v1243 = vpow.pop %v1242
    %v1244 = vsel %vm789, %v1239, 0.0
    %1245 = vadd.xlane.f32.xlu0 %v1244
    %v1246 = vpop.xlane.xlu0 %1245
    %v1247 = vsel %vm789, %v1241, 0.0
    %1248 = vadd.xlane.f32.xlu0 %v1247
    %v1249 = vpop.xlane.xlu0 %1248
    %v1250 = vsel %vm796, %v1243, 0.0
    %1251 = vadd.xlane.f32.xlu0 %v1250
    %v1252 = vpop.xlane.xlu0 %1251
    %v1253 = vrcp.pop %v1246
    %v1254 = vrcp.pop %v1249
    %v1255 = vrcp.pop %v1252
    %v1256 = vmul.f32 %v1239, %v1253
    %v1257 = vmul.f32 %v1241, %v1254
    %v1258 = vmul.f32 %v1243, %v1255
    %v1259 = vmul.f32 %v687, %v347
    %v1260 = vmul.f32 %v690, %v347
    %v1261 = vmul.f32 %v695, %v347
    %v1263 = vsel %vm789, %v1256, 0
    %v1266 = vsel %vm789, %v1257, 0
    %v1269 = vsel %vm789, %v1258, 0
    %v1272 = vsel %vm961, %v1261, 0
    %1274 = vmatprep.subr.mxu0 0.0
    %1275 = vmatpush1.msra.mxu0 %v1259
    %1276 = vmatprep.subr.mxu0 0.0
    %1277 = vmatpush1.msra.mxu0 %v1260
    %1278 = vmatprep.subr.mxu0 0.0
    %1279 = vmatpush1.msra.mxu0 %v1272
    %1280 = vmatprep.subr.mxu0 0.0
    %1281 = vmatpush1.msra.mxu0 0.0
    %1282 = vmatprep.subr.mxu0 0.0
    %1283 = vmatpush1.msra.mxu0 0.0
    %1284 = vmatprep.subr.mxu0 0.0
    %1285 = vmatpush1.msra.mxu0 0.0
    %1286 = vmatprep.subr.mxu0 0.0
    %1287 = vmatpush1.msra.mxu0 0.0
    %1288 = vmatprep.subr.mxu0 0.0
    %1289 = vmatpush1.msra.mxu0 0.0
    %1290 = vmatprep.subr.mxu0 0.0
    %1291 = vmatpush1.msra.mxu0 0.0
    %1292 = vmatprep.subr.mxu0 0.0
    %1293 = vmatpush1.msra.mxu0 0.0
    %1294 = vmatprep.subr.mxu0 0.0
    %1295 = vmatpush1.msra.mxu0 0.0
    %1296 = vmatprep.subr.mxu0 0.0
    %1297 = vmatpush1.msra.mxu0 0.0
    %1298 = vmatprep.subr.mxu0 0.0
    %1299 = vmatpush1.msra.mxu0 0.0
    %1300 = vmatprep.subr.mxu0 0.0
    %1301 = vmatpush1.msra.mxu0 0.0
    %1302 = vmatprep.subr.mxu0 0.0
    %1303 = vmatpush1.msra.mxu0 0.0
    %1304 = vmatprep.subr.mxu0 0.0
    %1305 = vmatpush1.msra.mxu0 0.0
    %1306 = vmatprep.subr.mxu0 0.0
    %1307 = vmatpush1.msra.mxu0 0.0
    %1308 = vmatprep.subr.mxu0 0.0
    %1309 = vmatpush1.msra.mxu0 0.0
    %1310 = vmatprep.subr.mxu0 0.0
    %1311 = vmatpush1.msra.mxu0 0.0
    %1312 = vmatprep.subr.mxu0 0.0
    %1313 = vmatpush1.msra.mxu0 0.0
    %1314 = vmatprep.subr.mxu0 0.0
    %1315 = vmatpush1.msra.mxu0 0.0
    %1316 = vmatprep.subr.mxu0 0.0
    %1317 = vmatpush1.msra.mxu0 0.0
    %1318 = vmatprep.subr.mxu0 0.0
    %1319 = vmatpush1.msra.mxu0 0.0
    %1320 = vmatprep.subr.mxu0 0.0
    %1321 = vmatpush1.msra.mxu0 0.0
    %1322 = vmatprep.subr.mxu0 0.0
    %1323 = vmatpush1.msra.mxu0 0.0
    %1324 = vmatprep.subr.mxu0 0.0
    %1325 = vmatpush1.msra.mxu0 0.0
    %1326 = vmatprep.subr.mxu0 0.0
    %1327 = vmatpush1.msra.mxu0 0.0
    %1328 = vmatprep.subr.mxu0 0.0
    %1329 = vmatpush1.msra.mxu0 0.0
    %1330 = vmatprep.subr.mxu0 0.0
    %1331 = vmatpush1.msra.mxu0 0.0
    %1332 = vmatprep.subr.mxu0 0.0
    %1333 = vmatpush1.msra.mxu0 0.0
    %1334 = vmatprep.subr.mxu0 0.0
    %1335 = vmatpush1.msra.mxu0 0.0
    %1336 = vmatprep.subr.mxu0 0.0
    %1337 = vmatpush1.msra.mxu0 0.0
    %1338 = vmatprep.mubr.f32.mxu0 0.0
    %1339 = vmatmul.mubr.f32.gmra.mrb[0].mxu0 %v1263
    %v1340 = vpop.f32.mrb[0].mxu0
    %v1341 = vadd.f32 0.0, %v1340
    %v1342 = vpop.f32.mrb[0].mxu0
    %1343 = vmatprep.mubr.f32.mxu0 0.0
    %1344 = vmatmul.mubr.f32.gmra.mrb[0].mxu0 %v1266
    %v1345 = vpop.f32.mrb[0].mxu0
    %v1346 = vadd.f32 0.0, %v1345
    %v1347 = vpop.f32.mrb[0].mxu0
    %1348 = vmatprep.mubr.f32.mxu0 0.0
    %1349 = vmatmul.mubr.f32.gmra.mrb[0].mxu0 %v1269
    %v1350 = vpop.f32.mrb[0].mxu0
    %v1351 = vadd.f32 0.0, %v1350
    %v1352 = vpop.f32.mrb[0].mxu0
    %1353 = vdwg.mxu0
    %v1354 = vadd.f32 %v1124, %v1341
    %v1355 = vadd.f32 %v1129, %v1346
    %v1356 = vadd.f32 %v1134, %v1351
    %v1357 = vmul.f32 %v638, %v351
    %v1358 = vmul.f32 %v642, %v351
    %v1359 = vmul.f32 %v648, %v351
    %1360 = vmatprep.subr.mxu0 0.0
    %1361 = vmatpush1.xpose.msra.mxu0 %v1357
    %1362 = vmatprep.subr.mxu0 0.0
    %1363 = vmatpush1.xpose.msra.mxu0 %v1358
    %1364 = vmatprep.subr.mxu0 0.0
    %1365 = vmatpush1.xpose.msra.mxu0 %v1359
    %1366 = vmatprep.subr.mxu0 0.0
    %1367 = vmatpush1.xpose.msra.mxu0 0.0
    %1368 = vmatprep.subr.mxu0 0.0
    %1369 = vmatpush1.xpose.msra.mxu0 0.0
    %1370 = vmatprep.subr.mxu0 0.0
    %1371 = vmatpush1.xpose.msra.mxu0 0.0
    %1372 = vmatprep.subr.mxu0 0.0
    %1373 = vmatpush1.xpose.msra.mxu0 0.0
    %1374 = vmatprep.subr.mxu0 0.0
    %1375 = vmatpush1.xpose.msra.mxu0 0.0
    %1376 = vmatprep.subr.mxu0 0.0
    %1377 = vmatpush1.xpose.msra.mxu0 0.0
    %1378 = vmatprep.subr.mxu0 0.0
    %1379 = vmatpush1.xpose.msra.mxu0 0.0
    %1380 = vmatprep.subr.mxu0 0.0
    %1381 = vmatpush1.xpose.msra.mxu0 0.0
    %1382 = vmatprep.subr.mxu0 0.0
    %1383 = vmatpush1.xpose.msra.mxu0 0.0
    %1384 = vmatprep.subr.mxu0 0.0
    %1385 = vmatpush1.xpose.msra.mxu0 0.0
    %1386 = vmatprep.subr.mxu0 0.0
    %1387 = vmatpush1.xpose.msra.mxu0 0.0
    %1388 = vmatprep.subr.mxu0 0.0
    %1389 = vmatpush1.xpose.msra.mxu0 0.0
    %1390 = vmatprep.subr.mxu0 0.0
    %1391 = vmatpush1.xpose.msra.mxu0 0.0
    %1392 = vmatprep.subr.mxu0 0.0
    %1393 = vmatpush1.xpose.msra.mxu0 0.0
    %1394 = vmatprep.subr.mxu0 0.0
    %1395 = vmatpush1.xpose.msra.mxu0 0.0
    %1396 = vmatprep.subr.mxu0 0.0
    %1397 = vmatpush1.xpose.msra.mxu0 0.0
    %1398 = vmatprep.subr.mxu0 0.0
    %1399 = vmatpush1.xpose.msra.mxu0 0.0
    %1400 = vmatprep.subr.mxu0 0.0
    %1401 = vmatpush1.xpose.msra.mxu0 0.0
    %1402 = vmatprep.subr.mxu0 0.0
    %1403 = vmatpush1.xpose.msra.mxu0 0.0
    %1404 = vmatprep.subr.mxu0 0.0
    %1405 = vmatpush1.xpose.msra.mxu0 0.0
    %1406 = vmatprep.subr.mxu0 0.0
    %1407 = vmatpush1.xpose.msra.mxu0 0.0
    %1408 = vmatprep.subr.mxu0 0.0
    %1409 = vmatpush1.xpose.msra.mxu0 0.0
    %1410 = vmatprep.subr.mxu0 0.0
    %1411 = vmatpush1.xpose.msra.mxu0 0.0
    %1412 = vmatprep.subr.mxu0 0.0
    %1413 = vmatpush1.xpose.msra.mxu0 0.0
    %1414 = vmatprep.subr.mxu0 0.0
    %1415 = vmatpush1.xpose.msra.mxu0 0.0
    %1416 = vmatprep.subr.mxu0 0.0
    %1417 = vmatpush1.xpose.msra.mxu0 0.0
    %1418 = vmatprep.subr.mxu0 0.0
    %1419 = vmatpush1.xpose.msra.mxu0 0.0
    %1420 = vmatprep.subr.mxu0 0.0
    %1421 = vmatpush1.xpose.msra.mxu0 0.0
    %1422 = vmatprep.subr.mxu0 0.0
    %1423 = vmatpush1.xpose.msra.mxu0 0.0
    %1424 = vmatprep.mubr.f32.mxu0 0.0
    %1425 = vmatmul.mubr.f32.gmra.mrb[0].mxu0 %v636
    %v1426 = vpop.f32.mrb[0].mxu0
    %v1427 = vadd.f32 0.0, %v1426
    %v1428 = vpop.f32.mrb[0].mxu0
    %1429 = vmatprep.mubr.f32.mxu0 0.0
    %1430 = vmatmul.mubr.f32.gmra.mrb[0].mxu0 %v640
    %v1431 = vpop.f32.mrb[0].mxu0
    %v1432 = vadd.f32 0.0, %v1431
    %v1433 = vpop.f32.mrb[0].mxu0
    %1434 = vmatprep.mubr.f32.mxu0 0.0
    %1435 = vmatmul.mubr.f32.gmra.mrb[0].mxu0 %v646
    %v1436 = vpop.f32.mrb[0].mxu0
    %v1437 = vadd.f32 0.0, %v1436
    %v1438 = vpop.f32.mrb[0].mxu0
    %1439 = vdwg.mxu0
    %v1440 = vmul.f32 %v1427, 0.17677669
    %v1441 = vmul.f32 %v1432, 0.17677669
    %v1442 = vmul.f32 %v1437, 0.17677669
    %v1443 = vadd.f32 %v1440, %v416
    %v1444 = vadd.f32 %v1441, %v417
    %v1445 = vadd.f32 %v1442, %v418
    %v1446 = vsel %vm789, %v1443, -inf
    %1447 = vmax.xlane.f32.xlu0 %v1446
    %v1448 = vpop.xlane.xlu0 %1447
    %v1449 = vsel %vm789, %v1444, -inf
    %1450 = vmax.xlane.f32.xlu0 %v1449
    %v1451 = vpop.xlane.xlu0 %1450
    %v1452 = vsel %vm796, %v1445, -inf
    %1453 = vmax.xlane.f32.xlu0 %v1452
    %v1454 = vpop.xlane.xlu0 %1453
    %v1455 = vsub.f32 %v1443, %v1448
    %v1456 = vsub.f32 %v1444, %v1451
    %v1457 = vsub.f32 %v1445, %v1454
    %v1458 = vmul.f32 %v1455, 1.442695
    %v1459 = vpow.pop %v1458
    %v1460 = vmul.f32 %v1456, 1.442695
    %v1461 = vpow.pop %v1460
    %v1462 = vmul.f32 %v1457, 1.442695
    %v1463 = vpow.pop %v1462
    %v1464 = vsel %vm789, %v1459, 0.0
    %1465 = vadd.xlane.f32.xlu0 %v1464
    %v1466 = vpop.xlane.xlu0 %1465
    %v1467 = vsel %vm789, %v1461, 0.0
    %1468 = vadd.xlane.f32.xlu0 %v1467
    %v1469 = vpop.xlane.xlu0 %1468
    %v1470 = vsel %vm796, %v1463, 0.0
    %1471 = vadd.xlane.f32.xlu0 %v1470
    %v1472 = vpop.xlane.xlu0 %1471
    %v1473 = vrcp.pop %v1466
    %v1474 = vrcp.pop %v1469
    %v1475 = vrcp.pop %v1472
    %v1476 = vmul.f32 %v1459, %v1473
    %v1477 = vmul.f32 %v1461, %v1474
    %v1478 = vmul.f32 %v1463, %v1475
    %v1479 = vmul.f32 %v687, %v351
    %v1480 = vmul.f32 %v690, %v351
    %v1481 = vmul.f32 %v695, %v351
    %v1483 = vsel %vm789, %v1476, 0
    %v1486 = vsel %vm789, %v1477, 0
    %v1489 = vsel %vm789, %v1478, 0
    %v1492 = vsel %vm961, %v1481, 0
    %1494 = vmatprep.subr.mxu0 0.0
    %1495 = vmatpush1.msra.mxu0 %v1479
    %1496 = vmatprep.subr.mxu0 0.0
    %1497 = vmatpush1.msra.mxu0 %v1480
    %1498 = vmatprep.subr.mxu0 0.0
    %1499 = vmatpush1.msra.mxu0 %v1492
    %1500 = vmatprep.subr.mxu0 0.0
    %1501 = vmatpush1.msra.mxu0 0.0
    %1502 = vmatprep.subr.mxu0 0.0
    %1503 = vmatpush1.msra.mxu0 0.0
    %1504 = vmatprep.subr.mxu0 0.0
    %1505 = vmatpush1.msra.mxu0 0.0
    %1506 = vmatprep.subr.mxu0 0.0
    %1507 = vmatpush1.msra.mxu0 0.0
    %1508 = vmatprep.subr.mxu0 0.0
    %1509 = vmatpush1.msra.mxu0 0.0
    %1510 = vmatprep.subr.mxu0 0.0
    %1511 = vmatpush1.msra.mxu0 0.0
    %1512 = vmatprep.subr.mxu0 0.0
    %1513 = vmatpush1.msra.mxu0 0.0
    %1514 = vmatprep.subr.mxu0 0.0
    %1515 = vmatpush1.msra.mxu0 0.0
    %1516 = vmatprep.subr.mxu0 0.0
    %1517 = vmatpush1.msra.mxu0 0.0
    %1518 = vmatprep.subr.mxu0 0.0
    %1519 = vmatpush1.msra.mxu0 0.0
    %1520 = vmatprep.subr.mxu0 0.0
    %1521 = vmatpush1.msra.mxu0 0.0
    %1522 = vmatprep.subr.mxu0 0.0
    %1523 = vmatpush1.msra.mxu0 0.0
    %1524 = vmatprep.subr.mxu0 0.0
    %1525 = vmatpush1.msra.mxu0 0.0
    %1526 = vmatprep.subr.mxu0 0.0
    %1527 = vmatpush1.msra.mxu0 0.0
    %1528 = vmatprep.subr.mxu0 0.0
    %1529 = vmatpush1.msra.mxu0 0.0
    %1530 = vmatprep.subr.mxu0 0.0
    %1531 = vmatpush1.msra.mxu0 0.0
    %1532 = vmatprep.subr.mxu0 0.0
    %1533 = vmatpush1.msra.mxu0 0.0
    %1534 = vmatprep.subr.mxu0 0.0
    %1535 = vmatpush1.msra.mxu0 0.0
    %1536 = vmatprep.subr.mxu0 0.0
    %1537 = vmatpush1.msra.mxu0 0.0
    %1538 = vmatprep.subr.mxu0 0.0
    %1539 = vmatpush1.msra.mxu0 0.0
    %1540 = vmatprep.subr.mxu0 0.0
    %1541 = vmatpush1.msra.mxu0 0.0
    %1542 = vmatprep.subr.mxu0 0.0
    %1543 = vmatpush1.msra.mxu0 0.0
    %1544 = vmatprep.subr.mxu0 0.0
    %1545 = vmatpush1.msra.mxu0 0.0
    %1546 = vmatprep.subr.mxu0 0.0
    %1547 = vmatpush1.msra.mxu0 0.0
    %1548 = vmatprep.subr.mxu0 0.0
    %1549 = vmatpush1.msra.mxu0 0.0
    %1550 = vmatprep.subr.mxu0 0.0
    %1551 = vmatpush1.msra.mxu0 0.0
    %1552 = vmatprep.subr.mxu0 0.0
    %1553 = vmatpush1.msra.mxu0 0.0
    %1554 = vmatprep.subr.mxu0 0.0
    %1555 = vmatpush1.msra.mxu0 0.0
    %1556 = vmatprep.subr.mxu0 0.0
    %1557 = vmatpush1.msra.mxu0 0.0
    %1558 = vmatprep.mubr.f32.mxu0 0.0
    %1559 = vmatmul.mubr.f32.gmra.mrb[0].mxu0 %v1483
    %v1560 = vpop.f32.mrb[0].mxu0
    %v1561 = vadd.f32 0.0, %v1560
    %v1562 = vpop.f32.mrb[0].mxu0
    %1563 = vmatprep.mubr.f32.mxu0 0.0
    %1564 = vmatmul.mubr.f32.gmra.mrb[0].mxu0 %v1486
    %v1565 = vpop.f32.mrb[0].mxu0
    %v1566 = vadd.f32 0.0, %v1565
    %v1567 = vpop.f32.mrb[0].mxu0
    %1568 = vmatprep.mubr.f32.mxu0 0.0
    %1569 = vmatmul.mubr.f32.gmra.mrb[0].mxu0 %v1489
    %v1570 = vpop.f32.mrb[0].mxu0
    %v1571 = vadd.f32 0.0, %v1570
    %v1572 = vpop.f32.mrb[0].mxu0
    %1573 = vdwg.mxu0
    %v1574 = vadd.f32 %v1354, %v1561
    %v1575 = vadd.f32 %v1355, %v1566
    %v1576 = vadd.f32 %v1356, %v1571
    %v1577 = vld [vmem:[%s3] sm:$0xf]
    %v1578 = vld [vmem:[%s3 + $0x4] sm:$0xf]
    %v1579 = vld [vmem:[%s3 + $0x8] sm:$0xf]
    %v1580 = vld [vmem:[%s3 + $0xc] sm:$0xf]
    %v1581 = vld [vmem:[%s3 + $0x10] sm:$0xf]
    %v1582 = vld [vmem:[%s3 + $0x14] sm:$0xf]
    %v1583 = vld [vmem:[%s3 + $0x18] sm:$0xf]
    %v1584 = vld [vmem:[%s3 + $0x1c] sm:$0xf]
    %v1585 = vld [vmem:[%s3 + $0x20] sm:$0xf]
    %v1586 = vld [vmem:[%s3 + $0x24] sm:$0xf]
    %v1587 = vld [vmem:[%s3 + $0x28] sm:$0xf]
    %v1588 = vld [vmem:[%s3 + $0x2c] sm:$0xf]
    %v1589 = vld [vmem:[%s3 + $0x30] sm:$0xf]
    %v1590 = vld [vmem:[%s3 + $0x34] sm:$0xf]
    %v1591 = vld [vmem:[%s3 + $0x38] sm:$0xf]
    %v1592 = vld [vmem:[%s3 + $0x3c] sm:$0xf]
    %v1593 = vld [vmem:[%s4] sm:$0x1]
    %v1594 = vpack.c.bf16 %v1575, %v1574
    %v1595 = vpack.c.bf16 %v1576, %v1576
    %v1597 = vlaneseq
    %v1598 = vshrl.u32 %v1597, 7
    %v1599 = vsub.s32 0, %v1598
    %v1600 = vrot.slane %v1593, %v1599
    %v1618 = vunpack.c.l.b16 %v1577
    %v1619 = vunpack.c.l.b16 %v1578
    %v1620 = vunpack.c.l.b16 %v1579
    %v1621 = vunpack.c.l.b16 %v1580
    %v1622 = vunpack.c.l.b16 %v1581
    %v1623 = vunpack.c.l.b16 %v1582
    %v1624 = vunpack.c.l.b16 %v1583
    %v1625 = vunpack.c.l.b16 %v1584
    %v1626 = vunpack.c.l.b16 %v1585
    %v1627 = vunpack.c.l.b16 %v1586
    %v1628 = vunpack.c.l.b16 %v1587
    %v1629 = vunpack.c.l.b16 %v1588
    %v1630 = vunpack.c.l.b16 %v1589
    %v1631 = vunpack.c.l.b16 %v1590
    %v1632 = vunpack.c.l.b16 %v1591
    %v1633 = vunpack.c.l.b16 %v1592
    %v1634 = vpack.c.b16 %v1619, %v1618
    %v1635 = vpack.c.b16 %v1621, %v1620
    %v1636 = vpack.c.b16 %v1623, %v1622
    %v1637 = vpack.c.b16 %v1625, %v1624
    %v1638 = vpack.c.b16 %v1627, %v1626
    %v1639 = vpack.c.b16 %v1629, %v1628
    %v1640 = vpack.c.b16 %v1631, %v1630
    %v1641 = vpack.c.b16 %v1633, %v1632
    %1650 = vmatprep.subr.bf16.mxu0 0
    %1651 = vmatpush1.bf16.msra.mxu0 %v1634
    %1652 = vmatprep.subr.bf16.mxu0 0
    %1653 = vmatpush1.bf16.msra.mxu0 %v1635
    %1654 = vmatprep.subr.bf16.mxu0 0
    %1655 = vmatpush1.bf16.msra.mxu0 %v1636
    %1656 = vmatprep.subr.bf16.mxu0 0
    %1657 = vmatpush1.bf16.msra.mxu0 %v1637
    %1658 = vmatprep.subr.bf16.mxu0 0
    %1659 = vmatpush1.bf16.msra.mxu0 %v1638
    %1660 = vmatprep.subr.bf16.mxu0 0
    %1661 = vmatpush1.bf16.msra.mxu0 %v1639
    %1662 = vmatprep.subr.bf16.mxu0 0
    %1663 = vmatpush1.bf16.msra.mxu0 %v1640
    %1664 = vmatprep.subr.bf16.mxu0 0
    %1665 = vmatpush1.bf16.msra.mxu0 %v1641
    %1666 = vmatprep.subr.bf16.mxu0 0
    %1667 = vmatpush1.bf16.msra.mxu0 0
    %1668 = vmatprep.subr.bf16.mxu0 0
    %1669 = vmatpush1.bf16.msra.mxu0 0
    %1670 = vmatprep.subr.bf16.mxu0 0
    %1671 = vmatpush1.bf16.msra.mxu0 0
    %1672 = vmatprep.subr.bf16.mxu0 0
    %1673 = vmatpush1.bf16.msra.mxu0 0
    %1674 = vmatprep.subr.bf16.mxu0 0
    %1675 = vmatpush1.bf16.msra.mxu0 0
    %1676 = vmatprep.subr.bf16.mxu0 0
    %1677 = vmatpush1.bf16.msra.mxu0 0
    %1678 = vmatprep.subr.bf16.mxu0 0
    %1679 = vmatpush1.bf16.msra.mxu0 0
    %1680 = vmatprep.subr.bf16.mxu0 0
    %1681 = vmatpush1.bf16.msra.mxu0 0
    %1682 = vmatprep.mubr.bf16.mxu0 0
    %1683 = vmatmul.mubr.bf16.gmra.mrb[0].mxu0 %v1594
    %v1684 = vpop.f32.mrb[0].mxu0
    %v1685 = vadd.f32 %v1600, %v1684
    %v1686 = vpop.f32.mrb[0].mxu0
    %v1687 = vpop.f32.mrb[0].mxu0
    %v1688 = vadd.f32 %v1600, %v1687
    %v1689 = vpop.f32.mrb[0].mxu0
    %1690 = vmatprep.mubr.bf16.mxu0 0
    %1691 = vmatmul.mubr.bf16.gmra.mrb[0].mxu0 %v1595
    %v1692 = vpop.f32.mrb[0].mxu0
    %v1693 = vadd.f32 %v1600, %v1692
    %v1694 = vpop.f32.mrb[0].mxu0
    %v1695 = vpop.f32.mrb[0].mxu0
    %v1696 = vpop.f32.mrb[0].mxu0
    %1697 = vdwg.mxu0
    %v1698 = vadd.f32 %v419, %v1685
    %v1699 = vadd.f32 %v420, %v1688
    %v1700 = vadd.f32 %v421, %v1693
    %v1701 = vld [vmem:[#allocation15] sm:$0x1]
    %v1702 = vld [vmem:[#allocation17] sm:$0x1]
    %1703 = vadd.xlane.f32.xlu0 %v1698
    %v1704 = vpop.xlane.xlu0 %1703
    %1705 = vadd.xlane.f32.xlu0 %v1699
    %v1706 = vpop.xlane.xlu0 %1705
    %v1707 = vsel %vm961, %v1700, 0.0
    %1708 = vadd.xlane.f32.xlu0 %v1707
    %v1709 = vpop.xlane.xlu0 %1708
    %v1710 = vrcp.pop 128.0
    %v1711 = vmul.f32 %v1704, %v1710
    %v1712 = vmul.f32 %v1706, %v1710
    %v1713 = vmul.f32 %v1709, %v1710
    %v1714 = vsub.f32 %v1698, %v1711
    %v1715 = vsub.f32 %v1699, %v1712
    %v1716 = vsub.f32 %v1700, %v1713
    %v1717 = vmul.f32 %v1714, %v1714
    %v1718 = vmul.f32 %v1715, %v1715
    %v1719 = vmul.f32 %v1716, %v1716
    %1720 = vadd.xlane.f32.xlu0 %v1717
    %v1721 = vpop.xlane.xlu0 %1720
    %1722 = vadd.xlane.f32.xlu0 %v1718
    %v1723 = vpop.xlane.xlu0 %1722
    %v1724 = vsel %vm961, %v1719, 0.0
    %1725 = vadd.xlane.f32.xlu0 %v1724
    %v1726 = vpop.xlane.xlu0 %1725
    %v1727 = vmul.f32 %v1721, %v1710
    %v1728 = vmul.f32 %v1723, %v1710
    %v1729 = vmul.f32 %v1726, %v1710
    %v1730 = vadd.f32 %v1727, 1e-05
    %v1731 = vadd.f32 %v1728, 1e-05
    %v1732 = vadd.f32 %v1729, 1e-05
    %v1733 = vrsqrt.pop %v1730
    %v1734 = vrsqrt.pop %v1731
    %v1735 = vrsqrt.pop %v1732
    %v1736 = vmul.f32 %v1714, %v1733
    %v1737 = vmul.f32 %v1715, %v1734
    %v1738 = vmul.f32 %v1716, %v1735
    %v1740 = vlaneseq
    %v1741 = vshrl.u32 %v1740, 7
    %v1742 = vsub.s32 0, %v1741
    %v1743 = vrot.slane %v1701, %v1742
    %v1745 = vmul.f32 %v1736, %v1743
    %v1746 = vmul.f32 %v1737, %v1743
    %v1747 = vmul.f32 %v1738, %v1743
    %v1749 = vlaneseq
    %v1750 = vshrl.u32 %v1749, 7
    %v1751 = vsub.s32 0, %v1750
    %v1752 = vrot.slane %v1702, %v1751
    %v1754 = vadd.f32 %v1745, %v1752
    %v1755 = vadd.f32 %v1746, %v1752
    %v1756 = vadd.f32 %v1747, %v1752
    %v1757 = vld [vmem:[#allocation6] sm:$0xf]
    %v1758 = vld [vmem:[#allocation6 + $0x4] sm:$0xf]
    %v1759 = vld [vmem:[#allocation6 + $0x8] sm:$0xf]
    %v1760 = vld [vmem:[#allocation6 + $0xc] sm:$0xf]
    %v1761 = vld [vmem:[#allocation6 + $0x10] sm:$0xf]
    %v1762 = vld [vmem:[#allocation6 + $0x14] sm:$0xf]
    %v1763 = vld [vmem:[#allocation6 + $0x18] sm:$0xf]
    %v1764 = vld [vmem:[#allocation6 + $0x1c] sm:$0xf]
    %v1765 = vld [vmem:[#allocation6 + $0x20] sm:$0xf]
    %v1766 = vld [vmem:[#allocation6 + $0x24] sm:$0xf]
    %v1767 = vld [vmem:[#allocation6 + $0x28] sm:$0xf]
    %v1768 = vld [vmem:[#allocation6 + $0x2c] sm:$0xf]
    %v1769 = vld [vmem:[#allocation6 + $0x30] sm:$0xf]
    %v1770 = vld [vmem:[#allocation6 + $0x34] sm:$0xf]
    %v1771 = vld [vmem:[#allocation6 + $0x38] sm:$0xf]
    %v1772 = vld [vmem:[#allocation6 + $0x3c] sm:$0xf]
    %v1773 = vld [vmem:[#allocation8] sm:$0x1]
    %v1774 = vpack.c.bf16 %v1755, %v1754
    %v1775 = vpack.c.bf16 %v1756, %v1756
    %v1777 = vlaneseq
    %v1778 = vshrl.u32 %v1777, 7
    %v1779 = vsub.s32 0, %v1778
    %v1780 = vrot.slane %v1773, %v1779
    %v1798 = vunpack.c.l.b16 %v1757
    %v1799 = vunpack.c.l.b16 %v1758
    %v1800 = vunpack.c.l.b16 %v1759
    %v1801 = vunpack.c.l.b16 %v1760
    %v1802 = vunpack.c.l.b16 %v1761
    %v1803 = vunpack.c.l.b16 %v1762
    %v1804 = vunpack.c.l.b16 %v1763
    %v1805 = vunpack.c.l.b16 %v1764
    %v1806 = vunpack.c.l.b16 %v1765
    %v1807 = vunpack.c.l.b16 %v1766
    %v1808 = vunpack.c.l.b16 %v1767
    %v1809 = vunpack.c.l.b16 %v1768
    %v1810 = vunpack.c.l.b16 %v1769
    %v1811 = vunpack.c.l.b16 %v1770
    %v1812 = vunpack.c.l.b16 %v1771
    %v1813 = vunpack.c.l.b16 %v1772
    %v1814 = vpack.c.b16 %v1799, %v1798
    %v1815 = vpack.c.b16 %v1801, %v1800
    %v1816 = vpack.c.b16 %v1803, %v1802
    %v1817 = vpack.c.b16 %v1805, %v1804
    %v1818 = vpack.c.b16 %v1807, %v1806
    %v1819 = vpack.c.b16 %v1809, %v1808
    %v1820 = vpack.c.b16 %v1811, %v1810
    %v1821 = vpack.c.b16 %v1813, %v1812
    %1830 = vmatprep.subr.bf16.mxu0 0
    %1831 = vmatpush1.bf16.msra.mxu0 %v1814
    %1832 = vmatprep.subr.bf16.mxu0 0
    %1833 = vmatpush1.bf16.msra.mxu0 %v1815
    %1834 = vmatprep.subr.bf16.mxu0 0
    %1835 = vmatpush1.bf16.msra.mxu0 %v1816
    %1836 = vmatprep.subr.bf16.mxu0 0
    %1837 = vmatpush1.bf16.msra.mxu0 %v1817
    %1838 = vmatprep.subr.bf16.mxu0 0
    %1839 = vmatpush1.bf16.msra.mxu0 %v1818
    %1840 = vmatprep.subr.bf16.mxu0 0
    %1841 = vmatpush1.bf16.msra.mxu0 %v1819
    %1842 = vmatprep.subr.bf16.mxu0 0
    %1843 = vmatpush1.bf16.msra.mxu0 %v1820
    %1844 = vmatprep.subr.bf16.mxu0 0
    %1845 = vmatpush1.bf16.msra.mxu0 %v1821
    %1846 = vmatprep.subr.bf16.mxu0 0
    %1847 = vmatpush1.bf16.msra.mxu0 0
    %1848 = vmatprep.subr.bf16.mxu0 0
    %1849 = vmatpush1.bf16.msra.mxu0 0
    %1850 = vmatprep.subr.bf16.mxu0 0
    %1851 = vmatpush1.bf16.msra.mxu0 0
    %1852 = vmatprep.subr.bf16.mxu0 0
    %1853 = vmatpush1.bf16.msra.mxu0 0
    %1854 = vmatprep.subr.bf16.mxu0 0
    %1855 = vmatpush1.bf16.msra.mxu0 0
    %1856 = vmatprep.subr.bf16.mxu0 0
    %1857 = vmatpush1.bf16.msra.mxu0 0
    %1858 = vmatprep.subr.bf16.mxu0 0
    %1859 = vmatpush1.bf16.msra.mxu0 0
    %1860 = vmatprep.subr.bf16.mxu0 0
    %1861 = vmatpush1.bf16.msra.mxu0 0
    %1862 = vmatprep.mubr.bf16.mxu0 0
    %1863 = vmatmul.mubr.bf16.gmra.mrb[0].mxu0 %v1774
    %v1864 = vpop.f32.mrb[0].mxu0
    %v1865 = vadd.f32 %v1780, %v1864
    %v1866 = vpop.f32.mrb[0].mxu0
    %v1867 = vpop.f32.mrb[0].mxu0
    %v1868 = vadd.f32 %v1780, %v1867
    %v1869 = vpop.f32.mrb[0].mxu0
    %1870 = vmatprep.mubr.bf16.mxu0 0
    %1871 = vmatmul.mubr.bf16.gmra.mrb[0].mxu0 %v1775
    %v1872 = vpop.f32.mrb[0].mxu0
    %v1873 = vadd.f32 %v1780, %v1872
    %v1874 = vpop.f32.mrb[0].mxu0
    %v1875 = vpop.f32.mrb[0].mxu0
    %v1876 = vpop.f32.mrb[0].mxu0
    %1877 = vdwg.mxu0
    %v1878 = vld [vmem:[#allocation9] sm:$0xff]
    %v1879 = vld [vmem:[#allocation9 + $0x8] sm:$0xff]
    %v1880 = vld [vmem:[#allocation9 + $0x10] sm:$0xff]
    %v1881 = vld [vmem:[#allocation9 + $0x18] sm:$0xff]
    %v1882 = vld [vmem:[#allocation9 + $0x20] sm:$0xff]
    %v1883 = vld [vmem:[#allocation9 + $0x28] sm:$0xff]
    %v1884 = vld [vmem:[#allocation9 + $0x30] sm:$0xff]
    %v1885 = vld [vmem:[#allocation9 + $0x38] sm:$0xff]
    %v1886 = vld [vmem:[#allocation9 + $0x40] sm:$0xff]
    %v1887 = vld [vmem:[#allocation9 + $0x48] sm:$0xff]
    %v1888 = vld [vmem:[#allocation9 + $0x50] sm:$0xff]
    %v1889 = vld [vmem:[#allocation9 + $0x58] sm:$0xff]
    %v1890 = vld [vmem:[#allocation9 + $0x60] sm:$0xff]
    %v1891 = vld [vmem:[#allocation9 + $0x68] sm:$0xff]
    %v1892 = vld [vmem:[#allocation9 + $0x70] sm:$0xff]
    %v1893 = vld [vmem:[#allocation9 + $0x78] sm:$0xff]
    %v1894 = vld [vmem:[#allocation11] sm:$0x3]
    %v1896 = vlaneseq
    %v1897 = vshrl.u32 %v1896, 7
    %v1898 = vsub.s32 0, %v1897
    %v1899 = vrot.slane %v1894, %v1898
    %v1900 = vlaneseq
    %v1901 = vshrl.u32 %v1900, 7
    %v1902 = vsub.s32 1, %v1901
    %v1903 = vrot.slane %v1894, %v1902
    %v1922 = vunpack.c.l.b16 %v1878
    %v1923 = vunpack.c.h.b16 %v1878
    %v1924 = vunpack.c.l.b16 %v1879
    %v1925 = vunpack.c.h.b16 %v1879
    %v1926 = vunpack.c.l.b16 %v1880
    %v1927 = vunpack.c.h.b16 %v1880
    %v1928 = vunpack.c.l.b16 %v1881
    %v1929 = vunpack.c.h.b16 %v1881
    %v1930 = vunpack.c.l.b16 %v1882
    %v1931 = vunpack.c.h.b16 %v1882
    %v1932 = vunpack.c.l.b16 %v1883
    %v1933 = vunpack.c.h.b16 %v1883
    %v1934 = vunpack.c.l.b16 %v1884
    %v1935 = vunpack.c.h.b16 %v1884
    %v1936 = vunpack.c.l.b16 %v1885
    %v1937 = vunpack.c.h.b16 %v1885
    %v1938 = vunpack.c.l.b16 %v1886
    %v1939 = vunpack.c.h.b16 %v1886
    %v1940 = vunpack.c.l.b16 %v1887
    %v1941 = vunpack.c.h.b16 %v1887
    %v1942 = vunpack.c.l.b16 %v1888
    %v1943 = vunpack.c.h.b16 %v1888
    %v1944 = vunpack.c.l.b16 %v1889
    %v1945 = vunpack.c.h.b16 %v1889
    %v1946 = vunpack.c.l.b16 %v1890
    %v1947 = vunpack.c.h.b16 %v1890
    %v1948 = vunpack.c.l.b16 %v1891
    %v1949 = vunpack.c.h.b16 %v1891
    %v1950 = vunpack.c.l.b16 %v1892
    %v1951 = vunpack.c.h.b16 %v1892
    %v1952 = vunpack.c.l.b16 %v1893
    %v1953 = vunpack.c.h.b16 %v1893
    %v1954 = vpack.c.b16 %v1924, %v1922
    %v1955 = vpack.c.b16 %v1925, %v1923
    %v1956 = vpack.c.b16 %v1928, %v1926
    %v1957 = vpack.c.b16 %v1929, %v1927
    %v1958 = vpack.c.b16 %v1932, %v1930
    %v1959 = vpack.c.b16 %v1933, %v1931
    %v1960 = vpack.c.b16 %v1936, %v1934
    %v1961 = vpack.c.b16 %v1937, %v1935
    %v1962 = vpack.c.b16 %v1940, %v1938
    %v1963 = vpack.c.b16 %v1941, %v1939
    %v1964 = vpack.c.b16 %v1944, %v1942
    %v1965 = vpack.c.b16 %v1945, %v1943
    %v1966 = vpack.c.b16 %v1948, %v1946
    %v1967 = vpack.c.b16 %v1949, %v1947
    %v1968 = vpack.c.b16 %v1952, %v1950
    %v1969 = vpack.c.b16 %v1953, %v1951
    %1986 = vmatprep.subr.bf16.mxu0 %v1955
    %1987 = vmatpush1.bf16.msra.mxu0 %v1954
    %1988 = vmatprep.subr.bf16.mxu0 %v1957
    %1989 = vmatpush1.bf16.msra.mxu0 %v1956
    %1990 = vmatprep.subr.bf16.mxu0 %v1959
    %1991 = vmatpush1.bf16.msra.mxu0 %v1958
    %1992 = vmatprep.subr.bf16.mxu0 %v1961
    %1993 = vmatpush1.bf16.msra.mxu0 %v1960
    %1994 = vmatprep.subr.bf16.mxu0 %v1963
    %1995 = vmatpush1.bf16.msra.mxu0 %v1962
    %1996 = vmatprep.subr.bf16.mxu0 %v1965
    %1997 = vmatpush1.bf16.msra.mxu0 %v1964
    %1998 = vmatprep.subr.bf16.mxu0 %v1967
    %1999 = vmatpush1.bf16.msra.mxu0 %v1966
    %2000 = vmatprep.subr.bf16.mxu0 %v1969
    %2001 = vmatpush1.bf16.msra.mxu0 %v1968
    %2002 = vmatprep.subr.bf16.mxu0 0
    %2003 = vmatpush1.bf16.msra.mxu0 0
    %2004 = vmatprep.subr.bf16.mxu0 0
    %2005 = vmatpush1.bf16.msra.mxu0 0
    %2006 = vmatprep.subr.bf16.mxu0 0
    %2007 = vmatpush1.bf16.msra.mxu0 0
    %2008 = vmatprep.subr.bf16.mxu0 0
    %2009 = vmatpush1.bf16.msra.mxu0 0
    %2010 = vmatprep.subr.bf16.mxu0 0
    %2011 = vmatpush1.bf16.msra.mxu0 0
    %2012 = vmatprep.subr.bf16.mxu0 0
    %2013 = vmatpush1.bf16.msra.mxu0 0
    %2014 = vmatprep.subr.bf16.mxu0 0
    %2015 = vmatpush1.bf16.msra.mxu0 0
    %2016 = vmatprep.subr.bf16.mxu0 0
    %2017 = vmatpush1.bf16.msra.mxu0 0
    %2018 = vmatprep.mubr.bf16.mxu0 0
    %2019 = vmatmul.mubr.bf16.gmra.mrb[0].mxu0 %v455
    %v2020 = vpop.f32.mrb[0].mxu0
    %v2021 = vadd.f32 %v1899, %v2020
    %v2022 = vpop.f32.mrb[0].mxu0
    %v2023 = vadd.f32 %v1903, %v2022
    %v2024 = vpop.f32.mrb[0].mxu0
    %v2025 = vadd.f32 %v1899, %v2024
    %v2026 = vpop.f32.mrb[0].mxu0
    %v2027 = vadd.f32 %v1903, %v2026
    %2028 = vmatprep.mubr.bf16.mxu0 0
    %2029 = vmatmul.mubr.bf16.gmra.mrb[0].mxu0 %v456
    %v2030 = vpop.f32.mrb[0].mxu0
    %v2031 = vadd.f32 %v1899, %v2030
    %v2032 = vpop.f32.mrb[0].mxu0
    %v2033 = vadd.f32 %v1903, %v2032
    %v2034 = vpop.f32.mrb[0].mxu0
    %v2035 = vpop.f32.mrb[0].mxu0
    %2036 = vdwg.mxu0
    %v2037 = vmul.f32 %v2021, %v339
    %v2038 = vmul.f32 %v2025, %v339
    %v2039 = vmul.f32 %v2031, %v339
    %2040 = vmatprep.subr.mxu0 0.0
    %2041 = vmatpush1.xpose.msra.mxu0 %v2037
    %2042 = vmatprep.subr.mxu0 0.0
    %2043 = vmatpush1.xpose.msra.mxu0 %v2038
    %2044 = vmatprep.subr.mxu0 0.0
    %2045 = vmatpush1.xpose.msra.mxu0 %v2039
    %2046 = vmatprep.subr.mxu0 0.0
    %2047 = vmatpush1.xpose.msra.mxu0 0.0
    %2048 = vmatprep.subr.mxu0 0.0
    %2049 = vmatpush1.xpose.msra.mxu0 0.0
    %2050 = vmatprep.subr.mxu0 0.0
    %2051 = vmatpush1.xpose.msra.mxu0 0.0
    %2052 = vmatprep.subr.mxu0 0.0
    %2053 = vmatpush1.xpose.msra.mxu0 0.0
    %2054 = vmatprep.subr.mxu0 0.0
    %2055 = vmatpush1.xpose.msra.mxu0 0.0
    %2056 = vmatprep.subr.mxu0 0.0
    %2057 = vmatpush1.xpose.msra.mxu0 0.0
    %2058 = vmatprep.subr.mxu0 0.0
    %2059 = vmatpush1.xpose.msra.mxu0 0.0
    %2060 = vmatprep.subr.mxu0 0.0
    %2061 = vmatpush1.xpose.msra.mxu0 0.0
    %2062 = vmatprep.subr.mxu0 0.0
    %2063 = vmatpush1.xpose.msra.mxu0 0.0
    %2064 = vmatprep.subr.mxu0 0.0
    %2065 = vmatpush1.xpose.msra.mxu0 0.0
    %2066 = vmatprep.subr.mxu0 0.0
    %2067 = vmatpush1.xpose.msra.mxu0 0.0
    %2068 = vmatprep.subr.mxu0 0.0
    %2069 = vmatpush1.xpose.msra.mxu0 0.0
    %2070 = vmatprep.subr.mxu0 0.0
    %2071 = vmatpush1.xpose.msra.mxu0 0.0
    %2072 = vmatprep.subr.mxu0 0.0
    %2073 = vmatpush1.xpose.msra.mxu0 0.0
    %2074 = vmatprep.subr.mxu0 0.0
    %2075 = vmatpush1.xpose.msra.mxu0 0.0
    %2076 = vmatprep.subr.mxu0 0.0
    %2077 = vmatpush1.xpose.msra.mxu0 0.0
    %2078 = vmatprep.subr.mxu0 0.0
    %2079 = vmatpush1.xpose.msra.mxu0 0.0
    %2080 = vmatprep.subr.mxu0 0.0
    %2081 = vmatpush1.xpose.msra.mxu0 0.0
    %2082 = vmatprep.subr.mxu0 0.0
    %2083 = vmatpush1.xpose.msra.mxu0 0.0
    %2084 = vmatprep.subr.mxu0 0.0
    %2085 = vmatpush1.xpose.msra.mxu0 0.0
    %2086 = vmatprep.subr.mxu0 0.0
    %2087 = vmatpush1.xpose.msra.mxu0 0.0
    %2088 = vmatprep.subr.mxu0 0.0
    %2089 = vmatpush1.xpose.msra.mxu0 0.0
    %2090 = vmatprep.subr.mxu0 0.0
    %2091 = vmatpush1.xpose.msra.mxu0 0.0
    %2092 = vmatprep.subr.mxu0 0.0
    %2093 = vmatpush1.xpose.msra.mxu0 0.0
    %2094 = vmatprep.subr.mxu0 0.0
    %2095 = vmatpush1.xpose.msra.mxu0 0.0
    %2096 = vmatprep.subr.mxu0 0.0
    %2097 = vmatpush1.xpose.msra.mxu0 0.0
    %2098 = vmatprep.subr.mxu0 0.0
    %2099 = vmatpush1.xpose.msra.mxu0 0.0
    %2100 = vmatprep.subr.mxu0 0.0
    %2101 = vmatpush1.xpose.msra.mxu0 0.0
    %2102 = vmatprep.subr.mxu0 0.0
    %2103 = vmatpush1.xpose.msra.mxu0 0.0
    %2104 = vmatprep.mubr.f32.mxu0 0.0
    %2105 = vmatmul.mubr.f32.gmra.mrb[0].mxu0 %v1865
    %v2106 = vpop.f32.mrb[0].mxu0
    %v2107 = vadd.f32 0.0, %v2106
    %v2108 = vpop.f32.mrb[0].mxu0
    %2109 = vmatprep.mubr.f32.mxu0 0.0
    %2110 = vmatmul.mubr.f32.gmra.mrb[0].mxu0 %v1868
    %v2111 = vpop.f32.mrb[0].mxu0
    %v2112 = vadd.f32 0.0, %v2111
    %v2113 = vpop.f32.mrb[0].mxu0
    %2114 = vmatprep.mubr.f32.mxu0 0.0
    %2115 = vmatmul.mubr.f32.gmra.mrb[0].mxu0 %v1873
    %v2116 = vpop.f32.mrb[0].mxu0
    %v2117 = vadd.f32 0.0, %v2116
    %v2118 = vpop.f32.mrb[0].mxu0
    %2119 = vdwg.mxu0
    %v2120 = vmul.f32 %v2107, 0.17677669
    %v2121 = vmul.f32 %v2112, 0.17677669
    %v2122 = vmul.f32 %v2117, 0.17677669
    %v2123 = vadd.f32 %v2120, %v416
    %v2124 = vadd.f32 %v2121, %v417
    %v2125 = vadd.f32 %v2122, %v418
    %v2126 = vsel %vm789, %v2123, -inf
    %2127 = vmax.xlane.f32.xlu0 %v2126
    %v2128 = vpop.xlane.xlu0 %2127
    %v2129 = vsel %vm789, %v2124, -inf
    %2130 = vmax.xlane.f32.xlu0 %v2129
    %v2131 = vpop.xlane.xlu0 %2130
    %v2132 = vsel %vm796, %v2125, -inf
    %2133 = vmax.xlane.f32.xlu0 %v2132
    %v2134 = vpop.xlane.xlu0 %2133
    %v2135 = vsub.f32 %v2123, %v2128
    %v2136 = vsub.f32 %v2124, %v2131
    %v2137 = vsub.f32 %v2125, %v2134
    %v2138 = vmul.f32 %v2135, 1.442695
    %v2139 = vpow.pop %v2138
    %v2140 = vmul.f32 %v2136, 1.442695
    %v2141 = vpow.pop %v2140
    %v2142 = vmul.f32 %v2137, 1.442695
    %v2143 = vpow.pop %v2142
    %v2144 = vsel %vm789, %v2139, 0.0
    %2145 = vadd.xlane.f32.xlu0 %v2144
    %v2146 = vpop.xlane.xlu0 %2145
    %v2147 = vsel %vm789, %v2141, 0.0
    %2148 = vadd.xlane.f32.xlu0 %v2147
    %v2149 = vpop.xlane.xlu0 %2148
    %v2150 = vsel %vm796, %v2143, 0.0
    %2151 = vadd.xlane.f32.xlu0 %v2150
    %v2152 = vpop.xlane.xlu0 %2151
    %v2153 = vrcp.pop %v2146
    %v2154 = vrcp.pop %v2149
    %v2155 = vrcp.pop %v2152
    %v2156 = vmul.f32 %v2139, %v2153
    %v2157 = vmul.f32 %v2141, %v2154
    %v2158 = vmul.f32 %v2143, %v2155
    %v2159 = vmul.f32 %v2023, %v339
    %v2160 = vmul.f32 %v2027, %v339
    %v2161 = vmul.f32 %v2033, %v339
    %v2162 = vmul.f32 %v2021, %v343
    %v2163 = vmul.f32 %v2025, %v343
    %v2164 = vmul.f32 %v2031, %v343
    %2165 = vmatprep.subr.mxu0 0.0
    %2166 = vmatpush1.xpose.msra.mxu0 %v2162
    %2167 = vmatprep.subr.mxu0 0.0
    %2168 = vmatpush1.xpose.msra.mxu0 %v2163
    %2169 = vmatprep.subr.mxu0 0.0
    %2170 = vmatpush1.xpose.msra.mxu0 %v2164
    %2171 = vmatprep.subr.mxu0 0.0
    %2172 = vmatpush1.xpose.msra.mxu0 0.0
    %2173 = vmatprep.subr.mxu0 0.0
    %2174 = vmatpush1.xpose.msra.mxu0 0.0
    %2175 = vmatprep.subr.mxu0 0.0
    %2176 = vmatpush1.xpose.msra.mxu0 0.0
    %2177 = vmatprep.subr.mxu0 0.0
    %2178 = vmatpush1.xpose.msra.mxu0 0.0
    %2179 = vmatprep.subr.mxu0 0.0
    %2180 = vmatpush1.xpose.msra.mxu0 0.0
    %2181 = vmatprep.subr.mxu0 0.0
    %2182 = vmatpush1.xpose.msra.mxu0 0.0
    %2183 = vmatprep.subr.mxu0 0.0
    %2184 = vmatpush1.xpose.msra.mxu0 0.0
    %2185 = vmatprep.subr.mxu0 0.0
    %2186 = vmatpush1.xpose.msra.mxu0 0.0
    %2187 = vmatprep.subr.mxu0 0.0
    %2188 = vmatpush1.xpose.msra.mxu0 0.0
    %2189 = vmatprep.subr.mxu0 0.0
    %2190 = vmatpush1.xpose.msra.mxu0 0.0
    %2191 = vmatprep.subr.mxu0 0.0
    %2192 = vmatpush1.xpose.msra.mxu0 0.0
    %2193 = vmatprep.subr.mxu0 0.0
    %2194 = vmatpush1.xpose.msra.mxu0 0.0
    %2195 = vmatprep.subr.mxu0 0.0
    %2196 = vmatpush1.xpose.msra.mxu0 0.0
    %2197 = vmatprep.subr.mxu0 0.0
    %2198 = vmatpush1.xpose.msra.mxu0 0.0
    %2199 = vmatprep.subr.mxu0 0.0
    %2200 = vmatpush1.xpose.msra.mxu0 0.0
    %2201 = vmatprep.subr.mxu0 0.0
    %2202 = vmatpush1.xpose.msra.mxu0 0.0
    %2203 = vmatprep.subr.mxu0 0.0
    %2204 = vmatpush1.xpose.msra.mxu0 0.0
    %2205 = vmatprep.subr.mxu0 0.0
    %2206 = vmatpush1.xpose.msra.mxu0 0.0
    %2207 = vmatprep.subr.mxu0 0.0
    %2208 = vmatpush1.xpose.msra.mxu0 0.0
    %2209 = vmatprep.subr.mxu0 0.0
    %2210 = vmatpush1.xpose.msra.mxu0 0.0
    %2211 = vmatprep.subr.mxu0 0.0
    %2212 = vmatpush1.xpose.msra.mxu0 0.0
    %2213 = vmatprep.subr.mxu0 0.0
    %2214 = vmatpush1.xpose.msra.mxu0 0.0
    %2215 = vmatprep.subr.mxu0 0.0
    %2216 = vmatpush1.xpose.msra.mxu0 0.0
    %2217 = vmatprep.subr.mxu0 0.0
    %2218 = vmatpush1.xpose.msra.mxu0 0.0
    %2219 = vmatprep.subr.mxu0 0.0
    %2220 = vmatpush1.xpose.msra.mxu0 0.0
    %2221 = vmatprep.subr.mxu0 0.0
    %2222 = vmatpush1.xpose.msra.mxu0 0.0
    %2223 = vmatprep.subr.mxu0 0.0
    %2224 = vmatpush1.xpose.msra.mxu0 0.0
    %2225 = vmatprep.subr.mxu0 0.0
    %2226 = vmatpush1.xpose.msra.mxu0 0.0
    %2227 = vmatprep.subr.mxu0 0.0
    %2228 = vmatpush1.xpose.msra.mxu0 0.0
    %2229 = vmatprep.mubr.f32.mxu0 0.0
    %2230 = vmatmul.mubr.f32.gmra.mrb[0].mxu0 %v1865
    %v2231 = vpop.f32.mrb[0].mxu0
    %v2232 = vadd.f32 0.0, %v2231
    %v2233 = vpop.f32.mrb[0].mxu0
    %2234 = vmatprep.mubr.f32.mxu0 0.0
    %2235 = vmatmul.mubr.f32.gmra.mrb[0].mxu0 %v1868
    %v2236 = vpop.f32.mrb[0].mxu0
    %v2237 = vadd.f32 0.0, %v2236
    %v2238 = vpop.f32.mrb[0].mxu0
    %2239 = vmatprep.mubr.f32.mxu0 0.0
    %2240 = vmatmul.mubr.f32.gmra.mrb[0].mxu0 %v1873
    %v2241 = vpop.f32.mrb[0].mxu0
    %v2242 = vadd.f32 0.0, %v2241
    %v2243 = vpop.f32.mrb[0].mxu0
    %2244 = vdwg.mxu0
    %v2245 = vmul.f32 %v2232, 0.17677669
    %v2246 = vmul.f32 %v2237, 0.17677669
    %v2247 = vmul.f32 %v2242, 0.17677669
    %v2248 = vadd.f32 %v2245, %v416
    %v2249 = vadd.f32 %v2246, %v417
    %v2250 = vadd.f32 %v2247, %v418
    %v2251 = vsel %vm789, %v2248, -inf
    %2252 = vmax.xlane.f32.xlu0 %v2251
    %v2253 = vpop.xlane.xlu0 %2252
    %v2254 = vsel %vm789, %v2249, -inf
    %2255 = vmax.xlane.f32.xlu0 %v2254
    %v2256 = vpop.xlane.xlu0 %2255
    %v2257 = vsel %vm796, %v2250, -inf
    %2258 = vmax.xlane.f32.xlu0 %v2257
    %v2259 = vpop.xlane.xlu0 %2258
    %v2260 = vsub.f32 %v2248, %v2253
    %v2261 = vsub.f32 %v2249, %v2256
    %v2262 = vsub.f32 %v2250, %v2259
    %v2263 = vmul.f32 %v2260, 1.442695
    %v2264 = vpow.pop %v2263
    %v2265 = vmul.f32 %v2261, 1.442695
    %v2266 = vpow.pop %v2265
    %v2267 = vmul.f32 %v2262, 1.442695
    %v2268 = vpow.pop %v2267
    %v2269 = vsel %vm789, %v2264, 0.0
    %2270 = vadd.xlane.f32.xlu0 %v2269
    %v2271 = vpop.xlane.xlu0 %2270
    %v2272 = vsel %vm789, %v2266, 0.0
    %2273 = vadd.xlane.f32.xlu0 %v2272
    %v2274 = vpop.xlane.xlu0 %2273
    %v2275 = vsel %vm796, %v2268, 0.0
    %2276 = vadd.xlane.f32.xlu0 %v2275
    %v2277 = vpop.xlane.xlu0 %2276
    %v2278 = vrcp.pop %v2271
    %v2279 = vrcp.pop %v2274
    %v2280 = vrcp.pop %v2277
    %v2281 = vmul.f32 %v2264, %v2278
    %v2282 = vmul.f32 %v2266, %v2279
    %v2283 = vmul.f32 %v2268, %v2280
    %v2284 = vmul.f32 %v2023, %v343
    %v2285 = vmul.f32 %v2027, %v343
    %v2286 = vmul.f32 %v2033, %v343
    %v2288 = vsel %vm789, %v2281, 0
    %v2291 = vsel %vm789, %v2282, 0
    %v2294 = vsel %vm789, %v2283, 0
    %v2297 = vsel %vm961, %v2286, 0
    %2299 = vmatprep.subr.mxu0 0.0
    %2300 = vmatpush1.msra.mxu0 %v2284
    %2301 = vmatprep.subr.mxu0 0.0
    %2302 = vmatpush1.msra.mxu0 %v2285
    %2303 = vmatprep.subr.mxu0 0.0
    %2304 = vmatpush1.msra.mxu0 %v2297
    %2305 = vmatprep.subr.mxu0 0.0
    %2306 = vmatpush1.msra.mxu0 0.0
    %2307 = vmatprep.subr.mxu0 0.0
    %2308 = vmatpush1.msra.mxu0 0.0
    %2309 = vmatprep.subr.mxu0 0.0
    %2310 = vmatpush1.msra.mxu0 0.0
    %2311 = vmatprep.subr.mxu0 0.0
    %2312 = vmatpush1.msra.mxu0 0.0
    %2313 = vmatprep.subr.mxu0 0.0
    %2314 = vmatpush1.msra.mxu0 0.0
    %2315 = vmatprep.subr.mxu0 0.0
    %2316 = vmatpush1.msra.mxu0 0.0
    %2317 = vmatprep.subr.mxu0 0.0
    %2318 = vmatpush1.msra.mxu0 0.0
    %2319 = vmatprep.subr.mxu0 0.0
    %2320 = vmatpush1.msra.mxu0 0.0
    %2321 = vmatprep.subr.mxu0 0.0
    %2322 = vmatpush1.msra.mxu0 0.0
    %2323 = vmatprep.subr.mxu0 0.0
    %2324 = vmatpush1.msra.mxu0 0.0
    %2325 = vmatprep.subr.mxu0 0.0
    %2326 = vmatpush1.msra.mxu0 0.0
    %2327 = vmatprep.subr.mxu0 0.0
    %2328 = vmatpush1.msra.mxu0 0.0
    %2329 = vmatprep.subr.mxu0 0.0
    %2330 = vmatpush1.msra.mxu0 0.0
    %2331 = vmatprep.subr.mxu0 0.0
    %2332 = vmatpush1.msra.mxu0 0.0
    %2333 = vmatprep.subr.mxu0 0.0
    %2334 = vmatpush1.msra.mxu0 0.0
    %2335 = vmatprep.subr.mxu0 0.0
    %2336 = vmatpush1.msra.mxu0 0.0
    %2337 = vmatprep.subr.mxu0 0.0
    %2338 = vmatpush1.msra.mxu0 0.0
    %2339 = vmatprep.subr.mxu0 0.0
    %2340 = vmatpush1.msra.mxu0 0.0
    %2341 = vmatprep.subr.mxu0 0.0
    %2342 = vmatpush1.msra.mxu0 0.0
    %2343 = vmatprep.subr.mxu0 0.0
    %2344 = vmatpush1.msra.mxu0 0.0
    %2345 = vmatprep.subr.mxu0 0.0
    %2346 = vmatpush1.msra.mxu0 0.0
    %2347 = vmatprep.subr.mxu0 0.0
    %2348 = vmatpush1.msra.mxu0 0.0
    %2349 = vmatprep.subr.mxu0 0.0
    %2350 = vmatpush1.msra.mxu0 0.0
    %2351 = vmatprep.subr.mxu0 0.0
    %2352 = vmatpush1.msra.mxu0 0.0
    %2353 = vmatprep.subr.mxu0 0.0
    %2354 = vmatpush1.msra.mxu0 0.0
    %2355 = vmatprep.subr.mxu0 0.0
    %2356 = vmatpush1.msra.mxu0 0.0
    %2357 = vmatprep.subr.mxu0 0.0
    %2358 = vmatpush1.msra.mxu0 0.0
    %2359 = vmatprep.subr.mxu0 0.0
    %2360 = vmatpush1.msra.mxu0 0.0
    %2361 = vmatprep.subr.mxu0 0.0
    %2362 = vmatpush1.msra.mxu0 0.0
    %2363 = vmatprep.mubr.f32.mxu0 0.0
    %2364 = vmatmul.mubr.f32.gmra.mrb[0].mxu0 %v2288
    %v2365 = vpop.f32.mrb[0].mxu0
    %v2366 = vadd.f32 0.0, %v2365
    %v2367 = vpop.f32.mrb[0].mxu0
    %2368 = vmatprep.mubr.f32.mxu0 0.0
    %2369 = vmatmul.mubr.f32.gmra.mrb[0].mxu0 %v2291
    %v2370 = vpop.f32.mrb[0].mxu0
    %v2371 = vadd.f32 0.0, %v2370
    %v2372 = vpop.f32.mrb[0].mxu0
    %2373 = vmatprep.mubr.f32.mxu0 0.0
    %2374 = vmatmul.mubr.f32.gmra.mrb[0].mxu0 %v2294
    %v2375 = vpop.f32.mrb[0].mxu0
    %v2376 = vadd.f32 0.0, %v2375
    %v2377 = vpop.f32.mrb[0].mxu0
    %2378 = vdwg.mxu0
    %v2380 = vsel %vm789, %v2156, 0
    %v2383 = vsel %vm789, %v2157, 0
    %v2386 = vsel %vm789, %v2158, 0
    %v2389 = vsel %vm961, %v2161, 0
    %2391 = vmatprep.subr.mxu0 0.0
    %2392 = vmatpush1.msra.mxu0 %v2159
    %2393 = vmatprep.subr.mxu0 0.0
    %2394 = vmatpush1.msra.mxu0 %v2160
    %2395 = vmatprep.subr.mxu0 0.0
    %2396 = vmatpush1.msra.mxu0 %v2389
    %2397 = vmatprep.subr.mxu0 0.0
    %2398 = vmatpush1.msra.mxu0 0.0
    %2399 = vmatprep.subr.mxu0 0.0
    %2400 = vmatpush1.msra.mxu0 0.0
    %2401 = vmatprep.subr.mxu0 0.0
    %2402 = vmatpush1.msra.mxu0 0.0
    %2403 = vmatprep.subr.mxu0 0.0
    %2404 = vmatpush1.msra.mxu0 0.0
    %2405 = vmatprep.subr.mxu0 0.0
    %2406 = vmatpush1.msra.mxu0 0.0
    %2407 = vmatprep.subr.mxu0 0.0
    %2408 = vmatpush1.msra.mxu0 0.0
    %2409 = vmatprep.subr.mxu0 0.0
    %2410 = vmatpush1.msra.mxu0 0.0
    %2411 = vmatprep.subr.mxu0 0.0
    %2412 = vmatpush1.msra.mxu0 0.0
    %2413 = vmatprep.subr.mxu0 0.0
    %2414 = vmatpush1.msra.mxu0 0.0
    %2415 = vmatprep.subr.mxu0 0.0
    %2416 = vmatpush1.msra.mxu0 0.0
    %2417 = vmatprep.subr.mxu0 0.0
    %2418 = vmatpush1.msra.mxu0 0.0
    %2419 = vmatprep.subr.mxu0 0.0
    %2420 = vmatpush1.msra.mxu0 0.0
    %2421 = vmatprep.subr.mxu0 0.0
    %2422 = vmatpush1.msra.mxu0 0.0
    %2423 = vmatprep.subr.mxu0 0.0
    %2424 = vmatpush1.msra.mxu0 0.0
    %2425 = vmatprep.subr.mxu0 0.0
    %2426 = vmatpush1.msra.mxu0 0.0
    %2427 = vmatprep.subr.mxu0 0.0
    %2428 = vmatpush1.msra.mxu0 0.0
    %2429 = vmatprep.subr.mxu0 0.0
    %2430 = vmatpush1.msra.mxu0 0.0
    %2431 = vmatprep.subr.mxu0 0.0
    %2432 = vmatpush1.msra.mxu0 0.0
    %2433 = vmatprep.subr.mxu0 0.0
    %2434 = vmatpush1.msra.mxu0 0.0
    %2435 = vmatprep.subr.mxu0 0.0
    %2436 = vmatpush1.msra.mxu0 0.0
    %2437 = vmatprep.subr.mxu0 0.0
    %2438 = vmatpush1.msra.mxu0 0.0
    %2439 = vmatprep.subr.mxu0 0.0
    %2440 = vmatpush1.msra.mxu0 0.0
    %2441 = vmatprep.subr.mxu0 0.0
    %2442 = vmatpush1.msra.mxu0 0.0
    %2443 = vmatprep.subr.mxu0 0.0
    %2444 = vmatpush1.msra.mxu0 0.0
    %2445 = vmatprep.subr.mxu0 0.0
    %2446 = vmatpush1.msra.mxu0 0.0
    %2447 = vmatprep.subr.mxu0 0.0
    %2448 = vmatpush1.msra.mxu0 0.0
    %2449 = vmatprep.subr.mxu0 0.0
    %2450 = vmatpush1.msra.mxu0 0.0
    %2451 = vmatprep.subr.mxu0 0.0
    %2452 = vmatpush1.msra.mxu0 0.0
    %2453 = vmatprep.subr.mxu0 0.0
    %2454 = vmatpush1.msra.mxu0 0.0
    %2455 = vmatprep.mubr.f32.mxu0 0.0
    %2456 = vmatmul.mubr.f32.gmra.mrb[0].mxu0 %v2380
    %v2457 = vpop.f32.mrb[0].mxu0
    %v2458 = vadd.f32 %v2366, %v2457
    %v2459 = vpop.f32.mrb[0].mxu0
    %2460 = vmatprep.mubr.f32.mxu0 0.0
    %2461 = vmatmul.mubr.f32.gmra.mrb[0].mxu0 %v2383
    %v2462 = vpop.f32.mrb[0].mxu0
    %v2463 = vadd.f32 %v2371, %v2462
    %v2464 = vpop.f32.mrb[0].mxu0
    %2465 = vmatprep.mubr.f32.mxu0 0.0
    %2466 = vmatmul.mubr.f32.gmra.mrb[0].mxu0 %v2386
    %v2467 = vpop.f32.mrb[0].mxu0
    %v2468 = vadd.f32 %v2376, %v2467
    %v2469 = vpop.f32.mrb[0].mxu0
    %2470 = vdwg.mxu0
    %v2471 = vmul.f32 %v2021, %v347
    %v2472 = vmul.f32 %v2025, %v347
    %v2473 = vmul.f32 %v2031, %v347
    %2474 = vmatprep.subr.mxu0 0.0
    %2475 = vmatpush1.xpose.msra.mxu0 %v2471
    %2476 = vmatprep.subr.mxu0 0.0
    %2477 = vmatpush1.xpose.msra.mxu0 %v2472
    %2478 = vmatprep.subr.mxu0 0.0
    %2479 = vmatpush1.xpose.msra.mxu0 %v2473
    %2480 = vmatprep.subr.mxu0 0.0
    %2481 = vmatpush1.xpose.msra.mxu0 0.0
    %2482 = vmatprep.subr.mxu0 0.0
    %2483 = vmatpush1.xpose.msra.mxu0 0.0
    %2484 = vmatprep.subr.mxu0 0.0
    %2485 = vmatpush1.xpose.msra.mxu0 0.0
    %2486 = vmatprep.subr.mxu0 0.0
    %2487 = vmatpush1.xpose.msra.mxu0 0.0
    %2488 = vmatprep.subr.mxu0 0.0
    %2489 = vmatpush1.xpose.msra.mxu0 0.0
    %2490 = vmatprep.subr.mxu0 0.0
    %2491 = vmatpush1.xpose.msra.mxu0 0.0
    %2492 = vmatprep.subr.mxu0 0.0
    %2493 = vmatpush1.xpose.msra.mxu0 0.0
    %2494 = vmatprep.subr.mxu0 0.0
    %2495 = vmatpush1.xpose.msra.mxu0 0.0
    %2496 = vmatprep.subr.mxu0 0.0
    %2497 = vmatpush1.xpose.msra.mxu0 0.0
    %2498 = vmatprep.subr.mxu0 0.0
    %2499 = vmatpush1.xpose.msra.mxu0 0.0
    %2500 = vmatprep.subr.mxu0 0.0
    %2501 = vmatpush1.xpose.msra.mxu0 0.0
    %2502 = vmatprep.subr.mxu0 0.0
    %2503 = vmatpush1.xpose.msra.mxu0 0.0
    %2504 = vmatprep.subr.mxu0 0.0
    %2505 = vmatpush1.xpose.msra.mxu0 0.0
    %2506 = vmatprep.subr.mxu0 0.0
    %2507 = vmatpush1.xpose.msra.mxu0 0.0
    %2508 = vmatprep.subr.mxu0 0.0
    %2509 = vmatpush1.xpose.msra.mxu0 0.0
    %2510 = vmatprep.subr.mxu0 0.0
    %2511 = vmatpush1.xpose.msra.mxu0 0.0
    %2512 = vmatprep.subr.mxu0 0.0
    %2513 = vmatpush1.xpose.msra.mxu0 0.0
    %2514 = vmatprep.subr.mxu0 0.0
    %2515 = vmatpush1.xpose.msra.mxu0 0.0
    %2516 = vmatprep.subr.mxu0 0.0
    %2517 = vmatpush1.xpose.msra.mxu0 0.0
    %2518 = vmatprep.subr.mxu0 0.0
    %2519 = vmatpush1.xpose.msra.mxu0 0.0
    %2520 = vmatprep.subr.mxu0 0.0
    %2521 = vmatpush1.xpose.msra.mxu0 0.0
    %2522 = vmatprep.subr.mxu0 0.0
    %2523 = vmatpush1.xpose.msra.mxu0 0.0
    %2524 = vmatprep.subr.mxu0 0.0
    %2525 = vmatpush1.xpose.msra.mxu0 0.0
    %2526 = vmatprep.subr.mxu0 0.0
    %2527 = vmatpush1.xpose.msra.mxu0 0.0
    %2528 = vmatprep.subr.mxu0 0.0
    %2529 = vmatpush1.xpose.msra.mxu0 0.0
    %2530 = vmatprep.subr.mxu0 0.0
    %2531 = vmatpush1.xpose.msra.mxu0 0.0
    %2532 = vmatprep.subr.mxu0 0.0
    %2533 = vmatpush1.xpose.msra.mxu0 0.0
    %2534 = vmatprep.subr.mxu0 0.0
    %2535 = vmatpush1.xpose.msra.mxu0 0.0
    %2536 = vmatprep.subr.mxu0 0.0
    %2537 = vmatpush1.xpose.msra.mxu0 0.0
    %2538 = vmatprep.mubr.f32.mxu0 0.0
    %2539 = vmatmul.mubr.f32.gmra.mrb[0].mxu0 %v1865
    %v2540 = vpop.f32.mrb[0].mxu0
    %v2541 = vadd.f32 0.0, %v2540
    %v2542 = vpop.f32.mrb[0].mxu0
    %2543 = vmatprep.mubr.f32.mxu0 0.0
    %2544 = vmatmul.mubr.f32.gmra.mrb[0].mxu0 %v1868
    %v2545 = vpop.f32.mrb[0].mxu0
    %v2546 = vadd.f32 0.0, %v2545
    %v2547 = vpop.f32.mrb[0].mxu0
    %2548 = vmatprep.mubr.f32.mxu0 0.0
    %2549 = vmatmul.mubr.f32.gmra.mrb[0].mxu0 %v1873
    %v2550 = vpop.f32.mrb[0].mxu0
    %v2551 = vadd.f32 0.0, %v2550
    %v2552 = vpop.f32.mrb[0].mxu0
    %2553 = vdwg.mxu0
    %v2554 = vmul.f32 %v2541, 0.17677669
    %v2555 = vmul.f32 %v2546, 0.17677669
    %v2556 = vmul.f32 %v2551, 0.17677669
    %v2557 = vadd.f32 %v2554, %v416
    %v2558 = vadd.f32 %v2555, %v417
    %v2559 = vadd.f32 %v2556, %v418
    %v2560 = vsel %vm789, %v2557, -inf
    %2561 = vmax.xlane.f32.xlu0 %v2560
    %v2562 = vpop.xlane.xlu0 %2561
    %v2563 = vsel %vm789, %v2558, -inf
    %2564 = vmax.xlane.f32.xlu0 %v2563
    %v2565 = vpop.xlane.xlu0 %2564
    %v2566 = vsel %vm796, %v2559, -inf
    %2567 = vmax.xlane.f32.xlu0 %v2566
    %v2568 = vpop.xlane.xlu0 %2567
    %v2569 = vsub.f32 %v2557, %v2562
    %v2570 = vsub.f32 %v2558, %v2565
    %v2571 = vsub.f32 %v2559, %v2568
    %v2572 = vmul.f32 %v2569, 1.442695
    %v2573 = vpow.pop %v2572
    %v2574 = vmul.f32 %v2570, 1.442695
    %v2575 = vpow.pop %v2574
    %v2576 = vmul.f32 %v2571, 1.442695
    %v2577 = vpow.pop %v2576
    %v2578 = vsel %vm789, %v2573, 0.0
    %2579 = vadd.xlane.f32.xlu0 %v2578
    %v2580 = vpop.xlane.xlu0 %2579
    %v2581 = vsel %vm789, %v2575, 0.0
    %2582 = vadd.xlane.f32.xlu0 %v2581
    %v2583 = vpop.xlane.xlu0 %2582
    %v2584 = vsel %vm796, %v2577, 0.0
    %2585 = vadd.xlane.f32.xlu0 %v2584
    %v2586 = vpop.xlane.xlu0 %2585
    %v2587 = vrcp.pop %v2580
    %v2588 = vrcp.pop %v2583
    %v2589 = vrcp.pop %v2586
    %v2590 = vmul.f32 %v2573, %v2587
    %v2591 = vmul.f32 %v2575, %v2588
    %v2592 = vmul.f32 %v2577, %v2589
    %v2593 = vmul.f32 %v2023, %v347
    %v2594 = vmul.f32 %v2027, %v347
    %v2595 = vmul.f32 %v2033, %v347
    %v2597 = vsel %vm789, %v2590, 0
    %v2600 = vsel %vm789, %v2591, 0
    %v2603 = vsel %vm789, %v2592, 0
    %v2606 = vsel %vm961, %v2595, 0
    %2608 = vmatprep.subr.mxu0 0.0
    %2609 = vmatpush1.msra.mxu0 %v2593
    %2610 = vmatprep.subr.mxu0 0.0
    %2611 = vmatpush1.msra.mxu0 %v2594
    %2612 = vmatprep.subr.mxu0 0.0
    %2613 = vmatpush1.msra.mxu0 %v2606
    %2614 = vmatprep.subr.mxu0 0.0
    %2615 = vmatpush1.msra.mxu0 0.0
    %2616 = vmatprep.subr.mxu0 0.0
    %2617 = vmatpush1.msra.mxu0 0.0
    %2618 = vmatprep.subr.mxu0 0.0
    %2619 = vmatpush1.msra.mxu0 0.0
    %2620 = vmatprep.subr.mxu0 0.0
    %2621 = vmatpush1.msra.mxu0 0.0
    %2622 = vmatprep.subr.mxu0 0.0
    %2623 = vmatpush1.msra.mxu0 0.0
    %2624 = vmatprep.subr.mxu0 0.0
    %2625 = vmatpush1.msra.mxu0 0.0
    %2626 = vmatprep.subr.mxu0 0.0
    %2627 = vmatpush1.msra.mxu0 0.0
    %2628 = vmatprep.subr.mxu0 0.0
    %2629 = vmatpush1.msra.mxu0 0.0
    %2630 = vmatprep.subr.mxu0 0.0
    %2631 = vmatpush1.msra.mxu0 0.0
    %2632 = vmatprep.subr.mxu0 0.0
    %2633 = vmatpush1.msra.mxu0 0.0
    %2634 = vmatprep.subr.mxu0 0.0
    %2635 = vmatpush1.msra.mxu0 0.0
    %2636 = vmatprep.subr.mxu0 0.0
    %2637 = vmatpush1.msra.mxu0 0.0
    %2638 = vmatprep.subr.mxu0 0.0
    %2639 = vmatpush1.msra.mxu0 0.0
    %2640 = vmatprep.subr.mxu0 0.0
    %2641 = vmatpush1.msra.mxu0 0.0
    %2642 = vmatprep.subr.mxu0 0.0
    %2643 = vmatpush1.msra.mxu0 0.0
    %2644 = vmatprep.subr.mxu0 0.0
    %2645 = vmatpush1.msra.mxu0 0.0
    %2646 = vmatprep.subr.mxu0 0.0
    %2647 = vmatpush1.msra.mxu0 0.0
    %2648 = vmatprep.subr.mxu0 0.0
    %2649 = vmatpush1.msra.mxu0 0.0
    %2650 = vmatprep.subr.mxu0 0.0
    %2651 = vmatpush1.msra.mxu0 0.0
    %2652 = vmatprep.subr.mxu0 0.0
    %2653 = vmatpush1.msra.mxu0 0.0
    %2654 = vmatprep.subr.mxu0 0.0
    %2655 = vmatpush1.msra.mxu0 0.0
    %2656 = vmatprep.subr.mxu0 0.0
    %2657 = vmatpush1.msra.mxu0 0.0
    %2658 = vmatprep.subr.mxu0 0.0
    %2659 = vmatpush1.msra.mxu0 0.0
    %2660 = vmatprep.subr.mxu0 0.0
    %2661 = vmatpush1.msra.mxu0 0.0
    %2662 = vmatprep.subr.mxu0 0.0
    %2663 = vmatpush1.msra.mxu0 0.0
    %2664 = vmatprep.subr.mxu0 0.0
    %2665 = vmatpush1.msra.mxu0 0.0
    %2666 = vmatprep.subr.mxu0 0.0
    %2667 = vmatpush1.msra.mxu0 0.0
    %2668 = vmatprep.subr.mxu0 0.0
    %2669 = vmatpush1.msra.mxu0 0.0
    %2670 = vmatprep.subr.mxu0 0.0
    %2671 = vmatpush1.msra.mxu0 0.0
    %2672 = vmatprep.mubr.f32.mxu0 0.0
    %2673 = vmatmul.mubr.f32.gmra.mrb[0].mxu0 %v2597
    %v2674 = vpop.f32.mrb[0].mxu0
    %v2675 = vadd.f32 0.0, %v2674
    %v2676 = vpop.f32.mrb[0].mxu0
    %2677 = vmatprep.mubr.f32.mxu0 0.0
    %2678 = vmatmul.mubr.f32.gmra.mrb[0].mxu0 %v2600
    %v2679 = vpop.f32.mrb[0].mxu0
    %v2680 = vadd.f32 0.0, %v2679
    %v2681 = vpop.f32.mrb[0].mxu0
    %2682 = vmatprep.mubr.f32.mxu0 0.0
    %2683 = vmatmul.mubr.f32.gmra.mrb[0].mxu0 %v2603
    %v2684 = vpop.f32.mrb[0].mxu0
    %v2685 = vadd.f32 0.0, %v2684
    %v2686 = vpop.f32.mrb[0].mxu0
    %2687 = vdwg.mxu0
    %v2688 = vadd.f32 %v2458, %v2675
    %v2689 = vadd.f32 %v2463, %v2680
    %v2690 = vadd.f32 %v2468, %v2685
    %v2691 = vmul.f32 %v2021, %v351
    %v2692 = vmul.f32 %v2025, %v351
    %v2693 = vmul.f32 %v2031, %v351
    %2694 = vmatprep.subr.mxu0 0.0
    %2695 = vmatpush1.xpose.msra.mxu0 %v2691
    %2696 = vmatprep.subr.mxu0 0.0
    %2697 = vmatpush1.xpose.msra.mxu0 %v2692
    %2698 = vmatprep.subr.mxu0 0.0
    %2699 = vmatpush1.xpose.msra.mxu0 %v2693
    %2700 = vmatprep.subr.mxu0 0.0
    %2701 = vmatpush1.xpose.msra.mxu0 0.0
    %2702 = vmatprep.subr.mxu0 0.0
    %2703 = vmatpush1.xpose.msra.mxu0 0.0
    %2704 = vmatprep.subr.mxu0 0.0
    %2705 = vmatpush1.xpose.msra.mxu0 0.0
    %2706 = vmatprep.subr.mxu0 0.0
    %2707 = vmatpush1.xpose.msra.mxu0 0.0
    %2708 = vmatprep.subr.mxu0 0.0
    %2709 = vmatpush1.xpose.msra.mxu0 0.0
    %2710 = vmatprep.subr.mxu0 0.0
    %2711 = vmatpush1.xpose.msra.mxu0 0.0
    %2712 = vmatprep.subr.mxu0 0.0
    %2713 = vmatpush1.xpose.msra.mxu0 0.0
    %2714 = vmatprep.subr.mxu0 0.0
    %2715 = vmatpush1.xpose.msra.mxu0 0.0
    %2716 = vmatprep.subr.mxu0 0.0
    %2717 = vmatpush1.xpose.msra.mxu0 0.0
    %2718 = vmatprep.subr.mxu0 0.0
    %2719 = vmatpush1.xpose.msra.mxu0 0.0
    %2720 = vmatprep.subr.mxu0 0.0
    %2721 = vmatpush1.xpose.msra.mxu0 0.0
    %2722 = vmatprep.subr.mxu0 0.0
    %2723 = vmatpush1.xpose.msra.mxu0 0.0
    %2724 = vmatprep.subr.mxu0 0.0
    %2725 = vmatpush1.xpose.msra.mxu0 0.0
    %2726 = vmatprep.subr.mxu0 0.0
    %2727 = vmatpush1.xpose.msra.mxu0 0.0
    %2728 = vmatprep.subr.mxu0 0.0
    %2729 = vmatpush1.xpose.msra.mxu0 0.0
    %2730 = vmatprep.subr.mxu0 0.0
    %2731 = vmatpush1.xpose.msra.mxu0 0.0
    %2732 = vmatprep.subr.mxu0 0.0
    %2733 = vmatpush1.xpose.msra.mxu0 0.0
    %2734 = vmatprep.subr.mxu0 0.0
    %2735 = vmatpush1.xpose.msra.mxu0 0.0
    %2736 = vmatprep.subr.mxu0 0.0
    %2737 = vmatpush1.xpose.msra.mxu0 0.0
    %2738 = vmatprep.subr.mxu0 0.0
    %2739 = vmatpush1.xpose.msra.mxu0 0.0
    %2740 = vmatprep.subr.mxu0 0.0
    %2741 = vmatpush1.xpose.msra.mxu0 0.0
    %2742 = vmatprep.subr.mxu0 0.0
    %2743 = vmatpush1.xpose.msra.mxu0 0.0
    %2744 = vmatprep.subr.mxu0 0.0
    %2745 = vmatpush1.xpose.msra.mxu0 0.0
    %2746 = vmatprep.subr.mxu0 0.0
    %2747 = vmatpush1.xpose.msra.mxu0 0.0
    %2748 = vmatprep.subr.mxu0 0.0
    %2749 = vmatpush1.xpose.msra.mxu0 0.0
    %2750 = vmatprep.subr.mxu0 0.0
    %2751 = vmatpush1.xpose.msra.mxu0 0.0
    %2752 = vmatprep.subr.mxu0 0.0
    %2753 = vmatpush1.xpose.msra.mxu0 0.0
    %2754 = vmatprep.subr.mxu0 0.0
    %2755 = vmatpush1.xpose.msra.mxu0 0.0
    %2756 = vmatprep.subr.mxu0 0.0
    %2757 = vmatpush1.xpose.msra.mxu0 0.0
    %2758 = vmatprep.mubr.f32.mxu0 0.0
    %2759 = vmatmul.mubr.f32.gmra.mrb[0].mxu0 %v1865
    %v2760 = vpop.f32.mrb[0].mxu0
    %v2761 = vadd.f32 0.0, %v2760
    %v2762 = vpop.f32.mrb[0].mxu0
    %2763 = vmatprep.mubr.f32.mxu0 0.0
    %2764 = vmatmul.mubr.f32.gmra.mrb[0].mxu0 %v1868
    %v2765 = vpop.f32.mrb[0].mxu0
    %v2766 = vadd.f32 0.0, %v2765
    %v2767 = vpop.f32.mrb[0].mxu0
    %2768 = vmatprep.mubr.f32.mxu0 0.0
    %2769 = vmatmul.mubr.f32.gmra.mrb[0].mxu0 %v1873
    %v2770 = vpop.f32.mrb[0].mxu0
    %v2771 = vadd.f32 0.0, %v2770
    %v2772 = vpop.f32.mrb[0].mxu0
    %2773 = vdwg.mxu0
    %v2774 = vmul.f32 %v2761, 0.17677669
    %v2775 = vmul.f32 %v2766, 0.17677669
    %v2776 = vmul.f32 %v2771, 0.17677669
    %v2777 = vadd.f32 %v2774, %v416
    %v2778 = vadd.f32 %v2775, %v417
    %v2779 = vadd.f32 %v2776, %v418
    %v2780 = vsel %vm789, %v2777, -inf
    %2781 = vmax.xlane.f32.xlu0 %v2780
    %v2782 = vpop.xlane.xlu0 %2781
    %v2783 = vsel %vm789, %v2778, -inf
    %2784 = vmax.xlane.f32.xlu0 %v2783
    %v2785 = vpop.xlane.xlu0 %2784
    %v2786 = vsel %vm796, %v2779, -inf
    %2787 = vmax.xlane.f32.xlu0 %v2786
    %v2788 = vpop.xlane.xlu0 %2787
    %v2789 = vsub.f32 %v2777, %v2782
    %v2790 = vsub.f32 %v2778, %v2785
    %v2791 = vsub.f32 %v2779, %v2788
    %v2792 = vmul.f32 %v2789, 1.442695
    %v2793 = vpow.pop %v2792
    %v2794 = vmul.f32 %v2790, 1.442695
    %v2795 = vpow.pop %v2794
    %v2796 = vmul.f32 %v2791, 1.442695
    %v2797 = vpow.pop %v2796
    %v2798 = vsel %vm789, %v2793, 0.0
    %2799 = vadd.xlane.f32.xlu0 %v2798
    %v2800 = vpop.xlane.xlu0 %2799
    %v2801 = vsel %vm789, %v2795, 0.0
    %2802 = vadd.xlane.f32.xlu0 %v2801
    %v2803 = vpop.xlane.xlu0 %2802
    %v2804 = vsel %vm796, %v2797, 0.0
    %2805 = vadd.xlane.f32.xlu0 %v2804
    %v2806 = vpop.xlane.xlu0 %2805
    %v2807 = vrcp.pop %v2800
    %v2808 = vrcp.pop %v2803
    %v2809 = vrcp.pop %v2806
    %v2810 = vmul.f32 %v2793, %v2807
    %v2811 = vmul.f32 %v2795, %v2808
    %v2812 = vmul.f32 %v2797, %v2809
    %v2813 = vmul.f32 %v2023, %v351
    %v2814 = vmul.f32 %v2027, %v351
    %v2815 = vmul.f32 %v2033, %v351
    %v2817 = vsel %vm789, %v2810, 0
    %v2820 = vsel %vm789, %v2811, 0
    %v2823 = vsel %vm789, %v2812, 0
    %v2826 = vsel %vm961, %v2815, 0
    %2828 = vmatprep.subr.mxu0 0.0
    %2829 = vmatpush1.msra.mxu0 %v2813
    %2830 = vmatprep.subr.mxu0 0.0
    %2831 = vmatpush1.msra.mxu0 %v2814
    %2832 = vmatprep.subr.mxu0 0.0
    %2833 = vmatpush1.msra.mxu0 %v2826
    %2834 = vmatprep.subr.mxu0 0.0
    %2835 = vmatpush1.msra.mxu0 0.0
    %2836 = vmatprep.subr.mxu0 0.0
    %2837 = vmatpush1.msra.mxu0 0.0
    %2838 = vmatprep.subr.mxu0 0.0
    %2839 = vmatpush1.msra.mxu0 0.0
    %2840 = vmatprep.subr.mxu0 0.0
    %2841 = vmatpush1.msra.mxu0 0.0
    %2842 = vmatprep.subr.mxu0 0.0
    %2843 = vmatpush1.msra.mxu0 0.0
    %2844 = vmatprep.subr.mxu0 0.0
    %2845 = vmatpush1.msra.mxu0 0.0
    %2846 = vmatprep.subr.mxu0 0.0
    %2847 = vmatpush1.msra.mxu0 0.0
    %2848 = vmatprep.subr.mxu0 0.0
    %2849 = vmatpush1.msra.mxu0 0.0
    %2850 = vmatprep.subr.mxu0 0.0
    %2851 = vmatpush1.msra.mxu0 0.0
    %2852 = vmatprep.subr.mxu0 0.0
    %2853 = vmatpush1.msra.mxu0 0.0
    %2854 = vmatprep.subr.mxu0 0.0
    %2855 = vmatpush1.msra.mxu0 0.0
    %2856 = vmatprep.subr.mxu0 0.0
    %2857 = vmatpush1.msra.mxu0 0.0
    %2858 = vmatprep.subr.mxu0 0.0
    %2859 = vmatpush1.msra.mxu0 0.0
    %2860 = vmatprep.subr.mxu0 0.0
    %2861 = vmatpush1.msra.mxu0 0.0
    %2862 = vmatprep.subr.mxu0 0.0
    %2863 = vmatpush1.msra.mxu0 0.0
    %2864 = vmatprep.subr.mxu0 0.0
    %2865 = vmatpush1.msra.mxu0 0.0
    %2866 = vmatprep.subr.mxu0 0.0
    %2867 = vmatpush1.msra.mxu0 0.0
    %2868 = vmatprep.subr.mxu0 0.0
    %2869 = vmatpush1.msra.mxu0 0.0
    %2870 = vmatprep.subr.mxu0 0.0
    %2871 = vmatpush1.msra.mxu0 0.0
    %2872 = vmatprep.subr.mxu0 0.0
    %2873 = vmatpush1.msra.mxu0 0.0
    %2874 = vmatprep.subr.mxu0 0.0
    %2875 = vmatpush1.msra.mxu0 0.0
    %2876 = vmatprep.subr.mxu0 0.0
    %2877 = vmatpush1.msra.mxu0 0.0
    %2878 = vmatprep.subr.mxu0 0.0
    %2879 = vmatpush1.msra.mxu0 0.0
    %2880 = vmatprep.subr.mxu0 0.0
    %2881 = vmatpush1.msra.mxu0 0.0
    %2882 = vmatprep.subr.mxu0 0.0
    %2883 = vmatpush1.msra.mxu0 0.0
    %2884 = vmatprep.subr.mxu0 0.0
    %2885 = vmatpush1.msra.mxu0 0.0
    %2886 = vmatprep.subr.mxu0 0.0
    %2887 = vmatpush1.msra.mxu0 0.0
    %2888 = vmatprep.subr.mxu0 0.0
    %2889 = vmatpush1.msra.mxu0 0.0
    %2890 = vmatprep.subr.mxu0 0.0
    %2891 = vmatpush1.msra.mxu0 0.0
    %2892 = vmatprep.mubr.f32.mxu0 0.0
    %2893 = vmatmul.mubr.f32.gmra.mrb[0].mxu0 %v2817
    %v2894 = vpop.f32.mrb[0].mxu0
    %v2895 = vadd.f32 0.0, %v2894
    %v2896 = vpop.f32.mrb[0].mxu0
    %2897 = vmatprep.mubr.f32.mxu0 0.0
    %2898 = vmatmul.mubr.f32.gmra.mrb[0].mxu0 %v2820
    %v2899 = vpop.f32.mrb[0].mxu0
    %v2900 = vadd.f32 0.0, %v2899
    %v2901 = vpop.f32.mrb[0].mxu0
    %2902 = vmatprep.mubr.f32.mxu0 0.0
    %2903 = vmatmul.mubr.f32.gmra.mrb[0].mxu0 %v2823
    %v2904 = vpop.f32.mrb[0].mxu0
    %v2905 = vadd.f32 0.0, %v2904
    %v2906 = vpop.f32.mrb[0].mxu0
    %2907 = vdwg.mxu0
    %v2908 = vadd.f32 %v2688, %v2895
    %v2909 = vadd.f32 %v2689, %v2900
    %v2910 = vadd.f32 %v2690, %v2905
    %v2911 = vld [vmem:[#allocation12] sm:$0xf]
    %v2912 = vld [vmem:[#allocation12 + $0x4] sm:$0xf]
    %v2913 = vld [vmem:[#allocation12 + $0x8] sm:$0xf]
    %v2914 = vld [vmem:[#allocation12 + $0xc] sm:$0xf]
    %v2915 = vld [vmem:[#allocation12 + $0x10] sm:$0xf]
    %v2916 = vld [vmem:[#allocation12 + $0x14] sm:$0xf]
    %v2917 = vld [vmem:[#allocation12 + $0x18] sm:$0xf]
    %v2918 = vld [vmem:[#allocation12 + $0x1c] sm:$0xf]
    %v2919 = vld [vmem:[#allocation12 + $0x20] sm:$0xf]
    %v2920 = vld [vmem:[#allocation12 + $0x24] sm:$0xf]
    %v2921 = vld [vmem:[#allocation12 + $0x28] sm:$0xf]
    %v2922 = vld [vmem:[#allocation12 + $0x2c] sm:$0xf]
    %v2923 = vld [vmem:[#allocation12 + $0x30] sm:$0xf]
    %v2924 = vld [vmem:[#allocation12 + $0x34] sm:$0xf]
    %v2925 = vld [vmem:[#allocation12 + $0x38] sm:$0xf]
    %v2926 = vld [vmem:[#allocation12 + $0x3c] sm:$0xf]
    %v2927 = vld [vmem:[#allocation14] sm:$0x1]
    %v2928 = vpack.c.bf16 %v2909, %v2908
    %v2929 = vpack.c.bf16 %v2910, %v2910
    %v2931 = vlaneseq
    %v2932 = vshrl.u32 %v2931, 7
    %v2933 = vsub.s32 0, %v2932
    %v2934 = vrot.slane %v2927, %v2933
    %v2952 = vunpack.c.l.b16 %v2911
    %v2953 = vunpack.c.l.b16 %v2912
    %v2954 = vunpack.c.l.b16 %v2913
    %v2955 = vunpack.c.l.b16 %v2914
    %v2956 = vunpack.c.l.b16 %v2915
    %v2957 = vunpack.c.l.b16 %v2916
    %v2958 = vunpack.c.l.b16 %v2917
    %v2959 = vunpack.c.l.b16 %v2918
    %v2960 = vunpack.c.l.b16 %v2919
    %v2961 = vunpack.c.l.b16 %v2920
    %v2962 = vunpack.c.l.b16 %v2921
    %v2963 = vunpack.c.l.b16 %v2922
    %v2964 = vunpack.c.l.b16 %v2923
    %v2965 = vunpack.c.l.b16 %v2924
    %v2966 = vunpack.c.l.b16 %v2925
    %v2967 = vunpack.c.l.b16 %v2926
    %v2968 = vpack.c.b16 %v2953, %v2952
    %v2969 = vpack.c.b16 %v2955, %v2954
    %v2970 = vpack.c.b16 %v2957, %v2956
    %v2971 = vpack.c.b16 %v2959, %v2958
    %v2972 = vpack.c.b16 %v2961, %v2960
    %v2973 = vpack.c.b16 %v2963, %v2962
    %v2974 = vpack.c.b16 %v2965, %v2964
    %v2975 = vpack.c.b16 %v2967, %v2966
    %2984 = vmatprep.subr.bf16.mxu0 0
    %2985 = vmatpush1.bf16.msra.mxu0 %v2968
    %2986 = vmatprep.subr.bf16.mxu0 0
    %2987 = vmatpush1.bf16.msra.mxu0 %v2969
    %2988 = vmatprep.subr.bf16.mxu0 0
    %2989 = vmatpush1.bf16.msra.mxu0 %v2970
    %2990 = vmatprep.subr.bf16.mxu0 0
    %2991 = vmatpush1.bf16.msra.mxu0 %v2971
    %2992 = vmatprep.subr.bf16.mxu0 0
    %2993 = vmatpush1.bf16.msra.mxu0 %v2972
    %2994 = vmatprep.subr.bf16.mxu0 0
    %2995 = vmatpush1.bf16.msra.mxu0 %v2973
    %2996 = vmatprep.subr.bf16.mxu0 0
    %2997 = vmatpush1.bf16.msra.mxu0 %v2974
    %2998 = vmatprep.subr.bf16.mxu0 0
    %2999 = vmatpush1.bf16.msra.mxu0 %v2975
    %3000 = vmatprep.subr.bf16.mxu0 0
    %3001 = vmatpush1.bf16.msra.mxu0 0
    %3002 = vmatprep.subr.bf16.mxu0 0
    %3003 = vmatpush1.bf16.msra.mxu0 0
    %3004 = vmatprep.subr.bf16.mxu0 0
    %3005 = vmatpush1.bf16.msra.mxu0 0
    %3006 = vmatprep.subr.bf16.mxu0 0
    %3007 = vmatpush1.bf16.msra.mxu0 0
    %3008 = vmatprep.subr.bf16.mxu0 0
    %3009 = vmatpush1.bf16.msra.mxu0 0
    %3010 = vmatprep.subr.bf16.mxu0 0
    %3011 = vmatpush1.bf16.msra.mxu0 0
    %3012 = vmatprep.subr.bf16.mxu0 0
    %3013 = vmatpush1.bf16.msra.mxu0 0
    %3014 = vmatprep.subr.bf16.mxu0 0
    %3015 = vmatpush1.bf16.msra.mxu0 0
    %3016 = vmatprep.mubr.bf16.mxu0 0
    %3017 = vmatmul.mubr.bf16.gmra.mrb[0].mxu0 %v2928
    %v3018 = vpop.f32.mrb[0].mxu0
    %v3019 = vadd.f32 %v2934, %v3018
    %v3020 = vpop.f32.mrb[0].mxu0
    %v3021 = vpop.f32.mrb[0].mxu0
    %v3022 = vadd.f32 %v2934, %v3021
    %v3023 = vpop.f32.mrb[0].mxu0
    %3024 = vmatprep.mubr.bf16.mxu0 0
    %3025 = vmatmul.mubr.bf16.gmra.mrb[0].mxu0 %v2929
    %v3026 = vpop.f32.mrb[0].mxu0
    %v3027 = vadd.f32 %v2934, %v3026
    %v3028 = vpop.f32.mrb[0].mxu0
    %v3029 = vpop.f32.mrb[0].mxu0
    %v3030 = vpop.f32.mrb[0].mxu0
    %3031 = vdwg.mxu0
    %v3032 = vadd.f32 %v1754, %v3019
    %v3033 = vadd.f32 %v1755, %v3022
    %v3034 = vadd.f32 %v1756, %v3027
    %v3035 = vld [vmem:[#allocation18] sm:$0x1]
    %v3036 = vld [vmem:[#allocation20] sm:$0x1]
    %3037 = vadd.xlane.f32.xlu0 %v3032
    %v3038 = vpop.xlane.xlu0 %3037
    %3039 = vadd.xlane.f32.xlu0 %v3033
    %v3040 = vpop.xlane.xlu0 %3039
    %v3041 = vsel %vm961, %v3034, 0.0
    %3042 = vadd.xlane.f32.xlu0 %v3041
    %v3043 = vpop.xlane.xlu0 %3042
    %v3044 = vmul.f32 %v3038, %v1710
    %v3045 = vmul.f32 %v3040, %v1710
    %v3046 = vmul.f32 %v3043, %v1710
    %v3047 = vsub.f32 %v3032, %v3044
    %v3048 = vsub.f32 %v3033, %v3045
    %v3049 = vsub.f32 %v3034, %v3046
    %v3050 = vmul.f32 %v3047, %v3047
    %v3051 = vmul.f32 %v3048, %v3048
    %v3052 = vmul.f32 %v3049, %v3049
    %3053 = vadd.xlane.f32.xlu0 %v3050
    %v3054 = vpop.xlane.xlu0 %3053
    %3055 = vadd.xlane.f32.xlu0 %v3051
    %v3056 = vpop.xlane.xlu0 %3055
    %v3057 = vsel %vm961, %v3052, 0.0
    %3058 = vadd.xlane.f32.xlu0 %v3057
    %v3059 = vpop.xlane.xlu0 %3058
    %v3060 = vmul.f32 %v3054, %v1710
    %v3061 = vmul.f32 %v3056, %v1710
    %v3062 = vmul.f32 %v3059, %v1710
    %v3063 = vadd.f32 %v3060, 1e-05
    %v3064 = vadd.f32 %v3061, 1e-05
    %v3065 = vadd.f32 %v3062, 1e-05
    %v3066 = vrsqrt.pop %v3063
    %v3067 = vrsqrt.pop %v3064
    %v3068 = vrsqrt.pop %v3065
    %v3069 = vmul.f32 %v3047, %v3066
    %v3070 = vmul.f32 %v3048, %v3067
    %v3071 = vmul.f32 %v3049, %v3068
    %v3073 = vlaneseq
    %v3074 = vshrl.u32 %v3073, 7
    %v3075 = vsub.s32 0, %v3074
    %v3076 = vrot.slane %v3035, %v3075
    %v3078 = vmul.f32 %v3069, %v3076
    %v3079 = vmul.f32 %v3070, %v3076
    %v3080 = vmul.f32 %v3071, %v3076
    %v3082 = vlaneseq
    %v3083 = vshrl.u32 %v3082, 7
    %v3084 = vsub.s32 0, %v3083
    %v3085 = vrot.slane %v3036, %v3084
    %v3087 = vadd.f32 %v3078, %v3085
    %v3088 = vadd.f32 %v3079, %v3085
    %v3089 = vadd.f32 %v3080, %v3085
    %v3090 = vld [vmem:[#allocation24] sm:$0xff]
    %v3091 = vld [vmem:[#allocation24 + $0x8] sm:$0xff]
    %v3092 = vld [vmem:[#allocation24 + $0x10] sm:$0xff]
    %v3093 = vld [vmem:[#allocation24 + $0x18] sm:$0xff]
    %v3094 = vld [vmem:[#allocation24 + $0x20] sm:$0xff]
    %v3095 = vld [vmem:[#allocation24 + $0x28] sm:$0xff]
    %v3096 = vld [vmem:[#allocation24 + $0x30] sm:$0xff]
    %v3097 = vld [vmem:[#allocation24 + $0x38] sm:$0xff]
    %v3098 = vld [vmem:[#allocation24 + $0x40] sm:$0xff]
    %v3099 = vld [vmem:[#allocation24 + $0x48] sm:$0xff]
    %v3100 = vld [vmem:[#allocation24 + $0x50] sm:$0xff]
    %v3101 = vld [vmem:[#allocation24 + $0x58] sm:$0xff]
    %v3102 = vld [vmem:[#allocation24 + $0x60] sm:$0xff]
    %v3103 = vld [vmem:[#allocation24 + $0x68] sm:$0xff]
    %v3104 = vld [vmem:[#allocation24 + $0x70] sm:$0xff]
    %v3105 = vld [vmem:[#allocation24 + $0x78] sm:$0xff]
    %v3106 = vld [vmem:[#allocation26] sm:$0x3]
    %v3107 = vpack.c.bf16 %v3088, %v3087
    %v3108 = vpack.c.bf16 %v3089, %v3089
    %v3110 = vlaneseq
    %v3111 = vshrl.u32 %v3110, 7
    %v3112 = vsub.s32 0, %v3111
    %v3113 = vrot.slane %v3106, %v3112
    %v3114 = vlaneseq
    %v3115 = vshrl.u32 %v3114, 7
    %v3116 = vsub.s32 1, %v3115
    %v3117 = vrot.slane %v3106, %v3116
    %v3136 = vunpack.c.l.b16 %v3090
    %v3137 = vunpack.c.h.b16 %v3090
    %v3138 = vunpack.c.l.b16 %v3091
    %v3139 = vunpack.c.h.b16 %v3091
    %v3140 = vunpack.c.l.b16 %v3092
    %v3141 = vunpack.c.h.b16 %v3092
    %v3142 = vunpack.c.l.b16 %v3093
    %v3143 = vunpack.c.h.b16 %v3093
    %v3144 = vunpack.c.l.b16 %v3094
    %v3145 = vunpack.c.h.b16 %v3094
    %v3146 = vunpack.c.l.b16 %v3095
    %v3147 = vunpack.c.h.b16 %v3095
    %v3148 = vunpack.c.l.b16 %v3096
    %v3149 = vunpack.c.h.b16 %v3096
    %v3150 = vunpack.c.l.b16 %v3097
    %v3151 = vunpack.c.h.b16 %v3097
    %v3152 = vunpack.c.l.b16 %v3098
    %v3153 = vunpack.c.h.b16 %v3098
    %v3154 = vunpack.c.l.b16 %v3099
    %v3155 = vunpack.c.h.b16 %v3099
    %v3156 = vunpack.c.l.b16 %v3100
    %v3157 = vunpack.c.h.b16 %v3100
    %v3158 = vunpack.c.l.b16 %v3101
    %v3159 = vunpack.c.h.b16 %v3101
    %v3160 = vunpack.c.l.b16 %v3102
    %v3161 = vunpack.c.h.b16 %v3102
    %v3162 = vunpack.c.l.b16 %v3103
    %v3163 = vunpack.c.h.b16 %v3103
    %v3164 = vunpack.c.l.b16 %v3104
    %v3165 = vunpack.c.h.b16 %v3104
    %v3166 = vunpack.c.l.b16 %v3105
    %v3167 = vunpack.c.h.b16 %v3105
    %v3168 = vpack.c.b16 %v3138, %v3136
    %v3169 = vpack.c.b16 %v3139, %v3137
    %v3170 = vpack.c.b16 %v3142, %v3140
    %v3171 = vpack.c.b16 %v3143, %v3141
    %v3172 = vpack.c.b16 %v3146, %v3144
    %v3173 = vpack.c.b16 %v3147, %v3145
    %v3174 = vpack.c.b16 %v3150, %v3148
    %v3175 = vpack.c.b16 %v3151, %v3149
    %v3176 = vpack.c.b16 %v3154, %v3152
    %v3177 = vpack.c.b16 %v3155, %v3153
    %v3178 = vpack.c.b16 %v3158, %v3156
    %v3179 = vpack.c.b16 %v3159, %v3157
    %v3180 = vpack.c.b16 %v3162, %v3160
    %v3181 = vpack.c.b16 %v3163, %v3161
    %v3182 = vpack.c.b16 %v3166, %v3164
    %v3183 = vpack.c.b16 %v3167, %v3165
    %3200 = vmatprep.subr.bf16.mxu0 %v3169
    %3201 = vmatpush1.bf16.msra.mxu0 %v3168
    %3202 = vmatprep.subr.bf16.mxu0 %v3171
    %3203 = vmatpush1.bf16.msra.mxu0 %v3170
    %3204 = vmatprep.subr.bf16.mxu0 %v3173
    %3205 = vmatpush1.bf16.msra.mxu0 %v3172
    %3206 = vmatprep.subr.bf16.mxu0 %v3175
    %3207 = vmatpush1.bf16.msra.mxu0 %v3174
    %3208 = vmatprep.subr.bf16.mxu0 %v3177
    %3209 = vmatpush1.bf16.msra.mxu0 %v3176
    %3210 = vmatprep.subr.bf16.mxu0 %v3179
    %3211 = vmatpush1.bf16.msra.mxu0 %v3178
    %3212 = vmatprep.subr.bf16.mxu0 %v3181
    %3213 = vmatpush1.bf16.msra.mxu0 %v3180
    %3214 = vmatprep.subr.bf16.mxu0 %v3183
    %3215 = vmatpush1.bf16.msra.mxu0 %v3182
    %3216 = vmatprep.subr.bf16.mxu0 0
    %3217 = vmatpush1.bf16.msra.mxu0 0
    %3218 = vmatprep.subr.bf16.mxu0 0
    %3219 = vmatpush1.bf16.msra.mxu0 0
    %3220 = vmatprep.subr.bf16.mxu0 0
    %3221 = vmatpush1.bf16.msra.mxu0 0
    %3222 = vmatprep.subr.bf16.mxu0 0
    %3223 = vmatpush1.bf16.msra.mxu0 0
    %3224 = vmatprep.subr.bf16.mxu0 0
    %3225 = vmatpush1.bf16.msra.mxu0 0
    %3226 = vmatprep.subr.bf16.mxu0 0
    %3227 = vmatpush1.bf16.msra.mxu0 0
    %3228 = vmatprep.subr.bf16.mxu0 0
    %3229 = vmatpush1.bf16.msra.mxu0 0
    %3230 = vmatprep.subr.bf16.mxu0 0
    %3231 = vmatpush1.bf16.msra.mxu0 0
    %3232 = vmatprep.mubr.bf16.mxu0 0
    %3233 = vmatmul.mubr.bf16.gmra.mrb[0].mxu0 %v3107
    %v3234 = vpop.f32.mrb[0].mxu0
    %v3235 = vadd.f32 %v3113, %v3234
    %v3236 = vpop.f32.mrb[0].mxu0
    %v3237 = vadd.f32 %v3117, %v3236
    %v3238 = vpop.f32.mrb[0].mxu0
    %v3239 = vadd.f32 %v3113, %v3238
    %v3240 = vpop.f32.mrb[0].mxu0
    %v3241 = vadd.f32 %v3117, %v3240
    %3242 = vmatprep.mubr.bf16.mxu0 0
    %3243 = vmatmul.mubr.bf16.gmra.mrb[0].mxu0 %v3108
    %v3244 = vpop.f32.mrb[0].mxu0
    %v3245 = vadd.f32 %v3113, %v3244
    %v3246 = vpop.f32.mrb[0].mxu0
    %v3247 = vadd.f32 %v3117, %v3246
    %v3248 = vpop.f32.mrb[0].mxu0
    %v3249 = vpop.f32.mrb[0].mxu0
    %3250 = vdwg.mxu0
    %v3251 = vmul.f32 %v3235, 0.5
    %v3252 = vmul.f32 %v3237, 0.5
    %v3253 = vmul.f32 %v3239, 0.5
    %v3254 = vmul.f32 %v3241, 0.5
    %v3255 = vmul.f32 %v3245, 0.5
    %v3256 = vmul.f32 %v3247, 0.5
    %v3257 = vmul.f32 %v3235, 0.044715
    %v3258 = vmul.f32 %v3237, 0.044715
    %v3259 = vmul.f32 %v3239, 0.044715
    %v3260 = vmul.f32 %v3241, 0.044715
    %v3261 = vmul.f32 %v3245, 0.044715
    %v3262 = vmul.f32 %v3247, 0.044715
    %v3263 = vmul.f32 %v3257, %v3235
    %v3264 = vmul.f32 %v3258, %v3237
    %v3265 = vmul.f32 %v3259, %v3239
    %v3266 = vmul.f32 %v3260, %v3241
    %v3267 = vmul.f32 %v3261, %v3245
    %v3268 = vmul.f32 %v3262, %v3247
    %v3269 = vmul.f32 %v3263, %v3235
    %v3270 = vmul.f32 %v3264, %v3237
    %v3271 = vmul.f32 %v3265, %v3239
    %v3272 = vmul.f32 %v3266, %v3241
    %v3273 = vmul.f32 %v3267, %v3245
    %v3274 = vmul.f32 %v3268, %v3247
    %v3275 = vadd.f32 %v3235, %v3269
    %v3276 = vadd.f32 %v3237, %v3270
    %v3277 = vadd.f32 %v3239, %v3271
    %v3278 = vadd.f32 %v3241, %v3272
    %v3279 = vadd.f32 %v3245, %v3273
    %v3280 = vadd.f32 %v3247, %v3274
    %v3281 = vmul.f32 %v3275, 0.7978846
    %v3282 = vmul.f32 %v3276, 0.7978846
    %v3283 = vmul.f32 %v3277, 0.7978846
    %v3284 = vmul.f32 %v3278, 0.7978846
    %v3285 = vmul.f32 %v3279, 0.7978846
    %v3286 = vmul.f32 %v3280, 0.7978846
    %v3287 = vtanh.pop %v3281
    %v3288 = vtanh.pop %v3282
    %v3289 = vtanh.pop %v3283
    %v3290 = vtanh.pop %v3284
    %v3291 = vtanh.pop %v3285
    %v3292 = vtanh.pop %v3286
    %v3293 = vadd.f32 %v3287, 1.0
    %v3294 = vadd.f32 %v3288, 1.0
    %v3295 = vadd.f32 %v3289, 1.0
    %v3296 = vadd.f32 %v3290, 1.0
    %v3297 = vadd.f32 %v3291, 1.0
    %v3298 = vadd.f32 %v3292, 1.0
    %v3299 = vmul.f32 %v3251, %v3293
    %v3300 = vmul.f32 %v3252, %v3294
    %v3301 = vmul.f32 %v3253, %v3295
    %v3302 = vmul.f32 %v3254, %v3296
    %v3303 = vmul.f32 %v3255, %v3297
    %v3304 = vmul.f32 %v3256, %v3298
    %v3305 = vld [vmem:[#allocation27] sm:$0xf]
    %v3306 = vld [vmem:[#allocation27 + $0x4] sm:$0xf]
    %v3307 = vld [vmem:[#allocation27 + $0x8] sm:$0xf]
    %v3308 = vld [vmem:[#allocation27 + $0xc] sm:$0xf]
    %v3309 = vld [vmem:[#allocation27 + $0x10] sm:$0xf]
    %v3310 = vld [vmem:[#allocation27 + $0x14] sm:$0xf]
    %v3311 = vld [vmem:[#allocation27 + $0x18] sm:$0xf]
    %v3312 = vld [vmem:[#allocation27 + $0x1c] sm:$0xf]
    %v3313 = vld [vmem:[#allocation27 + $0x20] sm:$0xf]
    %v3314 = vld [vmem:[#allocation27 + $0x24] sm:$0xf]
    %v3315 = vld [vmem:[#allocation27 + $0x28] sm:$0xf]
    %v3316 = vld [vmem:[#allocation27 + $0x2c] sm:$0xf]
    %v3317 = vld [vmem:[#allocation27 + $0x30] sm:$0xf]
    %v3318 = vld [vmem:[#allocation27 + $0x34] sm:$0xf]
    %v3319 = vld [vmem:[#allocation27 + $0x38] sm:$0xf]
    %v3320 = vld [vmem:[#allocation27 + $0x3c] sm:$0xf]
    %v3321 = vld [vmem:[#allocation27 + $0x40] sm:$0xf]
    %v3322 = vld [vmem:[#allocation27 + $0x44] sm:$0xf]
    %v3323 = vld [vmem:[#allocation27 + $0x48] sm:$0xf]
    %v3324 = vld [vmem:[#allocation27 + $0x4c] sm:$0xf]
    %v3325 = vld [vmem:[#allocation27 + $0x50] sm:$0xf]
    %v3326 = vld [vmem:[#allocation27 + $0x54] sm:$0xf]
    %v3327 = vld [vmem:[#allocation27 + $0x58] sm:$0xf]
    %v3328 = vld [vmem:[#allocation27 + $0x5c] sm:$0xf]
    %v3329 = vld [vmem:[#allocation27 + $0x60] sm:$0xf]
    %v3330 = vld [vmem:[#allocation27 + $0x64] sm:$0xf]
    %v3331 = vld [vmem:[#allocation27 + $0x68] sm:$0xf]
    %v3332 = vld [vmem:[#allocation27 + $0x6c] sm:$0xf]
    %v3333 = vld [vmem:[#allocation27 + $0x70] sm:$0xf]
    %v3334 = vld [vmem:[#allocation27 + $0x74] sm:$0xf]
    %v3335 = vld [vmem:[#allocation27 + $0x78] sm:$0xf]
    %v3336 = vld [vmem:[#allocation27 + $0x7c] sm:$0xf]
    %v3337 = vld [vmem:[#allocation29] sm:$0x1]
    %v3338 = vpack.c.bf16 %v3301, %v3299
    %v3339 = vpack.c.bf16 %v3302, %v3300
    %v3340 = vpack.c.bf16 %v3303, %v3303
    %v3341 = vpack.c.bf16 %v3304, %v3304
    %v3343 = vlaneseq
    %v3344 = vshrl.u32 %v3343, 7
    %v3345 = vsub.s32 0, %v3344
    %v3346 = vrot.slane %v3337, %v3345
    %v3380 = vunpack.c.l.b16 %v3305
    %v3381 = vunpack.c.l.b16 %v3306
    %v3382 = vunpack.c.l.b16 %v3307
    %v3383 = vunpack.c.l.b16 %v3308
    %v3384 = vunpack.c.l.b16 %v3309
    %v3385 = vunpack.c.l.b16 %v3310
    %v3386 = vunpack.c.l.b16 %v3311
    %v3387 = vunpack.c.l.b16 %v3312
    %v3388 = vunpack.c.l.b16 %v3313
    %v3389 = vunpack.c.l.b16 %v3314
    %v3390 = vunpack.c.l.b16 %v3315
    %v3391 = vunpack.c.l.b16 %v3316
    %v3392 = vunpack.c.l.b16 %v3317
    %v3393 = vunpack.c.l.b16 %v3318
    %v3394 = vunpack.c.l.b16 %v3319
    %v3395 = vunpack.c.l.b16 %v3320
    %v3396 = vunpack.c.l.b16 %v3321
    %v3397 = vunpack.c.l.b16 %v3322
    %v3398 = vunpack.c.l.b16 %v3323
    %v3399 = vunpack.c.l.b16 %v3324
    %v3400 = vunpack.c.l.b16 %v3325
    %v3401 = vunpack.c.l.b16 %v3326
    %v3402 = vunpack.c.l.b16 %v3327
    %v3403 = vunpack.c.l.b16 %v3328
    %v3404 = vunpack.c.l.b16 %v3329
    %v3405 = vunpack.c.l.b16 %v3330
    %v3406 = vunpack.c.l.b16 %v3331
    %v3407 = vunpack.c.l.b16 %v3332
    %v3408 = vunpack.c.l.b16 %v3333
    %v3409 = vunpack.c.l.b16 %v3334
    %v3410 = vunpack.c.l.b16 %v3335
    %v3411 = vunpack.c.l.b16 %v3336
    %v3412 = vpack.c.b16 %v3381, %v3380
    %v3413 = vpack.c.b16 %v3383, %v3382
    %v3414 = vpack.c.b16 %v3385, %v3384
    %v3415 = vpack.c.b16 %v3387, %v3386
    %v3416 = vpack.c.b16 %v3389, %v3388
    %v3417 = vpack.c.b16 %v3391, %v3390
    %v3418 = vpack.c.b16 %v3393, %v3392
    %v3419 = vpack.c.b16 %v3395, %v3394
    %v3420 = vpack.c.b16 %v3397, %v3396
    %v3421 = vpack.c.b16 %v3399, %v3398
    %v3422 = vpack.c.b16 %v3401, %v3400
    %v3423 = vpack.c.b16 %v3403, %v3402
    %v3424 = vpack.c.b16 %v3405, %v3404
    %v3425 = vpack.c.b16 %v3407, %v3406
    %v3426 = vpack.c.b16 %v3409, %v3408
    %v3427 = vpack.c.b16 %v3411, %v3410
    %3444 = vmatprep.subr.bf16.mxu0 0
    %3445 = vmatpush1.bf16.msra.mxu0 %v3412
    %3446 = vmatprep.subr.bf16.mxu0 0
    %3447 = vmatpush1.bf16.msra.mxu0 %v3413
    %3448 = vmatprep.subr.bf16.mxu0 0
    %3449 = vmatpush1.bf16.msra.mxu0 %v3414
    %3450 = vmatprep.subr.bf16.mxu0 0
    %3451 = vmatpush1.bf16.msra.mxu0 %v3415
    %3452 = vmatprep.subr.bf16.mxu0 0
    %3453 = vmatpush1.bf16.msra.mxu0 %v3416
    %3454 = vmatprep.subr.bf16.mxu0 0
    %3455 = vmatpush1.bf16.msra.mxu0 %v3417
    %3456 = vmatprep.subr.bf16.mxu0 0
    %3457 = vmatpush1.bf16.msra.mxu0 %v3418
    %3458 = vmatprep.subr.bf16.mxu0 0
    %3459 = vmatpush1.bf16.msra.mxu0 %v3419
    %3460 = vmatprep.subr.bf16.mxu0 0
    %3461 = vmatpush1.bf16.msra.mxu0 %v3420
    %3462 = vmatprep.subr.bf16.mxu0 0
    %3463 = vmatpush1.bf16.msra.mxu0 %v3421
    %3464 = vmatprep.subr.bf16.mxu0 0
    %3465 = vmatpush1.bf16.msra.mxu0 %v3422
    %3466 = vmatprep.subr.bf16.mxu0 0
    %3467 = vmatpush1.bf16.msra.mxu0 %v3423
    %3468 = vmatprep.subr.bf16.mxu0 0
    %3469 = vmatpush1.bf16.msra.mxu0 %v3424
    %3470 = vmatprep.subr.bf16.mxu0 0
    %3471 = vmatpush1.bf16.msra.mxu0 %v3425
    %3472 = vmatprep.subr.bf16.mxu0 0
    %3473 = vmatpush1.bf16.msra.mxu0 %v3426
    %3474 = vmatprep.subr.bf16.mxu0 0
    %3475 = vmatpush1.bf16.msra.mxu0 %v3427
    %3476 = vmatprep.mubr.bf16.mxu0 %v3339
    %3477 = vmatmul.mubr.bf16.gmra.mrb[0].mxu0 %v3338
    %v3478 = vpop.f32.mrb[0].mxu0
    %v3479 = vadd.f32 %v3346, %v3478
    %v3480 = vpop.f32.mrb[0].mxu0
    %v3481 = vpop.f32.mrb[0].mxu0
    %v3482 = vadd.f32 %v3346, %v3481
    %v3483 = vpop.f32.mrb[0].mxu0
    %3484 = vmatprep.mubr.bf16.mxu0 %v3341
    %3485 = vmatmul.mubr.bf16.gmra.mrb[0].mxu0 %v3340
    %v3486 = vpop.f32.mrb[0].mxu0
    %v3487 = vadd.f32 %v3346, %v3486
    %v3488 = vpop.f32.mrb[0].mxu0
    %v3489 = vpop.f32.mrb[0].mxu0
    %v3490 = vpop.f32.mrb[0].mxu0
    %3491 = vdwg.mxu0
    %v3492 = vadd.f32 %v3087, %v3479
    %v3493 = vadd.f32 %v3088, %v3482
    %v3494 = vadd.f32 %v3089, %v3487
    %v3495 = vld [vmem:[#allocation21] sm:$0x1]
    %v3496 = vld [vmem:[#allocation23] sm:$0x1]
    %3497 = vadd.xlane.f32.xlu0 %v3492
    %v3498 = vpop.xlane.xlu0 %3497
    %3499 = vadd.xlane.f32.xlu0 %v3493
    %v3500 = vpop.xlane.xlu0 %3499
    %v3501 = vsel %vm961, %v3494, 0.0
    %3502 = vadd.xlane.f32.xlu0 %v3501
    %v3503 = vpop.xlane.xlu0 %3502
    %v3504 = vmul.f32 %v3498, %v1710
    %v3505 = vmul.f32 %v3500, %v1710
    %v3506 = vmul.f32 %v3503, %v1710
    %v3507 = vsub.f32 %v3492, %v3504
    %v3508 = vsub.f32 %v3493, %v3505
    %v3509 = vsub.f32 %v3494, %v3506
    %v3510 = vmul.f32 %v3507, %v3507
    %v3511 = vmul.f32 %v3508, %v3508
    %v3512 = vmul.f32 %v3509, %v3509
    %3513 = vadd.xlane.f32.xlu0 %v3510
    %v3514 = vpop.xlane.xlu0 %3513
    %3515 = vadd.xlane.f32.xlu0 %v3511
    %v3516 = vpop.xlane.xlu0 %3515
    %v3517 = vsel %vm961, %v3512, 0.0
    %3518 = vadd.xlane.f32.xlu0 %v3517
    %v3519 = vpop.xlane.xlu0 %3518
    %v3520 = vmul.f32 %v3514, %v1710
    %v3521 = vmul.f32 %v3516, %v1710
    %v3522 = vmul.f32 %v3519, %v1710
    %v3523 = vadd.f32 %v3520, 1e-05
    %v3524 = vadd.f32 %v3521, 1e-05
    %v3525 = vadd.f32 %v3522, 1e-05
    %v3526 = vrsqrt.pop %v3523
    %v3527 = vrsqrt.pop %v3524
    %v3528 = vrsqrt.pop %v3525
    %v3529 = vmul.f32 %v3507, %v3526
    %v3530 = vmul.f32 %v3508, %v3527
    %v3531 = vmul.f32 %v3509, %v3528
    %v3533 = vlaneseq
    %v3534 = vshrl.u32 %v3533, 7
    %v3535 = vsub.s32 0, %v3534
    %v3536 = vrot.slane %v3495, %v3535
    %v3538 = vmul.f32 %v3529, %v3536
    %v3539 = vmul.f32 %v3530, %v3536
    %v3540 = vmul.f32 %v3531, %v3536
    %v3542 = vlaneseq
    %v3543 = vshrl.u32 %v3542, 7
    %v3544 = vsub.s32 0, %v3543
    %v3545 = vrot.slane %v3496, %v3544
    %v3547 = vadd.f32 %v3538, %v3545
    %v3548 = vadd.f32 %v3539, %v3545
    %v3549 = vadd.f32 %v3540, %v3545
    %s3550 = scalar_lea.vmem %s1, 192
    %v3551 = vld [vmem:[%s3550] sm:$0xff]
    %v3552 = vld [vmem:[%s3550 + $0x8] sm:$0xf]
    %v3553 = vld [vmem:[%s3550 + $0xc] sm:$0xff]
    %v3554 = vld [vmem:[%s3550 + $0x14] sm:$0xf]
    %v3555 = vld [vmem:[%s3550 + $0x18] sm:$0xff]
    %v3556 = vld [vmem:[%s3550 + $0x20] sm:$0xf]
    %v3557 = vld [vmem:[%s3550 + $0x24] sm:$0xff]
    %v3558 = vld [vmem:[%s3550 + $0x2c] sm:$0xf]
    %v3559 = vld [vmem:[%s3550 + $0x30] sm:$0xff]
    %v3560 = vld [vmem:[%s3550 + $0x38] sm:$0xf]
    %v3561 = vld [vmem:[%s3550 + $0x3c] sm:$0xff]
    %v3562 = vld [vmem:[%s3550 + $0x44] sm:$0xf]
    %v3563 = vld [vmem:[%s3550 + $0x48] sm:$0xff]
    %v3564 = vld [vmem:[%s3550 + $0x50] sm:$0xf]
    %v3565 = vld [vmem:[%s3550 + $0x54] sm:$0xff]
    %v3566 = vld [vmem:[%s3550 + $0x5c] sm:$0xf]
    %v3567 = vld [vmem:[%s3550 + $0x60] sm:$0xff]
    %v3568 = vld [vmem:[%s3550 + $0x68] sm:$0xf]
    %v3569 = vld [vmem:[%s3550 + $0x6c] sm:$0xff]
    %v3570 = vld [vmem:[%s3550 + $0x74] sm:$0xf]
    %v3571 = vld [vmem:[%s3550 + $0x78] sm:$0xff]
    %v3572 = vld [vmem:[%s3550 + $0x80] sm:$0xf]
    %v3573 = vld [vmem:[%s3550 + $0x84] sm:$0xff]
    %v3574 = vld [vmem:[%s3550 + $0x8c] sm:$0xf]
    %v3575 = vld [vmem:[%s3550 + $0x90] sm:$0xff]
    %v3576 = vld [vmem:[%s3550 + $0x98] sm:$0xf]
    %v3577 = vld [vmem:[%s3550 + $0x9c] sm:$0xff]
    %v3578 = vld [vmem:[%s3550 + $0xa4] sm:$0xf]
    %v3579 = vld [vmem:[%s3550 + $0xa8] sm:$0xff]
    %v3580 = vld [vmem:[%s3550 + $0xb0] sm:$0xf]
    %v3581 = vld [vmem:[%s3550 + $0xb4] sm:$0xff]
    %v3582 = vld [vmem:[%s3550 + $0xbc] sm:$0xf]
    %s3583 = scalar_lea.vmem [#allocation2], 3
    %v3584 = vld [vmem:[%s3583] sm:$0x7]
    %v3585 = vpack.c.bf16 %v3548, %v3547
    %v3586 = vpack.c.bf16 %v3549, %v3549
    %v3588 = vlaneseq
    %v3589 = vshrl.u32 %v3588, 7
    %v3590 = vsub.s32 0, %v3589
    %v3591 = vrot.slane %v3584, %v3590
    %v3592 = vlaneseq
    %v3593 = vshrl.u32 %v3592, 7
    %v3594 = vsub.s32 1, %v3593
    %v3595 = vrot.slane %v3584, %v3594
    %v3596 = vlaneseq
    %v3597 = vshrl.u32 %v3596, 7
    %v3598 = vsub.s32 2, %v3597
    %v3599 = vrot.slane %v3584, %v3598
    %v3635 = vunpack.c.l.b16 %v3551
    %v3636 = vunpack.c.h.b16 %v3551
    %v3637 = vunpack.c.l.b16 %v3552
    %v3638 = vunpack.c.l.b16 %v3553
    %v3639 = vunpack.c.h.b16 %v3553
    %v3640 = vunpack.c.l.b16 %v3554
    %v3641 = vunpack.c.l.b16 %v3555
    %v3642 = vunpack.c.h.b16 %v3555
    %v3643 = vunpack.c.l.b16 %v3556
    %v3644 = vunpack.c.l.b16 %v3557
    %v3645 = vunpack.c.h.b16 %v3557
    %v3646 = vunpack.c.l.b16 %v3558
    %v3647 = vunpack.c.l.b16 %v3559
    %v3648 = vunpack.c.h.b16 %v3559
    %v3649 = vunpack.c.l.b16 %v3560
    %v3650 = vunpack.c.l.b16 %v3561
    %v3651 = vunpack.c.h.b16 %v3561
    %v3652 = vunpack.c.l.b16 %v3562
    %v3653 = vunpack.c.l.b16 %v3563
    %v3654 = vunpack.c.h.b16 %v3563
    %v3655 = vunpack.c.l.b16 %v3564
    %v3656 = vunpack.c.l.b16 %v3565
    %v3657 = vunpack.c.h.b16 %v3565
    %v3658 = vunpack.c.l.b16 %v3566
    %v3659 = vunpack.c.l.b16 %v3567
    %v3660 = vunpack.c.h.b16 %v3567
    %v3661 = vunpack.c.l.b16 %v3568
    %v3662 = vunpack.c.l.b16 %v3569
    %v3663 = vunpack.c.h.b16 %v3569
    %v3664 = vunpack.c.l.b16 %v3570
    %v3665 = vunpack.c.l.b16 %v3571
    %v3666 = vunpack.c.h.b16 %v3571
    %v3667 = vunpack.c.l.b16 %v3572
    %v3668 = vunpack.c.l.b16 %v3573
    %v3669 = vunpack.c.h.b16 %v3573
    %v3670 = vunpack.c.l.b16 %v3574
    %v3671 = vunpack.c.l.b16 %v3575
    %v3672 = vunpack.c.h.b16 %v3575
    %v3673 = vunpack.c.l.b16 %v3576
    %v3674 = vunpack.c.l.b16 %v3577
    %v3675 = vunpack.c.h.b16 %v3577
    %v3676 = vunpack.c.l.b16 %v3578
    %v3677 = vunpack.c.l.b16 %v3579
    %v3678 = vunpack.c.h.b16 %v3579
    %v3679 = vunpack.c.l.b16 %v3580
    %v3680 = vunpack.c.l.b16 %v3581
    %v3681 = vunpack.c.h.b16 %v3581
    %v3682 = vunpack.c.l.b16 %v3582
    %v3683 = vpack.c.b16 %v3638, %v3635
    %v3684 = vpack.c.b16 %v3639, %v3636
    %v3685 = vpack.c.b16 %v3640, %v3637
    %v3686 = vpack.c.b16 %v3644, %v3641
    %v3687 = vpack.c.b16 %v3645, %v3642
    %v3688 = vpack.c.b16 %v3646, %v3643
    %v3689 = vpack.c.b16 %v3650, %v3647
    %v3690 = vpack.c.b16 %v3651, %v3648
    %v3691 = vpack.c.b16 %v3652, %v3649
    %v3692 = vpack.c.b16 %v3656, %v3653
    %v3693 = vpack.c.b16 %v3657, %v3654
    %v3694 = vpack.c.b16 %v3658, %v3655
    %v3695 = vpack.c.b16 %v3662, %v3659
    %v3696 = vpack.c.b16 %v3663, %v3660
    %v3697 = vpack.c.b16 %v3664, %v3661
    %v3698 = vpack.c.b16 %v3668, %v3665
    %v3699 = vpack.c.b16 %v3669, %v3666
    %v3700 = vpack.c.b16 %v3670, %v3667
    %v3701 = vpack.c.b16 %v3674, %v3671
    %v3702 = vpack.c.b16 %v3675, %v3672
    %v3703 = vpack.c.b16 %v3676, %v3673
    %v3704 = vpack.c.b16 %v3680, %v3677
    %v3705 = vpack.c.b16 %v3681, %v3678
    %v3706 = vpack.c.b16 %v3682, %v3679
    %3731 = vmatprep.subr.bf16.mxu0 %v3684
    %3732 = vmatpush1.bf16.msra.mxu0 %v3683
    %3733 = vmatprep.subr.bf16.mxu0 %v3687
    %3734 = vmatpush1.bf16.msra.mxu0 %v3686
    %3735 = vmatprep.subr.bf16.mxu0 %v3690
    %3736 = vmatpush1.bf16.msra.mxu0 %v3689
    %3737 = vmatprep.subr.bf16.mxu0 %v3693
    %3738 = vmatpush1.bf16.msra.mxu0 %v3692
    %3739 = vmatprep.subr.bf16.mxu0 %v3696
    %3740 = vmatpush1.bf16.msra.mxu0 %v3695
    %3741 = vmatprep.subr.bf16.mxu0 %v3699
    %3742 = vmatpush1.bf16.msra.mxu0 %v3698
    %3743 = vmatprep.subr.bf16.mxu0 %v3702
    %3744 = vmatpush1.bf16.msra.mxu0 %v3701
    %3745 = vmatprep.subr.bf16.mxu0 %v3705
    %3746 = vmatpush1.bf16.msra.mxu0 %v3704
    %3747 = vmatprep.subr.bf16.mxu0 0
    %3748 = vmatpush1.bf16.msra.mxu0 0
    %3749 = vmatprep.subr.bf16.mxu0 0
    %3750 = vmatpush1.bf16.msra.mxu0 0
    %3751 = vmatprep.subr.bf16.mxu0 0
    %3752 = vmatpush1.bf16.msra.mxu0 0
    %3753 = vmatprep.subr.bf16.mxu0 0
    %3754 = vmatpush1.bf16.msra.mxu0 0
    %3755 = vmatprep.subr.bf16.mxu0 0
    %3756 = vmatpush1.bf16.msra.mxu0 0
    %3757 = vmatprep.subr.bf16.mxu0 0
    %3758 = vmatpush1.bf16.msra.mxu0 0
    %3759 = vmatprep.subr.bf16.mxu0 0
    %3760 = vmatpush1.bf16.msra.mxu0 0
    %3761 = vmatprep.subr.bf16.mxu0 0
    %3762 = vmatpush1.bf16.msra.mxu0 0
    %3763 = vmatprep.mubr.bf16.mxu0 0
    %3764 = vmatmul.mubr.bf16.gmra.mrb[0].mxu0 %v3585
    %v3765 = vpop.f32.mrb[0].mxu0
    %v3766 = vadd.f32 %v3591, %v3765
    %v3767 = vpop.f32.mrb[0].mxu0
    %v3768 = vadd.f32 %v3595, %v3767
    %v3769 = vpop.f32.mrb[0].mxu0
    %v3770 = vadd.f32 %v3591, %v3769
    %v3771 = vpop.f32.mrb[0].mxu0
    %v3772 = vadd.f32 %v3595, %v3771
    %3773 = vmatprep.mubr.bf16.mxu0 0
    %3774 = vmatmul.mubr.bf16.gmra.mrb[0].mxu0 %v3586
    %v3775 = vpop.f32.mrb[0].mxu0
    %v3776 = vadd.f32 %v3591, %v3775
    %v3777 = vpop.f32.mrb[0].mxu0
    %v3778 = vadd.f32 %v3595, %v3777
    %v3779 = vpop.f32.mrb[0].mxu0
    %v3780 = vpop.f32.mrb[0].mxu0
    %3781 = vdwg.mxu0
    %3782 = vmatprep.subr.bf16.mxu0 0
    %3783 = vmatpush1.bf16.msra.mxu0 %v3685
    %3784 = vmatprep.subr.bf16.mxu0 0
    %3785 = vmatpush1.bf16.msra.mxu0 %v3688
    %3786 = vmatprep.subr.bf16.mxu0 0
    %3787 = vmatpush1.bf16.msra.mxu0 %v3691
    %3788 = vmatprep.subr.bf16.mxu0 0
    %3789 = vmatpush1.bf16.msra.mxu0 %v3694
    %3790 = vmatprep.subr.bf16.mxu0 0
    %3791 = vmatpush1.bf16.msra.mxu0 %v3697
    %3792 = vmatprep.subr.bf16.mxu0 0
    %3793 = vmatpush1.bf16.msra.mxu0 %v3700
    %3794 = vmatprep.subr.bf16.mxu0 0
    %3795 = vmatpush1.bf16.msra.mxu0 %v3703
    %3796 = vmatprep.subr.bf16.mxu0 0
    %3797 = vmatpush1.bf16.msra.mxu0 %v3706
    %3798 = vmatprep.subr.bf16.mxu0 0
    %3799 = vmatpush1.bf16.msra.mxu0 0
    %3800 = vmatprep.subr.bf16.mxu0 0
    %3801 = vmatpush1.bf16.msra.mxu0 0
    %3802 = vmatprep.subr.bf16.mxu0 0
    %3803 = vmatpush1.bf16.msra.mxu0 0
    %3804 = vmatprep.subr.bf16.mxu0 0
    %3805 = vmatpush1.bf16.msra.mxu0 0
    %3806 = vmatprep.subr.bf16.mxu0 0
    %3807 = vmatpush1.bf16.msra.mxu0 0
    %3808 = vmatprep.subr.bf16.mxu0 0
    %3809 = vmatpush1.bf16.msra.mxu0 0
    %3810 = vmatprep.subr.bf16.mxu0 0
    %3811 = vmatpush1.bf16.msra.mxu0 0
    %3812 = vmatprep.subr.bf16.mxu0 0
    %3813 = vmatpush1.bf16.msra.mxu0 0
    %3814 = vmatprep.mubr.bf16.mxu0 0
    %3815 = vmatmul.mubr.bf16.gmra.mrb[0].mxu0 %v3585
    %v3816 = vpop.f32.mrb[0].mxu0
    %v3817 = vadd.f32 %v3599, %v3816
    %v3818 = vpop.f32.mrb[0].mxu0
    %v3819 = vpop.f32.mrb[0].mxu0
    %v3820 = vadd.f32 %v3599, %v3819
    %v3821 = vpop.f32.mrb[0].mxu0
    %3822 = vmatprep.mubr.bf16.mxu0 0
    %3823 = vmatmul.mubr.bf16.gmra.mrb[0].mxu0 %v3586
    %v3824 = vpop.f32.mrb[0].mxu0
    %v3825 = vadd.f32 %v3599, %v3824
    %v3826 = vpop.f32.mrb[0].mxu0
    %v3827 = vpop.f32.mrb[0].mxu0
    %v3828 = vpop.f32.mrb[0].mxu0
    %3829 = vdwg.mxu0
    %v3830 = vmul.f32 %v3768, %v339
    %v3831 = vmul.f32 %v3772, %v339
    %v3832 = vmul.f32 %v3778, %v339
    %3833 = vmatprep.subr.mxu0 0.0
    %3834 = vmatpush1.xpose.msra.mxu0 %v3830
    %3835 = vmatprep.subr.mxu0 0.0
    %3836 = vmatpush1.xpose.msra.mxu0 %v3831
    %3837 = vmatprep.subr.mxu0 0.0
    %3838 = vmatpush1.xpose.msra.mxu0 %v3832
    %3839 = vmatprep.subr.mxu0 0.0
    %3840 = vmatpush1.xpose.msra.mxu0 0.0
    %3841 = vmatprep.subr.mxu0 0.0
    %3842 = vmatpush1.xpose.msra.mxu0 0.0
    %3843 = vmatprep.subr.mxu0 0.0
    %3844 = vmatpush1.xpose.msra.mxu0 0.0
    %3845 = vmatprep.subr.mxu0 0.0
    %3846 = vmatpush1.xpose.msra.mxu0 0.0
    %3847 = vmatprep.subr.mxu0 0.0
    %3848 = vmatpush1.xpose.msra.mxu0 0.0
    %3849 = vmatprep.subr.mxu0 0.0
    %3850 = vmatpush1.xpose.msra.mxu0 0.0
    %3851 = vmatprep.subr.mxu0 0.0
    %3852 = vmatpush1.xpose.msra.mxu0 0.0
    %3853 = vmatprep.subr.mxu0 0.0
    %3854 = vmatpush1.xpose.msra.mxu0 0.0
    %3855 = vmatprep.subr.mxu0 0.0
    %3856 = vmatpush1.xpose.msra.mxu0 0.0
    %3857 = vmatprep.subr.mxu0 0.0
    %3858 = vmatpush1.xpose.msra.mxu0 0.0
    %3859 = vmatprep.subr.mxu0 0.0
    %3860 = vmatpush1.xpose.msra.mxu0 0.0
    %3861 = vmatprep.subr.mxu0 0.0
    %3862 = vmatpush1.xpose.msra.mxu0 0.0
    %3863 = vmatprep.subr.mxu0 0.0
    %3864 = vmatpush1.xpose.msra.mxu0 0.0
    %3865 = vmatprep.subr.mxu0 0.0
    %3866 = vmatpush1.xpose.msra.mxu0 0.0
    %3867 = vmatprep.subr.mxu0 0.0
    %3868 = vmatpush1.xpose.msra.mxu0 0.0
    %3869 = vmatprep.subr.mxu0 0.0
    %3870 = vmatpush1.xpose.msra.mxu0 0.0
    %3871 = vmatprep.subr.mxu0 0.0
    %3872 = vmatpush1.xpose.msra.mxu0 0.0
    %3873 = vmatprep.subr.mxu0 0.0
    %3874 = vmatpush1.xpose.msra.mxu0 0.0
    %3875 = vmatprep.subr.mxu0 0.0
    %3876 = vmatpush1.xpose.msra.mxu0 0.0
    %3877 = vmatprep.subr.mxu0 0.0
    %3878 = vmatpush1.xpose.msra.mxu0 0.0
    %3879 = vmatprep.subr.mxu0 0.0
    %3880 = vmatpush1.xpose.msra.mxu0 0.0
    %3881 = vmatprep.subr.mxu0 0.0
    %3882 = vmatpush1.xpose.msra.mxu0 0.0
    %3883 = vmatprep.subr.mxu0 0.0
    %3884 = vmatpush1.xpose.msra.mxu0 0.0
    %3885 = vmatprep.subr.mxu0 0.0
    %3886 = vmatpush1.xpose.msra.mxu0 0.0
    %3887 = vmatprep.subr.mxu0 0.0
    %3888 = vmatpush1.xpose.msra.mxu0 0.0
    %3889 = vmatprep.subr.mxu0 0.0
    %3890 = vmatpush1.xpose.msra.mxu0 0.0
    %3891 = vmatprep.subr.mxu0 0.0
    %3892 = vmatpush1.xpose.msra.mxu0 0.0
    %3893 = vmatprep.subr.mxu0 0.0
    %3894 = vmatpush1.xpose.msra.mxu0 0.0
    %3895 = vmatprep.subr.mxu0 0.0
    %3896 = vmatpush1.xpose.msra.mxu0 0.0
    %3897 = vmatprep.mubr.f32.mxu0 0.0
    %3898 = vmatmul.mubr.f32.gmra.mrb[0].mxu0 %v3766
    %v3899 = vpop.f32.mrb[0].mxu0
    %v3900 = vadd.f32 0.0, %v3899
    %v3901 = vpop.f32.mrb[0].mxu0
    %3902 = vmatprep.mubr.f32.mxu0 0.0
    %3903 = vmatmul.mubr.f32.gmra.mrb[0].mxu0 %v3770
    %v3904 = vpop.f32.mrb[0].mxu0
    %v3905 = vadd.f32 0.0, %v3904
    %v3906 = vpop.f32.mrb[0].mxu0
    %3907 = vmatprep.mubr.f32.mxu0 0.0
    %3908 = vmatmul.mubr.f32.gmra.mrb[0].mxu0 %v3776
    %v3909 = vpop.f32.mrb[0].mxu0
    %v3910 = vadd.f32 0.0, %v3909
    %v3911 = vpop.f32.mrb[0].mxu0
    %3912 = vdwg.mxu0
    %v3913 = vmul.f32 %v3900, 0.17677669
    %v3914 = vmul.f32 %v3905, 0.17677669
    %v3915 = vmul.f32 %v3910, 0.17677669
    %v3916 = vadd.f32 %v3913, %v416
    %v3917 = vadd.f32 %v3914, %v417
    %v3918 = vadd.f32 %v3915, %v418
    %v3919 = vsel %vm789, %v3916, -inf
    %3920 = vmax.xlane.f32.xlu0 %v3919
    %v3921 = vpop.xlane.xlu0 %3920
    %v3922 = vsel %vm789, %v3917, -inf
    %3923 = vmax.xlane.f32.xlu0 %v3922
    %v3924 = vpop.xlane.xlu0 %3923
    %v3925 = vsel %vm796, %v3918, -inf
    %3926 = vmax.xlane.f32.xlu0 %v3925
    %v3927 = vpop.xlane.xlu0 %3926
    %v3928 = vsub.f32 %v3916, %v3921
    %v3929 = vsub.f32 %v3917, %v3924
    %v3930 = vsub.f32 %v3918, %v3927
    %v3931 = vmul.f32 %v3928, 1.442695
    %v3932 = vpow.pop %v3931
    %v3933 = vmul.f32 %v3929, 1.442695
    %v3934 = vpow.pop %v3933
    %v3935 = vmul.f32 %v3930, 1.442695
    %v3936 = vpow.pop %v3935
    %v3937 = vsel %vm789, %v3932, 0.0
    %3938 = vadd.xlane.f32.xlu0 %v3937
    %v3939 = vpop.xlane.xlu0 %3938
    %v3940 = vsel %vm789, %v3934, 0.0
    %3941 = vadd.xlane.f32.xlu0 %v3940
    %v3942 = vpop.xlane.xlu0 %3941
    %v3943 = vsel %vm796, %v3936, 0.0
    %3944 = vadd.xlane.f32.xlu0 %v3943
    %v3945 = vpop.xlane.xlu0 %3944
    %v3946 = vrcp.pop %v3939
    %v3947 = vrcp.pop %v3942
    %v3948 = vrcp.pop %v3945
    %v3949 = vmul.f32 %v3932, %v3946
    %v3950 = vmul.f32 %v3934, %v3947
    %v3951 = vmul.f32 %v3936, %v3948
    %v3952 = vmul.f32 %v3817, %v339
    %v3953 = vmul.f32 %v3820, %v339
    %v3954 = vmul.f32 %v3825, %v339
    %v3955 = vmul.f32 %v3768, %v343
    %v3956 = vmul.f32 %v3772, %v343
    %v3957 = vmul.f32 %v3778, %v343
    %3958 = vmatprep.subr.mxu0 0.0
    %3959 = vmatpush1.xpose.msra.mxu0 %v3955
    %3960 = vmatprep.subr.mxu0 0.0
    %3961 = vmatpush1.xpose.msra.mxu0 %v3956
    %3962 = vmatprep.subr.mxu0 0.0
    %3963 = vmatpush1.xpose.msra.mxu0 %v3957
    %3964 = vmatprep.subr.mxu0 0.0
    %3965 = vmatpush1.xpose.msra.mxu0 0.0
    %3966 = vmatprep.subr.mxu0 0.0
    %3967 = vmatpush1.xpose.msra.mxu0 0.0
    %3968 = vmatprep.subr.mxu0 0.0
    %3969 = vmatpush1.xpose.msra.mxu0 0.0
    %3970 = vmatprep.subr.mxu0 0.0
    %3971 = vmatpush1.xpose.msra.mxu0 0.0
    %3972 = vmatprep.subr.mxu0 0.0
    %3973 = vmatpush1.xpose.msra.mxu0 0.0
    %3974 = vmatprep.subr.mxu0 0.0
    %3975 = vmatpush1.xpose.msra.mxu0 0.0
    %3976 = vmatprep.subr.mxu0 0.0
    %3977 = vmatpush1.xpose.msra.mxu0 0.0
    %3978 = vmatprep.subr.mxu0 0.0
    %3979 = vmatpush1.xpose.msra.mxu0 0.0
    %3980 = vmatprep.subr.mxu0 0.0
    %3981 = vmatpush1.xpose.msra.mxu0 0.0
    %3982 = vmatprep.subr.mxu0 0.0
    %3983 = vmatpush1.xpose.msra.mxu0 0.0
    %3984 = vmatprep.subr.mxu0 0.0
    %3985 = vmatpush1.xpose.msra.mxu0 0.0
    %3986 = vmatprep.subr.mxu0 0.0
    %3987 = vmatpush1.xpose.msra.mxu0 0.0
    %3988 = vmatprep.subr.mxu0 0.0
    %3989 = vmatpush1.xpose.msra.mxu0 0.0
    %3990 = vmatprep.subr.mxu0 0.0
    %3991 = vmatpush1.xpose.msra.mxu0 0.0
    %3992 = vmatprep.subr.mxu0 0.0
    %3993 = vmatpush1.xpose.msra.mxu0 0.0
    %3994 = vmatprep.subr.mxu0 0.0
    %3995 = vmatpush1.xpose.msra.mxu0 0.0
    %3996 = vmatprep.subr.mxu0 0.0
    %3997 = vmatpush1.xpose.msra.mxu0 0.0
    %3998 = vmatprep.subr.mxu0 0.0
    %3999 = vmatpush1.xpose.msra.mxu0 0.0
    %4000 = vmatprep.subr.mxu0 0.0
    %4001 = vmatpush1.xpose.msra.mxu0 0.0
    %4002 = vmatprep.subr.mxu0 0.0
    %4003 = vmatpush1.xpose.msra.mxu0 0.0
    %4004 = vmatprep.subr.mxu0 0.0
    %4005 = vmatpush1.xpose.msra.mxu0 0.0
    %4006 = vmatprep.subr.mxu0 0.0
    %4007 = vmatpush1.xpose.msra.mxu0 0.0
    %4008 = vmatprep.subr.mxu0 0.0
    %4009 = vmatpush1.xpose.msra.mxu0 0.0
    %4010 = vmatprep.subr.mxu0 0.0
    %4011 = vmatpush1.xpose.msra.mxu0 0.0
    %4012 = vmatprep.subr.mxu0 0.0
    %4013 = vmatpush1.xpose.msra.mxu0 0.0
    %4014 = vmatprep.subr.mxu0 0.0
    %4015 = vmatpush1.xpose.msra.mxu0 0.0
    %4016 = vmatprep.subr.mxu0 0.0
    %4017 = vmatpush1.xpose.msra.mxu0 0.0
    %4018 = vmatprep.subr.mxu0 0.0
    %4019 = vmatpush1.xpose.msra.mxu0 0.0
    %4020 = vmatprep.subr.mxu0 0.0
    %4021 = vmatpush1.xpose.msra.mxu0 0.0
    %4022 = vmatprep.mubr.f32.mxu0 0.0
    %4023 = vmatmul.mubr.f32.gmra.mrb[0].mxu0 %v3766
    %v4024 = vpop.f32.mrb[0].mxu0
    %v4025 = vadd.f32 0.0, %v4024
    %v4026 = vpop.f32.mrb[0].mxu0
    %4027 = vmatprep.mubr.f32.mxu0 0.0
    %4028 = vmatmul.mubr.f32.gmra.mrb[0].mxu0 %v3770
    %v4029 = vpop.f32.mrb[0].mxu0
    %v4030 = vadd.f32 0.0, %v4029
    %v4031 = vpop.f32.mrb[0].mxu0
    %4032 = vmatprep.mubr.f32.mxu0 0.0
    %4033 = vmatmul.mubr.f32.gmra.mrb[0].mxu0 %v3776
    %v4034 = vpop.f32.mrb[0].mxu0
    %v4035 = vadd.f32 0.0, %v4034
    %v4036 = vpop.f32.mrb[0].mxu0
    %4037 = vdwg.mxu0
    %v4038 = vmul.f32 %v4025, 0.17677669
    %v4039 = vmul.f32 %v4030, 0.17677669
    %v4040 = vmul.f32 %v4035, 0.17677669
    %v4041 = vadd.f32 %v4038, %v416
    %v4042 = vadd.f32 %v4039, %v417
    %v4043 = vadd.f32 %v4040, %v418
    %v4044 = vsel %vm789, %v4041, -inf
    %4045 = vmax.xlane.f32.xlu0 %v4044
    %v4046 = vpop.xlane.xlu0 %4045
    %v4047 = vsel %vm789, %v4042, -inf
    %4048 = vmax.xlane.f32.xlu0 %v4047
    %v4049 = vpop.xlane.xlu0 %4048
    %v4050 = vsel %vm796, %v4043, -inf
    %4051 = vmax.xlane.f32.xlu0 %v4050
    %v4052 = vpop.xlane.xlu0 %4051
    %v4053 = vsub.f32 %v4041, %v4046
    %v4054 = vsub.f32 %v4042, %v4049
    %v4055 = vsub.f32 %v4043, %v4052
    %v4056 = vmul.f32 %v4053, 1.442695
    %v4057 = vpow.pop %v4056
    %v4058 = vmul.f32 %v4054, 1.442695
    %v4059 = vpow.pop %v4058
    %v4060 = vmul.f32 %v4055, 1.442695
    %v4061 = vpow.pop %v4060
    %v4062 = vsel %vm789, %v4057, 0.0
    %4063 = vadd.xlane.f32.xlu0 %v4062
    %v4064 = vpop.xlane.xlu0 %4063
    %v4065 = vsel %vm789, %v4059, 0.0
    %4066 = vadd.xlane.f32.xlu0 %v4065
    %v4067 = vpop.xlane.xlu0 %4066
    %v4068 = vsel %vm796, %v4061, 0.0
    %4069 = vadd.xlane.f32.xlu0 %v4068
    %v4070 = vpop.xlane.xlu0 %4069
    %v4071 = vrcp.pop %v4064
    %v4072 = vrcp.pop %v4067
    %v4073 = vrcp.pop %v4070
    %v4074 = vmul.f32 %v4057, %v4071
    %v4075 = vmul.f32 %v4059, %v4072
    %v4076 = vmul.f32 %v4061, %v4073
    %v4077 = vmul.f32 %v3817, %v343
    %v4078 = vmul.f32 %v3820, %v343
    %v4079 = vmul.f32 %v3825, %v343
    %v4081 = vsel %vm789, %v4074, 0
    %v4084 = vsel %vm789, %v4075, 0
    %v4087 = vsel %vm789, %v4076, 0
    %v4090 = vsel %vm961, %v4079, 0
    %4092 = vmatprep.subr.mxu0 0.0
    %4093 = vmatpush1.msra.mxu0 %v4077
    %4094 = vmatprep.subr.mxu0 0.0
    %4095 = vmatpush1.msra.mxu0 %v4078
    %4096 = vmatprep.subr.mxu0 0.0
    %4097 = vmatpush1.msra.mxu0 %v4090
    %4098 = vmatprep.subr.mxu0 0.0
    %4099 = vmatpush1.msra.mxu0 0.0
    %4100 = vmatprep.subr.mxu0 0.0
    %4101 = vmatpush1.msra.mxu0 0.0
    %4102 = vmatprep.subr.mxu0 0.0
    %4103 = vmatpush1.msra.mxu0 0.0
    %4104 = vmatprep.subr.mxu0 0.0
    %4105 = vmatpush1.msra.mxu0 0.0
    %4106 = vmatprep.subr.mxu0 0.0
    %4107 = vmatpush1.msra.mxu0 0.0
    %4108 = vmatprep.subr.mxu0 0.0
    %4109 = vmatpush1.msra.mxu0 0.0
    %4110 = vmatprep.subr.mxu0 0.0
    %4111 = vmatpush1.msra.mxu0 0.0
    %4112 = vmatprep.subr.mxu0 0.0
    %4113 = vmatpush1.msra.mxu0 0.0
    %4114 = vmatprep.subr.mxu0 0.0
    %4115 = vmatpush1.msra.mxu0 0.0
    %4116 = vmatprep.subr.mxu0 0.0
    %4117 = vmatpush1.msra.mxu0 0.0
    %4118 = vmatprep.subr.mxu0 0.0
    %4119 = vmatpush1.msra.mxu0 0.0
    %4120 = vmatprep.subr.mxu0 0.0
    %4121 = vmatpush1.msra.mxu0 0.0
    %4122 = vmatprep.subr.mxu0 0.0
    %4123 = vmatpush1.msra.mxu0 0.0
    %4124 = vmatprep.subr.mxu0 0.0
    %4125 = vmatpush1.msra.mxu0 0.0
    %4126 = vmatprep.subr.mxu0 0.0
    %4127 = vmatpush1.msra.mxu0 0.0
    %4128 = vmatprep.subr.mxu0 0.0
    %4129 = vmatpush1.msra.mxu0 0.0
    %4130 = vmatprep.subr.mxu0 0.0
    %4131 = vmatpush1.msra.mxu0 0.0
    %4132 = vmatprep.subr.mxu0 0.0
    %4133 = vmatpush1.msra.mxu0 0.0
    %4134 = vmatprep.subr.mxu0 0.0
    %4135 = vmatpush1.msra.mxu0 0.0
    %4136 = vmatprep.subr.mxu0 0.0
    %4137 = vmatpush1.msra.mxu0 0.0
    %4138 = vmatprep.subr.mxu0 0.0
    %4139 = vmatpush1.msra.mxu0 0.0
    %4140 = vmatprep.subr.mxu0 0.0
    %4141 = vmatpush1.msra.mxu0 0.0
    %4142 = vmatprep.subr.mxu0 0.0
    %4143 = vmatpush1.msra.mxu0 0.0
    %4144 = vmatprep.subr.mxu0 0.0
    %4145 = vmatpush1.msra.mxu0 0.0
    %4146 = vmatprep.subr.mxu0 0.0
    %4147 = vmatpush1.msra.mxu0 0.0
    %4148 = vmatprep.subr.mxu0 0.0
    %4149 = vmatpush1.msra.mxu0 0.0
    %4150 = vmatprep.subr.mxu0 0.0
    %4151 = vmatpush1.msra.mxu0 0.0
    %4152 = vmatprep.subr.mxu0 0.0
    %4153 = vmatpush1.msra.mxu0 0.0
    %4154 = vmatprep.subr.mxu0 0.0
    %4155 = vmatpush1.msra.mxu0 0.0
    %4156 = vmatprep.mubr.f32.mxu0 0.0
    %4157 = vmatmul.mubr.f32.gmra.mrb[0].mxu0 %v4081
    %v4158 = vpop.f32.mrb[0].mxu0
    %v4159 = vadd.f32 0.0, %v4158
    %v4160 = vpop.f32.mrb[0].mxu0
    %4161 = vmatprep.mubr.f32.mxu0 0.0
    %4162 = vmatmul.mubr.f32.gmra.mrb[0].mxu0 %v4084
    %v4163 = vpop.f32.mrb[0].mxu0
    %v4164 = vadd.f32 0.0, %v4163
    %v4165 = vpop.f32.mrb[0].mxu0
    %4166 = vmatprep.mubr.f32.mxu0 0.0
    %4167 = vmatmul.mubr.f32.gmra.mrb[0].mxu0 %v4087
    %v4168 = vpop.f32.mrb[0].mxu0
    %v4169 = vadd.f32 0.0, %v4168
    %v4170 = vpop.f32.mrb[0].mxu0
    %4171 = vdwg.mxu0
    %v4173 = vsel %vm789, %v3949, 0
    %v4176 = vsel %vm789, %v3950, 0
    %v4179 = vsel %vm789, %v3951, 0
    %v4182 = vsel %vm961, %v3954, 0
    %4184 = vmatprep.subr.mxu0 0.0
    %4185 = vmatpush1.msra.mxu0 %v3952
    %4186 = vmatprep.subr.mxu0 0.0
    %4187 = vmatpush1.msra.mxu0 %v3953
    %4188 = vmatprep.subr.mxu0 0.0
    %4189 = vmatpush1.msra.mxu0 %v4182
    %4190 = vmatprep.subr.mxu0 0.0
    %4191 = vmatpush1.msra.mxu0 0.0
    %4192 = vmatprep.subr.mxu0 0.0
    %4193 = vmatpush1.msra.mxu0 0.0
    %4194 = vmatprep.subr.mxu0 0.0
    %4195 = vmatpush1.msra.mxu0 0.0
    %4196 = vmatprep.subr.mxu0 0.0
    %4197 = vmatpush1.msra.mxu0 0.0
    %4198 = vmatprep.subr.mxu0 0.0
    %4199 = vmatpush1.msra.mxu0 0.0
    %4200 = vmatprep.subr.mxu0 0.0
    %4201 = vmatpush1.msra.mxu0 0.0
    %4202 = vmatprep.subr.mxu0 0.0
    %4203 = vmatpush1.msra.mxu0 0.0
    %4204 = vmatprep.subr.mxu0 0.0
    %4205 = vmatpush1.msra.mxu0 0.0
    %4206 = vmatprep.subr.mxu0 0.0
    %4207 = vmatpush1.msra.mxu0 0.0
    %4208 = vmatprep.subr.mxu0 0.0
    %4209 = vmatpush1.msra.mxu0 0.0
    %4210 = vmatprep.subr.mxu0 0.0
    %4211 = vmatpush1.msra.mxu0 0.0
    %4212 = vmatprep.subr.mxu0 0.0
    %4213 = vmatpush1.msra.mxu0 0.0
    %4214 = vmatprep.subr.mxu0 0.0
    %4215 = vmatpush1.msra.mxu0 0.0
    %4216 = vmatprep.subr.mxu0 0.0
    %4217 = vmatpush1.msra.mxu0 0.0
    %4218 = vmatprep.subr.mxu0 0.0
    %4219 = vmatpush1.msra.mxu0 0.0
    %4220 = vmatprep.subr.mxu0 0.0
    %4221 = vmatpush1.msra.mxu0 0.0
    %4222 = vmatprep.subr.mxu0 0.0
    %4223 = vmatpush1.msra.mxu0 0.0
    %4224 = vmatprep.subr.mxu0 0.0
    %4225 = vmatpush1.msra.mxu0 0.0
    %4226 = vmatprep.subr.mxu0 0.0
    %4227 = vmatpush1.msra.mxu0 0.0
    %4228 = vmatprep.subr.mxu0 0.0
    %4229 = vmatpush1.msra.mxu0 0.0
    %4230 = vmatprep.subr.mxu0 0.0
    %4231 = vmatpush1.msra.mxu0 0.0
    %4232 = vmatprep.subr.mxu0 0.0
    %4233 = vmatpush1.msra.mxu0 0.0
    %4234 = vmatprep.subr.mxu0 0.0
    %4235 = vmatpush1.msra.mxu0 0.0
    %4236 = vmatprep.subr.mxu0 0.0
    %4237 = vmatpush1.msra.mxu0 0.0
    %4238 = vmatprep.subr.mxu0 0.0
    %4239 = vmatpush1.msra.mxu0 0.0
    %4240 = vmatprep.subr.mxu0 0.0
    %4241 = vmatpush1.msra.mxu0 0.0
    %4242 = vmatprep.subr.mxu0 0.0
    %4243 = vmatpush1.msra.mxu0 0.0
    %4244 = vmatprep.subr.mxu0 0.0
    %4245 = vmatpush1.msra.mxu0 0.0
    %4246 = vmatprep.subr.mxu0 0.0
    %4247 = vmatpush1.msra.mxu0 0.0
    %4248 = vmatprep.mubr.f32.mxu0 0.0
    %4249 = vmatmul.mubr.f32.gmra.mrb[0].mxu0 %v4173
    %v4250 = vpop.f32.mrb[0].mxu0
    %v4251 = vadd.f32 %v4159, %v4250
    %v4252 = vpop.f32.mrb[0].mxu0
    %4253 = vmatprep.mubr.f32.mxu0 0.0
    %4254 = vmatmul.mubr.f32.gmra.mrb[0].mxu0 %v4176
    %v4255 = vpop.f32.mrb[0].mxu0
    %v4256 = vadd.f32 %v4164, %v4255
    %v4257 = vpop.f32.mrb[0].mxu0
    %4258 = vmatprep.mubr.f32.mxu0 0.0
    %4259 = vmatmul.mubr.f32.gmra.mrb[0].mxu0 %v4179
    %v4260 = vpop.f32.mrb[0].mxu0
    %v4261 = vadd.f32 %v4169, %v4260
    %v4262 = vpop.f32.mrb[0].mxu0
    %4263 = vdwg.mxu0
    %v4264 = vmul.f32 %v3768, %v347
    %v4265 = vmul.f32 %v3772, %v347
    %v4266 = vmul.f32 %v3778, %v347
    %4267 = vmatprep.subr.mxu0 0.0
    %4268 = vmatpush1.xpose.msra.mxu0 %v4264
    %4269 = vmatprep.subr.mxu0 0.0
    %4270 = vmatpush1.xpose.msra.mxu0 %v4265
    %4271 = vmatprep.subr.mxu0 0.0
    %4272 = vmatpush1.xpose.msra.mxu0 %v4266
    %4273 = vmatprep.subr.mxu0 0.0
    %4274 = vmatpush1.xpose.msra.mxu0 0.0
    %4275 = vmatprep.subr.mxu0 0.0
    %4276 = vmatpush1.xpose.msra.mxu0 0.0
    %4277 = vmatprep.subr.mxu0 0.0
    %4278 = vmatpush1.xpose.msra.mxu0 0.0
    %4279 = vmatprep.subr.mxu0 0.0
    %4280 = vmatpush1.xpose.msra.mxu0 0.0
    %4281 = vmatprep.subr.mxu0 0.0
    %4282 = vmatpush1.xpose.msra.mxu0 0.0
    %4283 = vmatprep.subr.mxu0 0.0
    %4284 = vmatpush1.xpose.msra.mxu0 0.0
    %4285 = vmatprep.subr.mxu0 0.0
    %4286 = vmatpush1.xpose.msra.mxu0 0.0
    %4287 = vmatprep.subr.mxu0 0.0
    %4288 = vmatpush1.xpose.msra.mxu0 0.0
    %4289 = vmatprep.subr.mxu0 0.0
    %4290 = vmatpush1.xpose.msra.mxu0 0.0
    %4291 = vmatprep.subr.mxu0 0.0
    %4292 = vmatpush1.xpose.msra.mxu0 0.0
    %4293 = vmatprep.subr.mxu0 0.0
    %4294 = vmatpush1.xpose.msra.mxu0 0.0
    %4295 = vmatprep.subr.mxu0 0.0
    %4296 = vmatpush1.xpose.msra.mxu0 0.0
    %4297 = vmatprep.subr.mxu0 0.0
    %4298 = vmatpush1.xpose.msra.mxu0 0.0
    %4299 = vmatprep.subr.mxu0 0.0
    %4300 = vmatpush1.xpose.msra.mxu0 0.0
    %4301 = vmatprep.subr.mxu0 0.0
    %4302 = vmatpush1.xpose.msra.mxu0 0.0
    %4303 = vmatprep.subr.mxu0 0.0
    %4304 = vmatpush1.xpose.msra.mxu0 0.0
    %4305 = vmatprep.subr.mxu0 0.0
    %4306 = vmatpush1.xpose.msra.mxu0 0.0
    %4307 = vmatprep.subr.mxu0 0.0
    %4308 = vmatpush1.xpose.msra.mxu0 0.0
    %4309 = vmatprep.subr.mxu0 0.0
    %4310 = vmatpush1.xpose.msra.mxu0 0.0
    %4311 = vmatprep.subr.mxu0 0.0
    %4312 = vmatpush1.xpose.msra.mxu0 0.0
    %4313 = vmatprep.subr.mxu0 0.0
    %4314 = vmatpush1.xpose.msra.mxu0 0.0
    %4315 = vmatprep.subr.mxu0 0.0
    %4316 = vmatpush1.xpose.msra.mxu0 0.0
    %4317 = vmatprep.subr.mxu0 0.0
    %4318 = vmatpush1.xpose.msra.mxu0 0.0
    %4319 = vmatprep.subr.mxu0 0.0
    %4320 = vmatpush1.xpose.msra.mxu0 0.0
    %4321 = vmatprep.subr.mxu0 0.0
    %4322 = vmatpush1.xpose.msra.mxu0 0.0
    %4323 = vmatprep.subr.mxu0 0.0
    %4324 = vmatpush1.xpose.msra.mxu0 0.0
    %4325 = vmatprep.subr.mxu0 0.0
    %4326 = vmatpush1.xpose.msra.mxu0 0.0
    %4327 = vmatprep.subr.mxu0 0.0
    %4328 = vmatpush1.xpose.msra.mxu0 0.0
    %4329 = vmatprep.subr.mxu0 0.0
    %4330 = vmatpush1.xpose.msra.mxu0 0.0
    %4331 = vmatprep.mubr.f32.mxu0 0.0
    %4332 = vmatmul.mubr.f32.gmra.mrb[0].mxu0 %v3766
    %v4333 = vpop.f32.mrb[0].mxu0
    %v4334 = vadd.f32 0.0, %v4333
    %v4335 = vpop.f32.mrb[0].mxu0
    %4336 = vmatprep.mubr.f32.mxu0 0.0
    %4337 = vmatmul.mubr.f32.gmra.mrb[0].mxu0 %v3770
    %v4338 = vpop.f32.mrb[0].mxu0
    %v4339 = vadd.f32 0.0, %v4338
    %v4340 = vpop.f32.mrb[0].mxu0
    %4341 = vmatprep.mubr.f32.mxu0 0.0
    %4342 = vmatmul.mubr.f32.gmra.mrb[0].mxu0 %v3776
    %v4343 = vpop.f32.mrb[0].mxu0
    %v4344 = vadd.f32 0.0, %v4343
    %v4345 = vpop.f32.mrb[0].mxu0
    %4346 = vdwg.mxu0
    %v4347 = vmul.f32 %v4334, 0.17677669
    %v4348 = vmul.f32 %v4339, 0.17677669
    %v4349 = vmul.f32 %v4344, 0.17677669
    %v4350 = vadd.f32 %v4347, %v416
    %v4351 = vadd.f32 %v4348, %v417
    %v4352 = vadd.f32 %v4349, %v418
    %v4353 = vsel %vm789, %v4350, -inf
    %4354 = vmax.xlane.f32.xlu0 %v4353
    %v4355 = vpop.xlane.xlu0 %4354
    %v4356 = vsel %vm789, %v4351, -inf
    %4357 = vmax.xlane.f32.xlu0 %v4356
    %v4358 = vpop.xlane.xlu0 %4357
    %v4359 = vsel %vm796, %v4352, -inf
    %4360 = vmax.xlane.f32.xlu0 %v4359
    %v4361 = vpop.xlane.xlu0 %4360
    %v4362 = vsub.f32 %v4350, %v4355
    %v4363 = vsub.f32 %v4351, %v4358
    %v4364 = vsub.f32 %v4352, %v4361
    %v4365 = vmul.f32 %v4362, 1.442695
    %v4366 = vpow.pop %v4365
    %v4367 = vmul.f32 %v4363, 1.442695
    %v4368 = vpow.pop %v4367
    %v4369 = vmul.f32 %v4364, 1.442695
    %v4370 = vpow.pop %v4369
    %v4371 = vsel %vm789, %v4366, 0.0
    %4372 = vadd.xlane.f32.xlu0 %v4371
    %v4373 = vpop.xlane.xlu0 %4372
    %v4374 = vsel %vm789, %v4368, 0.0
    %4375 = vadd.xlane.f32.xlu0 %v4374
    %v4376 = vpop.xlane.xlu0 %4375
    %v4377 = vsel %vm796, %v4370, 0.0
    %4378 = vadd.xlane.f32.xlu0 %v4377
    %v4379 = vpop.xlane.xlu0 %4378
    %v4380 = vrcp.pop %v4373
    %v4381 = vrcp.pop %v4376
    %v4382 = vrcp.pop %v4379
    %v4383 = vmul.f32 %v4366, %v4380
    %v4384 = vmul.f32 %v4368, %v4381
    %v4385 = vmul.f32 %v4370, %v4382
    %v4386 = vmul.f32 %v3817, %v347
    %v4387 = vmul.f32 %v3820, %v347
    %v4388 = vmul.f32 %v3825, %v347
    %v4390 = vsel %vm789, %v4383, 0
    %v4393 = vsel %vm789, %v4384, 0
    %v4396 = vsel %vm789, %v4385, 0
    %v4399 = vsel %vm961, %v4388, 0
    %4401 = vmatprep.subr.mxu0 0.0
    %4402 = vmatpush1.msra.mxu0 %v4386
    %4403 = vmatprep.subr.mxu0 0.0
    %4404 = vmatpush1.msra.mxu0 %v4387
    %4405 = vmatprep.subr.mxu0 0.0
    %4406 = vmatpush1.msra.mxu0 %v4399
    %4407 = vmatprep.subr.mxu0 0.0
    %4408 = vmatpush1.msra.mxu0 0.0
    %4409 = vmatprep.subr.mxu0 0.0
    %4410 = vmatpush1.msra.mxu0 0.0
    %4411 = vmatprep.subr.mxu0 0.0
    %4412 = vmatpush1.msra.mxu0 0.0
    %4413 = vmatprep.subr.mxu0 0.0
    %4414 = vmatpush1.msra.mxu0 0.0
    %4415 = vmatprep.subr.mxu0 0.0
    %4416 = vmatpush1.msra.mxu0 0.0
    %4417 = vmatprep.subr.mxu0 0.0
    %4418 = vmatpush1.msra.mxu0 0.0
    %4419 = vmatprep.subr.mxu0 0.0
    %4420 = vmatpush1.msra.mxu0 0.0
    %4421 = vmatprep.subr.mxu0 0.0
    %4422 = vmatpush1.msra.mxu0 0.0
    %4423 = vmatprep.subr.mxu0 0.0
    %4424 = vmatpush1.msra.mxu0 0.0
    %4425 = vmatprep.subr.mxu0 0.0
    %4426 = vmatpush1.msra.mxu0 0.0
    %4427 = vmatprep.subr.mxu0 0.0
    %4428 = vmatpush1.msra.mxu0 0.0
    %4429 = vmatprep.subr.mxu0 0.0
    %4430 = vmatpush1.msra.mxu0 0.0
    %4431 = vmatprep.subr.mxu0 0.0
    %4432 = vmatpush1.msra.mxu0 0.0
    %4433 = vmatprep.subr.mxu0 0.0
    %4434 = vmatpush1.msra.mxu0 0.0
    %4435 = vmatprep.subr.mxu0 0.0
    %4436 = vmatpush1.msra.mxu0 0.0
    %4437 = vmatprep.subr.mxu0 0.0
    %4438 = vmatpush1.msra.mxu0 0.0
    %4439 = vmatprep.subr.mxu0 0.0
    %4440 = vmatpush1.msra.mxu0 0.0
    %4441 = vmatprep.subr.mxu0 0.0
    %4442 = vmatpush1.msra.mxu0 0.0
    %4443 = vmatprep.subr.mxu0 0.0
    %4444 = vmatpush1.msra.mxu0 0.0
    %4445 = vmatprep.subr.mxu0 0.0
    %4446 = vmatpush1.msra.mxu0 0.0
    %4447 = vmatprep.subr.mxu0 0.0
    %4448 = vmatpush1.msra.mxu0 0.0
    %4449 = vmatprep.subr.mxu0 0.0
    %4450 = vmatpush1.msra.mxu0 0.0
    %4451 = vmatprep.subr.mxu0 0.0
    %4452 = vmatpush1.msra.mxu0 0.0
    %4453 = vmatprep.subr.mxu0 0.0
    %4454 = vmatpush1.msra.mxu0 0.0
    %4455 = vmatprep.subr.mxu0 0.0
    %4456 = vmatpush1.msra.mxu0 0.0
    %4457 = vmatprep.subr.mxu0 0.0
    %4458 = vmatpush1.msra.mxu0 0.0
    %4459 = vmatprep.subr.mxu0 0.0
    %4460 = vmatpush1.msra.mxu0 0.0
    %4461 = vmatprep.subr.mxu0 0.0
    %4462 = vmatpush1.msra.mxu0 0.0
    %4463 = vmatprep.subr.mxu0 0.0
    %4464 = vmatpush1.msra.mxu0 0.0
    %4465 = vmatprep.mubr.f32.mxu0 0.0
    %4466 = vmatmul.mubr.f32.gmra.mrb[0].mxu0 %v4390
    %v4467 = vpop.f32.mrb[0].mxu0
    %v4468 = vadd.f32 0.0, %v4467
    %v4469 = vpop.f32.mrb[0].mxu0
    %4470 = vmatprep.mubr.f32.mxu0 0.0
    %4471 = vmatmul.mubr.f32.gmra.mrb[0].mxu0 %v4393
    %v4472 = vpop.f32.mrb[0].mxu0
    %v4473 = vadd.f32 0.0, %v4472
    %v4474 = vpop.f32.mrb[0].mxu0
    %4475 = vmatprep.mubr.f32.mxu0 0.0
    %4476 = vmatmul.mubr.f32.gmra.mrb[0].mxu0 %v4396
    %v4477 = vpop.f32.mrb[0].mxu0
    %v4478 = vadd.f32 0.0, %v4477
    %v4479 = vpop.f32.mrb[0].mxu0
    %4480 = vdwg.mxu0
    %v4481 = vadd.f32 %v4251, %v4468
    %v4482 = vadd.f32 %v4256, %v4473
    %v4483 = vadd.f32 %v4261, %v4478
    %v4484 = vmul.f32 %v3768, %v351
    %v4485 = vmul.f32 %v3772, %v351
    %v4486 = vmul.f32 %v3778, %v351
    %4487 = vmatprep.subr.mxu0 0.0
    %4488 = vmatpush1.xpose.msra.mxu0 %v4484
    %4489 = vmatprep.subr.mxu0 0.0
    %4490 = vmatpush1.xpose.msra.mxu0 %v4485
    %4491 = vmatprep.subr.mxu0 0.0
    %4492 = vmatpush1.xpose.msra.mxu0 %v4486
    %4493 = vmatprep.subr.mxu0 0.0
    %4494 = vmatpush1.xpose.msra.mxu0 0.0
    %4495 = vmatprep.subr.mxu0 0.0
    %4496 = vmatpush1.xpose.msra.mxu0 0.0
    %4497 = vmatprep.subr.mxu0 0.0
    %4498 = vmatpush1.xpose.msra.mxu0 0.0
    %4499 = vmatprep.subr.mxu0 0.0
    %4500 = vmatpush1.xpose.msra.mxu0 0.0
    %4501 = vmatprep.subr.mxu0 0.0
    %4502 = vmatpush1.xpose.msra.mxu0 0.0
    %4503 = vmatprep.subr.mxu0 0.0
    %4504 = vmatpush1.xpose.msra.mxu0 0.0
    %4505 = vmatprep.subr.mxu0 0.0
    %4506 = vmatpush1.xpose.msra.mxu0 0.0
    %4507 = vmatprep.subr.mxu0 0.0
    %4508 = vmatpush1.xpose.msra.mxu0 0.0
    %4509 = vmatprep.subr.mxu0 0.0
    %4510 = vmatpush1.xpose.msra.mxu0 0.0
    %4511 = vmatprep.subr.mxu0 0.0
    %4512 = vmatpush1.xpose.msra.mxu0 0.0
    %4513 = vmatprep.subr.mxu0 0.0
    %4514 = vmatpush1.xpose.msra.mxu0 0.0
    %4515 = vmatprep.subr.mxu0 0.0
    %4516 = vmatpush1.xpose.msra.mxu0 0.0
    %4517 = vmatprep.subr.mxu0 0.0
    %4518 = vmatpush1.xpose.msra.mxu0 0.0
    %4519 = vmatprep.subr.mxu0 0.0
    %4520 = vmatpush1.xpose.msra.mxu0 0.0
    %4521 = vmatprep.subr.mxu0 0.0
    %4522 = vmatpush1.xpose.msra.mxu0 0.0
    %4523 = vmatprep.subr.mxu0 0.0
    %4524 = vmatpush1.xpose.msra.mxu0 0.0
    %4525 = vmatprep.subr.mxu0 0.0
    %4526 = vmatpush1.xpose.msra.mxu0 0.0
    %4527 = vmatprep.subr.mxu0 0.0
    %4528 = vmatpush1.xpose.msra.mxu0 0.0
    %4529 = vmatprep.subr.mxu0 0.0
    %4530 = vmatpush1.xpose.msra.mxu0 0.0
    %4531 = vmatprep.subr.mxu0 0.0
    %4532 = vmatpush1.xpose.msra.mxu0 0.0
    %4533 = vmatprep.subr.mxu0 0.0
    %4534 = vmatpush1.xpose.msra.mxu0 0.0
    %4535 = vmatprep.subr.mxu0 0.0
    %4536 = vmatpush1.xpose.msra.mxu0 0.0
    %4537 = vmatprep.subr.mxu0 0.0
    %4538 = vmatpush1.xpose.msra.mxu0 0.0
    %4539 = vmatprep.subr.mxu0 0.0
    %4540 = vmatpush1.xpose.msra.mxu0 0.0
    %4541 = vmatprep.subr.mxu0 0.0
    %4542 = vmatpush1.xpose.msra.mxu0 0.0
    %4543 = vmatprep.subr.mxu0 0.0
    %4544 = vmatpush1.xpose.msra.mxu0 0.0
    %4545 = vmatprep.subr.mxu0 0.0
    %4546 = vmatpush1.xpose.msra.mxu0 0.0
    %4547 = vmatprep.subr.mxu0 0.0
    %4548 = vmatpush1.xpose.msra.mxu0 0.0
    %4549 = vmatprep.subr.mxu0 0.0
    %4550 = vmatpush1.xpose.msra.mxu0 0.0
    %4551 = vmatprep.mubr.f32.mxu0 0.0
    %4552 = vmatmul.mubr.f32.gmra.mrb[0].mxu0 %v3766
    %v4553 = vpop.f32.mrb[0].mxu0
    %v4554 = vadd.f32 0.0, %v4553
    %v4555 = vpop.f32.mrb[0].mxu0
    %4556 = vmatprep.mubr.f32.mxu0 0.0
    %4557 = vmatmul.mubr.f32.gmra.mrb[0].mxu0 %v3770
    %v4558 = vpop.f32.mrb[0].mxu0
    %v4559 = vadd.f32 0.0, %v4558
    %v4560 = vpop.f32.mrb[0].mxu0
    %4561 = vmatprep.mubr.f32.mxu0 0.0
    %4562 = vmatmul.mubr.f32.gmra.mrb[0].mxu0 %v3776
    %v4563 = vpop.f32.mrb[0].mxu0
    %v4564 = vadd.f32 0.0, %v4563
    %v4565 = vpop.f32.mrb[0].mxu0
    %4566 = vdwg.mxu0
    %v4567 = vmul.f32 %v4554, 0.17677669
    %v4568 = vmul.f32 %v4559, 0.17677669
    %v4569 = vmul.f32 %v4564, 0.17677669
    %v4570 = vadd.f32 %v4567, %v416
    %v4571 = vadd.f32 %v4568, %v417
    %v4572 = vadd.f32 %v4569, %v418
    %v4573 = vsel %vm789, %v4570, -inf
    %4574 = vmax.xlane.f32.xlu0 %v4573
    %v4575 = vpop.xlane.xlu0 %4574
    %v4576 = vsel %vm789, %v4571, -inf
    %4577 = vmax.xlane.f32.xlu0 %v4576
    %v4578 = vpop.xlane.xlu0 %4577
    %v4579 = vsel %vm796, %v4572, -inf
    %4580 = vmax.xlane.f32.xlu0 %v4579
    %v4581 = vpop.xlane.xlu0 %4580
    %v4582 = vsub.f32 %v4570, %v4575
    %v4583 = vsub.f32 %v4571, %v4578
    %v4584 = vsub.f32 %v4572, %v4581
    %v4585 = vmul.f32 %v4582, 1.442695
    %v4586 = vpow.pop %v4585
    %v4587 = vmul.f32 %v4583, 1.442695
    %v4588 = vpow.pop %v4587
    %v4589 = vmul.f32 %v4584, 1.442695
    %v4590 = vpow.pop %v4589
    %v4591 = vsel %vm789, %v4586, 0.0
    %4592 = vadd.xlane.f32.xlu0 %v4591
    %v4593 = vpop.xlane.xlu0 %4592
    %v4594 = vsel %vm789, %v4588, 0.0
    %4595 = vadd.xlane.f32.xlu0 %v4594
    %v4596 = vpop.xlane.xlu0 %4595
    %v4597 = vsel %vm796, %v4590, 0.0
    %4598 = vadd.xlane.f32.xlu0 %v4597
    %v4599 = vpop.xlane.xlu0 %4598
    %v4600 = vrcp.pop %v4593
    %v4601 = vrcp.pop %v4596
    %v4602 = vrcp.pop %v4599
    %v4603 = vmul.f32 %v4586, %v4600
    %v4604 = vmul.f32 %v4588, %v4601
    %v4605 = vmul.f32 %v4590, %v4602
    %v4606 = vmul.f32 %v3817, %v351
    %v4607 = vmul.f32 %v3820, %v351
    %v4608 = vmul.f32 %v3825, %v351
    %v4610 = vsel %vm789, %v4603, 0
    %v4613 = vsel %vm789, %v4604, 0
    %v4616 = vsel %vm789, %v4605, 0
    %v4619 = vsel %vm961, %v4608, 0
    %4621 = vmatprep.subr.mxu0 0.0
    %4622 = vmatpush1.msra.mxu0 %v4606
    %4623 = vmatprep.subr.mxu0 0.0
    %4624 = vmatpush1.msra.mxu0 %v4607
    %4625 = vmatprep.subr.mxu0 0.0
    %4626 = vmatpush1.msra.mxu0 %v4619
    %4627 = vmatprep.subr.mxu0 0.0
    %4628 = vmatpush1.msra.mxu0 0.0
    %4629 = vmatprep.subr.mxu0 0.0
    %4630 = vmatpush1.msra.mxu0 0.0
    %4631 = vmatprep.subr.mxu0 0.0
    %4632 = vmatpush1.msra.mxu0 0.0
    %4633 = vmatprep.subr.mxu0 0.0
    %4634 = vmatpush1.msra.mxu0 0.0
    %4635 = vmatprep.subr.mxu0 0.0
    %4636 = vmatpush1.msra.mxu0 0.0
    %4637 = vmatprep.subr.mxu0 0.0
    %4638 = vmatpush1.msra.mxu0 0.0
    %4639 = vmatprep.subr.mxu0 0.0
    %4640 = vmatpush1.msra.mxu0 0.0
    %4641 = vmatprep.subr.mxu0 0.0
    %4642 = vmatpush1.msra.mxu0 0.0
    %4643 = vmatprep.subr.mxu0 0.0
    %4644 = vmatpush1.msra.mxu0 0.0
    %4645 = vmatprep.subr.mxu0 0.0
    %4646 = vmatpush1.msra.mxu0 0.0
    %4647 = vmatprep.subr.mxu0 0.0
    %4648 = vmatpush1.msra.mxu0 0.0
    %4649 = vmatprep.subr.mxu0 0.0
    %4650 = vmatpush1.msra.mxu0 0.0
    %4651 = vmatprep.subr.mxu0 0.0
    %4652 = vmatpush1.msra.mxu0 0.0
    %4653 = vmatprep.subr.mxu0 0.0
    %4654 = vmatpush1.msra.mxu0 0.0
    %4655 = vmatprep.subr.mxu0 0.0
    %4656 = vmatpush1.msra.mxu0 0.0
    %4657 = vmatprep.subr.mxu0 0.0
    %4658 = vmatpush1.msra.mxu0 0.0
    %4659 = vmatprep.subr.mxu0 0.0
    %4660 = vmatpush1.msra.mxu0 0.0
    %4661 = vmatprep.subr.mxu0 0.0
    %4662 = vmatpush1.msra.mxu0 0.0
    %4663 = vmatprep.subr.mxu0 0.0
    %4664 = vmatpush1.msra.mxu0 0.0
    %4665 = vmatprep.subr.mxu0 0.0
    %4666 = vmatpush1.msra.mxu0 0.0
    %4667 = vmatprep.subr.mxu0 0.0
    %4668 = vmatpush1.msra.mxu0 0.0
    %4669 = vmatprep.subr.mxu0 0.0
    %4670 = vmatpush1.msra.mxu0 0.0
    %4671 = vmatprep.subr.mxu0 0.0
    %4672 = vmatpush1.msra.mxu0 0.0
    %4673 = vmatprep.subr.mxu0 0.0
    %4674 = vmatpush1.msra.mxu0 0.0
    %4675 = vmatprep.subr.mxu0 0.0
    %4676 = vmatpush1.msra.mxu0 0.0
    %4677 = vmatprep.subr.mxu0 0.0
    %4678 = vmatpush1.msra.mxu0 0.0
    %4679 = vmatprep.subr.mxu0 0.0
    %4680 = vmatpush1.msra.mxu0 0.0
    %4681 = vmatprep.subr.mxu0 0.0
    %4682 = vmatpush1.msra.mxu0 0.0
    %4683 = vmatprep.subr.mxu0 0.0
    %4684 = vmatpush1.msra.mxu0 0.0
    %4685 = vmatprep.mubr.f32.mxu0 0.0
    %4686 = vmatmul.mubr.f32.gmra.mrb[0].mxu0 %v4610
    %v4687 = vpop.f32.mrb[0].mxu0
    %v4688 = vadd.f32 0.0, %v4687
    %v4689 = vpop.f32.mrb[0].mxu0
    %4690 = vmatprep.mubr.f32.mxu0 0.0
    %4691 = vmatmul.mubr.f32.gmra.mrb[0].mxu0 %v4613
    %v4692 = vpop.f32.mrb[0].mxu0
    %v4693 = vadd.f32 0.0, %v4692
    %v4694 = vpop.f32.mrb[0].mxu0
    %4695 = vmatprep.mubr.f32.mxu0 0.0
    %4696 = vmatmul.mubr.f32.gmra.mrb[0].mxu0 %v4616
    %v4697 = vpop.f32.mrb[0].mxu0
    %v4698 = vadd.f32 0.0, %v4697
    %v4699 = vpop.f32.mrb[0].mxu0
    %4700 = vdwg.mxu0
    %v4701 = vadd.f32 %v4481, %v4688
    %v4702 = vadd.f32 %v4482, %v4693
    %v4703 = vadd.f32 %v4483, %v4698
    %s4704 = scalar_lea.vmem %s3, 64
    %v4705 = vld [vmem:[%s4704] sm:$0xf]
    %v4706 = vld [vmem:[%s4704 + $0x4] sm:$0xf]
    %v4707 = vld [vmem:[%s4704 + $0x8] sm:$0xf]
    %v4708 = vld [vmem:[%s4704 + $0xc] sm:$0xf]
    %v4709 = vld [vmem:[%s4704 + $0x10] sm:$0xf]
    %v4710 = vld [vmem:[%s4704 + $0x14] sm:$0xf]
    %v4711 = vld [vmem:[%s4704 + $0x18] sm:$0xf]
    %v4712 = vld [vmem:[%s4704 + $0x1c] sm:$0xf]
    %v4713 = vld [vmem:[%s4704 + $0x20] sm:$0xf]
    %v4714 = vld [vmem:[%s4704 + $0x24] sm:$0xf]
    %v4715 = vld [vmem:[%s4704 + $0x28] sm:$0xf]
    %v4716 = vld [vmem:[%s4704 + $0x2c] sm:$0xf]
    %v4717 = vld [vmem:[%s4704 + $0x30] sm:$0xf]
    %v4718 = vld [vmem:[%s4704 + $0x34] sm:$0xf]
    %v4719 = vld [vmem:[%s4704 + $0x38] sm:$0xf]
    %v4720 = vld [vmem:[%s4704 + $0x3c] sm:$0xf]
    %s4721 = scalar_lea.vmem %s4, 1
    %v4722 = vld [vmem:[%s4721] sm:$0x1]
    %v4723 = vpack.c.bf16 %v4702, %v4701
    %v4724 = vpack.c.bf16 %v4703, %v4703
    %v4726 = vlaneseq
    %v4727 = vshrl.u32 %v4726, 7
    %v4728 = vsub.s32 0, %v4727
    %v4729 = vrot.slane %v4722, %v4728
    %v4747 = vunpack.c.l.b16 %v4705
    %v4748 = vunpack.c.l.b16 %v4706
    %v4749 = vunpack.c.l.b16 %v4707
    %v4750 = vunpack.c.l.b16 %v4708
    %v4751 = vunpack.c.l.b16 %v4709
    %v4752 = vunpack.c.l.b16 %v4710
    %v4753 = vunpack.c.l.b16 %v4711
    %v4754 = vunpack.c.l.b16 %v4712
    %v4755 = vunpack.c.l.b16 %v4713
    %v4756 = vunpack.c.l.b16 %v4714
    %v4757 = vunpack.c.l.b16 %v4715
    %v4758 = vunpack.c.l.b16 %v4716
    %v4759 = vunpack.c.l.b16 %v4717
    %v4760 = vunpack.c.l.b16 %v4718
    %v4761 = vunpack.c.l.b16 %v4719
    %v4762 = vunpack.c.l.b16 %v4720
    %v4763 = vpack.c.b16 %v4748, %v4747
    %v4764 = vpack.c.b16 %v4750, %v4749
    %v4765 = vpack.c.b16 %v4752, %v4751
    %v4766 = vpack.c.b16 %v4754, %v4753
    %v4767 = vpack.c.b16 %v4756, %v4755
    %v4768 = vpack.c.b16 %v4758, %v4757
    %v4769 = vpack.c.b16 %v4760, %v4759
    %v4770 = vpack.c.b16 %v4762, %v4761
    %4779 = vmatprep.subr.bf16.mxu0 0
    %4780 = vmatpush1.bf16.msra.mxu0 %v4763
    %4781 = vmatprep.subr.bf16.mxu0 0
    %4782 = vmatpush1.bf16.msra.mxu0 %v4764
    %4783 = vmatprep.subr.bf16.mxu0 0
    %4784 = vmatpush1.bf16.msra.mxu0 %v4765
    %4785 = vmatprep.subr.bf16.mxu0 0
    %4786 = vmatpush1.bf16.msra.mxu0 %v4766
    %4787 = vmatprep.subr.bf16.mxu0 0
    %4788 = vmatpush1.bf16.msra.mxu0 %v4767
    %4789 = vmatprep.subr.bf16.mxu0 0
    %4790 = vmatpush1.bf16.msra.mxu0 %v4768
    %4791 = vmatprep.subr.bf16.mxu0 0
    %4792 = vmatpush1.bf16.msra.mxu0 %v4769
    %4793 = vmatprep.subr.bf16.mxu0 0
    %4794 = vmatpush1.bf16.msra.mxu0 %v4770
    %4795 = vmatprep.subr.bf16.mxu0 0
    %4796 = vmatpush1.bf16.msra.mxu0 0
    %4797 = vmatprep.subr.bf16.mxu0 0
    %4798 = vmatpush1.bf16.msra.mxu0 0
    %4799 = vmatprep.subr.bf16.mxu0 0
    %4800 = vmatpush1.bf16.msra.mxu0 0
    %4801 = vmatprep.subr.bf16.mxu0 0
    %4802 = vmatpush1.bf16.msra.mxu0 0
    %4803 = vmatprep.subr.bf16.mxu0 0
    %4804 = vmatpush1.bf16.msra.mxu0 0
    %4805 = vmatprep.subr.bf16.mxu0 0
    %4806 = vmatpush1.bf16.msra.mxu0 0
    %4807 = vmatprep.subr.bf16.mxu0 0
    %4808 = vmatpush1.bf16.msra.mxu0 0
    %4809 = vmatprep.subr.bf16.mxu0 0
    %4810 = vmatpush1.bf16.msra.mxu0 0
    %4811 = vmatprep.mubr.bf16.mxu0 0
    %4812 = vmatmul.mubr.bf16.gmra.mrb[0].mxu0 %v4723
    %v4813 = vpop.f32.mrb[0].mxu0
    %v4814 = vadd.f32 %v4729, %v4813
    %v4815 = vpop.f32.mrb[0].mxu0
    %v4816 = vpop.f32.mrb[0].mxu0
    %v4817 = vadd.f32 %v4729, %v4816
    %v4818 = vpop.f32.mrb[0].mxu0
    %4819 = vmatprep.mubr.bf16.mxu0 0
    %4820 = vmatmul.mubr.bf16.gmra.mrb[0].mxu0 %v4724
    %v4821 = vpop.f32.mrb[0].mxu0
    %v4822 = vadd.f32 %v4729, %v4821
    %v4823 = vpop.f32.mrb[0].mxu0
    %v4824 = vpop.f32.mrb[0].mxu0
    %v4825 = vpop.f32.mrb[0].mxu0
    %4826 = vdwg.mxu0
    %v4827 = vadd.f32 %v3547, %v4814
    %v4828 = vadd.f32 %v3548, %v4817
    %v4829 = vadd.f32 %v3549, %v4822
    %s4830 = scalar_lea.vmem [#allocation15], 1
    %v4831 = vld [vmem:[%s4830] sm:$0x1]
    %s4832 = scalar_lea.vmem [#allocation17], 1
    %v4833 = vld [vmem:[%s4832] sm:$0x1]
    %4834 = vadd.xlane.f32.xlu0 %v4827
    %v4835 = vpop.xlane.xlu0 %4834
    %4836 = vadd.xlane.f32.xlu0 %v4828
    %v4837 = vpop.xlane.xlu0 %4836
    %v4838 = vsel %vm961, %v4829, 0.0
    %4839 = vadd.xlane.f32.xlu0 %v4838
    %v4840 = vpop.xlane.xlu0 %4839
    %v4841 = vmul.f32 %v4835, %v1710
    %v4842 = vmul.f32 %v4837, %v1710
    %v4843 = vmul.f32 %v4840, %v1710
    %v4844 = vsub.f32 %v4827, %v4841
    %v4845 = vsub.f32 %v4828, %v4842
    %v4846 = vsub.f32 %v4829, %v4843
    %v4847 = vmul.f32 %v4844, %v4844
    %v4848 = vmul.f32 %v4845, %v4845
    %v4849 = vmul.f32 %v4846, %v4846
    %4850 = vadd.xlane.f32.xlu0 %v4847
    %v4851 = vpop.xlane.xlu0 %4850
    %4852 = vadd.xlane.f32.xlu0 %v4848
    %v4853 = vpop.xlane.xlu0 %4852
    %v4854 = vsel %vm961, %v4849, 0.0
    %4855 = vadd.xlane.f32.xlu0 %v4854
    %v4856 = vpop.xlane.xlu0 %4855
    %v4857 = vmul.f32 %v4851, %v1710
    %v4858 = vmul.f32 %v4853, %v1710
    %v4859 = vmul.f32 %v4856, %v1710
    %v4860 = vadd.f32 %v4857, 1e-05
    %v4861 = vadd.f32 %v4858, 1e-05
    %v4862 = vadd.f32 %v4859, 1e-05
    %v4863 = vrsqrt.pop %v4860
    %v4864 = vrsqrt.pop %v4861
    %v4865 = vrsqrt.pop %v4862
    %v4866 = vmul.f32 %v4844, %v4863
    %v4867 = vmul.f32 %v4845, %v4864
    %v4868 = vmul.f32 %v4846, %v4865
    %v4870 = vlaneseq
    %v4871 = vshrl.u32 %v4870, 7
    %v4872 = vsub.s32 0, %v4871
    %v4873 = vrot.slane %v4831, %v4872
    %v4875 = vmul.f32 %v4866, %v4873
    %v4876 = vmul.f32 %v4867, %v4873
    %v4877 = vmul.f32 %v4868, %v4873
    %v4879 = vlaneseq
    %v4880 = vshrl.u32 %v4879, 7
    %v4881 = vsub.s32 0, %v4880
    %v4882 = vrot.slane %v4833, %v4881
    %v4884 = vadd.f32 %v4875, %v4882
    %v4885 = vadd.f32 %v4876, %v4882
    %v4886 = vadd.f32 %v4877, %v4882
    %s4887 = scalar_lea.vmem [#allocation6], 64
    %v4888 = vld [vmem:[%s4887] sm:$0xf]
    %v4889 = vld [vmem:[%s4887 + $0x4] sm:$0xf]
    %v4890 = vld [vmem:[%s4887 + $0x8] sm:$0xf]
    %v4891 = vld [vmem:[%s4887 + $0xc] sm:$0xf]
    %v4892 = vld [vmem:[%s4887 + $0x10] sm:$0xf]
    %v4893 = vld [vmem:[%s4887 + $0x14] sm:$0xf]
    %v4894 = vld [vmem:[%s4887 + $0x18] sm:$0xf]
    %v4895 = vld [vmem:[%s4887 + $0x1c] sm:$0xf]
    %v4896 = vld [vmem:[%s4887 + $0x20] sm:$0xf]
    %v4897 = vld [vmem:[%s4887 + $0x24] sm:$0xf]
    %v4898 = vld [vmem:[%s4887 + $0x28] sm:$0xf]
    %v4899 = vld [vmem:[%s4887 + $0x2c] sm:$0xf]
    %v4900 = vld [vmem:[%s4887 + $0x30] sm:$0xf]
    %v4901 = vld [vmem:[%s4887 + $0x34] sm:$0xf]
    %v4902 = vld [vmem:[%s4887 + $0x38] sm:$0xf]
    %v4903 = vld [vmem:[%s4887 + $0x3c] sm:$0xf]
    %s4904 = scalar_lea.vmem [#allocation8], 1
    %v4905 = vld [vmem:[%s4904] sm:$0x1]
    %v4906 = vpack.c.bf16 %v4885, %v4884
    %v4907 = vpack.c.bf16 %v4886, %v4886
    %v4909 = vlaneseq
    %v4910 = vshrl.u32 %v4909, 7
    %v4911 = vsub.s32 0, %v4910
    %v4912 = vrot.slane %v4905, %v4911
    %v4930 = vunpack.c.l.b16 %v4888
    %v4931 = vunpack.c.l.b16 %v4889
    %v4932 = vunpack.c.l.b16 %v4890
    %v4933 = vunpack.c.l.b16 %v4891
    %v4934 = vunpack.c.l.b16 %v4892
    %v4935 = vunpack.c.l.b16 %v4893
    %v4936 = vunpack.c.l.b16 %v4894
    %v4937 = vunpack.c.l.b16 %v4895
    %v4938 = vunpack.c.l.b16 %v4896
    %v4939 = vunpack.c.l.b16 %v4897
    %v4940 = vunpack.c.l.b16 %v4898
    %v4941 = vunpack.c.l.b16 %v4899
    %v4942 = vunpack.c.l.b16 %v4900
    %v4943 = vunpack.c.l.b16 %v4901
    %v4944 = vunpack.c.l.b16 %v4902
    %v4945 = vunpack.c.l.b16 %v4903
    %v4946 = vpack.c.b16 %v4931, %v4930
    %v4947 = vpack.c.b16 %v4933, %v4932
    %v4948 = vpack.c.b16 %v4935, %v4934
    %v4949 = vpack.c.b16 %v4937, %v4936
    %v4950 = vpack.c.b16 %v4939, %v4938
    %v4951 = vpack.c.b16 %v4941, %v4940
    %v4952 = vpack.c.b16 %v4943, %v4942
    %v4953 = vpack.c.b16 %v4945, %v4944
    %4962 = vmatprep.subr.bf16.mxu0 0
    %4963 = vmatpush1.bf16.msra.mxu0 %v4946
    %4964 = vmatprep.subr.bf16.mxu0 0
    %4965 = vmatpush1.bf16.msra.mxu0 %v4947
    %4966 = vmatprep.subr.bf16.mxu0 0
    %4967 = vmatpush1.bf16.msra.mxu0 %v4948
    %4968 = vmatprep.subr.bf16.mxu0 0
    %4969 = vmatpush1.bf16.msra.mxu0 %v4949
    %4970 = vmatprep.subr.bf16.mxu0 0
    %4971 = vmatpush1.bf16.msra.mxu0 %v4950
    %4972 = vmatprep.subr.bf16.mxu0 0
    %4973 = vmatpush1.bf16.msra.mxu0 %v4951
    %4974 = vmatprep.subr.bf16.mxu0 0
    %4975 = vmatpush1.bf16.msra.mxu0 %v4952
    %4976 = vmatprep.subr.bf16.mxu0 0
    %4977 = vmatpush1.bf16.msra.mxu0 %v4953
    %4978 = vmatprep.subr.bf16.mxu0 0
    %4979 = vmatpush1.bf16.msra.mxu0 0
    %4980 = vmatprep.subr.bf16.mxu0 0
    %4981 = vmatpush1.bf16.msra.mxu0 0
    %4982 = vmatprep.subr.bf16.mxu0 0
    %4983 = vmatpush1.bf16.msra.mxu0 0
    %4984 = vmatprep.subr.bf16.mxu0 0
    %4985 = vmatpush1.bf16.msra.mxu0 0
    %4986 = vmatprep.subr.bf16.mxu0 0
    %4987 = vmatpush1.bf16.msra.mxu0 0
    %4988 = vmatprep.subr.bf16.mxu0 0
    %4989 = vmatpush1.bf16.msra.mxu0 0
    %4990 = vmatprep.subr.bf16.mxu0 0
    %4991 = vmatpush1.bf16.msra.mxu0 0
    %4992 = vmatprep.subr.bf16.mxu0 0
    %4993 = vmatpush1.bf16.msra.mxu0 0
    %4994 = vmatprep.mubr.bf16.mxu0 0
    %4995 = vmatmul.mubr.bf16.gmra.mrb[0].mxu0 %v4906
    %v4996 = vpop.f32.mrb[0].mxu0
    %v4997 = vadd.f32 %v4912, %v4996
    %v4998 = vpop.f32.mrb[0].mxu0
    %v4999 = vpop.f32.mrb[0].mxu0
    %v5000 = vadd.f32 %v4912, %v4999
    %v5001 = vpop.f32.mrb[0].mxu0
    %5002 = vmatprep.mubr.bf16.mxu0 0
    %5003 = vmatmul.mubr.bf16.gmra.mrb[0].mxu0 %v4907
    %v5004 = vpop.f32.mrb[0].mxu0
    %v5005 = vadd.f32 %v4912, %v5004
    %v5006 = vpop.f32.mrb[0].mxu0
    %v5007 = vpop.f32.mrb[0].mxu0
    %v5008 = vpop.f32.mrb[0].mxu0
    %5009 = vdwg.mxu0
    %s5010 = scalar_lea.vmem [#allocation9], 128
    %v5011 = vld [vmem:[%s5010] sm:$0xff]
    %v5012 = vld [vmem:[%s5010 + $0x8] sm:$0xff]
    %v5013 = vld [vmem:[%s5010 + $0x10] sm:$0xff]
    %v5014 = vld [vmem:[%s5010 + $0x18] sm:$0xff]
    %v5015 = vld [vmem:[%s5010 + $0x20] sm:$0xff]
    %v5016 = vld [vmem:[%s5010 + $0x28] sm:$0xff]
    %v5017 = vld [vmem:[%s5010 + $0x30] sm:$0xff]
    %v5018 = vld [vmem:[%s5010 + $0x38] sm:$0xff]
    %v5019 = vld [vmem:[%s5010 + $0x40] sm:$0xff]
    %v5020 = vld [vmem:[%s5010 + $0x48] sm:$0xff]
    %v5021 = vld [vmem:[%s5010 + $0x50] sm:$0xff]
    %v5022 = vld [vmem:[%s5010 + $0x58] sm:$0xff]
    %v5023 = vld [vmem:[%s5010 + $0x60] sm:$0xff]
    %v5024 = vld [vmem:[%s5010 + $0x68] sm:$0xff]
    %v5025 = vld [vmem:[%s5010 + $0x70] sm:$0xff]
    %v5026 = vld [vmem:[%s5010 + $0x78] sm:$0xff]
    %s5027 = scalar_lea.vmem [#allocation11], 2
    %v5028 = vld [vmem:[%s5027] sm:$0x3]
    %v5030 = vlaneseq
    %v5031 = vshrl.u32 %v5030, 7
    %v5032 = vsub.s32 0, %v5031
    %v5033 = vrot.slane %v5028, %v5032
    %v5034 = vlaneseq
    %v5035 = vshrl.u32 %v5034, 7
    %v5036 = vsub.s32 1, %v5035
    %v5037 = vrot.slane %v5028, %v5036
    %v5056 = vunpack.c.l.b16 %v5011
    %v5057 = vunpack.c.h.b16 %v5011
    %v5058 = vunpack.c.l.b16 %v5012
    %v5059 = vunpack.c.h.b16 %v5012
    %v5060 = vunpack.c.l.b16 %v5013
    %v5061 = vunpack.c.h.b16 %v5013
    %v5062 = vunpack.c.l.b16 %v5014
    %v5063 = vunpack.c.h.b16 %v5014
    %v5064 = vunpack.c.l.b16 %v5015
    %v5065 = vunpack.c.h.b16 %v5015
    %v5066 = vunpack.c.l.b16 %v5016
    %v5067 = vunpack.c.h.b16 %v5016
    %v5068 = vunpack.c.l.b16 %v5017
    %v5069 = vunpack.c.h.b16 %v5017
    %v5070 = vunpack.c.l.b16 %v5018
    %v5071 = vunpack.c.h.b16 %v5018
    %v5072 = vunpack.c.l.b16 %v5019
    %v5073 = vunpack.c.h.b16 %v5019
    %v5074 = vunpack.c.l.b16 %v5020
    %v5075 = vunpack.c.h.b16 %v5020
    %v5076 = vunpack.c.l.b16 %v5021
    %v5077 = vunpack.c.h.b16 %v5021
    %v5078 = vunpack.c.l.b16 %v5022
    %v5079 = vunpack.c.h.b16 %v5022
    %v5080 = vunpack.c.l.b16 %v5023
    %v5081 = vunpack.c.h.b16 %v5023
    %v5082 = vunpack.c.l.b16 %v5024
    %v5083 = vunpack.c.h.b16 %v5024
    %v5084 = vunpack.c.l.b16 %v5025
    %v5085 = vunpack.c.h.b16 %v5025
    %v5086 = vunpack.c.l.b16 %v5026
    %v5087 = vunpack.c.h.b16 %v5026
    %v5088 = vpack.c.b16 %v5058, %v5056
    %v5089 = vpack.c.b16 %v5059, %v5057
    %v5090 = vpack.c.b16 %v5062, %v5060
    %v5091 = vpack.c.b16 %v5063, %v5061
    %v5092 = vpack.c.b16 %v5066, %v5064
    %v5093 = vpack.c.b16 %v5067, %v5065
    %v5094 = vpack.c.b16 %v5070, %v5068
    %v5095 = vpack.c.b16 %v5071, %v5069
    %v5096 = vpack.c.b16 %v5074, %v5072
    %v5097 = vpack.c.b16 %v5075, %v5073
    %v5098 = vpack.c.b16 %v5078, %v5076
    %v5099 = vpack.c.b16 %v5079, %v5077
    %v5100 = vpack.c.b16 %v5082, %v5080
    %v5101 = vpack.c.b16 %v5083, %v5081
    %v5102 = vpack.c.b16 %v5086, %v5084
    %v5103 = vpack.c.b16 %v5087, %v5085
    %5120 = vmatprep.subr.bf16.mxu0 %v5089
    %5121 = vmatpush1.bf16.msra.mxu0 %v5088
    %5122 = vmatprep.subr.bf16.mxu0 %v5091
    %5123 = vmatpush1.bf16.msra.mxu0 %v5090
    %5124 = vmatprep.subr.bf16.mxu0 %v5093
    %5125 = vmatpush1.bf16.msra.mxu0 %v5092
    %5126 = vmatprep.subr.bf16.mxu0 %v5095
    %5127 = vmatpush1.bf16.msra.mxu0 %v5094
    %5128 = vmatprep.subr.bf16.mxu0 %v5097
    %5129 = vmatpush1.bf16.msra.mxu0 %v5096
    %5130 = vmatprep.subr.bf16.mxu0 %v5099
    %5131 = vmatpush1.bf16.msra.mxu0 %v5098
    %5132 = vmatprep.subr.bf16.mxu0 %v5101
    %5133 = vmatpush1.bf16.msra.mxu0 %v5100
    %5134 = vmatprep.subr.bf16.mxu0 %v5103
    %5135 = vmatpush1.bf16.msra.mxu0 %v5102
    %5136 = vmatprep.subr.bf16.mxu0 0
    %5137 = vmatpush1.bf16.msra.mxu0 0
    %5138 = vmatprep.subr.bf16.mxu0 0
    %5139 = vmatpush1.bf16.msra.mxu0 0
    %5140 = vmatprep.subr.bf16.mxu0 0
    %5141 = vmatpush1.bf16.msra.mxu0 0
    %5142 = vmatprep.subr.bf16.mxu0 0
    %5143 = vmatpush1.bf16.msra.mxu0 0
    %5144 = vmatprep.subr.bf16.mxu0 0
    %5145 = vmatpush1.bf16.msra.mxu0 0
    %5146 = vmatprep.subr.bf16.mxu0 0
    %5147 = vmatpush1.bf16.msra.mxu0 0
    %5148 = vmatprep.subr.bf16.mxu0 0
    %5149 = vmatpush1.bf16.msra.mxu0 0
    %5150 = vmatprep.subr.bf16.mxu0 0
    %5151 = vmatpush1.bf16.msra.mxu0 0
    %5152 = vmatprep.mubr.bf16.mxu0 0
    %5153 = vmatmul.mubr.bf16.gmra.mrb[0].mxu0 %v455
    %v5154 = vpop.f32.mrb[0].mxu0
    %v5155 = vadd.f32 %v5033, %v5154
    %v5156 = vpop.f32.mrb[0].mxu0
    %v5157 = vadd.f32 %v5037, %v5156
    %v5158 = vpop.f32.mrb[0].mxu0
    %v5159 = vadd.f32 %v5033, %v5158
    %v5160 = vpop.f32.mrb[0].mxu0
    %v5161 = vadd.f32 %v5037, %v5160
    %5162 = vmatprep.mubr.bf16.mxu0 0
    %5163 = vmatmul.mubr.bf16.gmra.mrb[0].mxu0 %v456
    %v5164 = vpop.f32.mrb[0].mxu0
    %v5165 = vadd.f32 %v5033, %v5164
    %v5166 = vpop.f32.mrb[0].mxu0
    %v5167 = vadd.f32 %v5037, %v5166
    %v5168 = vpop.f32.mrb[0].mxu0
    %v5169 = vpop.f32.mrb[0].mxu0
    %5170 = vdwg.mxu0
    %v5171 = vmul.f32 %v5155, %v339
    %v5172 = vmul.f32 %v5159, %v339
    %v5173 = vmul.f32 %v5165, %v339
    %5174 = vmatprep.subr.mxu0 0.0
    %5175 = vmatpush1.xpose.msra.mxu0 %v5171
    %5176 = vmatprep.subr.mxu0 0.0
    %5177 = vmatpush1.xpose.msra.mxu0 %v5172
    %5178 = vmatprep.subr.mxu0 0.0
    %5179 = vmatpush1.xpose.msra.mxu0 %v5173
    %5180 = vmatprep.subr.mxu0 0.0
    %5181 = vmatpush1.xpose.msra.mxu0 0.0
    %5182 = vmatprep.subr.mxu0 0.0
    %5183 = vmatpush1.xpose.msra.mxu0 0.0
    %5184 = vmatprep.subr.mxu0 0.0
    %5185 = vmatpush1.xpose.msra.mxu0 0.0
    %5186 = vmatprep.subr.mxu0 0.0
    %5187 = vmatpush1.xpose.msra.mxu0 0.0
    %5188 = vmatprep.subr.mxu0 0.0
    %5189 = vmatpush1.xpose.msra.mxu0 0.0
    %5190 = vmatprep.subr.mxu0 0.0
    %5191 = vmatpush1.xpose.msra.mxu0 0.0
    %5192 = vmatprep.subr.mxu0 0.0
    %5193 = vmatpush1.xpose.msra.mxu0 0.0
    %5194 = vmatprep.subr.mxu0 0.0
    %5195 = vmatpush1.xpose.msra.mxu0 0.0
    %5196 = vmatprep.subr.mxu0 0.0
    %5197 = vmatpush1.xpose.msra.mxu0 0.0
    %5198 = vmatprep.subr.mxu0 0.0
    %5199 = vmatpush1.xpose.msra.mxu0 0.0
    %5200 = vmatprep.subr.mxu0 0.0
    %5201 = vmatpush1.xpose.msra.mxu0 0.0
    %5202 = vmatprep.subr.mxu0 0.0
    %5203 = vmatpush1.xpose.msra.mxu0 0.0
    %5204 = vmatprep.subr.mxu0 0.0
    %5205 = vmatpush1.xpose.msra.mxu0 0.0
    %5206 = vmatprep.subr.mxu0 0.0
    %5207 = vmatpush1.xpose.msra.mxu0 0.0
    %5208 = vmatprep.subr.mxu0 0.0
    %5209 = vmatpush1.xpose.msra.mxu0 0.0
    %5210 = vmatprep.subr.mxu0 0.0
    %5211 = vmatpush1.xpose.msra.mxu0 0.0
    %5212 = vmatprep.subr.mxu0 0.0
    %5213 = vmatpush1.xpose.msra.mxu0 0.0
    %5214 = vmatprep.subr.mxu0 0.0
    %5215 = vmatpush1.xpose.msra.mxu0 0.0
    %5216 = vmatprep.subr.mxu0 0.0
    %5217 = vmatpush1.xpose.msra.mxu0 0.0
    %5218 = vmatprep.subr.mxu0 0.0
    %5219 = vmatpush1.xpose.msra.mxu0 0.0
    %5220 = vmatprep.subr.mxu0 0.0
    %5221 = vmatpush1.xpose.msra.mxu0 0.0
    %5222 = vmatprep.subr.mxu0 0.0
    %5223 = vmatpush1.xpose.msra.mxu0 0.0
    %5224 = vmatprep.subr.mxu0 0.0
    %5225 = vmatpush1.xpose.msra.mxu0 0.0
    %5226 = vmatprep.subr.mxu0 0.0
    %5227 = vmatpush1.xpose.msra.mxu0 0.0
    %5228 = vmatprep.subr.mxu0 0.0
    %5229 = vmatpush1.xpose.msra.mxu0 0.0
    %5230 = vmatprep.subr.mxu0 0.0
    %5231 = vmatpush1.xpose.msra.mxu0 0.0
    %5232 = vmatprep.subr.mxu0 0.0
    %5233 = vmatpush1.xpose.msra.mxu0 0.0
    %5234 = vmatprep.subr.mxu0 0.0
    %5235 = vmatpush1.xpose.msra.mxu0 0.0
    %5236 = vmatprep.subr.mxu0 0.0
    %5237 = vmatpush1.xpose.msra.mxu0 0.0
    %5238 = vmatprep.mubr.f32.mxu0 0.0
    %5239 = vmatmul.mubr.f32.gmra.mrb[0].mxu0 %v4997
    %v5240 = vpop.f32.mrb[0].mxu0
    %v5241 = vadd.f32 0.0, %v5240
    %v5242 = vpop.f32.mrb[0].mxu0
    %5243 = vmatprep.mubr.f32.mxu0 0.0
    %5244 = vmatmul.mubr.f32.gmra.mrb[0].mxu0 %v5000
    %v5245 = vpop.f32.mrb[0].mxu0
    %v5246 = vadd.f32 0.0, %v5245
    %v5247 = vpop.f32.mrb[0].mxu0
    %5248 = vmatprep.mubr.f32.mxu0 0.0
    %5249 = vmatmul.mubr.f32.gmra.mrb[0].mxu0 %v5005
    %v5250 = vpop.f32.mrb[0].mxu0
    %v5251 = vadd.f32 0.0, %v5250
    %v5252 = vpop.f32.mrb[0].mxu0
    %5253 = vdwg.mxu0
    %v5254 = vmul.f32 %v5241, 0.17677669
    %v5255 = vmul.f32 %v5246, 0.17677669
    %v5256 = vmul.f32 %v5251, 0.17677669
    %v5257 = vadd.f32 %v5254, %v416
    %v5258 = vadd.f32 %v5255, %v417
    %v5259 = vadd.f32 %v5256, %v418
    %v5260 = vsel %vm789, %v5257, -inf
    %5261 = vmax.xlane.f32.xlu0 %v5260
    %v5262 = vpop.xlane.xlu0 %5261
    %v5263 = vsel %vm789, %v5258, -inf
    %5264 = vmax.xlane.f32.xlu0 %v5263
    %v5265 = vpop.xlane.xlu0 %5264
    %v5266 = vsel %vm796, %v5259, -inf
    %5267 = vmax.xlane.f32.xlu0 %v5266
    %v5268 = vpop.xlane.xlu0 %5267
    %v5269 = vsub.f32 %v5257, %v5262
    %v5270 = vsub.f32 %v5258, %v5265
    %v5271 = vsub.f32 %v5259, %v5268
    %v5272 = vmul.f32 %v5269, 1.442695
    %v5273 = vpow.pop %v5272
    %v5274 = vmul.f32 %v5270, 1.442695
    %v5275 = vpow.pop %v5274
    %v5276 = vmul.f32 %v5271, 1.442695
    %v5277 = vpow.pop %v5276
    %v5278 = vsel %vm789, %v5273, 0.0
    %5279 = vadd.xlane.f32.xlu0 %v5278
    %v5280 = vpop.xlane.xlu0 %5279
    %v5281 = vsel %vm789, %v5275, 0.0
    %5282 = vadd.xlane.f32.xlu0 %v5281
    %v5283 = vpop.xlane.xlu0 %5282
    %v5284 = vsel %vm796, %v5277, 0.0
    %5285 = vadd.xlane.f32.xlu0 %v5284
    %v5286 = vpop.xlane.xlu0 %5285
    %v5287 = vrcp.pop %v5280
    %v5288 = vrcp.pop %v5283
    %v5289 = vrcp.pop %v5286
    %v5290 = vmul.f32 %v5273, %v5287
    %v5291 = vmul.f32 %v5275, %v5288
    %v5292 = vmul.f32 %v5277, %v5289
    %v5293 = vmul.f32 %v5157, %v339
    %v5294 = vmul.f32 %v5161, %v339
    %v5295 = vmul.f32 %v5167, %v339
    %v5296 = vmul.f32 %v5155, %v343
    %v5297 = vmul.f32 %v5159, %v343
    %v5298 = vmul.f32 %v5165, %v343
    %5299 = vmatprep.subr.mxu0 0.0
    %5300 = vmatpush1.xpose.msra.mxu0 %v5296
    %5301 = vmatprep.subr.mxu0 0.0
    %5302 = vmatpush1.xpose.msra.mxu0 %v5297
    %5303 = vmatprep.subr.mxu0 0.0
    %5304 = vmatpush1.xpose.msra.mxu0 %v5298
    %5305 = vmatprep.subr.mxu0 0.0
    %5306 = vmatpush1.xpose.msra.mxu0 0.0
    %5307 = vmatprep.subr.mxu0 0.0
    %5308 = vmatpush1.xpose.msra.mxu0 0.0
    %5309 = vmatprep.subr.mxu0 0.0
    %5310 = vmatpush1.xpose.msra.mxu0 0.0
    %5311 = vmatprep.subr.mxu0 0.0
    %5312 = vmatpush1.xpose.msra.mxu0 0.0
    %5313 = vmatprep.subr.mxu0 0.0
    %5314 = vmatpush1.xpose.msra.mxu0 0.0
    %5315 = vmatprep.subr.mxu0 0.0
    %5316 = vmatpush1.xpose.msra.mxu0 0.0
    %5317 = vmatprep.subr.mxu0 0.0
    %5318 = vmatpush1.xpose.msra.mxu0 0.0
    %5319 = vmatprep.subr.mxu0 0.0
    %5320 = vmatpush1.xpose.msra.mxu0 0.0
    %5321 = vmatprep.subr.mxu0 0.0
    %5322 = vmatpush1.xpose.msra.mxu0 0.0
    %5323 = vmatprep.subr.mxu0 0.0
    %5324 = vmatpush1.xpose.msra.mxu0 0.0
    %5325 = vmatprep.subr.mxu0 0.0
    %5326 = vmatpush1.xpose.msra.mxu0 0.0
    %5327 = vmatprep.subr.mxu0 0.0
    %5328 = vmatpush1.xpose.msra.mxu0 0.0
    %5329 = vmatprep.subr.mxu0 0.0
    %5330 = vmatpush1.xpose.msra.mxu0 0.0
    %5331 = vmatprep.subr.mxu0 0.0
    %5332 = vmatpush1.xpose.msra.mxu0 0.0
    %5333 = vmatprep.subr.mxu0 0.0
    %5334 = vmatpush1.xpose.msra.mxu0 0.0
    %5335 = vmatprep.subr.mxu0 0.0
    %5336 = vmatpush1.xpose.msra.mxu0 0.0
    %5337 = vmatprep.subr.mxu0 0.0
    %5338 = vmatpush1.xpose.msra.mxu0 0.0
    %5339 = vmatprep.subr.mxu0 0.0
    %5340 = vmatpush1.xpose.msra.mxu0 0.0
    %5341 = vmatprep.subr.mxu0 0.0
    %5342 = vmatpush1.xpose.msra.mxu0 0.0
    %5343 = vmatprep.subr.mxu0 0.0
    %5344 = vmatpush1.xpose.msra.mxu0 0.0
    %5345 = vmatprep.subr.mxu0 0.0
    %5346 = vmatpush1.xpose.msra.mxu0 0.0
    %5347 = vmatprep.subr.mxu0 0.0
    %5348 = vmatpush1.xpose.msra.mxu0 0.0
    %5349 = vmatprep.subr.mxu0 0.0
    %5350 = vmatpush1.xpose.msra.mxu0 0.0
    %5351 = vmatprep.subr.mxu0 0.0
    %5352 = vmatpush1.xpose.msra.mxu0 0.0
    %5353 = vmatprep.subr.mxu0 0.0
    %5354 = vmatpush1.xpose.msra.mxu0 0.0
    %5355 = vmatprep.subr.mxu0 0.0
    %5356 = vmatpush1.xpose.msra.mxu0 0.0
    %5357 = vmatprep.subr.mxu0 0.0
    %5358 = vmatpush1.xpose.msra.mxu0 0.0
    %5359 = vmatprep.subr.mxu0 0.0
    %5360 = vmatpush1.xpose.msra.mxu0 0.0
    %5361 = vmatprep.subr.mxu0 0.0
    %5362 = vmatpush1.xpose.msra.mxu0 0.0
    %5363 = vmatprep.mubr.f32.mxu0 0.0
    %5364 = vmatmul.mubr.f32.gmra.mrb[0].mxu0 %v4997
    %v5365 = vpop.f32.mrb[0].mxu0
    %v5366 = vadd.f32 0.0, %v5365
    %v5367 = vpop.f32.mrb[0].mxu0
    %5368 = vmatprep.mubr.f32.mxu0 0.0
    %5369 = vmatmul.mubr.f32.gmra.mrb[0].mxu0 %v5000
    %v5370 = vpop.f32.mrb[0].mxu0
    %v5371 = vadd.f32 0.0, %v5370
    %v5372 = vpop.f32.mrb[0].mxu0
    %5373 = vmatprep.mubr.f32.mxu0 0.0
    %5374 = vmatmul.mubr.f32.gmra.mrb[0].mxu0 %v5005
    %v5375 = vpop.f32.mrb[0].mxu0
    %v5376 = vadd.f32 0.0, %v5375
    %v5377 = vpop.f32.mrb[0].mxu0
    %5378 = vdwg.mxu0
    %v5379 = vmul.f32 %v5366, 0.17677669
    %v5380 = vmul.f32 %v5371, 0.17677669
    %v5381 = vmul.f32 %v5376, 0.17677669
    %v5382 = vadd.f32 %v5379, %v416
    %v5383 = vadd.f32 %v5380, %v417
    %v5384 = vadd.f32 %v5381, %v418
    %v5385 = vsel %vm789, %v5382, -inf
    %5386 = vmax.xlane.f32.xlu0 %v5385
    %v5387 = vpop.xlane.xlu0 %5386
    %v5388 = vsel %vm789, %v5383, -inf
    %5389 = vmax.xlane.f32.xlu0 %v5388
    %v5390 = vpop.xlane.xlu0 %5389
    %v5391 = vsel %vm796, %v5384, -inf
    %5392 = vmax.xlane.f32.xlu0 %v5391
    %v5393 = vpop.xlane.xlu0 %5392
    %v5394 = vsub.f32 %v5382, %v5387
    %v5395 = vsub.f32 %v5383, %v5390
    %v5396 = vsub.f32 %v5384, %v5393
    %v5397 = vmul.f32 %v5394, 1.442695
    %v5398 = vpow.pop %v5397
    %v5399 = vmul.f32 %v5395, 1.442695
    %v5400 = vpow.pop %v5399
    %v5401 = vmul.f32 %v5396, 1.442695
    %v5402 = vpow.pop %v5401
    %v5403 = vsel %vm789, %v5398, 0.0
    %5404 = vadd.xlane.f32.xlu0 %v5403
    %v5405 = vpop.xlane.xlu0 %5404
    %v5406 = vsel %vm789, %v5400, 0.0
    %5407 = vadd.xlane.f32.xlu0 %v5406
    %v5408 = vpop.xlane.xlu0 %5407
    %v5409 = vsel %vm796, %v5402, 0.0
    %5410 = vadd.xlane.f32.xlu0 %v5409
    %v5411 = vpop.xlane.xlu0 %5410
    %v5412 = vrcp.pop %v5405
    %v5413 = vrcp.pop %v5408
    %v5414 = vrcp.pop %v5411
    %v5415 = vmul.f32 %v5398, %v5412
    %v5416 = vmul.f32 %v5400, %v5413
    %v5417 = vmul.f32 %v5402, %v5414
    %v5418 = vmul.f32 %v5157, %v343
    %v5419 = vmul.f32 %v5161, %v343
    %v5420 = vmul.f32 %v5167, %v343
    %v5422 = vsel %vm789, %v5415, 0
    %v5425 = vsel %vm789, %v5416, 0
    %v5428 = vsel %vm789, %v5417, 0
    %v5431 = vsel %vm961, %v5420, 0
    %5433 = vmatprep.subr.mxu0 0.0
    %5434 = vmatpush1.msra.mxu0 %v5418
    %5435 = vmatprep.subr.mxu0 0.0
    %5436 = vmatpush1.msra.mxu0 %v5419
    %5437 = vmatprep.subr.mxu0 0.0
    %5438 = vmatpush1.msra.mxu0 %v5431
    %5439 = vmatprep.subr.mxu0 0.0
    %5440 = vmatpush1.msra.mxu0 0.0
    %5441 = vmatprep.subr.mxu0 0.0
    %5442 = vmatpush1.msra.mxu0 0.0
    %5443 = vmatprep.subr.mxu0 0.0
    %5444 = vmatpush1.msra.mxu0 0.0
    %5445 = vmatprep.subr.mxu0 0.0
    %5446 = vmatpush1.msra.mxu0 0.0
    %5447 = vmatprep.subr.mxu0 0.0
    %5448 = vmatpush1.msra.mxu0 0.0
    %5449 = vmatprep.subr.mxu0 0.0
    %5450 = vmatpush1.msra.mxu0 0.0
    %5451 = vmatprep.subr.mxu0 0.0
    %5452 = vmatpush1.msra.mxu0 0.0
    %5453 = vmatprep.subr.mxu0 0.0
    %5454 = vmatpush1.msra.mxu0 0.0
    %5455 = vmatprep.subr.mxu0 0.0
    %5456 = vmatpush1.msra.mxu0 0.0
    %5457 = vmatprep.subr.mxu0 0.0
    %5458 = vmatpush1.msra.mxu0 0.0
    %5459 = vmatprep.subr.mxu0 0.0
    %5460 = vmatpush1.msra.mxu0 0.0
    %5461 = vmatprep.subr.mxu0 0.0
    %5462 = vmatpush1.msra.mxu0 0.0
    %5463 = vmatprep.subr.mxu0 0.0
    %5464 = vmatpush1.msra.mxu0 0.0
    %5465 = vmatprep.subr.mxu0 0.0
    %5466 = vmatpush1.msra.mxu0 0.0
    %5467 = vmatprep.subr.mxu0 0.0
    %5468 = vmatpush1.msra.mxu0 0.0
    %5469 = vmatprep.subr.mxu0 0.0
    %5470 = vmatpush1.msra.mxu0 0.0
    %5471 = vmatprep.subr.mxu0 0.0
    %5472 = vmatpush1.msra.mxu0 0.0
    %5473 = vmatprep.subr.mxu0 0.0
    %5474 = vmatpush1.msra.mxu0 0.0
    %5475 = vmatprep.subr.mxu0 0.0
    %5476 = vmatpush1.msra.mxu0 0.0
    %5477 = vmatprep.subr.mxu0 0.0
    %5478 = vmatpush1.msra.mxu0 0.0
    %5479 = vmatprep.subr.mxu0 0.0
    %5480 = vmatpush1.msra.mxu0 0.0
    %5481 = vmatprep.subr.mxu0 0.0
    %5482 = vmatpush1.msra.mxu0 0.0
    %5483 = vmatprep.subr.mxu0 0.0
    %5484 = vmatpush1.msra.mxu0 0.0
    %5485 = vmatprep.subr.mxu0 0.0
    %5486 = vmatpush1.msra.mxu0 0.0
    %5487 = vmatprep.subr.mxu0 0.0
    %5488 = vmatpush1.msra.mxu0 0.0
    %5489 = vmatprep.subr.mxu0 0.0
    %5490 = vmatpush1.msra.mxu0 0.0
    %5491 = vmatprep.subr.mxu0 0.0
    %5492 = vmatpush1.msra.mxu0 0.0
    %5493 = vmatprep.subr.mxu0 0.0
    %5494 = vmatpush1.msra.mxu0 0.0
    %5495 = vmatprep.subr.mxu0 0.0
    %5496 = vmatpush1.msra.mxu0 0.0
    %5497 = vmatprep.mubr.f32.mxu0 0.0
    %5498 = vmatmul.mubr.f32.gmra.mrb[0].mxu0 %v5422
    %v5499 = vpop.f32.mrb[0].mxu0
    %v5500 = vadd.f32 0.0, %v5499
    %v5501 = vpop.f32.mrb[0].mxu0
    %5502 = vmatprep.mubr.f32.mxu0 0.0
    %5503 = vmatmul.mubr.f32.gmra.mrb[0].mxu0 %v5425
    %v5504 = vpop.f32.mrb[0].mxu0
    %v5505 = vadd.f32 0.0, %v5504
    %v5506 = vpop.f32.mrb[0].mxu0
    %5507 = vmatprep.mubr.f32.mxu0 0.0
    %5508 = vmatmul.mubr.f32.gmra.mrb[0].mxu0 %v5428
    %v5509 = vpop.f32.mrb[0].mxu0
    %v5510 = vadd.f32 0.0, %v5509
    %v5511 = vpop.f32.mrb[0].mxu0
    %5512 = vdwg.mxu0
    %v5514 = vsel %vm789, %v5290, 0
    %v5517 = vsel %vm789, %v5291, 0
    %v5520 = vsel %vm789, %v5292, 0
    %v5523 = vsel %vm961, %v5295, 0
    %5525 = vmatprep.subr.mxu0 0.0
    %5526 = vmatpush1.msra.mxu0 %v5293
    %5527 = vmatprep.subr.mxu0 0.0
    %5528 = vmatpush1.msra.mxu0 %v5294
    %5529 = vmatprep.subr.mxu0 0.0
    %5530 = vmatpush1.msra.mxu0 %v5523
    %5531 = vmatprep.subr.mxu0 0.0
    %5532 = vmatpush1.msra.mxu0 0.0
    %5533 = vmatprep.subr.mxu0 0.0
    %5534 = vmatpush1.msra.mxu0 0.0
    %5535 = vmatprep.subr.mxu0 0.0
    %5536 = vmatpush1.msra.mxu0 0.0
    %5537 = vmatprep.subr.mxu0 0.0
    %5538 = vmatpush1.msra.mxu0 0.0
    %5539 = vmatprep.subr.mxu0 0.0
    %5540 = vmatpush1.msra.mxu0 0.0
    %5541 = vmatprep.subr.mxu0 0.0
    %5542 = vmatpush1.msra.mxu0 0.0
    %5543 = vmatprep.subr.mxu0 0.0
    %5544 = vmatpush1.msra.mxu0 0.0
    %5545 = vmatprep.subr.mxu0 0.0
    %5546 = vmatpush1.msra.mxu0 0.0
    %5547 = vmatprep.subr.mxu0 0.0
    %5548 = vmatpush1.msra.mxu0 0.0
    %5549 = vmatprep.subr.mxu0 0.0
    %5550 = vmatpush1.msra.mxu0 0.0
    %5551 = vmatprep.subr.mxu0 0.0
    %5552 = vmatpush1.msra.mxu0 0.0
    %5553 = vmatprep.subr.mxu0 0.0
    %5554 = vmatpush1.msra.mxu0 0.0
    %5555 = vmatprep.subr.mxu0 0.0
    %5556 = vmatpush1.msra.mxu0 0.0
    %5557 = vmatprep.subr.mxu0 0.0
    %5558 = vmatpush1.msra.mxu0 0.0
    %5559 = vmatprep.subr.mxu0 0.0
    %5560 = vmatpush1.msra.mxu0 0.0
    %5561 = vmatprep.subr.mxu0 0.0
    %5562 = vmatpush1.msra.mxu0 0.0
    %5563 = vmatprep.subr.mxu0 0.0
    %5564 = vmatpush1.msra.mxu0 0.0
    %5565 = vmatprep.subr.mxu0 0.0
    %5566 = vmatpush1.msra.mxu0 0.0
    %5567 = vmatprep.subr.mxu0 0.0
    %5568 = vmatpush1.msra.mxu0 0.0
    %5569 = vmatprep.subr.mxu0 0.0
    %5570 = vmatpush1.msra.mxu0 0.0
    %5571 = vmatprep.subr.mxu0 0.0
    %5572 = vmatpush1.msra.mxu0 0.0
    %5573 = vmatprep.subr.mxu0 0.0
    %5574 = vmatpush1.msra.mxu0 0.0
    %5575 = vmatprep.subr.mxu0 0.0
    %5576 = vmatpush1.msra.mxu0 0.0
    %5577 = vmatprep.subr.mxu0 0.0
    %5578 = vmatpush1.msra.mxu0 0.0
    %5579 = vmatprep.subr.mxu0 0.0
    %5580 = vmatpush1.msra.mxu0 0.0
    %5581 = vmatprep.subr.mxu0 0.0
    %5582 = vmatpush1.msra.mxu0 0.0
    %5583 = vmatprep.subr.mxu0 0.0
    %5584 = vmatpush1.msra.mxu0 0.0
    %5585 = vmatprep.subr.mxu0 0.0
    %5586 = vmatpush1.msra.mxu0 0.0
    %5587 = vmatprep.subr.mxu0 0.0
    %5588 = vmatpush1.msra.mxu0 0.0
    %5589 = vmatprep.mubr.f32.mxu0 0.0
    %5590 = vmatmul.mubr.f32.gmra.mrb[0].mxu0 %v5514
    %v5591 = vpop.f32.mrb[0].mxu0
    %v5592 = vadd.f32 %v5500, %v5591
    %v5593 = vpop.f32.mrb[0].mxu0
    %5594 = vmatprep.mubr.f32.mxu0 0.0
    %5595 = vmatmul.mubr.f32.gmra.mrb[0].mxu0 %v5517
    %v5596 = vpop.f32.mrb[0].mxu0
    %v5597 = vadd.f32 %v5505, %v5596
    %v5598 = vpop.f32.mrb[0].mxu0
    %5599 = vmatprep.mubr.f32.mxu0 0.0
    %5600 = vmatmul.mubr.f32.gmra.mrb[0].mxu0 %v5520
    %v5601 = vpop.f32.mrb[0].mxu0
    %v5602 = vadd.f32 %v5510, %v5601
    %v5603 = vpop.f32.mrb[0].mxu0
    %5604 = vdwg.mxu0
    %v5605 = vmul.f32 %v5155, %v347
    %v5606 = vmul.f32 %v5159, %v347
    %v5607 = vmul.f32 %v5165, %v347
    %5608 = vmatprep.subr.mxu0 0.0
    %5609 = vmatpush1.xpose.msra.mxu0 %v5605
    %5610 = vmatprep.subr.mxu0 0.0
    %5611 = vmatpush1.xpose.msra.mxu0 %v5606
    %5612 = vmatprep.subr.mxu0 0.0
    %5613 = vmatpush1.xpose.msra.mxu0 %v5607
    %5614 = vmatprep.subr.mxu0 0.0
    %5615 = vmatpush1.xpose.msra.mxu0 0.0
    %5616 = vmatprep.subr.mxu0 0.0
    %5617 = vmatpush1.xpose.msra.mxu0 0.0
    %5618 = vmatprep.subr.mxu0 0.0
    %5619 = vmatpush1.xpose.msra.mxu0 0.0
    %5620 = vmatprep.subr.mxu0 0.0
    %5621 = vmatpush1.xpose.msra.mxu0 0.0
    %5622 = vmatprep.subr.mxu0 0.0
    %5623 = vmatpush1.xpose.msra.mxu0 0.0
    %5624 = vmatprep.subr.mxu0 0.0
    %5625 = vmatpush1.xpose.msra.mxu0 0.0
    %5626 = vmatprep.subr.mxu0 0.0
    %5627 = vmatpush1.xpose.msra.mxu0 0.0
    %5628 = vmatprep.subr.mxu0 0.0
    %5629 = vmatpush1.xpose.msra.mxu0 0.0
    %5630 = vmatprep.subr.mxu0 0.0
    %5631 = vmatpush1.xpose.msra.mxu0 0.0
    %5632 = vmatprep.subr.mxu0 0.0
    %5633 = vmatpush1.xpose.msra.mxu0 0.0
    %5634 = vmatprep.subr.mxu0 0.0
    %5635 = vmatpush1.xpose.msra.mxu0 0.0
    %5636 = vmatprep.subr.mxu0 0.0
    %5637 = vmatpush1.xpose.msra.mxu0 0.0
    %5638 = vmatprep.subr.mxu0 0.0
    %5639 = vmatpush1.xpose.msra.mxu0 0.0
    %5640 = vmatprep.subr.mxu0 0.0
    %5641 = vmatpush1.xpose.msra.mxu0 0.0
    %5642 = vmatprep.subr.mxu0 0.0
    %5643 = vmatpush1.xpose.msra.mxu0 0.0
    %5644 = vmatprep.subr.mxu0 0.0
    %5645 = vmatpush1.xpose.msra.mxu0 0.0
    %5646 = vmatprep.subr.mxu0 0.0
    %5647 = vmatpush1.xpose.msra.mxu0 0.0
    %5648 = vmatprep.subr.mxu0 0.0
    %5649 = vmatpush1.xpose.msra.mxu0 0.0
    %5650 = vmatprep.subr.mxu0 0.0
    %5651 = vmatpush1.xpose.msra.mxu0 0.0
    %5652 = vmatprep.subr.mxu0 0.0
    %5653 = vmatpush1.xpose.msra.mxu0 0.0
    %5654 = vmatprep.subr.mxu0 0.0
    %5655 = vmatpush1.xpose.msra.mxu0 0.0
    %5656 = vmatprep.subr.mxu0 0.0
    %5657 = vmatpush1.xpose.msra.mxu0 0.0
    %5658 = vmatprep.subr.mxu0 0.0
    %5659 = vmatpush1.xpose.msra.mxu0 0.0
    %5660 = vmatprep.subr.mxu0 0.0
    %5661 = vmatpush1.xpose.msra.mxu0 0.0
    %5662 = vmatprep.subr.mxu0 0.0
    %5663 = vmatpush1.xpose.msra.mxu0 0.0
    %5664 = vmatprep.subr.mxu0 0.0
    %5665 = vmatpush1.xpose.msra.mxu0 0.0
    %5666 = vmatprep.subr.mxu0 0.0
    %5667 = vmatpush1.xpose.msra.mxu0 0.0
    %5668 = vmatprep.subr.mxu0 0.0
    %5669 = vmatpush1.xpose.msra.mxu0 0.0
    %5670 = vmatprep.subr.mxu0 0.0
    %5671 = vmatpush1.xpose.msra.mxu0 0.0
    %5672 = vmatprep.mubr.f32.mxu0 0.0
    %5673 = vmatmul.mubr.f32.gmra.mrb[0].mxu0 %v4997
    %v5674 = vpop.f32.mrb[0].mxu0
    %v5675 = vadd.f32 0.0, %v5674
    %v5676 = vpop.f32.mrb[0].mxu0
    %5677 = vmatprep.mubr.f32.mxu0 0.0
    %5678 = vmatmul.mubr.f32.gmra.mrb[0].mxu0 %v5000
    %v5679 = vpop.f32.mrb[0].mxu0
    %v5680 = vadd.f32 0.0, %v5679
    %v5681 = vpop.f32.mrb[0].mxu0
    %5682 = vmatprep.mubr.f32.mxu0 0.0
    %5683 = vmatmul.mubr.f32.gmra.mrb[0].mxu0 %v5005
    %v5684 = vpop.f32.mrb[0].mxu0
    %v5685 = vadd.f32 0.0, %v5684
    %v5686 = vpop.f32.mrb[0].mxu0
    %5687 = vdwg.mxu0
    %v5688 = vmul.f32 %v5675, 0.17677669
    %v5689 = vmul.f32 %v5680, 0.17677669
    %v5690 = vmul.f32 %v5685, 0.17677669
    %v5691 = vadd.f32 %v5688, %v416
    %v5692 = vadd.f32 %v5689, %v417
    %v5693 = vadd.f32 %v5690, %v418
    %v5694 = vsel %vm789, %v5691, -inf
    %5695 = vmax.xlane.f32.xlu0 %v5694
    %v5696 = vpop.xlane.xlu0 %5695
    %v5697 = vsel %vm789, %v5692, -inf
    %5698 = vmax.xlane.f32.xlu0 %v5697
    %v5699 = vpop.xlane.xlu0 %5698
    %v5700 = vsel %vm796, %v5693, -inf
    %5701 = vmax.xlane.f32.xlu0 %v5700
    %v5702 = vpop.xlane.xlu0 %5701
    %v5703 = vsub.f32 %v5691, %v5696
    %v5704 = vsub.f32 %v5692, %v5699
    %v5705 = vsub.f32 %v5693, %v5702
    %v5706 = vmul.f32 %v5703, 1.442695
    %v5707 = vpow.pop %v5706
    %v5708 = vmul.f32 %v5704, 1.442695
    %v5709 = vpow.pop %v5708
    %v5710 = vmul.f32 %v5705, 1.442695
    %v5711 = vpow.pop %v5710
    %v5712 = vsel %vm789, %v5707, 0.0
    %5713 = vadd.xlane.f32.xlu0 %v5712
    %v5714 = vpop.xlane.xlu0 %5713
    %v5715 = vsel %vm789, %v5709, 0.0
    %5716 = vadd.xlane.f32.xlu0 %v5715
    %v5717 = vpop.xlane.xlu0 %5716
    %v5718 = vsel %vm796, %v5711, 0.0
    %5719 = vadd.xlane.f32.xlu0 %v5718
    %v5720 = vpop.xlane.xlu0 %5719
    %v5721 = vrcp.pop %v5714
    %v5722 = vrcp.pop %v5717
    %v5723 = vrcp.pop %v5720
    %v5724 = vmul.f32 %v5707, %v5721
    %v5725 = vmul.f32 %v5709, %v5722
    %v5726 = vmul.f32 %v5711, %v5723
    %v5727 = vmul.f32 %v5157, %v347
    %v5728 = vmul.f32 %v5161, %v347
    %v5729 = vmul.f32 %v5167, %v347
    %v5731 = vsel %vm789, %v5724, 0
    %v5734 = vsel %vm789, %v5725, 0
    %v5737 = vsel %vm789, %v5726, 0
    %v5740 = vsel %vm961, %v5729, 0
    %5742 = vmatprep.subr.mxu0 0.0
    %5743 = vmatpush1.msra.mxu0 %v5727
    %5744 = vmatprep.subr.mxu0 0.0
    %5745 = vmatpush1.msra.mxu0 %v5728
    %5746 = vmatprep.subr.mxu0 0.0
    %5747 = vmatpush1.msra.mxu0 %v5740
    %5748 = vmatprep.subr.mxu0 0.0
    %5749 = vmatpush1.msra.mxu0 0.0
    %5750 = vmatprep.subr.mxu0 0.0
    %5751 = vmatpush1.msra.mxu0 0.0
    %5752 = vmatprep.subr.mxu0 0.0
    %5753 = vmatpush1.msra.mxu0 0.0
    %5754 = vmatprep.subr.mxu0 0.0
    %5755 = vmatpush1.msra.mxu0 0.0
    %5756 = vmatprep.subr.mxu0 0.0
    %5757 = vmatpush1.msra.mxu0 0.0
    %5758 = vmatprep.subr.mxu0 0.0
    %5759 = vmatpush1.msra.mxu0 0.0
    %5760 = vmatprep.subr.mxu0 0.0
    %5761 = vmatpush1.msra.mxu0 0.0
    %5762 = vmatprep.subr.mxu0 0.0
    %5763 = vmatpush1.msra.mxu0 0.0
    %5764 = vmatprep.subr.mxu0 0.0
    %5765 = vmatpush1.msra.mxu0 0.0
    %5766 = vmatprep.subr.mxu0 0.0
    %5767 = vmatpush1.msra.mxu0 0.0
    %5768 = vmatprep.subr.mxu0 0.0
    %5769 = vmatpush1.msra.mxu0 0.0
    %5770 = vmatprep.subr.mxu0 0.0
    %5771 = vmatpush1.msra.mxu0 0.0
    %5772 = vmatprep.subr.mxu0 0.0
    %5773 = vmatpush1.msra.mxu0 0.0
    %5774 = vmatprep.subr.mxu0 0.0
    %5775 = vmatpush1.msra.mxu0 0.0
    %5776 = vmatprep.subr.mxu0 0.0
    %5777 = vmatpush1.msra.mxu0 0.0
    %5778 = vmatprep.subr.mxu0 0.0
    %5779 = vmatpush1.msra.mxu0 0.0
    %5780 = vmatprep.subr.mxu0 0.0
    %5781 = vmatpush1.msra.mxu0 0.0
    %5782 = vmatprep.subr.mxu0 0.0
    %5783 = vmatpush1.msra.mxu0 0.0
    %5784 = vmatprep.subr.mxu0 0.0
    %5785 = vmatpush1.msra.mxu0 0.0
    %5786 = vmatprep.subr.mxu0 0.0
    %5787 = vmatpush1.msra.mxu0 0.0
    %5788 = vmatprep.subr.mxu0 0.0
    %5789 = vmatpush1.msra.mxu0 0.0
    %5790 = vmatprep.subr.mxu0 0.0
    %5791 = vmatpush1.msra.mxu0 0.0
    %5792 = vmatprep.subr.mxu0 0.0
    %5793 = vmatpush1.msra.mxu0 0.0
    %5794 = vmatprep.subr.mxu0 0.0
    %5795 = vmatpush1.msra.mxu0 0.0
    %5796 = vmatprep.subr.mxu0 0.0
    %5797 = vmatpush1.msra.mxu0 0.0
    %5798 = vmatprep.subr.mxu0 0.0
    %5799 = vmatpush1.msra.mxu0 0.0
    %5800 = vmatprep.subr.mxu0 0.0
    %5801 = vmatpush1.msra.mxu0 0.0
    %5802 = vmatprep.subr.mxu0 0.0
    %5803 = vmatpush1.msra.mxu0 0.0
    %5804 = vmatprep.subr.mxu0 0.0
    %5805 = vmatpush1.msra.mxu0 0.0
    %5806 = vmatprep.mubr.f32.mxu0 0.0
    %5807 = vmatmul.mubr.f32.gmra.mrb[0].mxu0 %v5731
    %v5808 = vpop.f32.mrb[0].mxu0
    %v5809 = vadd.f32 0.0, %v5808
    %v5810 = vpop.f32.mrb[0].mxu0
    %5811 = vmatprep.mubr.f32.mxu0 0.0
    %5812 = vmatmul.mubr.f32.gmra.mrb[0].mxu0 %v5734
    %v5813 = vpop.f32.mrb[0].mxu0
    %v5814 = vadd.f32 0.0, %v5813
    %v5815 = vpop.f32.mrb[0].mxu0
    %5816 = vmatprep.mubr.f32.mxu0 0.0
    %5817 = vmatmul.mubr.f32.gmra.mrb[0].mxu0 %v5737
    %v5818 = vpop.f32.mrb[0].mxu0
    %v5819 = vadd.f32 0.0, %v5818
    %v5820 = vpop.f32.mrb[0].mxu0
    %5821 = vdwg.mxu0
    %v5822 = vadd.f32 %v5592, %v5809
    %v5823 = vadd.f32 %v5597, %v5814
    %v5824 = vadd.f32 %v5602, %v5819
    %v5825 = vmul.f32 %v5155, %v351
    %v5826 = vmul.f32 %v5159, %v351
    %v5827 = vmul.f32 %v5165, %v351
    %5828 = vmatprep.subr.mxu0 0.0
    %5829 = vmatpush1.xpose.msra.mxu0 %v5825
    %5830 = vmatprep.subr.mxu0 0.0
    %5831 = vmatpush1.xpose.msra.mxu0 %v5826
    %5832 = vmatprep.subr.mxu0 0.0
    %5833 = vmatpush1.xpose.msra.mxu0 %v5827
    %5834 = vmatprep.subr.mxu0 0.0
    %5835 = vmatpush1.xpose.msra.mxu0 0.0
    %5836 = vmatprep.subr.mxu0 0.0
    %5837 = vmatpush1.xpose.msra.mxu0 0.0
    %5838 = vmatprep.subr.mxu0 0.0
    %5839 = vmatpush1.xpose.msra.mxu0 0.0
    %5840 = vmatprep.subr.mxu0 0.0
    %5841 = vmatpush1.xpose.msra.mxu0 0.0
    %5842 = vmatprep.subr.mxu0 0.0
    %5843 = vmatpush1.xpose.msra.mxu0 0.0
    %5844 = vmatprep.subr.mxu0 0.0
    %5845 = vmatpush1.xpose.msra.mxu0 0.0
    %5846 = vmatprep.subr.mxu0 0.0
    %5847 = vmatpush1.xpose.msra.mxu0 0.0
    %5848 = vmatprep.subr.mxu0 0.0
    %5849 = vmatpush1.xpose.msra.mxu0 0.0
    %5850 = vmatprep.subr.mxu0 0.0
    %5851 = vmatpush1.xpose.msra.mxu0 0.0
    %5852 = vmatprep.subr.mxu0 0.0
    %5853 = vmatpush1.xpose.msra.mxu0 0.0
    %5854 = vmatprep.subr.mxu0 0.0
    %5855 = vmatpush1.xpose.msra.mxu0 0.0
    %5856 = vmatprep.subr.mxu0 0.0
    %5857 = vmatpush1.xpose.msra.mxu0 0.0
    %5858 = vmatprep.subr.mxu0 0.0
    %5859 = vmatpush1.xpose.msra.mxu0 0.0
    %5860 = vmatprep.subr.mxu0 0.0
    %5861 = vmatpush1.xpose.msra.mxu0 0.0
    %5862 = vmatprep.subr.mxu0 0.0
    %5863 = vmatpush1.xpose.msra.mxu0 0.0
    %5864 = vmatprep.subr.mxu0 0.0
    %5865 = vmatpush1.xpose.msra.mxu0 0.0
    %5866 = vmatprep.subr.mxu0 0.0
    %5867 = vmatpush1.xpose.msra.mxu0 0.0
    %5868 = vmatprep.subr.mxu0 0.0
    %5869 = vmatpush1.xpose.msra.mxu0 0.0
    %5870 = vmatprep.subr.mxu0 0.0
    %5871 = vmatpush1.xpose.msra.mxu0 0.0
    %5872 = vmatprep.subr.mxu0 0.0
    %5873 = vmatpush1.xpose.msra.mxu0 0.0
    %5874 = vmatprep.subr.mxu0 0.0
    %5875 = vmatpush1.xpose.msra.mxu0 0.0
    %5876 = vmatprep.subr.mxu0 0.0
    %5877 = vmatpush1.xpose.msra.mxu0 0.0
    %5878 = vmatprep.subr.mxu0 0.0
    %5879 = vmatpush1.xpose.msra.mxu0 0.0
    %5880 = vmatprep.subr.mxu0 0.0
    %5881 = vmatpush1.xpose.msra.mxu0 0.0
    %5882 = vmatprep.subr.mxu0 0.0
    %5883 = vmatpush1.xpose.msra.mxu0 0.0
    %5884 = vmatprep.subr.mxu0 0.0
    %5885 = vmatpush1.xpose.msra.mxu0 0.0
    %5886 = vmatprep.subr.mxu0 0.0
    %5887 = vmatpush1.xpose.msra.mxu0 0.0
    %5888 = vmatprep.subr.mxu0 0.0
    %5889 = vmatpush1.xpose.msra.mxu0 0.0
    %5890 = vmatprep.subr.mxu0 0.0
    %5891 = vmatpush1.xpose.msra.mxu0 0.0
    %5892 = vmatprep.mubr.f32.mxu0 0.0
    %5893 = vmatmul.mubr.f32.gmra.mrb[0].mxu0 %v4997
    %v5894 = vpop.f32.mrb[0].mxu0
    %v5895 = vadd.f32 0.0, %v5894
    %v5896 = vpop.f32.mrb[0].mxu0
    %5897 = vmatprep.mubr.f32.mxu0 0.0
    %5898 = vmatmul.mubr.f32.gmra.mrb[0].mxu0 %v5000
    %v5899 = vpop.f32.mrb[0].mxu0
    %v5900 = vadd.f32 0.0, %v5899
    %v5901 = vpop.f32.mrb[0].mxu0
    %5902 = vmatprep.mubr.f32.mxu0 0.0
    %5903 = vmatmul.mubr.f32.gmra.mrb[0].mxu0 %v5005
    %v5904 = vpop.f32.mrb[0].mxu0
    %v5905 = vadd.f32 0.0, %v5904
    %v5906 = vpop.f32.mrb[0].mxu0
    %5907 = vdwg.mxu0
    %v5908 = vmul.f32 %v5895, 0.17677669
    %v5909 = vmul.f32 %v5900, 0.17677669
    %v5910 = vmul.f32 %v5905, 0.17677669
    %v5911 = vadd.f32 %v5908, %v416
    %v5912 = vadd.f32 %v5909, %v417
    %v5913 = vadd.f32 %v5910, %v418
    %v5914 = vsel %vm789, %v5911, -inf
    %5915 = vmax.xlane.f32.xlu0 %v5914
    %v5916 = vpop.xlane.xlu0 %5915
    %v5917 = vsel %vm789, %v5912, -inf
    %5918 = vmax.xlane.f32.xlu0 %v5917
    %v5919 = vpop.xlane.xlu0 %5918
    %v5920 = vsel %vm796, %v5913, -inf
    %5921 = vmax.xlane.f32.xlu0 %v5920
    %v5922 = vpop.xlane.xlu0 %5921
    %v5923 = vsub.f32 %v5911, %v5916
    %v5924 = vsub.f32 %v5912, %v5919
    %v5925 = vsub.f32 %v5913, %v5922
    %v5926 = vmul.f32 %v5923, 1.442695
    %v5927 = vpow.pop %v5926
    %v5928 = vmul.f32 %v5924, 1.442695
    %v5929 = vpow.pop %v5928
    %v5930 = vmul.f32 %v5925, 1.442695
    %v5931 = vpow.pop %v5930
    %v5932 = vsel %vm789, %v5927, 0.0
    %5933 = vadd.xlane.f32.xlu0 %v5932
    %v5934 = vpop.xlane.xlu0 %5933
    %v5935 = vsel %vm789, %v5929, 0.0
    %5936 = vadd.xlane.f32.xlu0 %v5935
    %v5937 = vpop.xlane.xlu0 %5936
    %v5938 = vsel %vm796, %v5931, 0.0
    %5939 = vadd.xlane.f32.xlu0 %v5938
    %v5940 = vpop.xlane.xlu0 %5939
    %v5941 = vrcp.pop %v5934
    %v5942 = vrcp.pop %v5937
    %v5943 = vrcp.pop %v5940
    %v5944 = vmul.f32 %v5927, %v5941
    %v5945 = vmul.f32 %v5929, %v5942
    %v5946 = vmul.f32 %v5931, %v5943
    %v5947 = vmul.f32 %v5157, %v351
    %v5948 = vmul.f32 %v5161, %v351
    %v5949 = vmul.f32 %v5167, %v351
    %v5951 = vsel %vm789, %v5944, 0
    %v5954 = vsel %vm789, %v5945, 0
    %v5957 = vsel %vm789, %v5946, 0
    %v5960 = vsel %vm961, %v5949, 0
    %5962 = vmatprep.subr.mxu0 0.0
    %5963 = vmatpush1.msra.mxu0 %v5947
    %5964 = vmatprep.subr.mxu0 0.0
    %5965 = vmatpush1.msra.mxu0 %v5948
    %5966 = vmatprep.subr.mxu0 0.0
    %5967 = vmatpush1.msra.mxu0 %v5960
    %5968 = vmatprep.subr.mxu0 0.0
    %5969 = vmatpush1.msra.mxu0 0.0
    %5970 = vmatprep.subr.mxu0 0.0
    %5971 = vmatpush1.msra.mxu0 0.0
    %5972 = vmatprep.subr.mxu0 0.0
    %5973 = vmatpush1.msra.mxu0 0.0
    %5974 = vmatprep.subr.mxu0 0.0
    %5975 = vmatpush1.msra.mxu0 0.0
    %5976 = vmatprep.subr.mxu0 0.0
    %5977 = vmatpush1.msra.mxu0 0.0
    %5978 = vmatprep.subr.mxu0 0.0
    %5979 = vmatpush1.msra.mxu0 0.0
    %5980 = vmatprep.subr.mxu0 0.0
    %5981 = vmatpush1.msra.mxu0 0.0
    %5982 = vmatprep.subr.mxu0 0.0
    %5983 = vmatpush1.msra.mxu0 0.0
    %5984 = vmatprep.subr.mxu0 0.0
    %5985 = vmatpush1.msra.mxu0 0.0
    %5986 = vmatprep.subr.mxu0 0.0
    %5987 = vmatpush1.msra.mxu0 0.0
    %5988 = vmatprep.subr.mxu0 0.0
    %5989 = vmatpush1.msra.mxu0 0.0
    %5990 = vmatprep.subr.mxu0 0.0
    %5991 = vmatpush1.msra.mxu0 0.0
    %5992 = vmatprep.subr.mxu0 0.0
    %5993 = vmatpush1.msra.mxu0 0.0
    %5994 = vmatprep.subr.mxu0 0.0
    %5995 = vmatpush1.msra.mxu0 0.0
    %5996 = vmatprep.subr.mxu0 0.0
    %5997 = vmatpush1.msra.mxu0 0.0
    %5998 = vmatprep.subr.mxu0 0.0
    %5999 = vmatpush1.msra.mxu0 0.0
    %6000 = vmatprep.subr.mxu0 0.0
    %6001 = vmatpush1.msra.mxu0 0.0
    %6002 = vmatprep.subr.mxu0 0.0
    %6003 = vmatpush1.msra.mxu0 0.0
    %6004 = vmatprep.subr.mxu0 0.0
    %6005 = vmatpush1.msra.mxu0 0.0
    %6006 = vmatprep.subr.mxu0 0.0
    %6007 = vmatpush1.msra.mxu0 0.0
    %6008 = vmatprep.subr.mxu0 0.0
    %6009 = vmatpush1.msra.mxu0 0.0
    %6010 = vmatprep.subr.mxu0 0.0
    %6011 = vmatpush1.msra.mxu0 0.0
    %6012 = vmatprep.subr.mxu0 0.0
    %6013 = vmatpush1.msra.mxu0 0.0
    %6014 = vmatprep.subr.mxu0 0.0
    %6015 = vmatpush1.msra.mxu0 0.0
    %6016 = vmatprep.subr.mxu0 0.0
    %6017 = vmatpush1.msra.mxu0 0.0
    %6018 = vmatprep.subr.mxu0 0.0
    %6019 = vmatpush1.msra.mxu0 0.0
    %6020 = vmatprep.subr.mxu0 0.0
    %6021 = vmatpush1.msra.mxu0 0.0
    %6022 = vmatprep.subr.mxu0 0.0
    %6023 = vmatpush1.msra.mxu0 0.0
    %6024 = vmatprep.subr.mxu0 0.0
    %6025 = vmatpush1.msra.mxu0 0.0
    %6026 = vmatprep.mubr.f32.mxu0 0.0
    %6027 = vmatmul.mubr.f32.gmra.mrb[0].mxu0 %v5951
    %v6028 = vpop.f32.mrb[0].mxu0
    %v6029 = vadd.f32 0.0, %v6028
    %v6030 = vpop.f32.mrb[0].mxu0
    %6031 = vmatprep.mubr.f32.mxu0 0.0
    %6032 = vmatmul.mubr.f32.gmra.mrb[0].mxu0 %v5954
    %v6033 = vpop.f32.mrb[0].mxu0
    %v6034 = vadd.f32 0.0, %v6033
    %v6035 = vpop.f32.mrb[0].mxu0
    %6036 = vmatprep.mubr.f32.mxu0 0.0
    %6037 = vmatmul.mubr.f32.gmra.mrb[0].mxu0 %v5957
    %v6038 = vpop.f32.mrb[0].mxu0
    %v6039 = vadd.f32 0.0, %v6038
    %v6040 = vpop.f32.mrb[0].mxu0
    %6041 = vdwg.mxu0
    %v6042 = vadd.f32 %v5822, %v6029
    %v6043 = vadd.f32 %v5823, %v6034
    %v6044 = vadd.f32 %v5824, %v6039
    %s6045 = scalar_lea.vmem [#allocation12], 64
    %v6046 = vld [vmem:[%s6045] sm:$0xf]
    %v6047 = vld [vmem:[%s6045 + $0x4] sm:$0xf]
    %v6048 = vld [vmem:[%s6045 + $0x8] sm:$0xf]
    %v6049 = vld [vmem:[%s6045 + $0xc] sm:$0xf]
    %v6050 = vld [vmem:[%s6045 + $0x10] sm:$0xf]
    %v6051 = vld [vmem:[%s6045 + $0x14] sm:$0xf]
    %v6052 = vld [vmem:[%s6045 + $0x18] sm:$0xf]
    %v6053 = vld [vmem:[%s6045 + $0x1c] sm:$0xf]
    %v6054 = vld [vmem:[%s6045 + $0x20] sm:$0xf]
    %v6055 = vld [vmem:[%s6045 + $0x24] sm:$0xf]
    %v6056 = vld [vmem:[%s6045 + $0x28] sm:$0xf]
    %v6057 = vld [vmem:[%s6045 + $0x2c] sm:$0xf]
    %v6058 = vld [vmem:[%s6045 + $0x30] sm:$0xf]
    %v6059 = vld [vmem:[%s6045 + $0x34] sm:$0xf]
    %v6060 = vld [vmem:[%s6045 + $0x38] sm:$0xf]
    %v6061 = vld [vmem:[%s6045 + $0x3c] sm:$0xf]
    %s6062 = scalar_lea.vmem [#allocation14], 1
    %v6063 = vld [vmem:[%s6062] sm:$0x1]
    %v6064 = vpack.c.bf16 %v6043, %v6042
    %v6065 = vpack.c.bf16 %v6044, %v6044
    %v6067 = vlaneseq
    %v6068 = vshrl.u32 %v6067, 7
    %v6069 = vsub.s32 0, %v6068
    %v6070 = vrot.slane %v6063, %v6069
    %v6088 = vunpack.c.l.b16 %v6046
    %v6089 = vunpack.c.l.b16 %v6047
    %v6090 = vunpack.c.l.b16 %v6048
    %v6091 = vunpack.c.l.b16 %v6049
    %v6092 = vunpack.c.l.b16 %v6050
    %v6093 = vunpack.c.l.b16 %v6051
    %v6094 = vunpack.c.l.b16 %v6052
    %v6095 = vunpack.c.l.b16 %v6053
    %v6096 = vunpack.c.l.b16 %v6054
    %v6097 = vunpack.c.l.b16 %v6055
    %v6098 = vunpack.c.l.b16 %v6056
    %v6099 = vunpack.c.l.b16 %v6057
    %v6100 = vunpack.c.l.b16 %v6058
    %v6101 = vunpack.c.l.b16 %v6059
    %v6102 = vunpack.c.l.b16 %v6060
    %v6103 = vunpack.c.l.b16 %v6061
    %v6104 = vpack.c.b16 %v6089, %v6088
    %v6105 = vpack.c.b16 %v6091, %v6090
    %v6106 = vpack.c.b16 %v6093, %v6092
    %v6107 = vpack.c.b16 %v6095, %v6094
    %v6108 = vpack.c.b16 %v6097, %v6096
    %v6109 = vpack.c.b16 %v6099, %v6098
    %v6110 = vpack.c.b16 %v6101, %v6100
    %v6111 = vpack.c.b16 %v6103, %v6102
    %6120 = vmatprep.subr.bf16.mxu0 0
    %6121 = vmatpush1.bf16.msra.mxu0 %v6104
    %6122 = vmatprep.subr.bf16.mxu0 0
    %6123 = vmatpush1.bf16.msra.mxu0 %v6105
    %6124 = vmatprep.subr.bf16.mxu0 0
    %6125 = vmatpush1.bf16.msra.mxu0 %v6106
    %6126 = vmatprep.subr.bf16.mxu0 0
    %6127 = vmatpush1.bf16.msra.mxu0 %v6107
    %6128 = vmatprep.subr.bf16.mxu0 0
    %6129 = vmatpush1.bf16.msra.mxu0 %v6108
    %6130 = vmatprep.subr.bf16.mxu0 0
    %6131 = vmatpush1.bf16.msra.mxu0 %v6109
    %6132 = vmatprep.subr.bf16.mxu0 0
    %6133 = vmatpush1.bf16.msra.mxu0 %v6110
    %6134 = vmatprep.subr.bf16.mxu0 0
    %6135 = vmatpush1.bf16.msra.mxu0 %v6111
    %6136 = vmatprep.subr.bf16.mxu0 0
    %6137 = vmatpush1.bf16.msra.mxu0 0
    %6138 = vmatprep.subr.bf16.mxu0 0
    %6139 = vmatpush1.bf16.msra.mxu0 0
    %6140 = vmatprep.subr.bf16.mxu0 0
    %6141 = vmatpush1.bf16.msra.mxu0 0
    %6142 = vmatprep.subr.bf16.mxu0 0
    %6143 = vmatpush1.bf16.msra.mxu0 0
    %6144 = vmatprep.subr.bf16.mxu0 0
    %6145 = vmatpush1.bf16.msra.mxu0 0
    %6146 = vmatprep.subr.bf16.mxu0 0
    %6147 = vmatpush1.bf16.msra.mxu0 0
    %6148 = vmatprep.subr.bf16.mxu0 0
    %6149 = vmatpush1.bf16.msra.mxu0 0
    %6150 = vmatprep.subr.bf16.mxu0 0
    %6151 = vmatpush1.bf16.msra.mxu0 0
    %6152 = vmatprep.mubr.bf16.mxu0 0
    %6153 = vmatmul.mubr.bf16.gmra.mrb[0].mxu0 %v6064
    %v6154 = vpop.f32.mrb[0].mxu0
    %v6155 = vadd.f32 %v6070, %v6154
    %v6156 = vpop.f32.mrb[0].mxu0
    %v6157 = vpop.f32.mrb[0].mxu0
    %v6158 = vadd.f32 %v6070, %v6157
    %v6159 = vpop.f32.mrb[0].mxu0
    %6160 = vmatprep.mubr.bf16.mxu0 0
    %6161 = vmatmul.mubr.bf16.gmra.mrb[0].mxu0 %v6065
    %v6162 = vpop.f32.mrb[0].mxu0
    %v6163 = vadd.f32 %v6070, %v6162
    %v6164 = vpop.f32.mrb[0].mxu0
    %v6165 = vpop.f32.mrb[0].mxu0
    %v6166 = vpop.f32.mrb[0].mxu0
    %6167 = vdwg.mxu0
    %v6168 = vadd.f32 %v4884, %v6155
    %v6169 = vadd.f32 %v4885, %v6158
    %v6170 = vadd.f32 %v4886, %v6163
    %s6171 = scalar_lea.vmem [#allocation18], 1
    %v6172 = vld [vmem:[%s6171] sm:$0x1]
    %s6173 = scalar_lea.vmem [#allocation20], 1
    %v6174 = vld [vmem:[%s6173] sm:$0x1]
    %6175 = vadd.xlane.f32.xlu0 %v6168
    %v6176 = vpop.xlane.xlu0 %6175
    %6177 = vadd.xlane.f32.xlu0 %v6169
    %v6178 = vpop.xlane.xlu0 %6177
    %v6179 = vsel %vm961, %v6170, 0.0
    %6180 = vadd.xlane.f32.xlu0 %v6179
    %v6181 = vpop.xlane.xlu0 %6180
    %v6182 = vmul.f32 %v6176, %v1710
    %v6183 = vmul.f32 %v6178, %v1710
    %v6184 = vmul.f32 %v6181, %v1710
    %v6185 = vsub.f32 %v6168, %v6182
    %v6186 = vsub.f32 %v6169, %v6183
    %v6187 = vsub.f32 %v6170, %v6184
    %v6188 = vmul.f32 %v6185, %v6185
    %v6189 = vmul.f32 %v6186, %v6186
    %v6190 = vmul.f32 %v6187, %v6187
    %6191 = vadd.xlane.f32.xlu0 %v6188
    %v6192 = vpop.xlane.xlu0 %6191
    %6193 = vadd.xlane.f32.xlu0 %v6189
    %v6194 = vpop.xlane.xlu0 %6193
    %v6195 = vsel %vm961, %v6190, 0.0
    %6196 = vadd.xlane.f32.xlu0 %v6195
    %v6197 = vpop.xlane.xlu0 %6196
    %v6198 = vmul.f32 %v6192, %v1710
    %v6199 = vmul.f32 %v6194, %v1710
    %v6200 = vmul.f32 %v6197, %v1710
    %v6201 = vadd.f32 %v6198, 1e-05
    %v6202 = vadd.f32 %v6199, 1e-05
    %v6203 = vadd.f32 %v6200, 1e-05
    %v6204 = vrsqrt.pop %v6201
    %v6205 = vrsqrt.pop %v6202
    %v6206 = vrsqrt.pop %v6203
    %v6207 = vmul.f32 %v6185, %v6204
    %v6208 = vmul.f32 %v6186, %v6205
    %v6209 = vmul.f32 %v6187, %v6206
    %v6211 = vlaneseq
    %v6212 = vshrl.u32 %v6211, 7
    %v6213 = vsub.s32 0, %v6212
    %v6214 = vrot.slane %v6172, %v6213
    %v6216 = vmul.f32 %v6207, %v6214
    %v6217 = vmul.f32 %v6208, %v6214
    %v6218 = vmul.f32 %v6209, %v6214
    %v6220 = vlaneseq
    %v6221 = vshrl.u32 %v6220, 7
    %v6222 = vsub.s32 0, %v6221
    %v6223 = vrot.slane %v6174, %v6222
    %v6225 = vadd.f32 %v6216, %v6223
    %v6226 = vadd.f32 %v6217, %v6223
    %v6227 = vadd.f32 %v6218, %v6223
    %s6228 = scalar_lea.vmem [#allocation24], 128
    %v6229 = vld [vmem:[%s6228] sm:$0xff]
    %v6230 = vld [vmem:[%s6228 + $0x8] sm:$0xff]
    %v6231 = vld [vmem:[%s6228 + $0x10] sm:$0xff]
    %v6232 = vld [vmem:[%s6228 + $0x18] sm:$0xff]
    %v6233 = vld [vmem:[%s6228 + $0x20] sm:$0xff]
    %v6234 = vld [vmem:[%s6228 + $0x28] sm:$0xff]
    %v6235 = vld [vmem:[%s6228 + $0x30] sm:$0xff]
    %v6236 = vld [vmem:[%s6228 + $0x38] sm:$0xff]
    %v6237 = vld [vmem:[%s6228 + $0x40] sm:$0xff]
    %v6238 = vld [vmem:[%s6228 + $0x48] sm:$0xff]
    %v6239 = vld [vmem:[%s6228 + $0x50] sm:$0xff]
    %v6240 = vld [vmem:[%s6228 + $0x58] sm:$0xff]
    %v6241 = vld [vmem:[%s6228 + $0x60] sm:$0xff]
    %v6242 = vld [vmem:[%s6228 + $0x68] sm:$0xff]
    %v6243 = vld [vmem:[%s6228 + $0x70] sm:$0xff]
    %v6244 = vld [vmem:[%s6228 + $0x78] sm:$0xff]
    %s6245 = scalar_lea.vmem [#allocation26], 2
    %v6246 = vld [vmem:[%s6245] sm:$0x3]
    %v6247 = vpack.c.bf16 %v6226, %v6225
    %v6248 = vpack.c.bf16 %v6227, %v6227
    %v6250 = vlaneseq
    %v6251 = vshrl.u32 %v6250, 7
    %v6252 = vsub.s32 0, %v6251
    %v6253 = vrot.slane %v6246, %v6252
    %v6254 = vlaneseq
    %v6255 = vshrl.u32 %v6254, 7
    %v6256 = vsub.s32 1, %v6255
    %v6257 = vrot.slane %v6246, %v6256
    %v6276 = vunpack.c.l.b16 %v6229
    %v6277 = vunpack.c.h.b16 %v6229
    %v6278 = vunpack.c.l.b16 %v6230
    %v6279 = vunpack.c.h.b16 %v6230
    %v6280 = vunpack.c.l.b16 %v6231
    %v6281 = vunpack.c.h.b16 %v6231
    %v6282 = vunpack.c.l.b16 %v6232
    %v6283 = vunpack.c.h.b16 %v6232
    %v6284 = vunpack.c.l.b16 %v6233
    %v6285 = vunpack.c.h.b16 %v6233
    %v6286 = vunpack.c.l.b16 %v6234
    %v6287 = vunpack.c.h.b16 %v6234
    %v6288 = vunpack.c.l.b16 %v6235
    %v6289 = vunpack.c.h.b16 %v6235
    %v6290 = vunpack.c.l.b16 %v6236
    %v6291 = vunpack.c.h.b16 %v6236
    %v6292 = vunpack.c.l.b16 %v6237
    %v6293 = vunpack.c.h.b16 %v6237
    %v6294 = vunpack.c.l.b16 %v6238
    %v6295 = vunpack.c.h.b16 %v6238
    %v6296 = vunpack.c.l.b16 %v6239
    %v6297 = vunpack.c.h.b16 %v6239
    %v6298 = vunpack.c.l.b16 %v6240
    %v6299 = vunpack.c.h.b16 %v6240
    %v6300 = vunpack.c.l.b16 %v6241
    %v6301 = vunpack.c.h.b16 %v6241
    %v6302 = vunpack.c.l.b16 %v6242
    %v6303 = vunpack.c.h.b16 %v6242
    %v6304 = vunpack.c.l.b16 %v6243
    %v6305 = vunpack.c.h.b16 %v6243
    %v6306 = vunpack.c.l.b16 %v6244
    %v6307 = vunpack.c.h.b16 %v6244
    %v6308 = vpack.c.b16 %v6278, %v6276
    %v6309 = vpack.c.b16 %v6279, %v6277
    %v6310 = vpack.c.b16 %v6282, %v6280
    %v6311 = vpack.c.b16 %v6283, %v6281
    %v6312 = vpack.c.b16 %v6286, %v6284
    %v6313 = vpack.c.b16 %v6287, %v6285
    %v6314 = vpack.c.b16 %v6290, %v6288
    %v6315 = vpack.c.b16 %v6291, %v6289
    %v6316 = vpack.c.b16 %v6294, %v6292
    %v6317 = vpack.c.b16 %v6295, %v6293
    %v6318 = vpack.c.b16 %v6298, %v6296
    %v6319 = vpack.c.b16 %v6299, %v6297
    %v6320 = vpack.c.b16 %v6302, %v6300
    %v6321 = vpack.c.b16 %v6303, %v6301
    %v6322 = vpack.c.b16 %v6306, %v6304
    %v6323 = vpack.c.b16 %v6307, %v6305
    %6340 = vmatprep.subr.bf16.mxu0 %v6309
    %6341 = vmatpush1.bf16.msra.mxu0 %v6308
    %6342 = vmatprep.subr.bf16.mxu0 %v6311
    %6343 = vmatpush1.bf16.msra.mxu0 %v6310
    %6344 = vmatprep.subr.bf16.mxu0 %v6313
    %6345 = vmatpush1.bf16.msra.mxu0 %v6312
    %6346 = vmatprep.subr.bf16.mxu0 %v6315
    %6347 = vmatpush1.bf16.msra.mxu0 %v6314
    %6348 = vmatprep.subr.bf16.mxu0 %v6317
    %6349 = vmatpush1.bf16.msra.mxu0 %v6316
    %6350 = vmatprep.subr.bf16.mxu0 %v6319
    %6351 = vmatpush1.bf16.msra.mxu0 %v6318
    %6352 = vmatprep.subr.bf16.mxu0 %v6321
    %6353 = vmatpush1.bf16.msra.mxu0 %v6320
    %6354 = vmatprep.subr.bf16.mxu0 %v6323
    %6355 = vmatpush1.bf16.msra.mxu0 %v6322
    %6356 = vmatprep.subr.bf16.mxu0 0
    %6357 = vmatpush1.bf16.msra.mxu0 0
    %6358 = vmatprep.subr.bf16.mxu0 0
    %6359 = vmatpush1.bf16.msra.mxu0 0
    %6360 = vmatprep.subr.bf16.mxu0 0
    %6361 = vmatpush1.bf16.msra.mxu0 0
    %6362 = vmatprep.subr.bf16.mxu0 0
    %6363 = vmatpush1.bf16.msra.mxu0 0
    %6364 = vmatprep.subr.bf16.mxu0 0
    %6365 = vmatpush1.bf16.msra.mxu0 0
    %6366 = vmatprep.subr.bf16.mxu0 0
    %6367 = vmatpush1.bf16.msra.mxu0 0
    %6368 = vmatprep.subr.bf16.mxu0 0
    %6369 = vmatpush1.bf16.msra.mxu0 0
    %6370 = vmatprep.subr.bf16.mxu0 0
    %6371 = vmatpush1.bf16.msra.mxu0 0
    %6372 = vmatprep.mubr.bf16.mxu0 0
    %6373 = vmatmul.mubr.bf16.gmra.mrb[0].mxu0 %v6247
    %v6374 = vpop.f32.mrb[0].mxu0
    %v6375 = vadd.f32 %v6253, %v6374
    %v6376 = vpop.f32.mrb[0].mxu0
    %v6377 = vadd.f32 %v6257, %v6376
    %v6378 = vpop.f32.mrb[0].mxu0
    %v6379 = vadd.f32 %v6253, %v6378
    %v6380 = vpop.f32.mrb[0].mxu0
    %v6381 = vadd.f32 %v6257, %v6380
    %6382 = vmatprep.mubr.bf16.mxu0 0
    %6383 = vmatmul.mubr.bf16.gmra.mrb[0].mxu0 %v6248
    %v6384 = vpop.f32.mrb[0].mxu0
    %v6385 = vadd.f32 %v6253, %v6384
    %v6386 = vpop.f32.mrb[0].mxu0
    %v6387 = vadd.f32 %v6257, %v6386
    %v6388 = vpop.f32.mrb[0].mxu0
    %v6389 = vpop.f32.mrb[0].mxu0
    %6390 = vdwg.mxu0
    %v6391 = vmul.f32 %v6375, 0.5
    %v6392 = vmul.f32 %v6377, 0.5
    %v6393 = vmul.f32 %v6379, 0.5
    %v6394 = vmul.f32 %v6381, 0.5
    %v6395 = vmul.f32 %v6385, 0.5
    %v6396 = vmul.f32 %v6387, 0.5
    %v6397 = vmul.f32 %v6375, 0.044715
    %v6398 = vmul.f32 %v6377, 0.044715
    %v6399 = vmul.f32 %v6379, 0.044715
    %v6400 = vmul.f32 %v6381, 0.044715
    %v6401 = vmul.f32 %v6385, 0.044715
    %v6402 = vmul.f32 %v6387, 0.044715
    %v6403 = vmul.f32 %v6397, %v6375
    %v6404 = vmul.f32 %v6398, %v6377
    %v6405 = vmul.f32 %v6399, %v6379
    %v6406 = vmul.f32 %v6400, %v6381
    %v6407 = vmul.f32 %v6401, %v6385
    %v6408 = vmul.f32 %v6402, %v6387
    %v6409 = vmul.f32 %v6403, %v6375
    %v6410 = vmul.f32 %v6404, %v6377
    %v6411 = vmul.f32 %v6405, %v6379
    %v6412 = vmul.f32 %v6406, %v6381
    %v6413 = vmul.f32 %v6407, %v6385
    %v6414 = vmul.f32 %v6408, %v6387
    %v6415 = vadd.f32 %v6375, %v6409
    %v6416 = vadd.f32 %v6377, %v6410
    %v6417 = vadd.f32 %v6379, %v6411
    %v6418 = vadd.f32 %v6381, %v6412
    %v6419 = vadd.f32 %v6385, %v6413
    %v6420 = vadd.f32 %v6387, %v6414
    %v6421 = vmul.f32 %v6415, 0.7978846
    %v6422 = vmul.f32 %v6416, 0.7978846
    %v6423 = vmul.f32 %v6417, 0.7978846
    %v6424 = vmul.f32 %v6418, 0.7978846
    %v6425 = vmul.f32 %v6419, 0.7978846
    %v6426 = vmul.f32 %v6420, 0.7978846
    %v6427 = vtanh.pop %v6421
    %v6428 = vtanh.pop %v6422
    %v6429 = vtanh.pop %v6423
    %v6430 = vtanh.pop %v6424
    %v6431 = vtanh.pop %v6425
    %v6432 = vtanh.pop %v6426
    %v6433 = vadd.f32 %v6427, 1.0
    %v6434 = vadd.f32 %v6428, 1.0
    %v6435 = vadd.f32 %v6429, 1.0
    %v6436 = vadd.f32 %v6430, 1.0
    %v6437 = vadd.f32 %v6431, 1.0
    %v6438 = vadd.f32 %v6432, 1.0
    %v6439 = vmul.f32 %v6391, %v6433
    %v6440 = vmul.f32 %v6392, %v6434
    %v6441 = vmul.f32 %v6393, %v6435
    %v6442 = vmul.f32 %v6394, %v6436
    %v6443 = vmul.f32 %v6395, %v6437
    %v6444 = vmul.f32 %v6396, %v6438
    %s6445 = scalar_lea.vmem [#allocation27], 128
    %v6446 = vld [vmem:[%s6445] sm:$0xf]
    %v6447 = vld [vmem:[%s6445 + $0x4] sm:$0xf]
    %v6448 = vld [vmem:[%s6445 + $0x8] sm:$0xf]
    %v6449 = vld [vmem:[%s6445 + $0xc] sm:$0xf]
    %v6450 = vld [vmem:[%s6445 + $0x10] sm:$0xf]
    %v6451 = vld [vmem:[%s6445 + $0x14] sm:$0xf]
    %v6452 = vld [vmem:[%s6445 + $0x18] sm:$0xf]
    %v6453 = vld [vmem:[%s6445 + $0x1c] sm:$0xf]
    %v6454 = vld [vmem:[%s6445 + $0x20] sm:$0xf]
    %v6455 = vld [vmem:[%s6445 + $0x24] sm:$0xf]
    %v6456 = vld [vmem:[%s6445 + $0x28] sm:$0xf]
    %v6457 = vld [vmem:[%s6445 + $0x2c] sm:$0xf]
    %v6458 = vld [vmem:[%s6445 + $0x30] sm:$0xf]
    %v6459 = vld [vmem:[%s6445 + $0x34] sm:$0xf]
    %v6460 = vld [vmem:[%s6445 + $0x38] sm:$0xf]
    %v6461 = vld [vmem:[%s6445 + $0x3c] sm:$0xf]
    %v6462 = vld [vmem:[%s6445 + $0x40] sm:$0xf]
    %v6463 = vld [vmem:[%s6445 + $0x44] sm:$0xf]
    %v6464 = vld [vmem:[%s6445 + $0x48] sm:$0xf]
    %v6465 = vld [vmem:[%s6445 + $0x4c] sm:$0xf]
    %v6466 = vld [vmem:[%s6445 + $0x50] sm:$0xf]
    %v6467 = vld [vmem:[%s6445 + $0x54] sm:$0xf]
    %v6468 = vld [vmem:[%s6445 + $0x58] sm:$0xf]
    %v6469 = vld [vmem:[%s6445 + $0x5c] sm:$0xf]
    %v6470 = vld [vmem:[%s6445 + $0x60] sm:$0xf]
    %v6471 = vld [vmem:[%s6445 + $0x64] sm:$0xf]
    %v6472 = vld [vmem:[%s6445 + $0x68] sm:$0xf]
    %v6473 = vld [vmem:[%s6445 + $0x6c] sm:$0xf]
    %v6474 = vld [vmem:[%s6445 + $0x70] sm:$0xf]
    %v6475 = vld [vmem:[%s6445 + $0x74] sm:$0xf]
    %v6476 = vld [vmem:[%s6445 + $0x78] sm:$0xf]
    %v6477 = vld [vmem:[%s6445 + $0x7c] sm:$0xf]
    %s6478 = scalar_lea.vmem [#allocation29], 1
    %v6479 = vld [vmem:[%s6478] sm:$0x1]
    %v6480 = vpack.c.bf16 %v6441, %v6439
    %v6481 = vpack.c.bf16 %v6442, %v6440
    %v6482 = vpack.c.bf16 %v6443, %v6443
    %v6483 = vpack.c.bf16 %v6444, %v6444
    %v6485 = vlaneseq
    %v6486 = vshrl.u32 %v6485, 7
    %v6487 = vsub.s32 0, %v6486
    %v6488 = vrot.slane %v6479, %v6487
    %v6522 = vunpack.c.l.b16 %v6446
    %v6523 = vunpack.c.l.b16 %v6447
    %v6524 = vunpack.c.l.b16 %v6448
    %v6525 = vunpack.c.l.b16 %v6449
    %v6526 = vunpack.c.l.b16 %v6450
    %v6527 = vunpack.c.l.b16 %v6451
    %v6528 = vunpack.c.l.b16 %v6452
    %v6529 = vunpack.c.l.b16 %v6453
    %v6530 = vunpack.c.l.b16 %v6454
    %v6531 = vunpack.c.l.b16 %v6455
    %v6532 = vunpack.c.l.b16 %v6456
    %v6533 = vunpack.c.l.b16 %v6457
    %v6534 = vunpack.c.l.b16 %v6458
    %v6535 = vunpack.c.l.b16 %v6459
    %v6536 = vunpack.c.l.b16 %v6460
    %v6537 = vunpack.c.l.b16 %v6461
    %v6538 = vunpack.c.l.b16 %v6462
    %v6539 = vunpack.c.l.b16 %v6463
    %v6540 = vunpack.c.l.b16 %v6464
    %v6541 = vunpack.c.l.b16 %v6465
    %v6542 = vunpack.c.l.b16 %v6466
    %v6543 = vunpack.c.l.b16 %v6467
    %v6544 = vunpack.c.l.b16 %v6468
    %v6545 = vunpack.c.l.b16 %v6469
    %v6546 = vunpack.c.l.b16 %v6470
    %v6547 = vunpack.c.l.b16 %v6471
    %v6548 = vunpack.c.l.b16 %v6472
    %v6549 = vunpack.c.l.b16 %v6473
    %v6550 = vunpack.c.l.b16 %v6474
    %v6551 = vunpack.c.l.b16 %v6475
    %v6552 = vunpack.c.l.b16 %v6476
    %v6553 = vunpack.c.l.b16 %v6477
    %v6554 = vpack.c.b16 %v6523, %v6522
    %v6555 = vpack.c.b16 %v6525, %v6524
    %v6556 = vpack.c.b16 %v6527, %v6526
    %v6557 = vpack.c.b16 %v6529, %v6528
    %v6558 = vpack.c.b16 %v6531, %v6530
    %v6559 = vpack.c.b16 %v6533, %v6532
    %v6560 = vpack.c.b16 %v6535, %v6534
    %v6561 = vpack.c.b16 %v6537, %v6536
    %v6562 = vpack.c.b16 %v6539, %v6538
    %v6563 = vpack.c.b16 %v6541, %v6540
    %v6564 = vpack.c.b16 %v6543, %v6542
    %v6565 = vpack.c.b16 %v6545, %v6544
    %v6566 = vpack.c.b16 %v6547, %v6546
    %v6567 = vpack.c.b16 %v6549, %v6548
    %v6568 = vpack.c.b16 %v6551, %v6550
    %v6569 = vpack.c.b16 %v6553, %v6552
    %6586 = vmatprep.subr.bf16.mxu0 0
    %6587 = vmatpush1.bf16.msra.mxu0 %v6554
    %6588 = vmatprep.subr.bf16.mxu0 0
    %6589 = vmatpush1.bf16.msra.mxu0 %v6555
    %6590 = vmatprep.subr.bf16.mxu0 0
    %6591 = vmatpush1.bf16.msra.mxu0 %v6556
    %6592 = vmatprep.subr.bf16.mxu0 0
    %6593 = vmatpush1.bf16.msra.mxu0 %v6557
    %6594 = vmatprep.subr.bf16.mxu0 0
    %6595 = vmatpush1.bf16.msra.mxu0 %v6558
    %6596 = vmatprep.subr.bf16.mxu0 0
    %6597 = vmatpush1.bf16.msra.mxu0 %v6559
    %6598 = vmatprep.subr.bf16.mxu0 0
    %6599 = vmatpush1.bf16.msra.mxu0 %v6560
    %6600 = vmatprep.subr.bf16.mxu0 0
    %6601 = vmatpush1.bf16.msra.mxu0 %v6561
    %6602 = vmatprep.subr.bf16.mxu0 0
    %6603 = vmatpush1.bf16.msra.mxu0 %v6562
    %6604 = vmatprep.subr.bf16.mxu0 0
    %6605 = vmatpush1.bf16.msra.mxu0 %v6563
    %6606 = vmatprep.subr.bf16.mxu0 0
    %6607 = vmatpush1.bf16.msra.mxu0 %v6564
    %6608 = vmatprep.subr.bf16.mxu0 0
    %6609 = vmatpush1.bf16.msra.mxu0 %v6565
    %6610 = vmatprep.subr.bf16.mxu0 0
    %6611 = vmatpush1.bf16.msra.mxu0 %v6566
    %6612 = vmatprep.subr.bf16.mxu0 0
    %6613 = vmatpush1.bf16.msra.mxu0 %v6567
    %6614 = vmatprep.subr.bf16.mxu0 0
    %6615 = vmatpush1.bf16.msra.mxu0 %v6568
    %6616 = vmatprep.subr.bf16.mxu0 0
    %6617 = vmatpush1.bf16.msra.mxu0 %v6569
    %6618 = vmatprep.mubr.bf16.mxu0 %v6481
    %6619 = vmatmul.mubr.bf16.gmra.mrb[0].mxu0 %v6480
    %v6620 = vpop.f32.mrb[0].mxu0
    %v6621 = vadd.f32 %v6488, %v6620
    %v6622 = vpop.f32.mrb[0].mxu0
    %v6623 = vpop.f32.mrb[0].mxu0
    %v6624 = vadd.f32 %v6488, %v6623
    %v6625 = vpop.f32.mrb[0].mxu0
    %6626 = vmatprep.mubr.bf16.mxu0 %v6483
    %6627 = vmatmul.mubr.bf16.gmra.mrb[0].mxu0 %v6482
    %v6628 = vpop.f32.mrb[0].mxu0
    %v6629 = vadd.f32 %v6488, %v6628
    %v6630 = vpop.f32.mrb[0].mxu0
    %v6631 = vpop.f32.mrb[0].mxu0
    %v6632 = vpop.f32.mrb[0].mxu0
    %6633 = vdwg.mxu0
    %v6634 = vadd.f32 %v6225, %v6621
    %v6635 = vadd.f32 %v6226, %v6624
    %v6636 = vadd.f32 %v6227, %v6629
    %s6637 = scalar_lea.vmem [#allocation21], 1
    %v6638 = vld [vmem:[%s6637] sm:$0x1]
    %s6639 = scalar_lea.vmem [#allocation23], 1
    %v6640 = vld [vmem:[%s6639] sm:$0x1]
    %6641 = vadd.xlane.f32.xlu0 %v6634
    %v6642 = vpop.xlane.xlu0 %6641
    %6643 = vadd.xlane.f32.xlu0 %v6635
    %v6644 = vpop.xlane.xlu0 %6643
    %v6645 = vsel %vm961, %v6636, 0.0
    %6646 = vadd.xlane.f32.xlu0 %v6645
    %v6647 = vpop.xlane.xlu0 %6646
    %v6648 = vmul.f32 %v6642, %v1710
    %v6649 = vmul.f32 %v6644, %v1710
    %v6650 = vmul.f32 %v6647, %v1710
    %v6651 = vsub.f32 %v6634, %v6648
    %v6652 = vsub.f32 %v6635, %v6649
    %v6653 = vsub.f32 %v6636, %v6650
    %v6654 = vmul.f32 %v6651, %v6651
    %v6655 = vmul.f32 %v6652, %v6652
    %v6656 = vmul.f32 %v6653, %v6653
    %6657 = vadd.xlane.f32.xlu0 %v6654
    %v6658 = vpop.xlane.xlu0 %6657
    %6659 = vadd.xlane.f32.xlu0 %v6655
    %v6660 = vpop.xlane.xlu0 %6659
    %v6661 = vsel %vm961, %v6656, 0.0
    %6662 = vadd.xlane.f32.xlu0 %v6661
    %v6663 = vpop.xlane.xlu0 %6662
    %v6664 = vmul.f32 %v6658, %v1710
    %v6665 = vmul.f32 %v6660, %v1710
    %v6666 = vmul.f32 %v6663, %v1710
    %v6667 = vadd.f32 %v6664, 1e-05
    %v6668 = vadd.f32 %v6665, 1e-05
    %v6669 = vadd.f32 %v6666, 1e-05
    %v6670 = vrsqrt.pop %v6667
    %v6671 = vrsqrt.pop %v6668
    %v6672 = vrsqrt.pop %v6669
    %v6673 = vmul.f32 %v6651, %v6670
    %v6674 = vmul.f32 %v6652, %v6671
    %v6675 = vmul.f32 %v6653, %v6672
    %v6677 = vlaneseq
    %v6678 = vshrl.u32 %v6677, 7
    %v6679 = vsub.s32 0, %v6678
    %v6680 = vrot.slane %v6638, %v6679
    %v6682 = vmul.f32 %v6673, %v6680
    %v6683 = vmul.f32 %v6674, %v6680
    %v6684 = vmul.f32 %v6675, %v6680
    %v6686 = vlaneseq
    %v6687 = vshrl.u32 %v6686, 7
    %v6688 = vsub.s32 0, %v6687
    %v6689 = vrot.slane %v6640, %v6688
    %v6691 = vadd.f32 %v6682, %v6689
    %v6692 = vadd.f32 %v6683, %v6689
    %v6693 = vadd.f32 %v6684, %v6689
    %v6694 = vld [vmem:[%s21] sm:$0xf]
    %v6695 = vld [vmem:[%s21 + $0x4] sm:$0xf]
    %v6696 = vld [vmem:[%s21 + $0x8] sm:$0xf]
    %v6697 = vld [vmem:[%s21 + $0xc] sm:$0xf]
    %v6698 = vld [vmem:[%s21 + $0x10] sm:$0xf]
    %v6699 = vld [vmem:[%s21 + $0x14] sm:$0xf]
    %v6700 = vld [vmem:[%s21 + $0x18] sm:$0xf]
    %v6701 = vld [vmem:[%s21 + $0x1c] sm:$0xf]
    %v6702 = vld [vmem:[%s21 + $0x20] sm:$0xf]
    %v6703 = vld [vmem:[%s21 + $0x24] sm:$0xf]
    %v6704 = vld [vmem:[%s21 + $0x28] sm:$0xf]
    %v6705 = vld [vmem:[%s21 + $0x2c] sm:$0xf]
    %v6706 = vld [vmem:[%s21 + $0x30] sm:$0xf]
    %v6707 = vld [vmem:[%s21 + $0x34] sm:$0xf]
    %v6708 = vld [vmem:[%s21 + $0x38] sm:$0xf]
    %v6709 = vld [vmem:[%s21 + $0x3c] sm:$0xf]
    %v6710 = vld [vmem:[#allocation30] sm:$0x1]
    %v6711 = vpack.c.bf16 %v6692, %v6691
    %v6712 = vpack.c.bf16 %v6693, %v6693
    %v6714 = vlaneseq
    %v6715 = vshrl.u32 %v6714, 7
    %v6716 = vsub.s32 0, %v6715
    %v6717 = vrot.slane %v6710, %v6716
    %v6735 = vunpack.c.l.b16 %v6694
    %v6736 = vunpack.c.l.b16 %v6695
    %v6737 = vunpack.c.l.b16 %v6696
    %v6738 = vunpack.c.l.b16 %v6697
    %v6739 = vunpack.c.l.b16 %v6698
    %v6740 = vunpack.c.l.b16 %v6699
    %v6741 = vunpack.c.l.b16 %v6700
    %v6742 = vunpack.c.l.b16 %v6701
    %v6743 = vunpack.c.l.b16 %v6702
    %v6744 = vunpack.c.l.b16 %v6703
    %v6745 = vunpack.c.l.b16 %v6704
    %v6746 = vunpack.c.l.b16 %v6705
    %v6747 = vunpack.c.l.b16 %v6706
    %v6748 = vunpack.c.l.b16 %v6707
    %v6749 = vunpack.c.l.b16 %v6708
    %v6750 = vunpack.c.l.b16 %v6709
    %v6751 = vpack.c.b16 %v6736, %v6735
    %v6752 = vpack.c.b16 %v6738, %v6737
    %v6753 = vpack.c.b16 %v6740, %v6739
    %v6754 = vpack.c.b16 %v6742, %v6741
    %v6755 = vpack.c.b16 %v6744, %v6743
    %v6756 = vpack.c.b16 %v6746, %v6745
    %v6757 = vpack.c.b16 %v6748, %v6747
    %v6758 = vpack.c.b16 %v6750, %v6749
    %6767 = vmatprep.subr.bf16.mxu0 0
    %6768 = vmatpush1.bf16.msra.mxu0 %v6751
    %6769 = vmatprep.subr.bf16.mxu0 0
    %6770 = vmatpush1.bf16.msra.mxu0 %v6752
    %6771 = vmatprep.subr.bf16.mxu0 0
    %6772 = vmatpush1.bf16.msra.mxu0 %v6753
    %6773 = vmatprep.subr.bf16.mxu0 0
    %6774 = vmatpush1.bf16.msra.mxu0 %v6754
    %6775 = vmatprep.subr.bf16.mxu0 0
    %6776 = vmatpush1.bf16.msra.mxu0 %v6755
    %6777 = vmatprep.subr.bf16.mxu0 0
    %6778 = vmatpush1.bf16.msra.mxu0 %v6756
    %6779 = vmatprep.subr.bf16.mxu0 0
    %6780 = vmatpush1.bf16.msra.mxu0 %v6757
    %6781 = vmatprep.subr.bf16.mxu0 0
    %6782 = vmatpush1.bf16.msra.mxu0 %v6758
    %6783 = vmatprep.subr.bf16.mxu0 0
    %6784 = vmatpush1.bf16.msra.mxu0 0
    %6785 = vmatprep.subr.bf16.mxu0 0
    %6786 = vmatpush1.bf16.msra.mxu0 0
    %6787 = vmatprep.subr.bf16.mxu0 0
    %6788 = vmatpush1.bf16.msra.mxu0 0
    %6789 = vmatprep.subr.bf16.mxu0 0
    %6790 = vmatpush1.bf16.msra.mxu0 0
    %6791 = vmatprep.subr.bf16.mxu0 0
    %6792 = vmatpush1.bf16.msra.mxu0 0
    %6793 = vmatprep.subr.bf16.mxu0 0
    %6794 = vmatpush1.bf16.msra.mxu0 0
    %6795 = vmatprep.subr.bf16.mxu0 0
    %6796 = vmatpush1.bf16.msra.mxu0 0
    %6797 = vmatprep.subr.bf16.mxu0 0
    %6798 = vmatpush1.bf16.msra.mxu0 0
    %6799 = vmatprep.mubr.bf16.mxu0 0
    %6800 = vmatmul.mubr.bf16.gmra.mrb[0].mxu0 %v6711
    %v6801 = vpop.f32.mrb[0].mxu0
    %v6802 = vadd.f32 %v6717, %v6801
    %v6803 = vpop.f32.mrb[0].mxu0
    %v6804 = vpop.f32.mrb[0].mxu0
    %v6805 = vadd.f32 %v6717, %v6804
    %v6806 = vpop.f32.mrb[0].mxu0
    %6807 = vmatprep.mubr.bf16.mxu0 0
    %6808 = vmatmul.mubr.bf16.gmra.mrb[0].mxu0 %v6712
    %v6809 = vpop.f32.mrb[0].mxu0
    %v6810 = vadd.f32 %v6717, %v6809
    %v6811 = vpop.f32.mrb[0].mxu0
    %v6812 = vpop.f32.mrb[0].mxu0
    %v6813 = vpop.f32.mrb[0].mxu0
    %6814 = vdwg.mxu0
    %vm6815 = vcmask 523264
    %v6816 = vsel %vm6815, %v6802, -inf
    %6817 = vmax.xlane.f32.xlu0 %v6816
    %v6818 = vpop.xlane.xlu0 %6817
    %v6819 = vsel %vm6815, %v6805, -inf
    %6820 = vmax.xlane.f32.xlu0 %v6819
    %v6821 = vpop.xlane.xlu0 %6820
    %vm6822 = vcmask 519168
    %v6823 = vsel %vm6822, %v6810, -inf
    %6824 = vmax.xlane.f32.xlu0 %v6823
    %v6825 = vpop.xlane.xlu0 %6824
    %v6826 = vsub.f32 %v6802, %v6818
    %v6827 = vsub.f32 %v6805, %v6821
    %v6828 = vsub.f32 %v6810, %v6825
    %v6829 = vmul.f32 %v6826, 1.442695
    %v6830 = vpow.pop %v6829
    %v6831 = vmul.f32 %v6827, 1.442695
    %v6832 = vpow.pop %v6831
    %v6833 = vmul.f32 %v6828, 1.442695
    %v6834 = vpow.pop %v6833
    %v6835 = vsel %vm6815, %v6830, 0.0
    %6836 = vadd.xlane.f32.xlu0 %v6835
    %v6837 = vpop.xlane.xlu0 %6836
    %v6838 = vsel %vm6815, %v6832, 0.0
    %6839 = vadd.xlane.f32.xlu0 %v6838
    %v6840 = vpop.xlane.xlu0 %6839
    %v6841 = vsel %vm6822, %v6834, 0.0
    %6842 = vadd.xlane.f32.xlu0 %v6841
    %v6843 = vpop.xlane.xlu0 %6842
    %v6844 = vlog2.pop %v6837
    %v6845 = vmul.f32 %v6844, 0.6931472
    %v6846 = vlog2.pop %v6840
    %v6847 = vmul.f32 %v6846, 0.6931472
    %v6848 = vlog2.pop %v6843
    %v6849 = vmul.f32 %v6848, 0.6931472
    %v6850 = vadd.f32 %v6818, %v6845
    %v6851 = vadd.f32 %v6821, %v6847
    %v6852 = vadd.f32 %v6825, %v6849
    %vm6853 = vcmp.eq.s32.totalorder %v353, 9
    %vm6854 = vcmp.eq.s32.totalorder %v354, 9
    %vm6855 = vcmp.eq.s32.totalorder %v355, 9
    %s6856 = sld [smem:[#allocation32]]
    %v6857 = vstv %s6856
    %v6858 = vsel %vm6853, %v6857, 0
    %v6859 = vsel %vm6854, %v6857, 0
    %v6860 = vsel %vm6855, %v6857, 0
    %v6861 = vsel %vm6853, 1.0, 0.0
    %v6862 = vsel %vm6854, 1.0, 0.0
    %v6863 = vsel %vm6855, 1.0, 0.0
    %v6864 = vadd.f32 %v6861, 0.0
    %v6865 = vadd.f32 %v6862, 0.0
    %v6866 = vadd.f32 %v6863, 0.0
    %vm6867 = vcmp.eq.s32.totalorder %v353, 19
    %vm6868 = vcmp.eq.s32.totalorder %v354, 19
    %vm6869 = vcmp.eq.s32.totalorder %v355, 19
    %s6870 = sld [smem:[#allocation32 + $0x1]]
    %v6871 = vstv %s6870
    %v6872 = vsel %vm6867, %v6871, %v6858
    %v6873 = vsel %vm6868, %v6871, %v6859
    %v6874 = vsel %vm6869, %v6871, %v6860
    %v6875 = vsel %vm6867, 1.0, 0.0
    %v6876 = vsel %vm6868, 1.0, 0.0
    %v6877 = vsel %vm6869, 1.0, 0.0
    %v6878 = vadd.f32 %v6864, %v6875
    %v6879 = vadd.f32 %v6865, %v6876
    %v6880 = vadd.f32 %v6866, %v6877
    %vm6881 = vcmp.eq.s32.totalorder %v335, %v6872
    %vm6882 = vcmp.eq.s32.totalorder %v335, %v6873
    %vm6883 = vcmp.eq.s32.totalorder %v335, %v6874
    %v6884 = vsel %vm6881, %v6802, 0.0
    %v6885 = vsel %vm6882, %v6805, 0.0
    %v6886 = vsel %vm6883, %v6810, 0.0
    %v6887 = vsel %vm6815, %v6884, 0.0
    %6888 = vadd.xlane.f32.xlu0 %v6887
    %v6889 = vpop.xlane.xlu0 %6888
    %v6890 = vsel %vm6815, %v6885, 0.0
    %6891 = vadd.xlane.f32.xlu0 %v6890
    %v6892 = vpop.xlane.xlu0 %6891
    %v6893 = vsel %vm6822, %v6886, 0.0
    %6894 = vadd.xlane.f32.xlu0 %v6893
    %v6895 = vpop.xlane.xlu0 %6894
    %v6896 = vsub.f32 %v6850, %v6889
    %v6897 = vsub.f32 %v6851, %v6892
    %v6898 = vsub.f32 %v6852, %v6895
    %v6899 = vmul.f32 %v6896, %v6878
    %v6900 = vmul.f32 %v6897, %v6879
    %v6901 = vmul.f32 %v6898, %v6880
    %v6902 = vadd.f32 %v6899, %v6900
    %v6903 = vsel %vm961, %v6901, 0.0
    %v6904 = vadd.f32 %v6902, %v6903
    %v6905 = vrot.slane %v6904, 4
    %v6906 = vadd.f32 %v6904, %v6905
    %v6907 = vrot.slane %v6906, 2
    %v6908 = vadd.f32 %v6906, %v6907
    %v6909 = vrot.slane %v6908, 1
    %v6910 = vadd.f32 %v6908, %v6909
    %v6911 = vmul.f32 %v6910, 0.5
    %vm6912 = vcmask 0
    %6913 = vst.msk [vmem:[#allocation33] sm:$0x1] %vm6912, %v6911
    // Predicated region
    $region174: #{node_gpt_forward.1} parent=1 // pred_check
      _
    $region175: #{node_gpt_forward.1} parent=1 // pred_check_branch
      %6915 = sbr.rel (0) target = $region177
    $region176: #{node_gpt_forward.1} parent=1 // pred_region
      %s6917 = ssub.s32 16, 16
      %6918 = vsyncadd [#allocation4], %s6917
      %s6920 = sshll.u32 [#allocation33], 4
      %s6921 = int_to_ptr.vmem [resolvable:$true] %s6920
      %6923 = dma.vmem_to_hbm [thread:$0]  %s6921, 16, %s24, [#allocation4]
    $region177: #{node_gpt_forward.1} parent=1 // pred_fallthru
      _
    // Predicated region
    $region178: #{node_gpt_forward.1} parent=1 // pred_check
      _
    $region179: #{node_gpt_forward.1} parent=1 // pred_check_branch
      %6925 = sbr.rel (0) target = $region181
    $region180: #{node_gpt_forward.1} parent=1 // pred_region
      %6926 = dma.done [#allocation4], 16
    $region181: #{node_gpt_forward.1} parent=1 // pred_fallthru
      _
    %6927 = vsyncpa [#allocation3], 1
    %6928 = vsyncpa [#allocation7], 1
    %6929 = vsyncpa [#allocation10], 1
    %6930 = vsyncpa [#allocation13], 1
    %6931 = vsyncpa [#allocation16], 1
    %6932 = vsyncpa [#allocation19], 1
    %6933 = vsyncpa [#allocation22], 1
    %6934 = vsyncpa [#allocation25], 1
    %6935 = vsyncpa [#allocation28], 1
    %6936 = vsyncpa [#allocation31], 1
    %6937 = vsyncpa [#allocation4], 1
    %6938 = vsyncpa [#allocation5], 1

</llo_original>
